<compile_context>
chip_gen: v6e
topology: v6e:2x2x1
jax: 0.10.0
libtpu: 0.0.40
codegen_flags: <defaults>
</compile_context>

<pallas_src>
import functools
import math

import jax
import jax.numpy as jnp
from jax import lax
from jax.experimental import pallas as pl
from jax.experimental.pallas import tpu as pltpu


_VMEM = functools.partial(pl.BlockSpec, memory_space=pltpu.MemorySpace.VMEM)


def _pcall(kernel, out_shape, scratch_shapes, *args):
    """Single-block pallas_call: every operand is one full-array VMEM tile."""
    return pl.pallas_call(
        kernel,
        out_shape=out_shape,
        in_specs=[_VMEM() for _ in args],
        out_specs=_VMEM(),
        scratch_shapes=list(scratch_shapes),
    )(*args)


# ----------------------- kernel 1: fused CNN frontend (conv+relu+pool x2) -------------
def _make_cnn_kernel(B, L, C1, C2):
    L2, L4 = L // 2, L // 4

    def kernel(xp_ref, w1_ref, b1_ref, w2_ref, b2_ref, o_ref, h1p_ref):
        f32 = jnp.float32
        # conv1 (Cin=1, k=3, pad=1): 3 shifted broadcast FMAs on the VPU (no im2col).
        y1 = jnp.zeros((B, L, C1), f32) + b1_ref[...]
        for k in range(3):
            y1 = y1 + xp_ref[:, k:k + L, :] * w1_ref[k:k + 1, :]
        y1 = jnp.maximum(y1, 0.0)

        # maxpool(2) -> zero-padded VMEM scratch (rows 1..L2 hold the pooled map).
        h1p_ref[...] = jnp.zeros((B, L2 + 2, C1), f32)
        for j in range(L2):
            h1p_ref[:, j + 1:j + 2, :] = jnp.maximum(
                y1[:, 2 * j:2 * j + 1, :], y1[:, 2 * j + 1:2 * j + 2, :])

        # conv2 (k=3, pad=1) as 3 shifted matmuls, then ReLU + maxpool(2).
        b2 = b2_ref[...]
        for b in range(B):
            y2 = jnp.zeros((L2, C2), f32) + b2
            for k in range(3):
                y2 = y2 + jnp.dot(h1p_ref[b, k:k + L2, :],
                                  w2_ref[k * C1:(k + 1) * C1, :],
                                  preferred_element_type=f32)
            y2 = jnp.maximum(y2, 0.0)
            for j in range(L4):
                o_ref[b * L4 + j:b * L4 + j + 1, :] = jnp.maximum(
                    y2[2 * j:2 * j + 1, :], y2[2 * j + 1:2 * j + 2, :])

    return kernel


# ----------------------- kernel 2: fused TransformerEncoderLayer ----------------------
def _make_transformer_kernel(B, S, D, num_heads):
    hd = D // num_heads
    scale = 1.0 / math.sqrt(hd)

    def _layernorm(z, g, b):
        mu = jnp.mean(z, axis=-1, keepdims=True)
        var = jnp.mean(jnp.square(z - mu), axis=-1, keepdims=True)
        return (z - mu) * lax.rsqrt(var + 1e-5) * g + b

    def kernel(x_ref, qkv_w_ref, qkv_b_ref, out_w_ref, out_b_ref,
               ff1_w_ref, ff1_b_ref, ff2_w_ref, ff2_b_ref,
               ln1_g_ref, ln1_b_ref, ln2_g_ref, ln2_b_ref,
               o_ref, attn_ref):
        f32 = jnp.float32
        x = x_ref[...]                                              # (B*S, D), b-major
        qkv = (jnp.dot(x, qkv_w_ref[...], preferred_element_type=f32)
               + qkv_b_ref[...])                                    # (B*S, 3D)
        q = qkv[:, 0:D] * scale
        k = qkv[:, D:2 * D]
        v = qkv[:, 2 * D:3 * D]
        # multi-head self-attention; per-head results assembled in VMEM scratch,
        # only the fused layer output ever leaves the kernel.
        for b in range(B):
            r = slice(b * S, (b + 1) * S)
            for h in range(num_heads):
                c = slice(h * hd, (h + 1) * hd)
                qh, kh, vh = q[r, c], k[r, c], v[r, c]              # (S, hd)
                s = lax.dot_general(qh, kh, (((1,), (1,)), ((), ())),
                                    preferred_element_type=f32)     # (S, S)
                s = s - jnp.max(s, axis=-1, keepdims=True)
                e = jnp.exp(s)
                p = e * pl.reciprocal(jnp.sum(e, axis=-1, keepdims=True),
                                      approx=True)
                attn_ref[r, c] = jnp.dot(p, vh, preferred_element_type=f32)
        attn = (jnp.dot(attn_ref[...], out_w_ref[...], preferred_element_type=f32)
                + out_b_ref[...])
        x1 = _layernorm(x + attn, ln1_g_ref[...], ln1_b_ref[...])   # post-norm
        ff = jnp.maximum(
            jnp.dot(x1, ff1_w_ref[...], preferred_element_type=f32) + ff1_b_ref[...],
            0.0)
        ff = jnp.dot(ff, ff2_w_ref[...], preferred_element_type=f32) + ff2_b_ref[...]
        o_ref[...] = _layernorm(x1 + ff, ln2_g_ref[...], ln2_b_ref[...])

    return kernel


# ----------------------- kernel 3: 2-layer BiLSTM + attention pooling + FC ------------
def _make_lstm_head_kernel(B, S, H):
    G = 4 * H

    def kernel(x_ref,
               wih0_ref, whhf0_ref, whhr0_ref, b0_ref,
               wih1_ref, whhf1_ref, whhr1_ref, b1_ref,
               att_w_ref, att_b_ref, fc_w_ref, fc_b_ref,
               o_ref, gx_ref, seq_ref):
        f32 = jnp.float32
        # Gate nonlinearity mask (hoisted): tanh on the "g" block, sigmoid elsewhere.
        lane = lax.broadcasted_iota(jnp.int32, (B, G), 1)
        is_g = jnp.logical_and(lane >= 2 * H, lane < 3 * H)

        def step(gt, h, c, whh):
            g = gt + jnp.dot(h, whh, preferred_element_type=f32)    # (B, 4H)
            a = jnp.where(is_g, jnp.tanh(g), jax.nn.sigmoid(g))
            i, f = a[:, 0:H], a[:, H:2 * H]
            gg, o = a[:, 2 * H:3 * H], a[:, 3 * H:4 * H]
            c_new = f * c + i * gg
            h_new = o * jnp.tanh(c_new)
            return h_new, c_new

        def run_layer(whh_f, whh_r):
            # forward direction -> seq_ref[:, t, 0:H]
            h = jnp.zeros((B, H), f32)
            c = jnp.zeros((B, H), f32)
            for t in range(S):
                h, c = step(gx_ref[:, t, 0:G], h, c, whh_f)
                seq_ref[:, t, 0:H] = h
            # backward direction -> seq_ref[:, t, H:2H]
            h = jnp.zeros((B, H), f32)
            c = jnp.zeros((B, H), f32)
            for t in range(S - 1, -1, -1):
                h, c = step(gx_ref[:, t, G:2 * G], h, c, whh_r)
                seq_ref[:, t, H:2 * H] = h

        # ---- layer 0: both-direction input projections hoisted out of the loop ----
        for b in range(B):
            gx_ref[b, :, :] = (
                jnp.dot(x_ref[b * S:(b + 1) * S, :], wih0_ref[...],
                        preferred_element_type=f32) + b0_ref[...])
        run_layer(whhf0_ref[...], whhr0_ref[...])

        # ---- layer 1 (input = layer-0 output kept in VMEM scratch) ----
        for b in range(B):
            gx_ref[b, :, :] = (
                jnp.dot(seq_ref[b], wih1_ref[...],
                        preferred_element_type=f32) + b1_ref[...])
        run_layer(whhf1_ref[...], whhr1_ref[...])

        # ---- global attention pooling + final FC (dropout = identity) ----
        xo = seq_ref[...]                                            # (B, S, 2H)
        sc = (jnp.sum(xo * att_w_ref[...], axis=-1, keepdims=True)
              + att_b_ref[...])                                      # (B, S, 1)
        sc = sc - jnp.max(sc, axis=1, keepdims=True)                 # softmax over S
        e = jnp.exp(sc)
        wgt = e * pl.reciprocal(jnp.sum(e, axis=1, keepdims=True), approx=True)
        ctx = jnp.sum(xo * wgt, axis=1)                              # (B, 2H)
        o_ref[...] = (jnp.dot(ctx, fc_w_ref[...], preferred_element_type=f32)
                      + fc_b_ref[...])

    return kernel


# --------------------------------- parameters -----------------------------------------
def init_params(key, hidden_size=64, num_classes=2):
    """Raw parameters in PyTorch layouts (as the nn.Module state_dict holds them)."""
    keys = iter(jax.random.split(key, 64))

    def rnd(shape, scale=0.1):
        return scale * jax.random.normal(next(keys), shape, jnp.float32)

    D, H = 32, hidden_size
    p = {
        'conv1_w': rnd((16, 1, 3)), 'conv1_b': rnd((16,)),
        'conv2_w': rnd((32, 16, 3)), 'conv2_b': rnd((32,)),
        'in_proj_w': rnd((3 * D, D)), 'in_proj_b': rnd((3 * D,)),
        'out_proj_w': rnd((D, D)), 'out_proj_b': rnd((D,)),
        'ff1_w': rnd((128, D)), 'ff1_b': rnd((128,)),
        'ff2_w': rnd((D, 128)), 'ff2_b': rnd((D,)),
        'ln1_g': jnp.ones((D,), jnp.float32), 'ln1_b': jnp.zeros((D,), jnp.float32),
        'ln2_g': jnp.ones((D,), jnp.float32), 'ln2_b': jnp.zeros((D,), jnp.float32),
        'att_w': rnd((1, 2 * H)), 'att_b': rnd((1,)),
        'fc_w': rnd((num_classes, 2 * H)), 'fc_b': rnd((num_classes,)),
    }
    lstm = []
    in_sizes = [D, 2 * H]
    for layer in range(2):
        In = in_sizes[layer]
        dirs = []
        for _ in range(2):   # forward, reverse
            dirs.append((rnd((4 * H, In)), rnd((4 * H, H)),
                         rnd((4 * H,)), rnd((4 * H,))))
        lstm.append(dirs)
    p['lstm'] = lstm
    return p


def prep_params(p, hidden_size=64):
    """One-time conversion to kernel-ready layouts (all transposes happen here)."""
    H = hidden_size
    D = p['in_proj_w'].shape[1]
    C1 = p['conv1_w'].shape[0]
    C2 = p['conv2_w'].shape[0]
    q = {
        # conv weights flattened (k-major, cin-minor) rows, cout in lanes.
        'conv1_w': jnp.transpose(p['conv1_w'], (2, 1, 0)).reshape(3, C1),
        'conv1_b': p['conv1_b'].reshape(1, C1),
        'conv2_w': jnp.transpose(p['conv2_w'], (2, 1, 0)).reshape(3 * C1, C2),
        'conv2_b': p['conv2_b'].reshape(1, C2),
        # transformer encoder layer
        'qkv_w': p['in_proj_w'].T, 'qkv_b': p['in_proj_b'].reshape(1, 3 * D),
        'out_w': p['out_proj_w'].T, 'out_b': p['out_proj_b'].reshape(1, D),
        'ff1_w': p['ff1_w'].T, 'ff1_b': p['ff1_b'].reshape(1, -1),
        'ff2_w': p['ff2_w'].T, 'ff2_b': p['ff2_b'].reshape(1, D),
        'ln1_g': p['ln1_g'].reshape(1, D), 'ln1_b': p['ln1_b'].reshape(1, D),
        'ln2_g': p['ln2_g'].reshape(1, D), 'ln2_b': p['ln2_b'].reshape(1, D),
        # attention pooling + classifier head
        'att_w': p['att_w'].reshape(1, 1, 2 * H),
        'att_b': p['att_b'].reshape(1, 1, 1),
        'fc_w': p['fc_w'].T, 'fc_b': p['fc_b'].reshape(1, -1),
    }
    for layer in range(2):
        (wf_ih, wf_hh, bf_ih, bf_hh) = p['lstm'][layer][0]
        (wr_ih, wr_hh, br_ih, br_hh) = p['lstm'][layer][1]
        q[f'wih{layer}'] = jnp.concatenate([wf_ih.T, wr_ih.T], axis=1)   # (In, 8H)
        q[f'whhf{layer}'] = wf_hh.T                                      # (H, 4H)
        q[f'whhr{layer}'] = wr_hh.T
        q[f'b{layer}'] = jnp.concatenate(
            [bf_ih + bf_hh, br_ih + br_hh]).reshape(1, 8 * H)
    return q


# --------------------------------- full forward ----------------------------------------
def forward(params, x, num_heads=4):
    """x: (B, 1, L) NCW float32, matching the PyTorch Conv1d input."""
    B, _, L = x.shape
    assert L % 4 == 0, "two MaxPool1d(2) stages need L divisible by 4"
    S = L // 4
    C1 = params['conv1_w'].shape[1]
    C2 = params['conv2_w'].shape[1]
    D = params['qkv_w'].shape[0]
    assert C2 == D and D % num_heads == 0
    H = params['whhf0'].shape[0]
    nc = params['fc_b'].shape[1]

    # one-time input glue: NCW -> channels-last, zero-pad the conv1 halo.
    xp = jnp.pad(jnp.transpose(x, (0, 2, 1)), ((0, 0), (1, 1), (0, 0)))

    y = _pcall(_make_cnn_kernel(B, L, C1, C2),
               jax.ShapeDtypeStruct((B * S, D), jnp.float32),
               [pltpu.VMEM((B, L // 2 + 2, C1), jnp.float32)],
               xp, params['conv1_w'], params['conv1_b'],
               params['conv2_w'], params['conv2_b'])

    y = _pcall(_make_transformer_kernel(B, S, D, num_heads),
               jax.ShapeDtypeStruct((B * S, D), jnp.float32),
               [pltpu.VMEM((B * S, D), jnp.float32)],
               y, params['qkv_w'], params['qkv_b'],
               params['out_w'], params['out_b'],
               params['ff1_w'], params['ff1_b'],
               params['ff2_w'], params['ff2_b'],
               params['ln1_g'], params['ln1_b'],
               params['ln2_g'], params['ln2_b'])

    logits = _pcall(_make_lstm_head_kernel(B, S, H),
                    jax.ShapeDtypeStruct((B, nc), jnp.float32),
                    [pltpu.VMEM((B, S, 8 * H), jnp.float32),
                     pltpu.VMEM((B, S, 2 * H), jnp.float32)],
                    y,
                    params['wih0'], params['whhf0'], params['whhr0'], params['b0'],
                    params['wih1'], params['whhf1'], params['whhr1'], params['b1'],
                    params['att_w'], params['att_b'],
                    params['fc_w'], params['fc_b'])
    return logits


if __name__ == "__main__":
    key = jax.random.PRNGKey(0)
    k_param, k_x = jax.random.split(key)
    B, L = 2, 16                        # L=16 -> sequence length 4 after two MaxPool1d(2)
    x = jax.random.normal(k_x, (B, 1, L), jnp.float32)
    raw = init_params(k_param, hidden_size=64, num_classes=2)
    params = prep_params(raw, hidden_size=64)

    run = jax.jit(forward)
    out = jax.block_until_ready(run(params, x))
    assert out.shape == (B, 2)
    print("KERNEL_OK")
</pallas_src>

<mosaic_0001>
module attributes {stable_mosaic.version = 11 : i64} {
  func.func @kernel(%arg0: memref<2x18x1xf32, #tpu.memory_space<vmem>>, %arg1: memref<3x16xf32, #tpu.memory_space<vmem>>, %arg2: memref<1x16xf32, #tpu.memory_space<vmem>>, %arg3: memref<48x32xf32, #tpu.memory_space<vmem>>, %arg4: memref<1x32xf32, #tpu.memory_space<vmem>>, %arg5: memref<8x32xf32, #tpu.memory_space<vmem>>, %arg6: memref<2x10x16xf32, #tpu.memory_space<vmem>>) attributes {dimension_semantics = [], scalar_prefetch = 0 : i64, scratch_operands = 1 : i64, tpu.core_type = #tpu.core_type<tc>} {
    %cst = arith.constant 0.000000e+00 : f32
    %0 = vector.broadcast %cst : f32 to vector<2x16x16xf32>
    %c0 = arith.constant 0 : index
    %c0_0 = arith.constant 0 : index
    %1 = vector.load %arg2[%c0, %c0_0] : memref<1x16xf32, #tpu.memory_space<vmem>>, vector<1x16xf32>
    %2 = vector.shape_cast %1 : vector<1x16xf32> to vector<1x1x16xf32>
    %3 = vector.broadcast %2 : vector<1x1x16xf32> to vector<2x16x16xf32>
    %4 = arith.addf %0, %3 : vector<2x16x16xf32>
    %c0_1 = arith.constant 0 : index
    %c0_2 = arith.constant 0 : index
    %c0_3 = arith.constant 0 : index
    %5 = vector.load %arg0[%c0_1, %c0_2, %c0_3] : memref<2x18x1xf32, #tpu.memory_space<vmem>>, vector<2x16x1xf32>
    %c0_4 = arith.constant 0 : index
    %c0_5 = arith.constant 0 : index
    %6 = vector.load %arg1[%c0_4, %c0_5] : memref<3x16xf32, #tpu.memory_space<vmem>>, vector<1x16xf32>
    %7 = vector.shape_cast %6 : vector<1x16xf32> to vector<1x1x16xf32>
    %8 = vector.broadcast %5 : vector<2x16x1xf32> to vector<2x16x16xf32>
    %9 = vector.broadcast %7 : vector<1x1x16xf32> to vector<2x16x16xf32>
    %10 = arith.mulf %8, %9 : vector<2x16x16xf32>
    %11 = arith.addf %4, %10 : vector<2x16x16xf32>
    %c0_6 = arith.constant 0 : index
    %c1 = arith.constant 1 : index
    %c0_7 = arith.constant 0 : index
    %12 = vector.load %arg0[%c0_6, %c1, %c0_7] : memref<2x18x1xf32, #tpu.memory_space<vmem>>, vector<2x16x1xf32>
    %c1_8 = arith.constant 1 : index
    %c0_9 = arith.constant 0 : index
    %13 = vector.load %arg1[%c1_8, %c0_9] : memref<3x16xf32, #tpu.memory_space<vmem>>, vector<1x16xf32>
    %14 = vector.shape_cast %13 : vector<1x16xf32> to vector<1x1x16xf32>
    %15 = vector.broadcast %12 : vector<2x16x1xf32> to vector<2x16x16xf32>
    %16 = vector.broadcast %14 : vector<1x1x16xf32> to vector<2x16x16xf32>
    %17 = arith.mulf %15, %16 : vector<2x16x16xf32>
    %18 = arith.addf %11, %17 : vector<2x16x16xf32>
    %c0_10 = arith.constant 0 : index
    %c2 = arith.constant 2 : index
    %c0_11 = arith.constant 0 : index
    %19 = vector.load %arg0[%c0_10, %c2, %c0_11] : memref<2x18x1xf32, #tpu.memory_space<vmem>>, vector<2x16x1xf32>
    %c2_12 = arith.constant 2 : index
    %c0_13 = arith.constant 0 : index
    %20 = vector.load %arg1[%c2_12, %c0_13] : memref<3x16xf32, #tpu.memory_space<vmem>>, vector<1x16xf32>
    %21 = vector.shape_cast %20 : vector<1x16xf32> to vector<1x1x16xf32>
    %22 = vector.broadcast %19 : vector<2x16x1xf32> to vector<2x16x16xf32>
    %23 = vector.broadcast %21 : vector<1x1x16xf32> to vector<2x16x16xf32>
    %24 = arith.mulf %22, %23 : vector<2x16x16xf32>
    %25 = arith.addf %18, %24 : vector<2x16x16xf32>
    %cst_14 = arith.constant 0.000000e+00 : f32
    %26 = vector.broadcast %cst_14 : f32 to vector<2x16x16xf32>
    %27 = arith.maximumf %25, %26 : vector<2x16x16xf32>
    %cst_15 = arith.constant 0.000000e+00 : f32
    %28 = vector.broadcast %cst_15 : f32 to vector<2x10x16xf32>
    %c0_16 = arith.constant 0 : index
    %c0_17 = arith.constant 0 : index
    %c0_18 = arith.constant 0 : index
    %29 = vector.load %arg6[%c0_16, %c0_17, %c0_18] : memref<2x10x16xf32, #tpu.memory_space<vmem>>, vector<2x10x16xf32>
    tpu.vector_store %arg6[%c0_16, %c0_17, %c0_18], %28 {strides = array<i32>} : memref<2x10x16xf32, #tpu.memory_space<vmem>>, vector<2x10x16xf32>,
    %30 = vector.extract_strided_slice %27 {offsets = [0, 0, 0], sizes = [2, 1, 16], strides = [1, 1, 1]} : vector<2x16x16xf32> to vector<2x1x16xf32>
    %31 = vector.extract_strided_slice %27 {offsets = [0, 1, 0], sizes = [2, 1, 16], strides = [1, 1, 1]} : vector<2x16x16xf32> to vector<2x1x16xf32>
    %32 = arith.maximumf %30, %31 : vector<2x1x16xf32>
    %c0_19 = arith.constant 0 : index
    %c1_20 = arith.constant 1 : index
    %c0_21 = arith.constant 0 : index
    %33 = vector.load %arg6[%c0_19, %c1_20, %c0_21] : memref<2x10x16xf32, #tpu.memory_space<vmem>>, vector<2x1x16xf32>
    tpu.vector_store %arg6[%c0_19, %c1_20, %c0_21], %32 {strides = array<i32>} : memref<2x10x16xf32, #tpu.memory_space<vmem>>, vector<2x1x16xf32>,
    %34 = vector.extract_strided_slice %27 {offsets = [0, 2, 0], sizes = [2, 1, 16], strides = [1, 1, 1]} : vector<2x16x16xf32> to vector<2x1x16xf32>
    %35 = vector.extract_strided_slice %27 {offsets = [0, 3, 0], sizes = [2, 1, 16], strides = [1, 1, 1]} : vector<2x16x16xf32> to vector<2x1x16xf32>
    %36 = arith.maximumf %34, %35 : vector<2x1x16xf32>
    %c0_22 = arith.constant 0 : index
    %c2_23 = arith.constant 2 : index
    %c0_24 = arith.constant 0 : index
    %37 = vector.load %arg6[%c0_22, %c2_23, %c0_24] : memref<2x10x16xf32, #tpu.memory_space<vmem>>, vector<2x1x16xf32>
    tpu.vector_store %arg6[%c0_22, %c2_23, %c0_24], %36 {strides = array<i32>} : memref<2x10x16xf32, #tpu.memory_space<vmem>>, vector<2x1x16xf32>,
    %38 = vector.extract_strided_slice %27 {offsets = [0, 4, 0], sizes = [2, 1, 16], strides = [1, 1, 1]} : vector<2x16x16xf32> to vector<2x1x16xf32>
    %39 = vector.extract_strided_slice %27 {offsets = [0, 5, 0], sizes = [2, 1, 16], strides = [1, 1, 1]} : vector<2x16x16xf32> to vector<2x1x16xf32>
    %40 = arith.maximumf %38, %39 : vector<2x1x16xf32>
    %c0_25 = arith.constant 0 : index
    %c3 = arith.constant 3 : index
    %c0_26 = arith.constant 0 : index
    %41 = vector.load %arg6[%c0_25, %c3, %c0_26] : memref<2x10x16xf32, #tpu.memory_space<vmem>>, vector<2x1x16xf32>
    tpu.vector_store %arg6[%c0_25, %c3, %c0_26], %40 {strides = array<i32>} : memref<2x10x16xf32, #tpu.memory_space<vmem>>, vector<2x1x16xf32>,
    %42 = vector.extract_strided_slice %27 {offsets = [0, 6, 0], sizes = [2, 1, 16], strides = [1, 1, 1]} : vector<2x16x16xf32> to vector<2x1x16xf32>
    %43 = vector.extract_strided_slice %27 {offsets = [0, 7, 0], sizes = [2, 1, 16], strides = [1, 1, 1]} : vector<2x16x16xf32> to vector<2x1x16xf32>
    %44 = arith.maximumf %42, %43 : vector<2x1x16xf32>
    %c0_27 = arith.constant 0 : index
    %c4 = arith.constant 4 : index
    %c0_28 = arith.constant 0 : index
    %45 = vector.load %arg6[%c0_27, %c4, %c0_28] : memref<2x10x16xf32, #tpu.memory_space<vmem>>, vector<2x1x16xf32>
    tpu.vector_store %arg6[%c0_27, %c4, %c0_28], %44 {strides = array<i32>} : memref<2x10x16xf32, #tpu.memory_space<vmem>>, vector<2x1x16xf32>,
    %46 = vector.extract_strided_slice %27 {offsets = [0, 8, 0], sizes = [2, 1, 16], strides = [1, 1, 1]} : vector<2x16x16xf32> to vector<2x1x16xf32>
    %47 = vector.extract_strided_slice %27 {offsets = [0, 9, 0], sizes = [2, 1, 16], strides = [1, 1, 1]} : vector<2x16x16xf32> to vector<2x1x16xf32>
    %48 = arith.maximumf %46, %47 : vector<2x1x16xf32>
    %c0_29 = arith.constant 0 : index
    %c5 = arith.constant 5 : index
    %c0_30 = arith.constant 0 : index
    %49 = vector.load %arg6[%c0_29, %c5, %c0_30] : memref<2x10x16xf32, #tpu.memory_space<vmem>>, vector<2x1x16xf32>
    tpu.vector_store %arg6[%c0_29, %c5, %c0_30], %48 {strides = array<i32>} : memref<2x10x16xf32, #tpu.memory_space<vmem>>, vector<2x1x16xf32>,
    %50 = vector.extract_strided_slice %27 {offsets = [0, 10, 0], sizes = [2, 1, 16], strides = [1, 1, 1]} : vector<2x16x16xf32> to vector<2x1x16xf32>
    %51 = vector.extract_strided_slice %27 {offsets = [0, 11, 0], sizes = [2, 1, 16], strides = [1, 1, 1]} : vector<2x16x16xf32> to vector<2x1x16xf32>
    %52 = arith.maximumf %50, %51 : vector<2x1x16xf32>
    %c0_31 = arith.constant 0 : index
    %c6 = arith.constant 6 : index
    %c0_32 = arith.constant 0 : index
    %53 = vector.load %arg6[%c0_31, %c6, %c0_32] : memref<2x10x16xf32, #tpu.memory_space<vmem>>, vector<2x1x16xf32>
    tpu.vector_store %arg6[%c0_31, %c6, %c0_32], %52 {strides = array<i32>} : memref<2x10x16xf32, #tpu.memory_space<vmem>>, vector<2x1x16xf32>,
    %54 = vector.extract_strided_slice %27 {offsets = [0, 12, 0], sizes = [2, 1, 16], strides = [1, 1, 1]} : vector<2x16x16xf32> to vector<2x1x16xf32>
    %55 = vector.extract_strided_slice %27 {offsets = [0, 13, 0], sizes = [2, 1, 16], strides = [1, 1, 1]} : vector<2x16x16xf32> to vector<2x1x16xf32>
    %56 = arith.maximumf %54, %55 : vector<2x1x16xf32>
    %c0_33 = arith.constant 0 : index
    %c7 = arith.constant 7 : index
    %c0_34 = arith.constant 0 : index
    %57 = vector.load %arg6[%c0_33, %c7, %c0_34] : memref<2x10x16xf32, #tpu.memory_space<vmem>>, vector<2x1x16xf32>
    tpu.vector_store %arg6[%c0_33, %c7, %c0_34], %56 {strides = array<i32>} : memref<2x10x16xf32, #tpu.memory_space<vmem>>, vector<2x1x16xf32>,
    %58 = vector.extract_strided_slice %27 {offsets = [0, 14, 0], sizes = [2, 1, 16], strides = [1, 1, 1]} : vector<2x16x16xf32> to vector<2x1x16xf32>
    %59 = vector.extract_strided_slice %27 {offsets = [0, 15, 0], sizes = [2, 1, 16], strides = [1, 1, 1]} : vector<2x16x16xf32> to vector<2x1x16xf32>
    %60 = arith.maximumf %58, %59 : vector<2x1x16xf32>
    %c0_35 = arith.constant 0 : index
    %c8 = arith.constant 8 : index
    %c0_36 = arith.constant 0 : index
    %61 = vector.load %arg6[%c0_35, %c8, %c0_36] : memref<2x10x16xf32, #tpu.memory_space<vmem>>, vector<2x1x16xf32>
    tpu.vector_store %arg6[%c0_35, %c8, %c0_36], %60 {strides = array<i32>} : memref<2x10x16xf32, #tpu.memory_space<vmem>>, vector<2x1x16xf32>,
    %c0_37 = arith.constant 0 : index
    %c0_38 = arith.constant 0 : index
    %62 = vector.load %arg4[%c0_37, %c0_38] : memref<1x32xf32, #tpu.memory_space<vmem>>, vector<1x32xf32>
    %cst_39 = arith.constant 0.000000e+00 : f32
    %63 = vector.broadcast %cst_39 : f32 to vector<8x32xf32>
    %64 = vector.broadcast %62 : vector<1x32xf32> to vector<8x32xf32>
    %65 = arith.addf %63, %64 : vector<8x32xf32>
    %c0_40 = arith.constant 0 : index
    %c0_41 = arith.constant 0 : index
    %c0_42 = arith.constant 0 : index
    %66 = vector.load %arg6[%c0_40, %c0_41, %c0_42] : memref<2x10x16xf32, #tpu.memory_space<vmem>>, vector<1x8x16xf32>
    %67 = vector.shape_cast %66 : vector<1x8x16xf32> to vector<8x16xf32>
    %c0_43 = arith.constant 0 : index
    %c0_44 = arith.constant 0 : index
    %68 = vector.load %arg3[%c0_43, %c0_44] : memref<48x32xf32, #tpu.memory_space<vmem>>, vector<16x32xf32>
    %cst_45 = arith.constant dense<0.000000e+00> : vector<8x32xf32>
    %69 = tpu.matmul %67, %68, %cst_45 {dimension_numbers = #tpu.dot_dimension_numbers<[1], [0], [0], [1], [0, 0, 1, 1], [], []>} : vector<8x16xf32>, vector<16x32xf32>, vector<8x32xf32> -> vector<8x32xf32>
    %70 = arith.addf %65, %69 : vector<8x32xf32>
    %c0_46 = arith.constant 0 : index
    %c1_47 = arith.constant 1 : index
    %c0_48 = arith.constant 0 : index
    %71 = vector.load %arg6[%c0_46, %c1_47, %c0_48] : memref<2x10x16xf32, #tpu.memory_space<vmem>>, vector<1x8x16xf32>
    %72 = vector.shape_cast %71 : vector<1x8x16xf32> to vector<8x16xf32>
    %c16 = arith.constant 16 : index
    %c0_49 = arith.constant 0 : index
    %73 = vector.load %arg3[%c16, %c0_49] : memref<48x32xf32, #tpu.memory_space<vmem>>, vector<16x32xf32>
    %cst_50 = arith.constant dense<0.000000e+00> : vector<8x32xf32>
    %74 = tpu.matmul %72, %73, %cst_50 {dimension_numbers = #tpu.dot_dimension_numbers<[1], [0], [0], [1], [0, 0, 1, 1], [], []>} : vector<8x16xf32>, vector<16x32xf32>, vector<8x32xf32> -> vector<8x32xf32>
    %75 = arith.addf %70, %74 : vector<8x32xf32>
    %c0_51 = arith.constant 0 : index
    %c2_52 = arith.constant 2 : index
    %c0_53 = arith.constant 0 : index
    %76 = vector.load %arg6[%c0_51, %c2_52, %c0_53] : memref<2x10x16xf32, #tpu.memory_space<vmem>>, vector<1x8x16xf32>
    %77 = vector.shape_cast %76 : vector<1x8x16xf32> to vector<8x16xf32>
    %c32 = arith.constant 32 : index
    %c0_54 = arith.constant 0 : index
    %78 = vector.load %arg3[%c32, %c0_54] : memref<48x32xf32, #tpu.memory_space<vmem>>, vector<16x32xf32>
    %cst_55 = arith.constant dense<0.000000e+00> : vector<8x32xf32>
    %79 = tpu.matmul %77, %78, %cst_55 {dimension_numbers = #tpu.dot_dimension_numbers<[1], [0], [0], [1], [0, 0, 1, 1], [], []>} : vector<8x16xf32>, vector<16x32xf32>, vector<8x32xf32> -> vector<8x32xf32>
    %80 = arith.addf %75, %79 : vector<8x32xf32>
    %cst_56 = arith.constant 0.000000e+00 : f32
    %81 = vector.broadcast %cst_56 : f32 to vector<8x32xf32>
    %82 = arith.maximumf %80, %81 : vector<8x32xf32>
    %83 = vector.extract_strided_slice %82 {offsets = [0, 0], sizes = [1, 32], strides = [1, 1]} : vector<8x32xf32> to vector<1x32xf32>
    %84 = vector.extract_strided_slice %82 {offsets = [1, 0], sizes = [1, 32], strides = [1, 1]} : vector<8x32xf32> to vector<1x32xf32>
    %85 = arith.maximumf %83, %84 : vector<1x32xf32>
    %c0_57 = arith.constant 0 : index
    %c0_58 = arith.constant 0 : index
    %86 = vector.load %arg5[%c0_57, %c0_58] : memref<8x32xf32, #tpu.memory_space<vmem>>, vector<1x32xf32>
    tpu.vector_store %arg5[%c0_57, %c0_58], %85 {strides = array<i32>} : memref<8x32xf32, #tpu.memory_space<vmem>>, vector<1x32xf32>,
    %87 = vector.extract_strided_slice %82 {offsets = [2, 0], sizes = [1, 32], strides = [1, 1]} : vector<8x32xf32> to vector<1x32xf32>
    %88 = vector.extract_strided_slice %82 {offsets = [3, 0], sizes = [1, 32], strides = [1, 1]} : vector<8x32xf32> to vector<1x32xf32>
    %89 = arith.maximumf %87, %88 : vector<1x32xf32>
    %c1_59 = arith.constant 1 : index
    %c0_60 = arith.constant 0 : index
    %90 = vector.load %arg5[%c1_59, %c0_60] : memref<8x32xf32, #tpu.memory_space<vmem>>, vector<1x32xf32>
    tpu.vector_store %arg5[%c1_59, %c0_60], %89 {strides = array<i32>} : memref<8x32xf32, #tpu.memory_space<vmem>>, vector<1x32xf32>,
    %91 = vector.extract_strided_slice %82 {offsets = [4, 0], sizes = [1, 32], strides = [1, 1]} : vector<8x32xf32> to vector<1x32xf32>
    %92 = vector.extract_strided_slice %82 {offsets = [5, 0], sizes = [1, 32], strides = [1, 1]} : vector<8x32xf32> to vector<1x32xf32>
    %93 = arith.maximumf %91, %92 : vector<1x32xf32>
    %c2_61 = arith.constant 2 : index
    %c0_62 = arith.constant 0 : index
    %94 = vector.load %arg5[%c2_61, %c0_62] : memref<8x32xf32, #tpu.memory_space<vmem>>, vector<1x32xf32>
    tpu.vector_store %arg5[%c2_61, %c0_62], %93 {strides = array<i32>} : memref<8x32xf32, #tpu.memory_space<vmem>>, vector<1x32xf32>,
    %95 = vector.extract_strided_slice %82 {offsets = [6, 0], sizes = [1, 32], strides = [1, 1]} : vector<8x32xf32> to vector<1x32xf32>
    %96 = vector.extract_strided_slice %82 {offsets = [7, 0], sizes = [1, 32], strides = [1, 1]} : vector<8x32xf32> to vector<1x32xf32>
    %97 = arith.maximumf %95, %96 : vector<1x32xf32>
    %c3_63 = arith.constant 3 : index
    %c0_64 = arith.constant 0 : index
    %98 = vector.load %arg5[%c3_63, %c0_64] : memref<8x32xf32, #tpu.memory_space<vmem>>, vector<1x32xf32>
    tpu.vector_store %arg5[%c3_63, %c0_64], %97 {strides = array<i32>} : memref<8x32xf32, #tpu.memory_space<vmem>>, vector<1x32xf32>,
    %cst_65 = arith.constant 0.000000e+00 : f32
    %99 = vector.broadcast %cst_65 : f32 to vector<8x32xf32>
    %100 = vector.broadcast %62 : vector<1x32xf32> to vector<8x32xf32>
    %101 = arith.addf %99, %100 : vector<8x32xf32>
    %c1_66 = arith.constant 1 : index
    %c0_67 = arith.constant 0 : index
    %c0_68 = arith.constant 0 : index
    %102 = vector.load %arg6[%c1_66, %c0_67, %c0_68] : memref<2x10x16xf32, #tpu.memory_space<vmem>>, vector<1x8x16xf32>
    %103 = vector.shape_cast %102 : vector<1x8x16xf32> to vector<8x16xf32>
    %c0_69 = arith.constant 0 : index
    %c0_70 = arith.constant 0 : index
    %104 = vector.load %arg3[%c0_69, %c0_70] : memref<48x32xf32, #tpu.memory_space<vmem>>, vector<16x32xf32>
    %cst_71 = arith.constant dense<0.000000e+00> : vector<8x32xf32>
    %105 = tpu.matmul %103, %104, %cst_71 {dimension_numbers = #tpu.dot_dimension_numbers<[1], [0], [0], [1], [0, 0, 1, 1], [], []>} : vector<8x16xf32>, vector<16x32xf32>, vector<8x32xf32> -> vector<8x32xf32>
    %106 = arith.addf %101, %105 : vector<8x32xf32>
    %c1_72 = arith.constant 1 : index
    %c1_73 = arith.constant 1 : index
    %c0_74 = arith.constant 0 : index
    %107 = vector.load %arg6[%c1_72, %c1_73, %c0_74] : memref<2x10x16xf32, #tpu.memory_space<vmem>>, vector<1x8x16xf32>
    %108 = vector.shape_cast %107 : vector<1x8x16xf32> to vector<8x16xf32>
    %c16_75 = arith.constant 16 : index
    %c0_76 = arith.constant 0 : index
    %109 = vector.load %arg3[%c16_75, %c0_76] : memref<48x32xf32, #tpu.memory_space<vmem>>, vector<16x32xf32>
    %cst_77 = arith.constant dense<0.000000e+00> : vector<8x32xf32>
    %110 = tpu.matmul %108, %109, %cst_77 {dimension_numbers = #tpu.dot_dimension_numbers<[1], [0], [0], [1], [0, 0, 1, 1], [], []>} : vector<8x16xf32>, vector<16x32xf32>, vector<8x32xf32> -> vector<8x32xf32>
    %111 = arith.addf %106, %110 : vector<8x32xf32>
    %c1_78 = arith.constant 1 : index
    %c2_79 = arith.constant 2 : index
    %c0_80 = arith.constant 0 : index
    %112 = vector.load %arg6[%c1_78, %c2_79, %c0_80] : memref<2x10x16xf32, #tpu.memory_space<vmem>>, vector<1x8x16xf32>
    %113 = vector.shape_cast %112 : vector<1x8x16xf32> to vector<8x16xf32>
    %c32_81 = arith.constant 32 : index
    %c0_82 = arith.constant 0 : index
    %114 = vector.load %arg3[%c32_81, %c0_82] : memref<48x32xf32, #tpu.memory_space<vmem>>, vector<16x32xf32>
    %cst_83 = arith.constant dense<0.000000e+00> : vector<8x32xf32>
    %115 = tpu.matmul %113, %114, %cst_83 {dimension_numbers = #tpu.dot_dimension_numbers<[1], [0], [0], [1], [0, 0, 1, 1], [], []>} : vector<8x16xf32>, vector<16x32xf32>, vector<8x32xf32> -> vector<8x32xf32>
    %116 = arith.addf %111, %115 : vector<8x32xf32>
    %cst_84 = arith.constant 0.000000e+00 : f32
    %117 = vector.broadcast %cst_84 : f32 to vector<8x32xf32>
    %118 = arith.maximumf %116, %117 : vector<8x32xf32>
    %119 = vector.extract_strided_slice %118 {offsets = [0, 0], sizes = [1, 32], strides = [1, 1]} : vector<8x32xf32> to vector<1x32xf32>
    %120 = vector.extract_strided_slice %118 {offsets = [1, 0], sizes = [1, 32], strides = [1, 1]} : vector<8x32xf32> to vector<1x32xf32>
    %121 = arith.maximumf %119, %120 : vector<1x32xf32>
    %c4_85 = arith.constant 4 : index
    %c0_86 = arith.constant 0 : index
    %122 = vector.load %arg5[%c4_85, %c0_86] : memref<8x32xf32, #tpu.memory_space<vmem>>, vector<1x32xf32>
    tpu.vector_store %arg5[%c4_85, %c0_86], %121 {strides = array<i32>} : memref<8x32xf32, #tpu.memory_space<vmem>>, vector<1x32xf32>,
    %123 = vector.extract_strided_slice %118 {offsets = [2, 0], sizes = [1, 32], strides = [1, 1]} : vector<8x32xf32> to vector<1x32xf32>
    %124 = vector.extract_strided_slice %118 {offsets = [3, 0], sizes = [1, 32], strides = [1, 1]} : vector<8x32xf32> to vector<1x32xf32>
    %125 = arith.maximumf %123, %124 : vector<1x32xf32>
    %c5_87 = arith.constant 5 : index
    %c0_88 = arith.constant 0 : index
    %126 = vector.load %arg5[%c5_87, %c0_88] : memref<8x32xf32, #tpu.memory_space<vmem>>, vector<1x32xf32>
    tpu.vector_store %arg5[%c5_87, %c0_88], %125 {strides = array<i32>} : memref<8x32xf32, #tpu.memory_space<vmem>>, vector<1x32xf32>,
    %127 = vector.extract_strided_slice %118 {offsets = [4, 0], sizes = [1, 32], strides = [1, 1]} : vector<8x32xf32> to vector<1x32xf32>
    %128 = vector.extract_strided_slice %118 {offsets = [5, 0], sizes = [1, 32], strides = [1, 1]} : vector<8x32xf32> to vector<1x32xf32>
    %129 = arith.maximumf %127, %128 : vector<1x32xf32>
    %c6_89 = arith.constant 6 : index
    %c0_90 = arith.constant 0 : index
    %130 = vector.load %arg5[%c6_89, %c0_90] : memref<8x32xf32, #tpu.memory_space<vmem>>, vector<1x32xf32>
    tpu.vector_store %arg5[%c6_89, %c0_90], %129 {strides = array<i32>} : memref<8x32xf32, #tpu.memory_space<vmem>>, vector<1x32xf32>,
    %131 = vector.extract_strided_slice %118 {offsets = [6, 0], sizes = [1, 32], strides = [1, 1]} : vector<8x32xf32> to vector<1x32xf32>
    %132 = vector.extract_strided_slice %118 {offsets = [7, 0], sizes = [1, 32], strides = [1, 1]} : vector<8x32xf32> to vector<1x32xf32>
    %133 = arith.maximumf %131, %132 : vector<1x32xf32>
    %c7_91 = arith.constant 7 : index
    %c0_92 = arith.constant 0 : index
    %134 = vector.load %arg5[%c7_91, %c0_92] : memref<8x32xf32, #tpu.memory_space<vmem>>, vector<1x32xf32>
    tpu.vector_store %arg5[%c7_91, %c0_92], %133 {strides = array<i32>} : memref<8x32xf32, #tpu.memory_space<vmem>>, vector<1x32xf32>,
    return
  }
}

module attributes {stable_mosaic.version = 11 : i64} {
  func.func @kernel(%arg0: memref<8x32xf32, #tpu.memory_space<vmem>>, %arg1: memref<32x96xf32, #tpu.memory_space<vmem>>, %arg2: memref<1x96xf32, #tpu.memory_space<vmem>>, %arg3: memref<32x32xf32, #tpu.memory_space<vmem>>, %arg4: memref<1x32xf32, #tpu.memory_space<vmem>>, %arg5: memref<32x128xf32, #tpu.memory_space<vmem>>, %arg6: memref<1x128xf32, #tpu.memory_space<vmem>>, %arg7: memref<128x32xf32, #tpu.memory_space<vmem>>, %arg8: memref<1x32xf32, #tpu.memory_space<vmem>>, %arg9: memref<1x32xf32, #tpu.memory_space<vmem>>, %arg10: memref<1x32xf32, #tpu.memory_space<vmem>>, %arg11: memref<1x32xf32, #tpu.memory_space<vmem>>, %arg12: memref<1x32xf32, #tpu.memory_space<vmem>>, %arg13: memref<8x32xf32, #tpu.memory_space<vmem>>, %arg14: memref<8x32xf32, #tpu.memory_space<vmem>>) attributes {dimension_semantics = [], scalar_prefetch = 0 : i64, scratch_operands = 1 : i64, tpu.core_type = #tpu.core_type<tc>} {
    %c0 = arith.constant 0 : index
    %c0_0 = arith.constant 0 : index
    %0 = vector.load %arg0[%c0, %c0_0] : memref<8x32xf32, #tpu.memory_space<vmem>>, vector<8x32xf32>
    %c0_1 = arith.constant 0 : index
    %c0_2 = arith.constant 0 : index
    %1 = vector.load %arg1[%c0_1, %c0_2] : memref<32x96xf32, #tpu.memory_space<vmem>>, vector<32x96xf32>
    %cst = arith.constant dense<0.000000e+00> : vector<8x96xf32>
    %2 = tpu.matmul %0, %1, %cst {dimension_numbers = #tpu.dot_dimension_numbers<[1], [0], [0], [1], [0, 0, 1, 1], [], []>} : vector<8x32xf32>, vector<32x96xf32>, vector<8x96xf32> -> vector<8x96xf32>
    %c0_3 = arith.constant 0 : index
    %c0_4 = arith.constant 0 : index
    %3 = vector.load %arg2[%c0_3, %c0_4] : memref<1x96xf32, #tpu.memory_space<vmem>>, vector<1x96xf32>
    %4 = vector.broadcast %3 : vector<1x96xf32> to vector<8x96xf32>
    %5 = arith.addf %2, %4 : vector<8x96xf32>
    %6 = vector.extract_strided_slice %5 {offsets = [0, 0], sizes = [8, 32], strides = [1, 1]} : vector<8x96xf32> to vector<8x32xf32>
    %cst_5 = arith.constant 0.353553385 : f32
    %7 = vector.broadcast %cst_5 : f32 to vector<8x32xf32>
    %8 = arith.mulf %6, %7 : vector<8x32xf32>
    %9 = vector.extract_strided_slice %5 {offsets = [0, 32], sizes = [8, 32], strides = [1, 1]} : vector<8x96xf32> to vector<8x32xf32>
    %10 = vector.extract_strided_slice %5 {offsets = [0, 64], sizes = [8, 32], strides = [1, 1]} : vector<8x96xf32> to vector<8x32xf32>
    %11 = vector.extract_strided_slice %8 {offsets = [0, 0], sizes = [4, 8], strides = [1, 1]} : vector<8x32xf32> to vector<4x8xf32>
    %12 = vector.extract_strided_slice %9 {offsets = [0, 0], sizes = [4, 8], strides = [1, 1]} : vector<8x32xf32> to vector<4x8xf32>
    %13 = vector.extract_strided_slice %10 {offsets = [0, 0], sizes = [4, 8], strides = [1, 1]} : vector<8x32xf32> to vector<4x8xf32>
    %cst_6 = arith.constant dense<0.000000e+00> : vector<4x4xf32>
    %14 = tpu.matmul %11, %12, %cst_6 {dimension_numbers = #tpu.dot_dimension_numbers<[1], [1], [0], [0], [0, 0, 1, 0], [], []>} : vector<4x8xf32>, vector<4x8xf32>, vector<4x4xf32> -> vector<4x4xf32>
    %cst_7 = arith.constant dense<0xFF800000> : vector<4xf32>
    %15 = vector.multi_reduction <maximumf>, %14, %cst_7 [1] : vector<4x4xf32> to vector<4xf32>
    %16 = vector.shape_cast %15 : vector<4xf32> to vector<4x1xf32>
    %17 = vector.broadcast %16 : vector<4x1xf32> to vector<4x4xf32>
    %18 = arith.subf %14, %17 : vector<4x4xf32>
    %19 = math.exp %18 : vector<4x4xf32>
    %cst_8 = arith.constant dense<0.000000e+00> : vector<4xf32>
    %20 = vector.multi_reduction <add>, %19, %cst_8 [1] : vector<4x4xf32> to vector<4xf32>
    %21 = vector.shape_cast %20 : vector<4xf32> to vector<4x1xf32>
    %22 = tpu.reciprocal %21 {approx = true} : vector<4x1xf32> -> vector<4x1xf32>
    %23 = vector.broadcast %22 : vector<4x1xf32> to vector<4x4xf32>
    %24 = arith.mulf %19, %23 : vector<4x4xf32>
    %cst_9 = arith.constant dense<0.000000e+00> : vector<4x8xf32>
    %25 = tpu.matmul %24, %13, %cst_9 {dimension_numbers = #tpu.dot_dimension_numbers<[1], [0], [0], [1], [0, 0, 1, 1], [], []>} : vector<4x4xf32>, vector<4x8xf32>, vector<4x8xf32> -> vector<4x8xf32>
    %c0_10 = arith.constant 0 : index
    %c0_11 = arith.constant 0 : index
    %26 = vector.load %arg14[%c0_10, %c0_11] : memref<8x32xf32, #tpu.memory_space<vmem>>, vector<4x8xf32>
    tpu.vector_store %arg14[%c0_10, %c0_11], %25 {strides = array<i32>} : memref<8x32xf32, #tpu.memory_space<vmem>>, vector<4x8xf32>,
    %27 = vector.extract_strided_slice %8 {offsets = [0, 8], sizes = [4, 8], strides = [1, 1]} : vector<8x32xf32> to vector<4x8xf32>
    %28 = vector.extract_strided_slice %9 {offsets = [0, 8], sizes = [4, 8], strides = [1, 1]} : vector<8x32xf32> to vector<4x8xf32>
    %29 = vector.extract_strided_slice %10 {offsets = [0, 8], sizes = [4, 8], strides = [1, 1]} : vector<8x32xf32> to vector<4x8xf32>
    %cst_12 = arith.constant dense<0.000000e+00> : vector<4x4xf32>
    %30 = tpu.matmul %27, %28, %cst_12 {dimension_numbers = #tpu.dot_dimension_numbers<[1], [1], [0], [0], [0, 0, 1, 0], [], []>} : vector<4x8xf32>, vector<4x8xf32>, vector<4x4xf32> -> vector<4x4xf32>
    %cst_13 = arith.constant dense<0xFF800000> : vector<4xf32>
    %31 = vector.multi_reduction <maximumf>, %30, %cst_13 [1] : vector<4x4xf32> to vector<4xf32>
    %32 = vector.shape_cast %31 : vector<4xf32> to vector<4x1xf32>
    %33 = vector.broadcast %32 : vector<4x1xf32> to vector<4x4xf32>
    %34 = arith.subf %30, %33 : vector<4x4xf32>
    %35 = math.exp %34 : vector<4x4xf32>
    %cst_14 = arith.constant dense<0.000000e+00> : vector<4xf32>
    %36 = vector.multi_reduction <add>, %35, %cst_14 [1] : vector<4x4xf32> to vector<4xf32>
    %37 = vector.shape_cast %36 : vector<4xf32> to vector<4x1xf32>
    %38 = tpu.reciprocal %37 {approx = true} : vector<4x1xf32> -> vector<4x1xf32>
    %39 = vector.broadcast %38 : vector<4x1xf32> to vector<4x4xf32>
    %40 = arith.mulf %35, %39 : vector<4x4xf32>
    %cst_15 = arith.constant dense<0.000000e+00> : vector<4x8xf32>
    %41 = tpu.matmul %40, %29, %cst_15 {dimension_numbers = #tpu.dot_dimension_numbers<[1], [0], [0], [1], [0, 0, 1, 1], [], []>} : vector<4x4xf32>, vector<4x8xf32>, vector<4x8xf32> -> vector<4x8xf32>
    %c0_16 = arith.constant 0 : index
    %c8 = arith.constant 8 : index
    %42 = vector.load %arg14[%c0_16, %c8] : memref<8x32xf32, #tpu.memory_space<vmem>>, vector<4x8xf32>
    tpu.vector_store %arg14[%c0_16, %c8], %41 {strides = array<i32>} : memref<8x32xf32, #tpu.memory_space<vmem>>, vector<4x8xf32>,
    %43 = vector.extract_strided_slice %8 {offsets = [0, 16], sizes = [4, 8], strides = [1, 1]} : vector<8x32xf32> to vector<4x8xf32>
    %44 = vector.extract_strided_slice %9 {offsets = [0, 16], sizes = [4, 8], strides = [1, 1]} : vector<8x32xf32> to vector<4x8xf32>
    %45 = vector.extract_strided_slice %10 {offsets = [0, 16], sizes = [4, 8], strides = [1, 1]} : vector<8x32xf32> to vector<4x8xf32>
    %cst_17 = arith.constant dense<0.000000e+00> : vector<4x4xf32>
    %46 = tpu.matmul %43, %44, %cst_17 {dimension_numbers = #tpu.dot_dimension_numbers<[1], [1], [0], [0], [0, 0, 1, 0], [], []>} : vector<4x8xf32>, vector<4x8xf32>, vector<4x4xf32> -> vector<4x4xf32>
    %cst_18 = arith.constant dense<0xFF800000> : vector<4xf32>
    %47 = vector.multi_reduction <maximumf>, %46, %cst_18 [1] : vector<4x4xf32> to vector<4xf32>
    %48 = vector.shape_cast %47 : vector<4xf32> to vector<4x1xf32>
    %49 = vector.broadcast %48 : vector<4x1xf32> to vector<4x4xf32>
    %50 = arith.subf %46, %49 : vector<4x4xf32>
    %51 = math.exp %50 : vector<4x4xf32>
    %cst_19 = arith.constant dense<0.000000e+00> : vector<4xf32>
    %52 = vector.multi_reduction <add>, %51, %cst_19 [1] : vector<4x4xf32> to vector<4xf32>
    %53 = vector.shape_cast %52 : vector<4xf32> to vector<4x1xf32>
    %54 = tpu.reciprocal %53 {approx = true} : vector<4x1xf32> -> vector<4x1xf32>
    %55 = vector.broadcast %54 : vector<4x1xf32> to vector<4x4xf32>
    %56 = arith.mulf %51, %55 : vector<4x4xf32>
    %cst_20 = arith.constant dense<0.000000e+00> : vector<4x8xf32>
    %57 = tpu.matmul %56, %45, %cst_20 {dimension_numbers = #tpu.dot_dimension_numbers<[1], [0], [0], [1], [0, 0, 1, 1], [], []>} : vector<4x4xf32>, vector<4x8xf32>, vector<4x8xf32> -> vector<4x8xf32>
    %c0_21 = arith.constant 0 : index
    %c16 = arith.constant 16 : index
    %58 = vector.load %arg14[%c0_21, %c16] : memref<8x32xf32, #tpu.memory_space<vmem>>, vector<4x8xf32>
    tpu.vector_store %arg14[%c0_21, %c16], %57 {strides = array<i32>} : memref<8x32xf32, #tpu.memory_space<vmem>>, vector<4x8xf32>,
    %59 = vector.extract_strided_slice %8 {offsets = [0, 24], sizes = [4, 8], strides = [1, 1]} : vector<8x32xf32> to vector<4x8xf32>
    %60 = vector.extract_strided_slice %9 {offsets = [0, 24], sizes = [4, 8], strides = [1, 1]} : vector<8x32xf32> to vector<4x8xf32>
    %61 = vector.extract_strided_slice %10 {offsets = [0, 24], sizes = [4, 8], strides = [1, 1]} : vector<8x32xf32> to vector<4x8xf32>
    %cst_22 = arith.constant dense<0.000000e+00> : vector<4x4xf32>
    %62 = tpu.matmul %59, %60, %cst_22 {dimension_numbers = #tpu.dot_dimension_numbers<[1], [1], [0], [0], [0, 0, 1, 0], [], []>} : vector<4x8xf32>, vector<4x8xf32>, vector<4x4xf32> -> vector<4x4xf32>
    %cst_23 = arith.constant dense<0xFF800000> : vector<4xf32>
    %63 = vector.multi_reduction <maximumf>, %62, %cst_23 [1] : vector<4x4xf32> to vector<4xf32>
    %64 = vector.shape_cast %63 : vector<4xf32> to vector<4x1xf32>
    %65 = vector.broadcast %64 : vector<4x1xf32> to vector<4x4xf32>
    %66 = arith.subf %62, %65 : vector<4x4xf32>
    %67 = math.exp %66 : vector<4x4xf32>
    %cst_24 = arith.constant dense<0.000000e+00> : vector<4xf32>
    %68 = vector.multi_reduction <add>, %67, %cst_24 [1] : vector<4x4xf32> to vector<4xf32>
    %69 = vector.shape_cast %68 : vector<4xf32> to vector<4x1xf32>
    %70 = tpu.reciprocal %69 {approx = true} : vector<4x1xf32> -> vector<4x1xf32>
    %71 = vector.broadcast %70 : vector<4x1xf32> to vector<4x4xf32>
    %72 = arith.mulf %67, %71 : vector<4x4xf32>
    %cst_25 = arith.constant dense<0.000000e+00> : vector<4x8xf32>
    %73 = tpu.matmul %72, %61, %cst_25 {dimension_numbers = #tpu.dot_dimension_numbers<[1], [0], [0], [1], [0, 0, 1, 1], [], []>} : vector<4x4xf32>, vector<4x8xf32>, vector<4x8xf32> -> vector<4x8xf32>
    %c0_26 = arith.constant 0 : index
    %c24 = arith.constant 24 : index
    %74 = vector.load %arg14[%c0_26, %c24] : memref<8x32xf32, #tpu.memory_space<vmem>>, vector<4x8xf32>
    tpu.vector_store %arg14[%c0_26, %c24], %73 {strides = array<i32>} : memref<8x32xf32, #tpu.memory_space<vmem>>, vector<4x8xf32>,
    %75 = vector.extract_strided_slice %8 {offsets = [4, 0], sizes = [4, 8], strides = [1, 1]} : vector<8x32xf32> to vector<4x8xf32>
    %76 = vector.extract_strided_slice %9 {offsets = [4, 0], sizes = [4, 8], strides = [1, 1]} : vector<8x32xf32> to vector<4x8xf32>
    %77 = vector.extract_strided_slice %10 {offsets = [4, 0], sizes = [4, 8], strides = [1, 1]} : vector<8x32xf32> to vector<4x8xf32>
    %cst_27 = arith.constant dense<0.000000e+00> : vector<4x4xf32>
    %78 = tpu.matmul %75, %76, %cst_27 {dimension_numbers = #tpu.dot_dimension_numbers<[1], [1], [0], [0], [0, 0, 1, 0], [], []>} : vector<4x8xf32>, vector<4x8xf32>, vector<4x4xf32> -> vector<4x4xf32>
    %cst_28 = arith.constant dense<0xFF800000> : vector<4xf32>
    %79 = vector.multi_reduction <maximumf>, %78, %cst_28 [1] : vector<4x4xf32> to vector<4xf32>
    %80 = vector.shape_cast %79 : vector<4xf32> to vector<4x1xf32>
    %81 = vector.broadcast %80 : vector<4x1xf32> to vector<4x4xf32>
    %82 = arith.subf %78, %81 : vector<4x4xf32>
    %83 = math.exp %82 : vector<4x4xf32>
    %cst_29 = arith.constant dense<0.000000e+00> : vector<4xf32>
    %84 = vector.multi_reduction <add>, %83, %cst_29 [1] : vector<4x4xf32> to vector<4xf32>
    %85 = vector.shape_cast %84 : vector<4xf32> to vector<4x1xf32>
    %86 = tpu.reciprocal %85 {approx = true} : vector<4x1xf32> -> vector<4x1xf32>
    %87 = vector.broadcast %86 : vector<4x1xf32> to vector<4x4xf32>
    %88 = arith.mulf %83, %87 : vector<4x4xf32>
    %cst_30 = arith.constant dense<0.000000e+00> : vector<4x8xf32>
    %89 = tpu.matmul %88, %77, %cst_30 {dimension_numbers = #tpu.dot_dimension_numbers<[1], [0], [0], [1], [0, 0, 1, 1], [], []>} : vector<4x4xf32>, vector<4x8xf32>, vector<4x8xf32> -> vector<4x8xf32>
    %c4 = arith.constant 4 : index
    %c0_31 = arith.constant 0 : index
    %90 = vector.load %arg14[%c4, %c0_31] : memref<8x32xf32, #tpu.memory_space<vmem>>, vector<4x8xf32>
    tpu.vector_store %arg14[%c4, %c0_31], %89 {strides = array<i32>} : memref<8x32xf32, #tpu.memory_space<vmem>>, vector<4x8xf32>,
    %91 = vector.extract_strided_slice %8 {offsets = [4, 8], sizes = [4, 8], strides = [1, 1]} : vector<8x32xf32> to vector<4x8xf32>
    %92 = vector.extract_strided_slice %9 {offsets = [4, 8], sizes = [4, 8], strides = [1, 1]} : vector<8x32xf32> to vector<4x8xf32>
    %93 = vector.extract_strided_slice %10 {offsets = [4, 8], sizes = [4, 8], strides = [1, 1]} : vector<8x32xf32> to vector<4x8xf32>
    %cst_32 = arith.constant dense<0.000000e+00> : vector<4x4xf32>
    %94 = tpu.matmul %91, %92, %cst_32 {dimension_numbers = #tpu.dot_dimension_numbers<[1], [1], [0], [0], [0, 0, 1, 0], [], []>} : vector<4x8xf32>, vector<4x8xf32>, vector<4x4xf32> -> vector<4x4xf32>
    %cst_33 = arith.constant dense<0xFF800000> : vector<4xf32>
    %95 = vector.multi_reduction <maximumf>, %94, %cst_33 [1] : vector<4x4xf32> to vector<4xf32>
    %96 = vector.shape_cast %95 : vector<4xf32> to vector<4x1xf32>
    %97 = vector.broadcast %96 : vector<4x1xf32> to vector<4x4xf32>
    %98 = arith.subf %94, %97 : vector<4x4xf32>
    %99 = math.exp %98 : vector<4x4xf32>
    %cst_34 = arith.constant dense<0.000000e+00> : vector<4xf32>
    %100 = vector.multi_reduction <add>, %99, %cst_34 [1] : vector<4x4xf32> to vector<4xf32>
    %101 = vector.shape_cast %100 : vector<4xf32> to vector<4x1xf32>
    %102 = tpu.reciprocal %101 {approx = true} : vector<4x1xf32> -> vector<4x1xf32>
    %103 = vector.broadcast %102 : vector<4x1xf32> to vector<4x4xf32>
    %104 = arith.mulf %99, %103 : vector<4x4xf32>
    %cst_35 = arith.constant dense<0.000000e+00> : vector<4x8xf32>
    %105 = tpu.matmul %104, %93, %cst_35 {dimension_numbers = #tpu.dot_dimension_numbers<[1], [0], [0], [1], [0, 0, 1, 1], [], []>} : vector<4x4xf32>, vector<4x8xf32>, vector<4x8xf32> -> vector<4x8xf32>
    %c4_36 = arith.constant 4 : index
    %c8_37 = arith.constant 8 : index
    %106 = vector.load %arg14[%c4_36, %c8_37] : memref<8x32xf32, #tpu.memory_space<vmem>>, vector<4x8xf32>
    tpu.vector_store %arg14[%c4_36, %c8_37], %105 {strides = array<i32>} : memref<8x32xf32, #tpu.memory_space<vmem>>, vector<4x8xf32>,
    %107 = vector.extract_strided_slice %8 {offsets = [4, 16], sizes = [4, 8], strides = [1, 1]} : vector<8x32xf32> to vector<4x8xf32>
    %108 = vector.extract_strided_slice %9 {offsets = [4, 16], sizes = [4, 8], strides = [1, 1]} : vector<8x32xf32> to vector<4x8xf32>
    %109 = vector.extract_strided_slice %10 {offsets = [4, 16], sizes = [4, 8], strides = [1, 1]} : vector<8x32xf32> to vector<4x8xf32>
    %cst_38 = arith.constant dense<0.000000e+00> : vector<4x4xf32>
    %110 = tpu.matmul %107, %108, %cst_38 {dimension_numbers = #tpu.dot_dimension_numbers<[1], [1], [0], [0], [0, 0, 1, 0], [], []>} : vector<4x8xf32>, vector<4x8xf32>, vector<4x4xf32> -> vector<4x4xf32>
    %cst_39 = arith.constant dense<0xFF800000> : vector<4xf32>
    %111 = vector.multi_reduction <maximumf>, %110, %cst_39 [1] : vector<4x4xf32> to vector<4xf32>
    %112 = vector.shape_cast %111 : vector<4xf32> to vector<4x1xf32>
    %113 = vector.broadcast %112 : vector<4x1xf32> to vector<4x4xf32>
    %114 = arith.subf %110, %113 : vector<4x4xf32>
    %115 = math.exp %114 : vector<4x4xf32>
    %cst_40 = arith.constant dense<0.000000e+00> : vector<4xf32>
    %116 = vector.multi_reduction <add>, %115, %cst_40 [1] : vector<4x4xf32> to vector<4xf32>
    %117 = vector.shape_cast %116 : vector<4xf32> to vector<4x1xf32>
    %118 = tpu.reciprocal %117 {approx = true} : vector<4x1xf32> -> vector<4x1xf32>
    %119 = vector.broadcast %118 : vector<4x1xf32> to vector<4x4xf32>
    %120 = arith.mulf %115, %119 : vector<4x4xf32>
    %cst_41 = arith.constant dense<0.000000e+00> : vector<4x8xf32>
    %121 = tpu.matmul %120, %109, %cst_41 {dimension_numbers = #tpu.dot_dimension_numbers<[1], [0], [0], [1], [0, 0, 1, 1], [], []>} : vector<4x4xf32>, vector<4x8xf32>, vector<4x8xf32> -> vector<4x8xf32>
    %c4_42 = arith.constant 4 : index
    %c16_43 = arith.constant 16 : index
    %122 = vector.load %arg14[%c4_42, %c16_43] : memref<8x32xf32, #tpu.memory_space<vmem>>, vector<4x8xf32>
    tpu.vector_store %arg14[%c4_42, %c16_43], %121 {strides = array<i32>} : memref<8x32xf32, #tpu.memory_space<vmem>>, vector<4x8xf32>,
    %123 = vector.extract_strided_slice %8 {offsets = [4, 24], sizes = [4, 8], strides = [1, 1]} : vector<8x32xf32> to vector<4x8xf32>
    %124 = vector.extract_strided_slice %9 {offsets = [4, 24], sizes = [4, 8], strides = [1, 1]} : vector<8x32xf32> to vector<4x8xf32>
    %125 = vector.extract_strided_slice %10 {offsets = [4, 24], sizes = [4, 8], strides = [1, 1]} : vector<8x32xf32> to vector<4x8xf32>
    %cst_44 = arith.constant dense<0.000000e+00> : vector<4x4xf32>
    %126 = tpu.matmul %123, %124, %cst_44 {dimension_numbers = #tpu.dot_dimension_numbers<[1], [1], [0], [0], [0, 0, 1, 0], [], []>} : vector<4x8xf32>, vector<4x8xf32>, vector<4x4xf32> -> vector<4x4xf32>
    %cst_45 = arith.constant dense<0xFF800000> : vector<4xf32>
    %127 = vector.multi_reduction <maximumf>, %126, %cst_45 [1] : vector<4x4xf32> to vector<4xf32>
    %128 = vector.shape_cast %127 : vector<4xf32> to vector<4x1xf32>
    %129 = vector.broadcast %128 : vector<4x1xf32> to vector<4x4xf32>
    %130 = arith.subf %126, %129 : vector<4x4xf32>
    %131 = math.exp %130 : vector<4x4xf32>
    %cst_46 = arith.constant dense<0.000000e+00> : vector<4xf32>
    %132 = vector.multi_reduction <add>, %131, %cst_46 [1] : vector<4x4xf32> to vector<4xf32>
    %133 = vector.shape_cast %132 : vector<4xf32> to vector<4x1xf32>
    %134 = tpu.reciprocal %133 {approx = true} : vector<4x1xf32> -> vector<4x1xf32>
    %135 = vector.broadcast %134 : vector<4x1xf32> to vector<4x4xf32>
    %136 = arith.mulf %131, %135 : vector<4x4xf32>
    %cst_47 = arith.constant dense<0.000000e+00> : vector<4x8xf32>
    %137 = tpu.matmul %136, %125, %cst_47 {dimension_numbers = #tpu.dot_dimension_numbers<[1], [0], [0], [1], [0, 0, 1, 1], [], []>} : vector<4x4xf32>, vector<4x8xf32>, vector<4x8xf32> -> vector<4x8xf32>
    %c4_48 = arith.constant 4 : index
    %c24_49 = arith.constant 24 : index
    %138 = vector.load %arg14[%c4_48, %c24_49] : memref<8x32xf32, #tpu.memory_space<vmem>>, vector<4x8xf32>
    tpu.vector_store %arg14[%c4_48, %c24_49], %137 {strides = array<i32>} : memref<8x32xf32, #tpu.memory_space<vmem>>, vector<4x8xf32>,
    %c0_50 = arith.constant 0 : index
    %c0_51 = arith.constant 0 : index
    %139 = vector.load %arg14[%c0_50, %c0_51] : memref<8x32xf32, #tpu.memory_space<vmem>>, vector<8x32xf32>
    %c0_52 = arith.constant 0 : index
    %c0_53 = arith.constant 0 : index
    %140 = vector.load %arg3[%c0_52, %c0_53] : memref<32x32xf32, #tpu.memory_space<vmem>>, vector<32x32xf32>
    %cst_54 = arith.constant dense<0.000000e+00> : vector<8x32xf32>
    %141 = tpu.matmul %139, %140, %cst_54 {dimension_numbers = #tpu.dot_dimension_numbers<[1], [0], [0], [1], [0, 0, 1, 1], [], []>} : vector<8x32xf32>, vector<32x32xf32>, vector<8x32xf32> -> vector<8x32xf32>
    %c0_55 = arith.constant 0 : index
    %c0_56 = arith.constant 0 : index
    %142 = vector.load %arg4[%c0_55, %c0_56] : memref<1x32xf32, #tpu.memory_space<vmem>>, vector<1x32xf32>
    %143 = vector.broadcast %142 : vector<1x32xf32> to vector<8x32xf32>
    %144 = arith.addf %141, %143 : vector<8x32xf32>
    %145 = arith.addf %0, %144 : vector<8x32xf32>
    %c0_57 = arith.constant 0 : index
    %c0_58 = arith.constant 0 : index
    %146 = vector.load %arg9[%c0_57, %c0_58] : memref<1x32xf32, #tpu.memory_space<vmem>>, vector<1x32xf32>
    %c0_59 = arith.constant 0 : index
    %c0_60 = arith.constant 0 : index
    %147 = vector.load %arg10[%c0_59, %c0_60] : memref<1x32xf32, #tpu.memory_space<vmem>>, vector<1x32xf32>
    %cst_61 = arith.constant dense<0.000000e+00> : vector<8xf32>
    %148 = vector.multi_reduction <add>, %145, %cst_61 [1] : vector<8x32xf32> to vector<8xf32>
    %149 = vector.shape_cast %148 : vector<8xf32> to vector<8x1xf32>
    %cst_62 = arith.constant 3.200000e+01 : f32
    %150 = vector.broadcast %cst_62 : f32 to vector<8x1xf32>
    %151 = arith.divf %149, %150 : vector<8x1xf32>
    %152 = vector.broadcast %151 : vector<8x1xf32> to vector<8x32xf32>
    %153 = arith.subf %145, %152 : vector<8x32xf32>
    %154 = arith.mulf %153, %153 : vector<8x32xf32>
    %cst_63 = arith.constant dense<0.000000e+00> : vector<8xf32>
    %155 = vector.multi_reduction <add>, %154, %cst_63 [1] : vector<8x32xf32> to vector<8xf32>
    %156 = vector.shape_cast %155 : vector<8xf32> to vector<8x1xf32>
    %cst_64 = arith.constant 3.200000e+01 : f32
    %157 = vector.broadcast %cst_64 : f32 to vector<8x1xf32>
    %158 = arith.divf %156, %157 : vector<8x1xf32>
    %159 = vector.broadcast %151 : vector<8x1xf32> to vector<8x32xf32>
    %160 = arith.subf %145, %159 : vector<8x32xf32>
    %cst_65 = arith.constant 9.99999974E-6 : f32
    %161 = vector.broadcast %cst_65 : f32 to vector<8x1xf32>
    %162 = arith.addf %158, %161 : vector<8x1xf32>
    %163 = math.rsqrt %162 : vector<8x1xf32>
    %164 = vector.broadcast %163 : vector<8x1xf32> to vector<8x32xf32>
    %165 = arith.mulf %160, %164 : vector<8x32xf32>
    %166 = vector.broadcast %146 : vector<1x32xf32> to vector<8x32xf32>
    %167 = arith.mulf %165, %166 : vector<8x32xf32>
    %168 = vector.broadcast %147 : vector<1x32xf32> to vector<8x32xf32>
    %169 = arith.addf %167, %168 : vector<8x32xf32>
    %c0_66 = arith.constant 0 : index
    %c0_67 = arith.constant 0 : index
    %170 = vector.load %arg5[%c0_66, %c0_67] : memref<32x128xf32, #tpu.memory_space<vmem>>, vector<32x128xf32>
    %cst_68 = arith.constant dense<0.000000e+00> : vector<8x128xf32>
    %171 = tpu.matmul %169, %170, %cst_68 {dimension_numbers = #tpu.dot_dimension_numbers<[1], [0], [0], [1], [0, 0, 1, 1], [], []>} : vector<8x32xf32>, vector<32x128xf32>, vector<8x128xf32> -> vector<8x128xf32>
    %c0_69 = arith.constant 0 : index
    %c0_70 = arith.constant 0 : index
    %172 = vector.load %arg6[%c0_69, %c0_70] : memref<1x128xf32, #tpu.memory_space<vmem>>, vector<1x128xf32>
    %173 = vector.broadcast %172 : vector<1x128xf32> to vector<8x128xf32>
    %174 = arith.addf %171, %173 : vector<8x128xf32>
    %cst_71 = arith.constant 0.000000e+00 : f32
    %175 = vector.broadcast %cst_71 : f32 to vector<8x128xf32>
    %176 = arith.maximumf %174, %175 : vector<8x128xf32>
    %c0_72 = arith.constant 0 : index
    %c0_73 = arith.constant 0 : index
    %177 = vector.load %arg7[%c0_72, %c0_73] : memref<128x32xf32, #tpu.memory_space<vmem>>, vector<128x32xf32>
    %cst_74 = arith.constant dense<0.000000e+00> : vector<8x32xf32>
    %178 = tpu.matmul %176, %177, %cst_74 {dimension_numbers = #tpu.dot_dimension_numbers<[1], [0], [0], [1], [0, 0, 1, 1], [], []>} : vector<8x128xf32>, vector<128x32xf32>, vector<8x32xf32> -> vector<8x32xf32>
    %c0_75 = arith.constant 0 : index
    %c0_76 = arith.constant 0 : index
    %179 = vector.load %arg8[%c0_75, %c0_76] : memref<1x32xf32, #tpu.memory_space<vmem>>, vector<1x32xf32>
    %180 = vector.broadcast %179 : vector<1x32xf32> to vector<8x32xf32>
    %181 = arith.addf %178, %180 : vector<8x32xf32>
    %182 = arith.addf %169, %181 : vector<8x32xf32>
    %c0_77 = arith.constant 0 : index
    %c0_78 = arith.constant 0 : index
    %183 = vector.load %arg11[%c0_77, %c0_78] : memref<1x32xf32, #tpu.memory_space<vmem>>, vector<1x32xf32>
    %c0_79 = arith.constant 0 : index
    %c0_80 = arith.constant 0 : index
    %184 = vector.load %arg12[%c0_79, %c0_80] : memref<1x32xf32, #tpu.memory_space<vmem>>, vector<1x32xf32>
    %cst_81 = arith.constant dense<0.000000e+00> : vector<8xf32>
    %185 = vector.multi_reduction <add>, %182, %cst_81 [1] : vector<8x32xf32> to vector<8xf32>
    %186 = vector.shape_cast %185 : vector<8xf32> to vector<8x1xf32>
    %cst_82 = arith.constant 3.200000e+01 : f32
    %187 = vector.broadcast %cst_82 : f32 to vector<8x1xf32>
    %188 = arith.divf %186, %187 : vector<8x1xf32>
    %189 = vector.broadcast %188 : vector<8x1xf32> to vector<8x32xf32>
    %190 = arith.subf %182, %189 : vector<8x32xf32>
    %191 = arith.mulf %190, %190 : vector<8x32xf32>
    %cst_83 = arith.constant dense<0.000000e+00> : vector<8xf32>
    %192 = vector.multi_reduction <add>, %191, %cst_83 [1] : vector<8x32xf32> to vector<8xf32>
    %193 = vector.shape_cast %192 : vector<8xf32> to vector<8x1xf32>
    %cst_84 = arith.constant 3.200000e+01 : f32
    %194 = vector.broadcast %cst_84 : f32 to vector<8x1xf32>
    %195 = arith.divf %193, %194 : vector<8x1xf32>
    %196 = vector.broadcast %188 : vector<8x1xf32> to vector<8x32xf32>
    %197 = arith.subf %182, %196 : vector<8x32xf32>
    %cst_85 = arith.constant 9.99999974E-6 : f32
    %198 = vector.broadcast %cst_85 : f32 to vector<8x1xf32>
    %199 = arith.addf %195, %198 : vector<8x1xf32>
    %200 = math.rsqrt %199 : vector<8x1xf32>
    %201 = vector.broadcast %200 : vector<8x1xf32> to vector<8x32xf32>
    %202 = arith.mulf %197, %201 : vector<8x32xf32>
    %203 = vector.broadcast %183 : vector<1x32xf32> to vector<8x32xf32>
    %204 = arith.mulf %202, %203 : vector<8x32xf32>
    %205 = vector.broadcast %184 : vector<1x32xf32> to vector<8x32xf32>
    %206 = arith.addf %204, %205 : vector<8x32xf32>
    %c0_86 = arith.constant 0 : index
    %c0_87 = arith.constant 0 : index
    %207 = vector.load %arg13[%c0_86, %c0_87] : memref<8x32xf32, #tpu.memory_space<vmem>>, vector<8x32xf32>
    tpu.vector_store %arg13[%c0_86, %c0_87], %206 {strides = array<i32>} : memref<8x32xf32, #tpu.memory_space<vmem>>, vector<8x32xf32>,
    return
  }
}

module attributes {stable_mosaic.version = 11 : i64} {
  func.func @kernel(%arg0: memref<8x32xf32, #tpu.memory_space<vmem>>, %arg1: memref<32x512xf32, #tpu.memory_space<vmem>>, %arg2: memref<64x256xf32, #tpu.memory_space<vmem>>, %arg3: memref<64x256xf32, #tpu.memory_space<vmem>>, %arg4: memref<1x512xf32, #tpu.memory_space<vmem>>, %arg5: memref<128x512xf32, #tpu.memory_space<vmem>>, %arg6: memref<64x256xf32, #tpu.memory_space<vmem>>, %arg7: memref<64x256xf32, #tpu.memory_space<vmem>>, %arg8: memref<1x512xf32, #tpu.memory_space<vmem>>, %arg9: memref<1x1x128xf32, #tpu.memory_space<vmem>>, %arg10: memref<1x1x1xf32, #tpu.memory_space<vmem>>, %arg11: memref<128x2xf32, #tpu.memory_space<vmem>>, %arg12: memref<1x2xf32, #tpu.memory_space<vmem>>, %arg13: memref<2x2xf32, #tpu.memory_space<vmem>>, %arg14: memref<2x4x512xf32, #tpu.memory_space<vmem>>, %arg15: memref<2x4x128xf32, #tpu.memory_space<vmem>>) attributes {dimension_semantics = [], scalar_prefetch = 0 : i64, scratch_operands = 2 : i64, tpu.core_type = #tpu.core_type<tc>} {
    %0 = tpu.iota {dimensions = array<i32: 1>} : vector<2x256xi32>
    %c128_i32 = arith.constant 128 : i32
    %1 = vector.broadcast %c128_i32 : i32 to vector<2x256xi32>
    %2 = arith.cmpi sge, %0, %1 : vector<2x256xi32>
    %c192_i32 = arith.constant 192 : i32
    %3 = vector.broadcast %c192_i32 : i32 to vector<2x256xi32>
    %4 = arith.cmpi slt, %0, %3 : vector<2x256xi32>
    %5 = arith.andi %2, %4 : vector<2x256xi1>
    %c0 = arith.constant 0 : index
    %c0_0 = arith.constant 0 : index
    %6 = vector.load %arg0[%c0, %c0_0] : memref<8x32xf32, #tpu.memory_space<vmem>>, vector<4x32xf32>
    %c0_1 = arith.constant 0 : index
    %c0_2 = arith.constant 0 : index
    %7 = vector.load %arg1[%c0_1, %c0_2] : memref<32x512xf32, #tpu.memory_space<vmem>>, vector<32x512xf32>
    %cst = arith.constant dense<0.000000e+00> : vector<4x512xf32>
    %8 = tpu.matmul %6, %7, %cst {dimension_numbers = #tpu.dot_dimension_numbers<[1], [0], [0], [1], [0, 0, 1, 1], [], []>} : vector<4x32xf32>, vector<32x512xf32>, vector<4x512xf32> -> vector<4x512xf32>
    %c0_3 = arith.constant 0 : index
    %c0_4 = arith.constant 0 : index
    %9 = vector.load %arg4[%c0_3, %c0_4] : memref<1x512xf32, #tpu.memory_space<vmem>>, vector<1x512xf32>
    %10 = vector.broadcast %9 : vector<1x512xf32> to vector<4x512xf32>
    %11 = arith.addf %8, %10 : vector<4x512xf32>
    %c0_5 = arith.constant 0 : index
    %c0_6 = arith.constant 0 : index
    %c0_7 = arith.constant 0 : index
    %12 = vector.load %arg14[%c0_5, %c0_6, %c0_7] : memref<2x4x512xf32, #tpu.memory_space<vmem>>, vector<1x4x512xf32>
    %13 = vector.shape_cast %12 : vector<1x4x512xf32> to vector<4x512xf32>
    %14 = vector.shape_cast %11 : vector<4x512xf32> to vector<1x4x512xf32>
    tpu.vector_store %arg14[%c0_5, %c0_6, %c0_7], %14 {strides = array<i32>} : memref<2x4x512xf32, #tpu.memory_space<vmem>>, vector<1x4x512xf32>,
    %c4 = arith.constant 4 : index
    %c0_8 = arith.constant 0 : index
    %15 = vector.load %arg0[%c4, %c0_8] : memref<8x32xf32, #tpu.memory_space<vmem>>, vector<4x32xf32>
    %c0_9 = arith.constant 0 : index
    %c0_10 = arith.constant 0 : index
    %16 = vector.load %arg1[%c0_9, %c0_10] : memref<32x512xf32, #tpu.memory_space<vmem>>, vector<32x512xf32>
    %cst_11 = arith.constant dense<0.000000e+00> : vector<4x512xf32>
    %17 = tpu.matmul %15, %16, %cst_11 {dimension_numbers = #tpu.dot_dimension_numbers<[1], [0], [0], [1], [0, 0, 1, 1], [], []>} : vector<4x32xf32>, vector<32x512xf32>, vector<4x512xf32> -> vector<4x512xf32>
    %c0_12 = arith.constant 0 : index
    %c0_13 = arith.constant 0 : index
    %18 = vector.load %arg4[%c0_12, %c0_13] : memref<1x512xf32, #tpu.memory_space<vmem>>, vector<1x512xf32>
    %19 = vector.broadcast %18 : vector<1x512xf32> to vector<4x512xf32>
    %20 = arith.addf %17, %19 : vector<4x512xf32>
    %c1 = arith.constant 1 : index
    %c0_14 = arith.constant 0 : index
    %c0_15 = arith.constant 0 : index
    %21 = vector.load %arg14[%c1, %c0_14, %c0_15] : memref<2x4x512xf32, #tpu.memory_space<vmem>>, vector<1x4x512xf32>
    %22 = vector.shape_cast %21 : vector<1x4x512xf32> to vector<4x512xf32>
    %23 = vector.shape_cast %20 : vector<4x512xf32> to vector<1x4x512xf32>
    tpu.vector_store %arg14[%c1, %c0_14, %c0_15], %23 {strides = array<i32>} : memref<2x4x512xf32, #tpu.memory_space<vmem>>, vector<1x4x512xf32>,
    %c0_16 = arith.constant 0 : index
    %c0_17 = arith.constant 0 : index
    %24 = vector.load %arg2[%c0_16, %c0_17] : memref<64x256xf32, #tpu.memory_space<vmem>>, vector<64x256xf32>
    %c0_18 = arith.constant 0 : index
    %c0_19 = arith.constant 0 : index
    %25 = vector.load %arg3[%c0_18, %c0_19] : memref<64x256xf32, #tpu.memory_space<vmem>>, vector<64x256xf32>
    %cst_20 = arith.constant 0.000000e+00 : f32
    %26 = vector.broadcast %cst_20 : f32 to vector<2x64xf32>
    %cst_21 = arith.constant 0.000000e+00 : f32
    %27 = vector.broadcast %cst_21 : f32 to vector<2x64xf32>
    %c0_22 = arith.constant 0 : index
    %c0_23 = arith.constant 0 : index
    %c0_24 = arith.constant 0 : index
    %28 = vector.load %arg14[%c0_22, %c0_23, %c0_24] : memref<2x4x512xf32, #tpu.memory_space<vmem>>, vector<2x1x256xf32>
    %29 = vector.shape_cast %28 : vector<2x1x256xf32> to vector<2x256xf32>
    %cst_25 = arith.constant dense<0.000000e+00> : vector<2x256xf32>
    %30 = tpu.matmul %26, %24, %cst_25 {dimension_numbers = #tpu.dot_dimension_numbers<[1], [0], [0], [1], [0, 0, 1, 1], [], []>} : vector<2x64xf32>, vector<64x256xf32>, vector<2x256xf32> -> vector<2x256xf32>
    %31 = arith.addf %29, %30 : vector<2x256xf32>
    %32 = math.tanh %31 : vector<2x256xf32>
    %33 = arith.negf %31 : vector<2x256xf32>
    %34 = math.exp %33 : vector<2x256xf32>
    %cst_26 = arith.constant 1.000000e+00 : f32
    %35 = vector.broadcast %cst_26 : f32 to vector<2x256xf32>
    %36 = arith.addf %35, %34 : vector<2x256xf32>
    %37 = arith.divf %35, %36 : vector<2x256xf32>
    %38 = arith.select %5, %32, %37 : vector<2x256xi1>, vector<2x256xf32>
    %39 = vector.extract_strided_slice %38 {offsets = [0, 0], sizes = [2, 64], strides = [1, 1]} : vector<2x256xf32> to vector<2x64xf32>
    %40 = vector.extract_strided_slice %38 {offsets = [0, 64], sizes = [2, 64], strides = [1, 1]} : vector<2x256xf32> to vector<2x64xf32>
    %41 = vector.extract_strided_slice %38 {offsets = [0, 128], sizes = [2, 64], strides = [1, 1]} : vector<2x256xf32> to vector<2x64xf32>
    %42 = vector.extract_strided_slice %38 {offsets = [0, 192], sizes = [2, 64], strides = [1, 1]} : vector<2x256xf32> to vector<2x64xf32>
    %43 = arith.mulf %40, %27 : vector<2x64xf32>
    %44 = arith.mulf %39, %41 : vector<2x64xf32>
    %45 = arith.addf %43, %44 : vector<2x64xf32>
    %46 = math.tanh %45 : vector<2x64xf32>
    %47 = arith.mulf %42, %46 : vector<2x64xf32>
    %c0_27 = arith.constant 0 : index
    %c0_28 = arith.constant 0 : index
    %c0_29 = arith.constant 0 : index
    %48 = vector.load %arg15[%c0_27, %c0_28, %c0_29] : memref<2x4x128xf32, #tpu.memory_space<vmem>>, vector<2x1x64xf32>
    %49 = vector.shape_cast %48 : vector<2x1x64xf32> to vector<2x64xf32>
    %50 = vector.shape_cast %47 : vector<2x64xf32> to vector<2x1x64xf32>
    tpu.vector_store %arg15[%c0_27, %c0_28, %c0_29], %50 {strides = array<i32>} : memref<2x4x128xf32, #tpu.memory_space<vmem>>, vector<2x1x64xf32>,
    %c0_30 = arith.constant 0 : index
    %c1_31 = arith.constant 1 : index
    %c0_32 = arith.constant 0 : index
    %51 = vector.load %arg14[%c0_30, %c1_31, %c0_32] : memref<2x4x512xf32, #tpu.memory_space<vmem>>, vector<2x1x256xf32>
    %52 = vector.shape_cast %51 : vector<2x1x256xf32> to vector<2x256xf32>
    %cst_33 = arith.constant dense<0.000000e+00> : vector<2x256xf32>
    %53 = tpu.matmul %47, %24, %cst_33 {dimension_numbers = #tpu.dot_dimension_numbers<[1], [0], [0], [1], [0, 0, 1, 1], [], []>} : vector<2x64xf32>, vector<64x256xf32>, vector<2x256xf32> -> vector<2x256xf32>
    %54 = arith.addf %52, %53 : vector<2x256xf32>
    %55 = math.tanh %54 : vector<2x256xf32>
    %56 = arith.negf %54 : vector<2x256xf32>
    %57 = math.exp %56 : vector<2x256xf32>
    %cst_34 = arith.constant 1.000000e+00 : f32
    %58 = vector.broadcast %cst_34 : f32 to vector<2x256xf32>
    %59 = arith.addf %58, %57 : vector<2x256xf32>
    %60 = arith.divf %58, %59 : vector<2x256xf32>
    %61 = arith.select %5, %55, %60 : vector<2x256xi1>, vector<2x256xf32>
    %62 = vector.extract_strided_slice %61 {offsets = [0, 0], sizes = [2, 64], strides = [1, 1]} : vector<2x256xf32> to vector<2x64xf32>
    %63 = vector.extract_strided_slice %61 {offsets = [0, 64], sizes = [2, 64], strides = [1, 1]} : vector<2x256xf32> to vector<2x64xf32>
    %64 = vector.extract_strided_slice %61 {offsets = [0, 128], sizes = [2, 64], strides = [1, 1]} : vector<2x256xf32> to vector<2x64xf32>
    %65 = vector.extract_strided_slice %61 {offsets = [0, 192], sizes = [2, 64], strides = [1, 1]} : vector<2x256xf32> to vector<2x64xf32>
    %66 = arith.mulf %63, %45 : vector<2x64xf32>
    %67 = arith.mulf %62, %64 : vector<2x64xf32>
    %68 = arith.addf %66, %67 : vector<2x64xf32>
    %69 = math.tanh %68 : vector<2x64xf32>
    %70 = arith.mulf %65, %69 : vector<2x64xf32>
    %c0_35 = arith.constant 0 : index
    %c1_36 = arith.constant 1 : index
    %c0_37 = arith.constant 0 : index
    %71 = vector.load %arg15[%c0_35, %c1_36, %c0_37] : memref<2x4x128xf32, #tpu.memory_space<vmem>>, vector<2x1x64xf32>
    %72 = vector.shape_cast %71 : vector<2x1x64xf32> to vector<2x64xf32>
    %73 = vector.shape_cast %70 : vector<2x64xf32> to vector<2x1x64xf32>
    tpu.vector_store %arg15[%c0_35, %c1_36, %c0_37], %73 {strides = array<i32>} : memref<2x4x128xf32, #tpu.memory_space<vmem>>, vector<2x1x64xf32>,
    %c0_38 = arith.constant 0 : index
    %c2 = arith.constant 2 : index
    %c0_39 = arith.constant 0 : index
    %74 = vector.load %arg14[%c0_38, %c2, %c0_39] : memref<2x4x512xf32, #tpu.memory_space<vmem>>, vector<2x1x256xf32>
    %75 = vector.shape_cast %74 : vector<2x1x256xf32> to vector<2x256xf32>
    %cst_40 = arith.constant dense<0.000000e+00> : vector<2x256xf32>
    %76 = tpu.matmul %70, %24, %cst_40 {dimension_numbers = #tpu.dot_dimension_numbers<[1], [0], [0], [1], [0, 0, 1, 1], [], []>} : vector<2x64xf32>, vector<64x256xf32>, vector<2x256xf32> -> vector<2x256xf32>
    %77 = arith.addf %75, %76 : vector<2x256xf32>
    %78 = math.tanh %77 : vector<2x256xf32>
    %79 = arith.negf %77 : vector<2x256xf32>
    %80 = math.exp %79 : vector<2x256xf32>
    %cst_41 = arith.constant 1.000000e+00 : f32
    %81 = vector.broadcast %cst_41 : f32 to vector<2x256xf32>
    %82 = arith.addf %81, %80 : vector<2x256xf32>
    %83 = arith.divf %81, %82 : vector<2x256xf32>
    %84 = arith.select %5, %78, %83 : vector<2x256xi1>, vector<2x256xf32>
    %85 = vector.extract_strided_slice %84 {offsets = [0, 0], sizes = [2, 64], strides = [1, 1]} : vector<2x256xf32> to vector<2x64xf32>
    %86 = vector.extract_strided_slice %84 {offsets = [0, 64], sizes = [2, 64], strides = [1, 1]} : vector<2x256xf32> to vector<2x64xf32>
    %87 = vector.extract_strided_slice %84 {offsets = [0, 128], sizes = [2, 64], strides = [1, 1]} : vector<2x256xf32> to vector<2x64xf32>
    %88 = vector.extract_strided_slice %84 {offsets = [0, 192], sizes = [2, 64], strides = [1, 1]} : vector<2x256xf32> to vector<2x64xf32>
    %89 = arith.mulf %86, %68 : vector<2x64xf32>
    %90 = arith.mulf %85, %87 : vector<2x64xf32>
    %91 = arith.addf %89, %90 : vector<2x64xf32>
    %92 = math.tanh %91 : vector<2x64xf32>
    %93 = arith.mulf %88, %92 : vector<2x64xf32>
    %c0_42 = arith.constant 0 : index
    %c2_43 = arith.constant 2 : index
    %c0_44 = arith.constant 0 : index
    %94 = vector.load %arg15[%c0_42, %c2_43, %c0_44] : memref<2x4x128xf32, #tpu.memory_space<vmem>>, vector<2x1x64xf32>
    %95 = vector.shape_cast %94 : vector<2x1x64xf32> to vector<2x64xf32>
    %96 = vector.shape_cast %93 : vector<2x64xf32> to vector<2x1x64xf32>
    tpu.vector_store %arg15[%c0_42, %c2_43, %c0_44], %96 {strides = array<i32>} : memref<2x4x128xf32, #tpu.memory_space<vmem>>, vector<2x1x64xf32>,
    %c0_45 = arith.constant 0 : index
    %c3 = arith.constant 3 : index
    %c0_46 = arith.constant 0 : index
    %97 = vector.load %arg14[%c0_45, %c3, %c0_46] : memref<2x4x512xf32, #tpu.memory_space<vmem>>, vector<2x1x256xf32>
    %98 = vector.shape_cast %97 : vector<2x1x256xf32> to vector<2x256xf32>
    %cst_47 = arith.constant dense<0.000000e+00> : vector<2x256xf32>
    %99 = tpu.matmul %93, %24, %cst_47 {dimension_numbers = #tpu.dot_dimension_numbers<[1], [0], [0], [1], [0, 0, 1, 1], [], []>} : vector<2x64xf32>, vector<64x256xf32>, vector<2x256xf32> -> vector<2x256xf32>
    %100 = arith.addf %98, %99 : vector<2x256xf32>
    %101 = math.tanh %100 : vector<2x256xf32>
    %102 = arith.negf %100 : vector<2x256xf32>
    %103 = math.exp %102 : vector<2x256xf32>
    %cst_48 = arith.constant 1.000000e+00 : f32
    %104 = vector.broadcast %cst_48 : f32 to vector<2x256xf32>
    %105 = arith.addf %104, %103 : vector<2x256xf32>
    %106 = arith.divf %104, %105 : vector<2x256xf32>
    %107 = arith.select %5, %101, %106 : vector<2x256xi1>, vector<2x256xf32>
    %108 = vector.extract_strided_slice %107 {offsets = [0, 0], sizes = [2, 64], strides = [1, 1]} : vector<2x256xf32> to vector<2x64xf32>
    %109 = vector.extract_strided_slice %107 {offsets = [0, 64], sizes = [2, 64], strides = [1, 1]} : vector<2x256xf32> to vector<2x64xf32>
    %110 = vector.extract_strided_slice %107 {offsets = [0, 128], sizes = [2, 64], strides = [1, 1]} : vector<2x256xf32> to vector<2x64xf32>
    %111 = vector.extract_strided_slice %107 {offsets = [0, 192], sizes = [2, 64], strides = [1, 1]} : vector<2x256xf32> to vector<2x64xf32>
    %112 = arith.mulf %109, %91 : vector<2x64xf32>
    %113 = arith.mulf %108, %110 : vector<2x64xf32>
    %114 = arith.addf %112, %113 : vector<2x64xf32>
    %115 = math.tanh %114 : vector<2x64xf32>
    %116 = arith.mulf %111, %115 : vector<2x64xf32>
    %c0_49 = arith.constant 0 : index
    %c3_50 = arith.constant 3 : index
    %c0_51 = arith.constant 0 : index
    %117 = vector.load %arg15[%c0_49, %c3_50, %c0_51] : memref<2x4x128xf32, #tpu.memory_space<vmem>>, vector<2x1x64xf32>
    %118 = vector.shape_cast %117 : vector<2x1x64xf32> to vector<2x64xf32>
    %119 = vector.shape_cast %116 : vector<2x64xf32> to vector<2x1x64xf32>
    tpu.vector_store %arg15[%c0_49, %c3_50, %c0_51], %119 {strides = array<i32>} : memref<2x4x128xf32, #tpu.memory_space<vmem>>, vector<2x1x64xf32>,
    %cst_52 = arith.constant 0.000000e+00 : f32
    %120 = vector.broadcast %cst_52 : f32 to vector<2x64xf32>
    %cst_53 = arith.constant 0.000000e+00 : f32
    %121 = vector.broadcast %cst_53 : f32 to vector<2x64xf32>
    %c0_54 = arith.constant 0 : index
    %c3_55 = arith.constant 3 : index
    %c256 = arith.constant 256 : index
    %122 = vector.load %arg14[%c0_54, %c3_55, %c256] : memref<2x4x512xf32, #tpu.memory_space<vmem>>, vector<2x1x256xf32>
    %123 = vector.shape_cast %122 : vector<2x1x256xf32> to vector<2x256xf32>
    %cst_56 = arith.constant dense<0.000000e+00> : vector<2x256xf32>
    %124 = tpu.matmul %120, %25, %cst_56 {dimension_numbers = #tpu.dot_dimension_numbers<[1], [0], [0], [1], [0, 0, 1, 1], [], []>} : vector<2x64xf32>, vector<64x256xf32>, vector<2x256xf32> -> vector<2x256xf32>
    %125 = arith.addf %123, %124 : vector<2x256xf32>
    %126 = math.tanh %125 : vector<2x256xf32>
    %127 = arith.negf %125 : vector<2x256xf32>
    %128 = math.exp %127 : vector<2x256xf32>
    %cst_57 = arith.constant 1.000000e+00 : f32
    %129 = vector.broadcast %cst_57 : f32 to vector<2x256xf32>
    %130 = arith.addf %129, %128 : vector<2x256xf32>
    %131 = arith.divf %129, %130 : vector<2x256xf32>
    %132 = arith.select %5, %126, %131 : vector<2x256xi1>, vector<2x256xf32>
    %133 = vector.extract_strided_slice %132 {offsets = [0, 0], sizes = [2, 64], strides = [1, 1]} : vector<2x256xf32> to vector<2x64xf32>
    %134 = vector.extract_strided_slice %132 {offsets = [0, 64], sizes = [2, 64], strides = [1, 1]} : vector<2x256xf32> to vector<2x64xf32>
    %135 = vector.extract_strided_slice %132 {offsets = [0, 128], sizes = [2, 64], strides = [1, 1]} : vector<2x256xf32> to vector<2x64xf32>
    %136 = vector.extract_strided_slice %132 {offsets = [0, 192], sizes = [2, 64], strides = [1, 1]} : vector<2x256xf32> to vector<2x64xf32>
    %137 = arith.mulf %134, %121 : vector<2x64xf32>
    %138 = arith.mulf %133, %135 : vector<2x64xf32>
    %139 = arith.addf %137, %138 : vector<2x64xf32>
    %140 = math.tanh %139 : vector<2x64xf32>
    %141 = arith.mulf %136, %140 : vector<2x64xf32>
    %c0_58 = arith.constant 0 : index
    %c3_59 = arith.constant 3 : index
    %c64 = arith.constant 64 : index
    %142 = vector.load %arg15[%c0_58, %c3_59, %c64] : memref<2x4x128xf32, #tpu.memory_space<vmem>>, vector<2x1x64xf32>
    %143 = vector.shape_cast %142 : vector<2x1x64xf32> to vector<2x64xf32>
    %144 = vector.shape_cast %141 : vector<2x64xf32> to vector<2x1x64xf32>
    tpu.vector_store %arg15[%c0_58, %c3_59, %c64], %144 {strides = array<i32>} : memref<2x4x128xf32, #tpu.memory_space<vmem>>, vector<2x1x64xf32>,
    %c0_60 = arith.constant 0 : index
    %c2_61 = arith.constant 2 : index
    %c256_62 = arith.constant 256 : index
    %145 = vector.load %arg14[%c0_60, %c2_61, %c256_62] : memref<2x4x512xf32, #tpu.memory_space<vmem>>, vector<2x1x256xf32>
    %146 = vector.shape_cast %145 : vector<2x1x256xf32> to vector<2x256xf32>
    %cst_63 = arith.constant dense<0.000000e+00> : vector<2x256xf32>
    %147 = tpu.matmul %141, %25, %cst_63 {dimension_numbers = #tpu.dot_dimension_numbers<[1], [0], [0], [1], [0, 0, 1, 1], [], []>} : vector<2x64xf32>, vector<64x256xf32>, vector<2x256xf32> -> vector<2x256xf32>
    %148 = arith.addf %146, %147 : vector<2x256xf32>
    %149 = math.tanh %148 : vector<2x256xf32>
    %150 = arith.negf %148 : vector<2x256xf32>
    %151 = math.exp %150 : vector<2x256xf32>
    %cst_64 = arith.constant 1.000000e+00 : f32
    %152 = vector.broadcast %cst_64 : f32 to vector<2x256xf32>
    %153 = arith.addf %152, %151 : vector<2x256xf32>
    %154 = arith.divf %152, %153 : vector<2x256xf32>
    %155 = arith.select %5, %149, %154 : vector<2x256xi1>, vector<2x256xf32>
    %156 = vector.extract_strided_slice %155 {offsets = [0, 0], sizes = [2, 64], strides = [1, 1]} : vector<2x256xf32> to vector<2x64xf32>
    %157 = vector.extract_strided_slice %155 {offsets = [0, 64], sizes = [2, 64], strides = [1, 1]} : vector<2x256xf32> to vector<2x64xf32>
    %158 = vector.extract_strided_slice %155 {offsets = [0, 128], sizes = [2, 64], strides = [1, 1]} : vector<2x256xf32> to vector<2x64xf32>
    %159 = vector.extract_strided_slice %155 {offsets = [0, 192], sizes = [2, 64], strides = [1, 1]} : vector<2x256xf32> to vector<2x64xf32>
    %160 = arith.mulf %157, %139 : vector<2x64xf32>
    %161 = arith.mulf %156, %158 : vector<2x64xf32>
    %162 = arith.addf %160, %161 : vector<2x64xf32>
    %163 = math.tanh %162 : vector<2x64xf32>
    %164 = arith.mulf %159, %163 : vector<2x64xf32>
    %c0_65 = arith.constant 0 : index
    %c2_66 = arith.constant 2 : index
    %c64_67 = arith.constant 64 : index
    %165 = vector.load %arg15[%c0_65, %c2_66, %c64_67] : memref<2x4x128xf32, #tpu.memory_space<vmem>>, vector<2x1x64xf32>
    %166 = vector.shape_cast %165 : vector<2x1x64xf32> to vector<2x64xf32>
    %167 = vector.shape_cast %164 : vector<2x64xf32> to vector<2x1x64xf32>
    tpu.vector_store %arg15[%c0_65, %c2_66, %c64_67], %167 {strides = array<i32>} : memref<2x4x128xf32, #tpu.memory_space<vmem>>, vector<2x1x64xf32>,
    %c0_68 = arith.constant 0 : index
    %c1_69 = arith.constant 1 : index
    %c256_70 = arith.constant 256 : index
    %168 = vector.load %arg14[%c0_68, %c1_69, %c256_70] : memref<2x4x512xf32, #tpu.memory_space<vmem>>, vector<2x1x256xf32>
    %169 = vector.shape_cast %168 : vector<2x1x256xf32> to vector<2x256xf32>
    %cst_71 = arith.constant dense<0.000000e+00> : vector<2x256xf32>
    %170 = tpu.matmul %164, %25, %cst_71 {dimension_numbers = #tpu.dot_dimension_numbers<[1], [0], [0], [1], [0, 0, 1, 1], [], []>} : vector<2x64xf32>, vector<64x256xf32>, vector<2x256xf32> -> vector<2x256xf32>
    %171 = arith.addf %169, %170 : vector<2x256xf32>
    %172 = math.tanh %171 : vector<2x256xf32>
    %173 = arith.negf %171 : vector<2x256xf32>
    %174 = math.exp %173 : vector<2x256xf32>
    %cst_72 = arith.constant 1.000000e+00 : f32
    %175 = vector.broadcast %cst_72 : f32 to vector<2x256xf32>
    %176 = arith.addf %175, %174 : vector<2x256xf32>
    %177 = arith.divf %175, %176 : vector<2x256xf32>
    %178 = arith.select %5, %172, %177 : vector<2x256xi1>, vector<2x256xf32>
    %179 = vector.extract_strided_slice %178 {offsets = [0, 0], sizes = [2, 64], strides = [1, 1]} : vector<2x256xf32> to vector<2x64xf32>
    %180 = vector.extract_strided_slice %178 {offsets = [0, 64], sizes = [2, 64], strides = [1, 1]} : vector<2x256xf32> to vector<2x64xf32>
    %181 = vector.extract_strided_slice %178 {offsets = [0, 128], sizes = [2, 64], strides = [1, 1]} : vector<2x256xf32> to vector<2x64xf32>
    %182 = vector.extract_strided_slice %178 {offsets = [0, 192], sizes = [2, 64], strides = [1, 1]} : vector<2x256xf32> to vector<2x64xf32>
    %183 = arith.mulf %180, %162 : vector<2x64xf32>
    %184 = arith.mulf %179, %181 : vector<2x64xf32>
    %185 = arith.addf %183, %184 : vector<2x64xf32>
    %186 = math.tanh %185 : vector<2x64xf32>
    %187 = arith.mulf %182, %186 : vector<2x64xf32>
    %c0_73 = arith.constant 0 : index
    %c1_74 = arith.constant 1 : index
    %c64_75 = arith.constant 64 : index
    %188 = vector.load %arg15[%c0_73, %c1_74, %c64_75] : memref<2x4x128xf32, #tpu.memory_space<vmem>>, vector<2x1x64xf32>
    %189 = vector.shape_cast %188 : vector<2x1x64xf32> to vector<2x64xf32>
    %190 = vector.shape_cast %187 : vector<2x64xf32> to vector<2x1x64xf32>
    tpu.vector_store %arg15[%c0_73, %c1_74, %c64_75], %190 {strides = array<i32>} : memref<2x4x128xf32, #tpu.memory_space<vmem>>, vector<2x1x64xf32>,
    %c0_76 = arith.constant 0 : index
    %c0_77 = arith.constant 0 : index
    %c256_78 = arith.constant 256 : index
    %191 = vector.load %arg14[%c0_76, %c0_77, %c256_78] : memref<2x4x512xf32, #tpu.memory_space<vmem>>, vector<2x1x256xf32>
    %192 = vector.shape_cast %191 : vector<2x1x256xf32> to vector<2x256xf32>
    %cst_79 = arith.constant dense<0.000000e+00> : vector<2x256xf32>
    %193 = tpu.matmul %187, %25, %cst_79 {dimension_numbers = #tpu.dot_dimension_numbers<[1], [0], [0], [1], [0, 0, 1, 1], [], []>} : vector<2x64xf32>, vector<64x256xf32>, vector<2x256xf32> -> vector<2x256xf32>
    %194 = arith.addf %192, %193 : vector<2x256xf32>
    %195 = math.tanh %194 : vector<2x256xf32>
    %196 = arith.negf %194 : vector<2x256xf32>
    %197 = math.exp %196 : vector<2x256xf32>
    %cst_80 = arith.constant 1.000000e+00 : f32
    %198 = vector.broadcast %cst_80 : f32 to vector<2x256xf32>
    %199 = arith.addf %198, %197 : vector<2x256xf32>
    %200 = arith.divf %198, %199 : vector<2x256xf32>
    %201 = arith.select %5, %195, %200 : vector<2x256xi1>, vector<2x256xf32>
    %202 = vector.extract_strided_slice %201 {offsets = [0, 0], sizes = [2, 64], strides = [1, 1]} : vector<2x256xf32> to vector<2x64xf32>
    %203 = vector.extract_strided_slice %201 {offsets = [0, 64], sizes = [2, 64], strides = [1, 1]} : vector<2x256xf32> to vector<2x64xf32>
    %204 = vector.extract_strided_slice %201 {offsets = [0, 128], sizes = [2, 64], strides = [1, 1]} : vector<2x256xf32> to vector<2x64xf32>
    %205 = vector.extract_strided_slice %201 {offsets = [0, 192], sizes = [2, 64], strides = [1, 1]} : vector<2x256xf32> to vector<2x64xf32>
    %206 = arith.mulf %203, %185 : vector<2x64xf32>
    %207 = arith.mulf %202, %204 : vector<2x64xf32>
    %208 = arith.addf %206, %207 : vector<2x64xf32>
    %209 = math.tanh %208 : vector<2x64xf32>
    %210 = arith.mulf %205, %209 : vector<2x64xf32>
    %c0_81 = arith.constant 0 : index
    %c0_82 = arith.constant 0 : index
    %c64_83 = arith.constant 64 : index
    %211 = vector.load %arg15[%c0_81, %c0_82, %c64_83] : memref<2x4x128xf32, #tpu.memory_space<vmem>>, vector<2x1x64xf32>
    %212 = vector.shape_cast %211 : vector<2x1x64xf32> to vector<2x64xf32>
    %213 = vector.shape_cast %210 : vector<2x64xf32> to vector<2x1x64xf32>
    tpu.vector_store %arg15[%c0_81, %c0_82, %c64_83], %213 {strides = array<i32>} : memref<2x4x128xf32, #tpu.memory_space<vmem>>, vector<2x1x64xf32>,
    %c0_84 = arith.constant 0 : index
    %c0_85 = arith.constant 0 : index
    %c0_86 = arith.constant 0 : index
    %214 = vector.load %arg15[%c0_84, %c0_85, %c0_86] : memref<2x4x128xf32, #tpu.memory_space<vmem>>, vector<1x4x128xf32>
    %215 = vector.shape_cast %214 : vector<1x4x128xf32> to vector<4x128xf32>
    %c0_87 = arith.constant 0 : index
    %c0_88 = arith.constant 0 : index
    %216 = vector.load %arg5[%c0_87, %c0_88] : memref<128x512xf32, #tpu.memory_space<vmem>>, vector<128x512xf32>
    %cst_89 = arith.constant dense<0.000000e+00> : vector<4x512xf32>
    %217 = tpu.matmul %215, %216, %cst_89 {dimension_numbers = #tpu.dot_dimension_numbers<[1], [0], [0], [1], [0, 0, 1, 1], [], []>} : vector<4x128xf32>, vector<128x512xf32>, vector<4x512xf32> -> vector<4x512xf32>
    %c0_90 = arith.constant 0 : index
    %c0_91 = arith.constant 0 : index
    %218 = vector.load %arg8[%c0_90, %c0_91] : memref<1x512xf32, #tpu.memory_space<vmem>>, vector<1x512xf32>
    %219 = vector.broadcast %218 : vector<1x512xf32> to vector<4x512xf32>
    %220 = arith.addf %217, %219 : vector<4x512xf32>
    %c0_92 = arith.constant 0 : index
    %c0_93 = arith.constant 0 : index
    %c0_94 = arith.constant 0 : index
    %221 = vector.load %arg14[%c0_92, %c0_93, %c0_94] : memref<2x4x512xf32, #tpu.memory_space<vmem>>, vector<1x4x512xf32>
    %222 = vector.shape_cast %221 : vector<1x4x512xf32> to vector<4x512xf32>
    %223 = vector.shape_cast %220 : vector<4x512xf32> to vector<1x4x512xf32>
    tpu.vector_store %arg14[%c0_92, %c0_93, %c0_94], %223 {strides = array<i32>} : memref<2x4x512xf32, #tpu.memory_space<vmem>>, vector<1x4x512xf32>,
    %c1_95 = arith.constant 1 : index
    %c0_96 = arith.constant 0 : index
    %c0_97 = arith.constant 0 : index
    %224 = vector.load %arg15[%c1_95, %c0_96, %c0_97] : memref<2x4x128xf32, #tpu.memory_space<vmem>>, vector<1x4x128xf32>
    %225 = vector.shape_cast %224 : vector<1x4x128xf32> to vector<4x128xf32>
    %c0_98 = arith.constant 0 : index
    %c0_99 = arith.constant 0 : index
    %226 = vector.load %arg5[%c0_98, %c0_99] : memref<128x512xf32, #tpu.memory_space<vmem>>, vector<128x512xf32>
    %cst_100 = arith.constant dense<0.000000e+00> : vector<4x512xf32>
    %227 = tpu.matmul %225, %226, %cst_100 {dimension_numbers = #tpu.dot_dimension_numbers<[1], [0], [0], [1], [0, 0, 1, 1], [], []>} : vector<4x128xf32>, vector<128x512xf32>, vector<4x512xf32> -> vector<4x512xf32>
    %c0_101 = arith.constant 0 : index
    %c0_102 = arith.constant 0 : index
    %228 = vector.load %arg8[%c0_101, %c0_102] : memref<1x512xf32, #tpu.memory_space<vmem>>, vector<1x512xf32>
    %229 = vector.broadcast %228 : vector<1x512xf32> to vector<4x512xf32>
    %230 = arith.addf %227, %229 : vector<4x512xf32>
    %c1_103 = arith.constant 1 : index
    %c0_104 = arith.constant 0 : index
    %c0_105 = arith.constant 0 : index
    %231 = vector.load %arg14[%c1_103, %c0_104, %c0_105] : memref<2x4x512xf32, #tpu.memory_space<vmem>>, vector<1x4x512xf32>
    %232 = vector.shape_cast %231 : vector<1x4x512xf32> to vector<4x512xf32>
    %233 = vector.shape_cast %230 : vector<4x512xf32> to vector<1x4x512xf32>
    tpu.vector_store %arg14[%c1_103, %c0_104, %c0_105], %233 {strides = array<i32>} : memref<2x4x512xf32, #tpu.memory_space<vmem>>, vector<1x4x512xf32>,
    %c0_106 = arith.constant 0 : index
    %c0_107 = arith.constant 0 : index
    %234 = vector.load %arg6[%c0_106, %c0_107] : memref<64x256xf32, #tpu.memory_space<vmem>>, vector<64x256xf32>
    %c0_108 = arith.constant 0 : index
    %c0_109 = arith.constant 0 : index
    %235 = vector.load %arg7[%c0_108, %c0_109] : memref<64x256xf32, #tpu.memory_space<vmem>>, vector<64x256xf32>
    %cst_110 = arith.constant 0.000000e+00 : f32
    %236 = vector.broadcast %cst_110 : f32 to vector<2x64xf32>
    %cst_111 = arith.constant 0.000000e+00 : f32
    %237 = vector.broadcast %cst_111 : f32 to vector<2x64xf32>
    %c0_112 = arith.constant 0 : index
    %c0_113 = arith.constant 0 : index
    %c0_114 = arith.constant 0 : index
    %238 = vector.load %arg14[%c0_112, %c0_113, %c0_114] : memref<2x4x512xf32, #tpu.memory_space<vmem>>, vector<2x1x256xf32>
    %239 = vector.shape_cast %238 : vector<2x1x256xf32> to vector<2x256xf32>
    %cst_115 = arith.constant dense<0.000000e+00> : vector<2x256xf32>
    %240 = tpu.matmul %236, %234, %cst_115 {dimension_numbers = #tpu.dot_dimension_numbers<[1], [0], [0], [1], [0, 0, 1, 1], [], []>} : vector<2x64xf32>, vector<64x256xf32>, vector<2x256xf32> -> vector<2x256xf32>
    %241 = arith.addf %239, %240 : vector<2x256xf32>
    %242 = math.tanh %241 : vector<2x256xf32>
    %243 = arith.negf %241 : vector<2x256xf32>
    %244 = math.exp %243 : vector<2x256xf32>
    %cst_116 = arith.constant 1.000000e+00 : f32
    %245 = vector.broadcast %cst_116 : f32 to vector<2x256xf32>
    %246 = arith.addf %245, %244 : vector<2x256xf32>
    %247 = arith.divf %245, %246 : vector<2x256xf32>
    %248 = arith.select %5, %242, %247 : vector<2x256xi1>, vector<2x256xf32>
    %249 = vector.extract_strided_slice %248 {offsets = [0, 0], sizes = [2, 64], strides = [1, 1]} : vector<2x256xf32> to vector<2x64xf32>
    %250 = vector.extract_strided_slice %248 {offsets = [0, 64], sizes = [2, 64], strides = [1, 1]} : vector<2x256xf32> to vector<2x64xf32>
    %251 = vector.extract_strided_slice %248 {offsets = [0, 128], sizes = [2, 64], strides = [1, 1]} : vector<2x256xf32> to vector<2x64xf32>
    %252 = vector.extract_strided_slice %248 {offsets = [0, 192], sizes = [2, 64], strides = [1, 1]} : vector<2x256xf32> to vector<2x64xf32>
    %253 = arith.mulf %250, %237 : vector<2x64xf32>
    %254 = arith.mulf %249, %251 : vector<2x64xf32>
    %255 = arith.addf %253, %254 : vector<2x64xf32>
    %256 = math.tanh %255 : vector<2x64xf32>
    %257 = arith.mulf %252, %256 : vector<2x64xf32>
    %c0_117 = arith.constant 0 : index
    %c0_118 = arith.constant 0 : index
    %c0_119 = arith.constant 0 : index
    %258 = vector.load %arg15[%c0_117, %c0_118, %c0_119] : memref<2x4x128xf32, #tpu.memory_space<vmem>>, vector<2x1x64xf32>
    %259 = vector.shape_cast %258 : vector<2x1x64xf32> to vector<2x64xf32>
    %260 = vector.shape_cast %257 : vector<2x64xf32> to vector<2x1x64xf32>
    tpu.vector_store %arg15[%c0_117, %c0_118, %c0_119], %260 {strides = array<i32>} : memref<2x4x128xf32, #tpu.memory_space<vmem>>, vector<2x1x64xf32>,
    %c0_120 = arith.constant 0 : index
    %c1_121 = arith.constant 1 : index
    %c0_122 = arith.constant 0 : index
    %261 = vector.load %arg14[%c0_120, %c1_121, %c0_122] : memref<2x4x512xf32, #tpu.memory_space<vmem>>, vector<2x1x256xf32>
    %262 = vector.shape_cast %261 : vector<2x1x256xf32> to vector<2x256xf32>
    %cst_123 = arith.constant dense<0.000000e+00> : vector<2x256xf32>
    %263 = tpu.matmul %257, %234, %cst_123 {dimension_numbers = #tpu.dot_dimension_numbers<[1], [0], [0], [1], [0, 0, 1, 1], [], []>} : vector<2x64xf32>, vector<64x256xf32>, vector<2x256xf32> -> vector<2x256xf32>
    %264 = arith.addf %262, %263 : vector<2x256xf32>
    %265 = math.tanh %264 : vector<2x256xf32>
    %266 = arith.negf %264 : vector<2x256xf32>
    %267 = math.exp %266 : vector<2x256xf32>
    %cst_124 = arith.constant 1.000000e+00 : f32
    %268 = vector.broadcast %cst_124 : f32 to vector<2x256xf32>
    %269 = arith.addf %268, %267 : vector<2x256xf32>
    %270 = arith.divf %268, %269 : vector<2x256xf32>
    %271 = arith.select %5, %265, %270 : vector<2x256xi1>, vector<2x256xf32>
    %272 = vector.extract_strided_slice %271 {offsets = [0, 0], sizes = [2, 64], strides = [1, 1]} : vector<2x256xf32> to vector<2x64xf32>
    %273 = vector.extract_strided_slice %271 {offsets = [0, 64], sizes = [2, 64], strides = [1, 1]} : vector<2x256xf32> to vector<2x64xf32>
    %274 = vector.extract_strided_slice %271 {offsets = [0, 128], sizes = [2, 64], strides = [1, 1]} : vector<2x256xf32> to vector<2x64xf32>
    %275 = vector.extract_strided_slice %271 {offsets = [0, 192], sizes = [2, 64], strides = [1, 1]} : vector<2x256xf32> to vector<2x64xf32>
    %276 = arith.mulf %273, %255 : vector<2x64xf32>
    %277 = arith.mulf %272, %274 : vector<2x64xf32>
    %278 = arith.addf %276, %277 : vector<2x64xf32>
    %279 = math.tanh %278 : vector<2x64xf32>
    %280 = arith.mulf %275, %279 : vector<2x64xf32>
    %c0_125 = arith.constant 0 : index
    %c1_126 = arith.constant 1 : index
    %c0_127 = arith.constant 0 : index
    %281 = vector.load %arg15[%c0_125, %c1_126, %c0_127] : memref<2x4x128xf32, #tpu.memory_space<vmem>>, vector<2x1x64xf32>
    %282 = vector.shape_cast %281 : vector<2x1x64xf32> to vector<2x64xf32>
    %283 = vector.shape_cast %280 : vector<2x64xf32> to vector<2x1x64xf32>
    tpu.vector_store %arg15[%c0_125, %c1_126, %c0_127], %283 {strides = array<i32>} : memref<2x4x128xf32, #tpu.memory_space<vmem>>, vector<2x1x64xf32>,
    %c0_128 = arith.constant 0 : index
    %c2_129 = arith.constant 2 : index
    %c0_130 = arith.constant 0 : index
    %284 = vector.load %arg14[%c0_128, %c2_129, %c0_130] : memref<2x4x512xf32, #tpu.memory_space<vmem>>, vector<2x1x256xf32>
    %285 = vector.shape_cast %284 : vector<2x1x256xf32> to vector<2x256xf32>
    %cst_131 = arith.constant dense<0.000000e+00> : vector<2x256xf32>
    %286 = tpu.matmul %280, %234, %cst_131 {dimension_numbers = #tpu.dot_dimension_numbers<[1], [0], [0], [1], [0, 0, 1, 1], [], []>} : vector<2x64xf32>, vector<64x256xf32>, vector<2x256xf32> -> vector<2x256xf32>
    %287 = arith.addf %285, %286 : vector<2x256xf32>
    %288 = math.tanh %287 : vector<2x256xf32>
    %289 = arith.negf %287 : vector<2x256xf32>
    %290 = math.exp %289 : vector<2x256xf32>
    %cst_132 = arith.constant 1.000000e+00 : f32
    %291 = vector.broadcast %cst_132 : f32 to vector<2x256xf32>
    %292 = arith.addf %291, %290 : vector<2x256xf32>
    %293 = arith.divf %291, %292 : vector<2x256xf32>
    %294 = arith.select %5, %288, %293 : vector<2x256xi1>, vector<2x256xf32>
    %295 = vector.extract_strided_slice %294 {offsets = [0, 0], sizes = [2, 64], strides = [1, 1]} : vector<2x256xf32> to vector<2x64xf32>
    %296 = vector.extract_strided_slice %294 {offsets = [0, 64], sizes = [2, 64], strides = [1, 1]} : vector<2x256xf32> to vector<2x64xf32>
    %297 = vector.extract_strided_slice %294 {offsets = [0, 128], sizes = [2, 64], strides = [1, 1]} : vector<2x256xf32> to vector<2x64xf32>
    %298 = vector.extract_strided_slice %294 {offsets = [0, 192], sizes = [2, 64], strides = [1, 1]} : vector<2x256xf32> to vector<2x64xf32>
    %299 = arith.mulf %296, %278 : vector<2x64xf32>
    %300 = arith.mulf %295, %297 : vector<2x64xf32>
    %301 = arith.addf %299, %300 : vector<2x64xf32>
    %302 = math.tanh %301 : vector<2x64xf32>
    %303 = arith.mulf %298, %302 : vector<2x64xf32>
    %c0_133 = arith.constant 0 : index
    %c2_134 = arith.constant 2 : index
    %c0_135 = arith.constant 0 : index
    %304 = vector.load %arg15[%c0_133, %c2_134, %c0_135] : memref<2x4x128xf32, #tpu.memory_space<vmem>>, vector<2x1x64xf32>
    %305 = vector.shape_cast %304 : vector<2x1x64xf32> to vector<2x64xf32>
    %306 = vector.shape_cast %303 : vector<2x64xf32> to vector<2x1x64xf32>
    tpu.vector_store %arg15[%c0_133, %c2_134, %c0_135], %306 {strides = array<i32>} : memref<2x4x128xf32, #tpu.memory_space<vmem>>, vector<2x1x64xf32>,
    %c0_136 = arith.constant 0 : index
    %c3_137 = arith.constant 3 : index
    %c0_138 = arith.constant 0 : index
    %307 = vector.load %arg14[%c0_136, %c3_137, %c0_138] : memref<2x4x512xf32, #tpu.memory_space<vmem>>, vector<2x1x256xf32>
    %308 = vector.shape_cast %307 : vector<2x1x256xf32> to vector<2x256xf32>
    %cst_139 = arith.constant dense<0.000000e+00> : vector<2x256xf32>
    %309 = tpu.matmul %303, %234, %cst_139 {dimension_numbers = #tpu.dot_dimension_numbers<[1], [0], [0], [1], [0, 0, 1, 1], [], []>} : vector<2x64xf32>, vector<64x256xf32>, vector<2x256xf32> -> vector<2x256xf32>
    %310 = arith.addf %308, %309 : vector<2x256xf32>
    %311 = math.tanh %310 : vector<2x256xf32>
    %312 = arith.negf %310 : vector<2x256xf32>
    %313 = math.exp %312 : vector<2x256xf32>
    %cst_140 = arith.constant 1.000000e+00 : f32
    %314 = vector.broadcast %cst_140 : f32 to vector<2x256xf32>
    %315 = arith.addf %314, %313 : vector<2x256xf32>
    %316 = arith.divf %314, %315 : vector<2x256xf32>
    %317 = arith.select %5, %311, %316 : vector<2x256xi1>, vector<2x256xf32>
    %318 = vector.extract_strided_slice %317 {offsets = [0, 0], sizes = [2, 64], strides = [1, 1]} : vector<2x256xf32> to vector<2x64xf32>
    %319 = vector.extract_strided_slice %317 {offsets = [0, 64], sizes = [2, 64], strides = [1, 1]} : vector<2x256xf32> to vector<2x64xf32>
    %320 = vector.extract_strided_slice %317 {offsets = [0, 128], sizes = [2, 64], strides = [1, 1]} : vector<2x256xf32> to vector<2x64xf32>
    %321 = vector.extract_strided_slice %317 {offsets = [0, 192], sizes = [2, 64], strides = [1, 1]} : vector<2x256xf32> to vector<2x64xf32>
    %322 = arith.mulf %319, %301 : vector<2x64xf32>
    %323 = arith.mulf %318, %320 : vector<2x64xf32>
    %324 = arith.addf %322, %323 : vector<2x64xf32>
    %325 = math.tanh %324 : vector<2x64xf32>
    %326 = arith.mulf %321, %325 : vector<2x64xf32>
    %c0_141 = arith.constant 0 : index
    %c3_142 = arith.constant 3 : index
    %c0_143 = arith.constant 0 : index
    %327 = vector.load %arg15[%c0_141, %c3_142, %c0_143] : memref<2x4x128xf32, #tpu.memory_space<vmem>>, vector<2x1x64xf32>
    %328 = vector.shape_cast %327 : vector<2x1x64xf32> to vector<2x64xf32>
    %329 = vector.shape_cast %326 : vector<2x64xf32> to vector<2x1x64xf32>
    tpu.vector_store %arg15[%c0_141, %c3_142, %c0_143], %329 {strides = array<i32>} : memref<2x4x128xf32, #tpu.memory_space<vmem>>, vector<2x1x64xf32>,
    %cst_144 = arith.constant 0.000000e+00 : f32
    %330 = vector.broadcast %cst_144 : f32 to vector<2x64xf32>
    %cst_145 = arith.constant 0.000000e+00 : f32
    %331 = vector.broadcast %cst_145 : f32 to vector<2x64xf32>
    %c0_146 = arith.constant 0 : index
    %c3_147 = arith.constant 3 : index
    %c256_148 = arith.constant 256 : index
    %332 = vector.load %arg14[%c0_146, %c3_147, %c256_148] : memref<2x4x512xf32, #tpu.memory_space<vmem>>, vector<2x1x256xf32>
    %333 = vector.shape_cast %332 : vector<2x1x256xf32> to vector<2x256xf32>
    %cst_149 = arith.constant dense<0.000000e+00> : vector<2x256xf32>
    %334 = tpu.matmul %330, %235, %cst_149 {dimension_numbers = #tpu.dot_dimension_numbers<[1], [0], [0], [1], [0, 0, 1, 1], [], []>} : vector<2x64xf32>, vector<64x256xf32>, vector<2x256xf32> -> vector<2x256xf32>
    %335 = arith.addf %333, %334 : vector<2x256xf32>
    %336 = math.tanh %335 : vector<2x256xf32>
    %337 = arith.negf %335 : vector<2x256xf32>
    %338 = math.exp %337 : vector<2x256xf32>
    %cst_150 = arith.constant 1.000000e+00 : f32
    %339 = vector.broadcast %cst_150 : f32 to vector<2x256xf32>
    %340 = arith.addf %339, %338 : vector<2x256xf32>
    %341 = arith.divf %339, %340 : vector<2x256xf32>
    %342 = arith.select %5, %336, %341 : vector<2x256xi1>, vector<2x256xf32>
    %343 = vector.extract_strided_slice %342 {offsets = [0, 0], sizes = [2, 64], strides = [1, 1]} : vector<2x256xf32> to vector<2x64xf32>
    %344 = vector.extract_strided_slice %342 {offsets = [0, 64], sizes = [2, 64], strides = [1, 1]} : vector<2x256xf32> to vector<2x64xf32>
    %345 = vector.extract_strided_slice %342 {offsets = [0, 128], sizes = [2, 64], strides = [1, 1]} : vector<2x256xf32> to vector<2x64xf32>
    %346 = vector.extract_strided_slice %342 {offsets = [0, 192], sizes = [2, 64], strides = [1, 1]} : vector<2x256xf32> to vector<2x64xf32>
    %347 = arith.mulf %344, %331 : vector<2x64xf32>
    %348 = arith.mulf %343, %345 : vector<2x64xf32>
    %349 = arith.addf %347, %348 : vector<2x64xf32>
    %350 = math.tanh %349 : vector<2x64xf32>
    %351 = arith.mulf %346, %350 : vector<2x64xf32>
    %c0_151 = arith.constant 0 : index
    %c3_152 = arith.constant 3 : index
    %c64_153 = arith.constant 64 : index
    %352 = vector.load %arg15[%c0_151, %c3_152, %c64_153] : memref<2x4x128xf32, #tpu.memory_space<vmem>>, vector<2x1x64xf32>
    %353 = vector.shape_cast %352 : vector<2x1x64xf32> to vector<2x64xf32>
    %354 = vector.shape_cast %351 : vector<2x64xf32> to vector<2x1x64xf32>
    tpu.vector_store %arg15[%c0_151, %c3_152, %c64_153], %354 {strides = array<i32>} : memref<2x4x128xf32, #tpu.memory_space<vmem>>, vector<2x1x64xf32>,
    %c0_154 = arith.constant 0 : index
    %c2_155 = arith.constant 2 : index
    %c256_156 = arith.constant 256 : index
    %355 = vector.load %arg14[%c0_154, %c2_155, %c256_156] : memref<2x4x512xf32, #tpu.memory_space<vmem>>, vector<2x1x256xf32>
    %356 = vector.shape_cast %355 : vector<2x1x256xf32> to vector<2x256xf32>
    %cst_157 = arith.constant dense<0.000000e+00> : vector<2x256xf32>
    %357 = tpu.matmul %351, %235, %cst_157 {dimension_numbers = #tpu.dot_dimension_numbers<[1], [0], [0], [1], [0, 0, 1, 1], [], []>} : vector<2x64xf32>, vector<64x256xf32>, vector<2x256xf32> -> vector<2x256xf32>
    %358 = arith.addf %356, %357 : vector<2x256xf32>
    %359 = math.tanh %358 : vector<2x256xf32>
    %360 = arith.negf %358 : vector<2x256xf32>
    %361 = math.exp %360 : vector<2x256xf32>
    %cst_158 = arith.constant 1.000000e+00 : f32
    %362 = vector.broadcast %cst_158 : f32 to vector<2x256xf32>
    %363 = arith.addf %362, %361 : vector<2x256xf32>
    %364 = arith.divf %362, %363 : vector<2x256xf32>
    %365 = arith.select %5, %359, %364 : vector<2x256xi1>, vector<2x256xf32>
    %366 = vector.extract_strided_slice %365 {offsets = [0, 0], sizes = [2, 64], strides = [1, 1]} : vector<2x256xf32> to vector<2x64xf32>
    %367 = vector.extract_strided_slice %365 {offsets = [0, 64], sizes = [2, 64], strides = [1, 1]} : vector<2x256xf32> to vector<2x64xf32>
    %368 = vector.extract_strided_slice %365 {offsets = [0, 128], sizes = [2, 64], strides = [1, 1]} : vector<2x256xf32> to vector<2x64xf32>
    %369 = vector.extract_strided_slice %365 {offsets = [0, 192], sizes = [2, 64], strides = [1, 1]} : vector<2x256xf32> to vector<2x64xf32>
    %370 = arith.mulf %367, %349 : vector<2x64xf32>
    %371 = arith.mulf %366, %368 : vector<2x64xf32>
    %372 = arith.addf %370, %371 : vector<2x64xf32>
    %373 = math.tanh %372 : vector<2x64xf32>
    %374 = arith.mulf %369, %373 : vector<2x64xf32>
    %c0_159 = arith.constant 0 : index
    %c2_160 = arith.constant 2 : index
    %c64_161 = arith.constant 64 : index
    %375 = vector.load %arg15[%c0_159, %c2_160, %c64_161] : memref<2x4x128xf32, #tpu.memory_space<vmem>>, vector<2x1x64xf32>
    %376 = vector.shape_cast %375 : vector<2x1x64xf32> to vector<2x64xf32>
    %377 = vector.shape_cast %374 : vector<2x64xf32> to vector<2x1x64xf32>
    tpu.vector_store %arg15[%c0_159, %c2_160, %c64_161], %377 {strides = array<i32>} : memref<2x4x128xf32, #tpu.memory_space<vmem>>, vector<2x1x64xf32>,
    %c0_162 = arith.constant 0 : index
    %c1_163 = arith.constant 1 : index
    %c256_164 = arith.constant 256 : index
    %378 = vector.load %arg14[%c0_162, %c1_163, %c256_164] : memref<2x4x512xf32, #tpu.memory_space<vmem>>, vector<2x1x256xf32>
    %379 = vector.shape_cast %378 : vector<2x1x256xf32> to vector<2x256xf32>
    %cst_165 = arith.constant dense<0.000000e+00> : vector<2x256xf32>
    %380 = tpu.matmul %374, %235, %cst_165 {dimension_numbers = #tpu.dot_dimension_numbers<[1], [0], [0], [1], [0, 0, 1, 1], [], []>} : vector<2x64xf32>, vector<64x256xf32>, vector<2x256xf32> -> vector<2x256xf32>
    %381 = arith.addf %379, %380 : vector<2x256xf32>
    %382 = math.tanh %381 : vector<2x256xf32>
    %383 = arith.negf %381 : vector<2x256xf32>
    %384 = math.exp %383 : vector<2x256xf32>
    %cst_166 = arith.constant 1.000000e+00 : f32
    %385 = vector.broadcast %cst_166 : f32 to vector<2x256xf32>
    %386 = arith.addf %385, %384 : vector<2x256xf32>
    %387 = arith.divf %385, %386 : vector<2x256xf32>
    %388 = arith.select %5, %382, %387 : vector<2x256xi1>, vector<2x256xf32>
    %389 = vector.extract_strided_slice %388 {offsets = [0, 0], sizes = [2, 64], strides = [1, 1]} : vector<2x256xf32> to vector<2x64xf32>
    %390 = vector.extract_strided_slice %388 {offsets = [0, 64], sizes = [2, 64], strides = [1, 1]} : vector<2x256xf32> to vector<2x64xf32>
    %391 = vector.extract_strided_slice %388 {offsets = [0, 128], sizes = [2, 64], strides = [1, 1]} : vector<2x256xf32> to vector<2x64xf32>
    %392 = vector.extract_strided_slice %388 {offsets = [0, 192], sizes = [2, 64], strides = [1, 1]} : vector<2x256xf32> to vector<2x64xf32>
    %393 = arith.mulf %390, %372 : vector<2x64xf32>
    %394 = arith.mulf %389, %391 : vector<2x64xf32>
    %395 = arith.addf %393, %394 : vector<2x64xf32>
    %396 = math.tanh %395 : vector<2x64xf32>
    %397 = arith.mulf %392, %396 : vector<2x64xf32>
    %c0_167 = arith.constant 0 : index
    %c1_168 = arith.constant 1 : index
    %c64_169 = arith.constant 64 : index
    %398 = vector.load %arg15[%c0_167, %c1_168, %c64_169] : memref<2x4x128xf32, #tpu.memory_space<vmem>>, vector<2x1x64xf32>
    %399 = vector.shape_cast %398 : vector<2x1x64xf32> to vector<2x64xf32>
    %400 = vector.shape_cast %397 : vector<2x64xf32> to vector<2x1x64xf32>
    tpu.vector_store %arg15[%c0_167, %c1_168, %c64_169], %400 {strides = array<i32>} : memref<2x4x128xf32, #tpu.memory_space<vmem>>, vector<2x1x64xf32>,
    %c0_170 = arith.constant 0 : index
    %c0_171 = arith.constant 0 : index
    %c256_172 = arith.constant 256 : index
    %401 = vector.load %arg14[%c0_170, %c0_171, %c256_172] : memref<2x4x512xf32, #tpu.memory_space<vmem>>, vector<2x1x256xf32>
    %402 = vector.shape_cast %401 : vector<2x1x256xf32> to vector<2x256xf32>
    %cst_173 = arith.constant dense<0.000000e+00> : vector<2x256xf32>
    %403 = tpu.matmul %397, %235, %cst_173 {dimension_numbers = #tpu.dot_dimension_numbers<[1], [0], [0], [1], [0, 0, 1, 1], [], []>} : vector<2x64xf32>, vector<64x256xf32>, vector<2x256xf32> -> vector<2x256xf32>
    %404 = arith.addf %402, %403 : vector<2x256xf32>
    %405 = math.tanh %404 : vector<2x256xf32>
    %406 = arith.negf %404 : vector<2x256xf32>
    %407 = math.exp %406 : vector<2x256xf32>
    %cst_174 = arith.constant 1.000000e+00 : f32
    %408 = vector.broadcast %cst_174 : f32 to vector<2x256xf32>
    %409 = arith.addf %408, %407 : vector<2x256xf32>
    %410 = arith.divf %408, %409 : vector<2x256xf32>
    %411 = arith.select %5, %405, %410 : vector<2x256xi1>, vector<2x256xf32>
    %412 = vector.extract_strided_slice %411 {offsets = [0, 0], sizes = [2, 64], strides = [1, 1]} : vector<2x256xf32> to vector<2x64xf32>
    %413 = vector.extract_strided_slice %411 {offsets = [0, 64], sizes = [2, 64], strides = [1, 1]} : vector<2x256xf32> to vector<2x64xf32>
    %414 = vector.extract_strided_slice %411 {offsets = [0, 128], sizes = [2, 64], strides = [1, 1]} : vector<2x256xf32> to vector<2x64xf32>
    %415 = vector.extract_strided_slice %411 {offsets = [0, 192], sizes = [2, 64], strides = [1, 1]} : vector<2x256xf32> to vector<2x64xf32>
    %416 = arith.mulf %413, %395 : vector<2x64xf32>
    %417 = arith.mulf %412, %414 : vector<2x64xf32>
    %418 = arith.addf %416, %417 : vector<2x64xf32>
    %419 = math.tanh %418 : vector<2x64xf32>
    %420 = arith.mulf %415, %419 : vector<2x64xf32>
    %c0_175 = arith.constant 0 : index
    %c0_176 = arith.constant 0 : index
    %c64_177 = arith.constant 64 : index
    %421 = vector.load %arg15[%c0_175, %c0_176, %c64_177] : memref<2x4x128xf32, #tpu.memory_space<vmem>>, vector<2x1x64xf32>
    %422 = vector.shape_cast %421 : vector<2x1x64xf32> to vector<2x64xf32>
    %423 = vector.shape_cast %420 : vector<2x64xf32> to vector<2x1x64xf32>
    tpu.vector_store %arg15[%c0_175, %c0_176, %c64_177], %423 {strides = array<i32>} : memref<2x4x128xf32, #tpu.memory_space<vmem>>, vector<2x1x64xf32>,
    %c0_178 = arith.constant 0 : index
    %c0_179 = arith.constant 0 : index
    %c0_180 = arith.constant 0 : index
    %424 = vector.load %arg15[%c0_178, %c0_179, %c0_180] : memref<2x4x128xf32, #tpu.memory_space<vmem>>, vector<2x4x128xf32>
    %c0_181 = arith.constant 0 : index
    %c0_182 = arith.constant 0 : index
    %c0_183 = arith.constant 0 : index
    %425 = vector.load %arg9[%c0_181, %c0_182, %c0_183] : memref<1x1x128xf32, #tpu.memory_space<vmem>>, vector<1x1x128xf32>
    %426 = vector.broadcast %425 : vector<1x1x128xf32> to vector<2x4x128xf32>
    %427 = arith.mulf %424, %426 : vector<2x4x128xf32>
    %cst_184 = arith.constant dense<0.000000e+00> : vector<2x4xf32>
    %428 = vector.multi_reduction <add>, %427, %cst_184 [2] : vector<2x4x128xf32> to vector<2x4xf32>
    %429 = vector.shape_cast %428 : vector<2x4xf32> to vector<2x4x1xf32>
    %c0_185 = arith.constant 0 : index
    %c0_186 = arith.constant 0 : index
    %c0_187 = arith.constant 0 : index
    %430 = vector.load %arg10[%c0_185, %c0_186, %c0_187] : memref<1x1x1xf32, #tpu.memory_space<vmem>>, vector<1x1x1xf32>
    %431 = vector.broadcast %430 : vector<1x1x1xf32> to vector<2x4x1xf32>
    %432 = arith.addf %429, %431 : vector<2x4x1xf32>
    %cst_188 = arith.constant dense<0xFF800000> : vector<2x1xf32>
    %433 = vector.multi_reduction <maximumf>, %432, %cst_188 [1] : vector<2x4x1xf32> to vector<2x1xf32>
    %434 = vector.shape_cast %433 : vector<2x1xf32> to vector<2x1x1xf32>
    %435 = vector.broadcast %434 : vector<2x1x1xf32> to vector<2x4x1xf32>
    %436 = arith.subf %432, %435 : vector<2x4x1xf32>
    %437 = math.exp %436 : vector<2x4x1xf32>
    %cst_189 = arith.constant dense<0.000000e+00> : vector<2x1xf32>
    %438 = vector.multi_reduction <add>, %437, %cst_189 [1] : vector<2x4x1xf32> to vector<2x1xf32>
    %439 = vector.shape_cast %438 : vector<2x1xf32> to vector<2x1x1xf32>
    %440 = tpu.reciprocal %439 {approx = true} : vector<2x1x1xf32> -> vector<2x1x1xf32>
    %441 = vector.broadcast %440 : vector<2x1x1xf32> to vector<2x4x1xf32>
    %442 = arith.mulf %437, %441 : vector<2x4x1xf32>
    %443 = vector.broadcast %442 : vector<2x4x1xf32> to vector<2x4x128xf32>
    %444 = arith.mulf %424, %443 : vector<2x4x128xf32>
    %cst_190 = arith.constant dense<0.000000e+00> : vector<2x128xf32>
    %445 = vector.multi_reduction <add>, %444, %cst_190 [1] : vector<2x4x128xf32> to vector<2x128xf32>
    %c0_191 = arith.constant 0 : index
    %c0_192 = arith.constant 0 : index
    %446 = vector.load %arg11[%c0_191, %c0_192] : memref<128x2xf32, #tpu.memory_space<vmem>>, vector<128x2xf32>
    %cst_193 = arith.constant dense<0.000000e+00> : vector<2x2xf32>
    %447 = tpu.matmul %445, %446, %cst_193 {dimension_numbers = #tpu.dot_dimension_numbers<[1], [0], [0], [1], [0, 0, 1, 1], [], []>} : vector<2x128xf32>, vector<128x2xf32>, vector<2x2xf32> -> vector<2x2xf32>
    %c0_194 = arith.constant 0 : index
    %c0_195 = arith.constant 0 : index
    %448 = vector.load %arg12[%c0_194, %c0_195] : memref<1x2xf32, #tpu.memory_space<vmem>>, vector<1x2xf32>
    %449 = vector.broadcast %448 : vector<1x2xf32> to vector<2x2xf32>
    %450 = arith.addf %447, %449 : vector<2x2xf32>
    %c0_196 = arith.constant 0 : index
    %c0_197 = arith.constant 0 : index
    %451 = vector.load %arg13[%c0_196, %c0_197] : memref<2x2xf32, #tpu.memory_space<vmem>>, vector<2x2xf32>
    tpu.vector_store %arg13[%c0_196, %c0_197], %450 {strides = array<i32>} : memref<2x2xf32, #tpu.memory_space<vmem>>, vector<2x2xf32>,
    return
  }
}

</mosaic_0001>

<llo_original>
// kernel: forward.3
$region0: #{forward.3}
  #allocation0 [shape = 'u32[]', space=smem, size = 0x4, offset = 0x4, fixed_abs, tag = 'smem constant byte address 0x4 - core index']
  #allocation1 [shape = 'u32[144,128]{1,0:T(1,128)}', space=vmem, size = 0x12000, scoped, tag = 'internal scratch']
  #allocation2 [shape = 'f32[2,10,16]{2,1,0:T(8,128)}', space=vmem, size = 0x4000, scoped, tag = 'scratch operand']
  %s0 = inlined_call_operand.vmem [shape: f32[2,18,1], index: 0, kind: input, shape index: {}]
  %s1 = inlined_call_operand.hbm [shape: f32[3,16], index: 1, kind: input, shape index: {}]
  %s2 = inlined_call_operand.hbm [shape: f32[1,16], index: 2, kind: input, shape index: {}]
  %s3 = inlined_call_operand.vmem [shape: f32[48,32], index: 3, kind: input, shape index: {}]
  %s4 = inlined_call_operand.hbm [shape: f32[1,32], index: 4, kind: input, shape index: {}]
  %s5 = inlined_call_operand.vmem [shape: f32[8,32], index: 5, kind: output, shape index: {}]
  %s6 = sld [smem:[#allocation0]]
  $region42: #{forward.3} parent=0
    _
  %s8 = ssub.s32 1, %s6
  %s9 = scalar_select 0, %s8, %s6
  $region1: #{forward.3} parent=0
    #allocation3 [shape = 'u8[2048]{0}', space=vmem, size = 0x800, scoped, tag = 'input window, operand 1, single buffered']
    #allocation4 [shape = 's32[1]{0}', space=sflag, size = 0x4, scoped, tag = 'scoped memory for forward.3']
    #allocation5 [shape = 'u8[512]{0}', space=vmem, size = 0x400, scoped, tag = 'input window, operand 2, single buffered']
    #allocation6 [shape = 's32[1]{0}', space=sflag, size = 0x4, scoped, tag = 'scoped memory for forward.3']
    #allocation7 [shape = 'u8[512]{0}', space=vmem, size = 0x400, scoped, tag = 'input window, operand 4, single buffered']
    %10 = vsyncpa [#allocation4], 0
    %11 = vsyncpa [#allocation6], 0
    // Predicated region
    $region2: #{forward.3} parent=1 // pred_check
      _
    $region3: #{forward.3} parent=1 // pred_check_branch
      %13 = sbr.rel (0) target = $region5
    $region4: #{forward.3} parent=1 // pred_region
      _
    $region5: #{forward.3} parent=1 // pred_fallthru
      _
    // Predicated region
    $region6: #{forward.3} parent=1 // pred_check
      _
    $region7: #{forward.3} parent=1 // pred_check_branch
      %15 = sbr.rel (0) target = $region9
    $region8: #{forward.3} parent=1 // pred_region
      %s17 = ssub.s32 64, 64
      %18 = vsyncadd [#allocation4], %s17
      %s20 = sshll.u32 [#allocation3], 4
      %s21 = int_to_ptr.vmem [resolvable:$true] %s20
      %23 = dma.hbm_to_vmem [thread:$0]  %s1, 64, %s21, [#allocation4]
    $region9: #{forward.3} parent=1 // pred_fallthru
      _
    // Predicated region
    $region10: #{forward.3} parent=1 // pred_check
      _
    $region11: #{forward.3} parent=1 // pred_check_branch
      %25 = sbr.rel (0) target = $region13
    $region12: #{forward.3} parent=1 // pred_region
      %s27 = ssub.s32 16, 16
      %28 = vsyncadd [#allocation6], %s27
      %s30 = sshll.u32 [#allocation5], 4
      %s31 = int_to_ptr.vmem [resolvable:$true] %s30
      %33 = dma.hbm_to_vmem [thread:$0]  %s2, 16, %s31, [#allocation6]
    $region13: #{forward.3} parent=1 // pred_fallthru
      _
    // Predicated region
    $region14: #{forward.3} parent=1 // pred_check
      _
    $region15: #{forward.3} parent=1 // pred_check_branch
      %35 = sbr.rel (0) target = $region17
    $region16: #{forward.3} parent=1 // pred_region
      _
    $region17: #{forward.3} parent=1 // pred_fallthru
      _
    // Predicated region
    $region18: #{forward.3} parent=1 // pred_check
      _
    $region19: #{forward.3} parent=1 // pred_check_branch
      %37 = sbr.rel (0) target = $region21
    $region20: #{forward.3} parent=1 // pred_region
      %s39 = ssub.s32 16, 16
      %40 = vsyncadd [#allocation6], %s39
      %s42 = sshll.u32 [#allocation7], 4
      %s43 = int_to_ptr.vmem [resolvable:$true] %s42
      %45 = dma.hbm_to_vmem [thread:$0]  %s4, 16, %s43, [#allocation6]
    $region21: #{forward.3} parent=1 // pred_fallthru
      _
    // Predicated region
    $region22: #{forward.3} parent=1 // pred_check
      _
    $region23: #{forward.3} parent=1 // pred_check_branch
      %47 = sbr.rel (0) target = $region25
    $region24: #{forward.3} parent=1 // pred_region
      %48 = dma.done [#allocation4], 64
    $region25: #{forward.3} parent=1 // pred_fallthru
      _
    // Predicated region
    $region26: #{forward.3} parent=1 // pred_check
      _
    $region27: #{forward.3} parent=1 // pred_check_branch
      %50 = sbr.rel (0) target = $region29
    $region28: #{forward.3} parent=1 // pred_region
      %51 = dma.done [#allocation6], 16
    $region29: #{forward.3} parent=1 // pred_fallthru
      _
    // Predicated region
    $region30: #{forward.3} parent=1 // pred_check
      _
    $region31: #{forward.3} parent=1 // pred_check_branch
      %53 = sbr.rel (0) target = $region33
    $region32: #{forward.3} parent=1 // pred_region
      %54 = dma.done [#allocation6], 16
    $region33: #{forward.3} parent=1 // pred_fallthru
      _
    %v55 = vld [vmem:[#allocation5] sm:$0x1]
    %v57 = vlaneseq
    %v58 = vshrl.u32 %v57, 7
    %v59 = vsub.s32 0, %v58
    %v60 = vrot.slane %v55, %v59
    %v62 = vadd.f32 %v60, 0.0
    %v63 = vld [vmem:[%s0] sm:$0xff]
    %v64 = vld [vmem:[%s0 + $0x8] sm:$0xff]
    %v65 = vld [vmem:[%s0 + $0x18] sm:$0xff]
    %v66 = vld [vmem:[%s0 + $0x20] sm:$0xff]
    %v67 = vld [vmem:[#allocation3] sm:$0x1]
    %69 = vset.pattern.permute.xlu0 0
    %70 = vperm.xlu0 %69, %v63
    %v71 = vpop.permute.xlu0 %70
    %74 = vset.pattern.permute.xlu0 0
    %75 = vperm.xlu0 %74, %v64
    %v76 = vpop.permute.xlu0 %75
    %79 = vset.pattern.permute.xlu0 0
    %80 = vperm.xlu0 %79, %v65
    %v81 = vpop.permute.xlu0 %80
    %84 = vset.pattern.permute.xlu0 0
    %85 = vperm.xlu0 %84, %v66
    %v86 = vpop.permute.xlu0 %85
    %v88 = vlaneseq
    %v89 = vshrl.u32 %v88, 7
    %v90 = vsub.s32 0, %v89
    %v91 = vrot.slane %v67, %v90
    %v92 = vmul.f32 %v71, %v91
    %v93 = vmul.f32 %v76, %v91
    %v94 = vmul.f32 %v81, %v91
    %v95 = vmul.f32 %v86, %v91
    %v96 = vadd.f32 %v62, %v92
    %v97 = vadd.f32 %v62, %v93
    %v98 = vadd.f32 %v62, %v94
    %v99 = vadd.f32 %v62, %v95
    %v100 = vld [vmem:[%s0 + $0x1] sm:$0xff]
    %v101 = vld [vmem:[%s0 + $0x9] sm:$0xff]
    %v102 = vld [vmem:[%s0 + $0x19] sm:$0xff]
    %v103 = vld [vmem:[%s0 + $0x21] sm:$0xff]
    %v104 = vld [vmem:[#allocation3 + $0x1] sm:$0x1]
    %106 = vset.pattern.permute.xlu0 0
    %107 = vperm.xlu0 %106, %v100
    %v108 = vpop.permute.xlu0 %107
    %111 = vset.pattern.permute.xlu0 0
    %112 = vperm.xlu0 %111, %v101
    %v113 = vpop.permute.xlu0 %112
    %116 = vset.pattern.permute.xlu0 0
    %117 = vperm.xlu0 %116, %v102
    %v118 = vpop.permute.xlu0 %117
    %121 = vset.pattern.permute.xlu0 0
    %122 = vperm.xlu0 %121, %v103
    %v123 = vpop.permute.xlu0 %122
    %v125 = vlaneseq
    %v126 = vshrl.u32 %v125, 7
    %v127 = vsub.s32 0, %v126
    %v128 = vrot.slane %v104, %v127
    %v129 = vmul.f32 %v108, %v128
    %v130 = vmul.f32 %v113, %v128
    %v131 = vmul.f32 %v118, %v128
    %v132 = vmul.f32 %v123, %v128
    %v133 = vadd.f32 %v96, %v129
    %v134 = vadd.f32 %v97, %v130
    %v135 = vadd.f32 %v98, %v131
    %v136 = vadd.f32 %v99, %v132
    %v137 = vld [vmem:[%s0 + $0x2] sm:$0xff]
    %v138 = vld [vmem:[%s0 + $0xa] sm:$0xff]
    %v139 = vld [vmem:[%s0 + $0x1a] sm:$0xff]
    %v140 = vld [vmem:[%s0 + $0x22] sm:$0xff]
    %v141 = vld [vmem:[#allocation3 + $0x2] sm:$0x1]
    %143 = vset.pattern.permute.xlu0 0
    %144 = vperm.xlu0 %143, %v137
    %v145 = vpop.permute.xlu0 %144
    %148 = vset.pattern.permute.xlu0 0
    %149 = vperm.xlu0 %148, %v138
    %v150 = vpop.permute.xlu0 %149
    %153 = vset.pattern.permute.xlu0 0
    %154 = vperm.xlu0 %153, %v139
    %v155 = vpop.permute.xlu0 %154
    %158 = vset.pattern.permute.xlu0 0
    %159 = vperm.xlu0 %158, %v140
    %v160 = vpop.permute.xlu0 %159
    %v162 = vlaneseq
    %v163 = vshrl.u32 %v162, 7
    %v164 = vsub.s32 0, %v163
    %v165 = vrot.slane %v141, %v164
    %v166 = vmul.f32 %v145, %v165
    %v167 = vmul.f32 %v150, %v165
    %v168 = vmul.f32 %v155, %v165
    %v169 = vmul.f32 %v160, %v165
    %v170 = vadd.f32 %v133, %v166
    %v171 = vadd.f32 %v134, %v167
    %v172 = vadd.f32 %v135, %v168
    %v173 = vadd.f32 %v136, %v169
    %v174 = vmax.f32 %v170, 0.0
    %v175 = vmax.f32 %v171, 0.0
    %v176 = vmax.f32 %v172, 0.0
    %v177 = vmax.f32 %v173, 0.0
    %vm178 = vcmask 130048
    %179 = vst.msk [vmem:[#allocation2] sm:$0xff] %vm178, 0.0
    %vm180 = vcmask 123904
    %181 = vst.msk [vmem:[#allocation2 + $0x8] sm:$0x3] %vm180, 0.0
    %182 = vst.msk [vmem:[#allocation2 + $0x10] sm:$0xff] %vm178, 0.0
    %183 = vst.msk [vmem:[#allocation2 + $0x18] sm:$0x3] %vm180, 0.0
    %v186 = vrot.slane %v174, 1
    %v187 = vrot.slane %v176, 1
    %v190 = vmax.f32 %v174, %v186
    %v191 = vmax.f32 %v176, %v187
    %vm192 = vcmask 122880
    %193 = vst.msk [vmem:[#allocation2 + $0x1] sm:$0x1] %vm192, %v190
    %194 = vst.msk [vmem:[#allocation2 + $0x11] sm:$0x1] %vm192, %v191
    %vm195 = vcmask 124930
    %196 = vst.msk [vmem:[#allocation2] sm:$0x4] %vm195, %v190
    %197 = vst.msk [vmem:[#allocation2 + $0x10] sm:$0x4] %vm195, %v191
    %vm198 = vcmask 126980
    %199 = vst.msk [vmem:[#allocation2 - $0x1] sm:$0x10] %vm198, %v190
    %200 = vst.msk [vmem:[#allocation2 + $0xf] sm:$0x10] %vm198, %v191
    %vm201 = vcmask 129030
    %202 = vst.msk [vmem:[#allocation2 - $0x2] sm:$0x40] %vm201, %v190
    %203 = vst.msk [vmem:[#allocation2 + $0xe] sm:$0x40] %vm201, %v191
    %v206 = vrot.slane %v175, 1
    %v207 = vrot.slane %v177, 1
    %v210 = vmax.f32 %v175, %v206
    %v211 = vmax.f32 %v177, %v207
    %212 = vst.msk [vmem:[#allocation2 + $0x5] sm:$0x1] %vm192, %v210
    %213 = vst.msk [vmem:[#allocation2 + $0x15] sm:$0x1] %vm192, %v211
    %214 = vst.msk [vmem:[#allocation2 + $0x4] sm:$0x4] %vm195, %v210
    %215 = vst.msk [vmem:[#allocation2 + $0x14] sm:$0x4] %vm195, %v211
    %216 = vst.msk [vmem:[#allocation2 + $0x3] sm:$0x10] %vm198, %v210
    %217 = vst.msk [vmem:[#allocation2 + $0x13] sm:$0x10] %vm198, %v211
    %218 = vst.msk [vmem:[#allocation2 + $0x2] sm:$0x40] %vm201, %v210
    %219 = vst.msk [vmem:[#allocation2 + $0x12] sm:$0x40] %vm201, %v211
    %v220 = vld [vmem:[#allocation7] sm:$0x1]
    %v222 = vlaneseq
    %v223 = vshrl.u32 %v222, 7
    %v224 = vsub.s32 0, %v223
    %v225 = vrot.slane %v220, %v224
    %v227 = vadd.f32 %v225, 0.0
    %v228 = vld [vmem:[#allocation2] sm:$0xff]
    %v229 = vld [vmem:[%s3] sm:$0xff]
    %v230 = vld [vmem:[%s3 + $0x8] sm:$0xff]
    %v232 = vsel %vm178, %v228, 0
    %234 = vmatprep.subr.mxu0 0.0
    %235 = vmatpush1.msra.mxu0 0.0
    %236 = vmatprep.subr.mxu0 0.0
    %237 = vmatpush1.msra.mxu0 0.0
    %238 = vmatprep.subr.mxu0 0.0
    %239 = vmatpush1.msra.mxu0 0.0
    %240 = vmatprep.subr.mxu0 0.0
    %241 = vmatpush1.msra.mxu0 0.0
    %242 = vmatprep.subr.mxu0 0.0
    %243 = vmatpush1.msra.mxu0 0.0
    %244 = vmatprep.subr.mxu0 0.0
    %245 = vmatpush1.msra.mxu0 0.0
    %246 = vmatprep.subr.mxu0 0.0
    %247 = vmatpush1.msra.mxu0 0.0
    %248 = vmatprep.subr.mxu0 0.0
    %249 = vmatpush1.msra.mxu0 0.0
    %250 = vmatprep.subr.mxu0 0.0
    %251 = vmatpush1.msra.mxu0 0.0
    %252 = vmatprep.subr.mxu0 0.0
    %253 = vmatpush1.msra.mxu0 0.0
    %254 = vmatprep.subr.mxu0 0.0
    %255 = vmatpush1.msra.mxu0 0.0
    %256 = vmatprep.subr.mxu0 0.0
    %257 = vmatpush1.msra.mxu0 0.0
    %258 = vmatprep.subr.mxu0 0.0
    %259 = vmatpush1.msra.mxu0 0.0
    %260 = vmatprep.subr.mxu0 0.0
    %261 = vmatpush1.msra.mxu0 0.0
    %262 = vmatprep.subr.mxu0 0.0
    %263 = vmatpush1.msra.mxu0 %v230
    %264 = vmatprep.subr.mxu0 0.0
    %265 = vmatpush1.msra.mxu0 %v229
    %266 = vmatprep.subr.mxu0 0.0
    %267 = vmatpush2.msra.mxu0 0.0
    %268 = vmatprep.subr.mxu0 0.0
    %269 = vmatpush2.msra.mxu0 0.0
    %270 = vmatprep.subr.mxu0 0.0
    %271 = vmatpush2.msra.mxu0 0.0
    %272 = vmatprep.subr.mxu0 0.0
    %273 = vmatpush2.msra.mxu0 0.0
    %274 = vmatprep.subr.mxu0 0.0
    %275 = vmatpush2.msra.mxu0 0.0
    %276 = vmatprep.subr.mxu0 0.0
    %277 = vmatpush2.msra.mxu0 0.0
    %278 = vmatprep.subr.mxu0 0.0
    %279 = vmatpush2.msra.mxu0 0.0
    %280 = vmatprep.subr.mxu0 0.0
    %281 = vmatpush2.msra.mxu0 0.0
    %282 = vmatprep.subr.mxu0 0.0
    %283 = vmatpush2.msra.mxu0 0.0
    %284 = vmatprep.subr.mxu0 0.0
    %285 = vmatpush2.msra.mxu0 0.0
    %286 = vmatprep.subr.mxu0 0.0
    %287 = vmatpush2.msra.mxu0 0.0
    %288 = vmatprep.subr.mxu0 0.0
    %289 = vmatpush2.msra.mxu0 0.0
    %290 = vmatprep.subr.mxu0 0.0
    %291 = vmatpush2.msra.mxu0 0.0
    %292 = vmatprep.subr.mxu0 0.0
    %293 = vmatpush2.msra.mxu0 0.0
    %294 = vmatprep.subr.mxu0 0.0
    %295 = vmatpush2.msra.mxu0 0.0
    %296 = vmatprep.subr.mxu0 0.0
    %297 = vmatpush2.msra.mxu0 0.0
    %298 = vmatprep.mubr.f32.mxu0 0.0
    %299 = vmatmul.mubr.f32.gmra.mxu0 %v232
    %v300 = vpop.f32.mrf.mxu0
    %v301 = vadd.f32 0.0, %v300
    %v302 = vpop.f32.mrf.mxu0
    %303 = vdwg.mxu0
    %v304 = vadd.f32 %v227, %v301
    %v305 = vld [vmem:[#allocation2 + $0x1] sm:$0xff]
    %v306 = vld [vmem:[%s3 + $0x10] sm:$0xff]
    %v307 = vld [vmem:[%s3 + $0x18] sm:$0xff]
    %v309 = vsel %vm178, %v305, 0
    %311 = vmatprep.subr.mxu0 0.0
    %312 = vmatpush1.msra.mxu0 0.0
    %313 = vmatprep.subr.mxu0 0.0
    %314 = vmatpush1.msra.mxu0 0.0
    %315 = vmatprep.subr.mxu0 0.0
    %316 = vmatpush1.msra.mxu0 0.0
    %317 = vmatprep.subr.mxu0 0.0
    %318 = vmatpush1.msra.mxu0 0.0
    %319 = vmatprep.subr.mxu0 0.0
    %320 = vmatpush1.msra.mxu0 0.0
    %321 = vmatprep.subr.mxu0 0.0
    %322 = vmatpush1.msra.mxu0 0.0
    %323 = vmatprep.subr.mxu0 0.0
    %324 = vmatpush1.msra.mxu0 0.0
    %325 = vmatprep.subr.mxu0 0.0
    %326 = vmatpush1.msra.mxu0 0.0
    %327 = vmatprep.subr.mxu0 0.0
    %328 = vmatpush1.msra.mxu0 0.0
    %329 = vmatprep.subr.mxu0 0.0
    %330 = vmatpush1.msra.mxu0 0.0
    %331 = vmatprep.subr.mxu0 0.0
    %332 = vmatpush1.msra.mxu0 0.0
    %333 = vmatprep.subr.mxu0 0.0
    %334 = vmatpush1.msra.mxu0 0.0
    %335 = vmatprep.subr.mxu0 0.0
    %336 = vmatpush1.msra.mxu0 0.0
    %337 = vmatprep.subr.mxu0 0.0
    %338 = vmatpush1.msra.mxu0 0.0
    %339 = vmatprep.subr.mxu0 0.0
    %340 = vmatpush1.msra.mxu0 %v307
    %341 = vmatprep.subr.mxu0 0.0
    %342 = vmatpush1.msra.mxu0 %v306
    %343 = vmatprep.subr.mxu0 0.0
    %344 = vmatpush2.msra.mxu0 0.0
    %345 = vmatprep.subr.mxu0 0.0
    %346 = vmatpush2.msra.mxu0 0.0
    %347 = vmatprep.subr.mxu0 0.0
    %348 = vmatpush2.msra.mxu0 0.0
    %349 = vmatprep.subr.mxu0 0.0
    %350 = vmatpush2.msra.mxu0 0.0
    %351 = vmatprep.subr.mxu0 0.0
    %352 = vmatpush2.msra.mxu0 0.0
    %353 = vmatprep.subr.mxu0 0.0
    %354 = vmatpush2.msra.mxu0 0.0
    %355 = vmatprep.subr.mxu0 0.0
    %356 = vmatpush2.msra.mxu0 0.0
    %357 = vmatprep.subr.mxu0 0.0
    %358 = vmatpush2.msra.mxu0 0.0
    %359 = vmatprep.subr.mxu0 0.0
    %360 = vmatpush2.msra.mxu0 0.0
    %361 = vmatprep.subr.mxu0 0.0
    %362 = vmatpush2.msra.mxu0 0.0
    %363 = vmatprep.subr.mxu0 0.0
    %364 = vmatpush2.msra.mxu0 0.0
    %365 = vmatprep.subr.mxu0 0.0
    %366 = vmatpush2.msra.mxu0 0.0
    %367 = vmatprep.subr.mxu0 0.0
    %368 = vmatpush2.msra.mxu0 0.0
    %369 = vmatprep.subr.mxu0 0.0
    %370 = vmatpush2.msra.mxu0 0.0
    %371 = vmatprep.subr.mxu0 0.0
    %372 = vmatpush2.msra.mxu0 0.0
    %373 = vmatprep.subr.mxu0 0.0
    %374 = vmatpush2.msra.mxu0 0.0
    %375 = vmatprep.mubr.f32.mxu0 0.0
    %376 = vmatmul.mubr.f32.gmra.mxu0 %v309
    %v377 = vpop.f32.mrf.mxu0
    %v378 = vadd.f32 0.0, %v377
    %v379 = vpop.f32.mrf.mxu0
    %380 = vdwg.mxu0
    %v381 = vadd.f32 %v304, %v378
    %v382 = vld [vmem:[#allocation2 + $0x2] sm:$0xff]
    %v383 = vld [vmem:[%s3 + $0x20] sm:$0xff]
    %v384 = vld [vmem:[%s3 + $0x28] sm:$0xff]
    %v386 = vsel %vm178, %v382, 0
    %388 = vmatprep.subr.mxu0 0.0
    %389 = vmatpush1.msra.mxu0 0.0
    %390 = vmatprep.subr.mxu0 0.0
    %391 = vmatpush1.msra.mxu0 0.0
    %392 = vmatprep.subr.mxu0 0.0
    %393 = vmatpush1.msra.mxu0 0.0
    %394 = vmatprep.subr.mxu0 0.0
    %395 = vmatpush1.msra.mxu0 0.0
    %396 = vmatprep.subr.mxu0 0.0
    %397 = vmatpush1.msra.mxu0 0.0
    %398 = vmatprep.subr.mxu0 0.0
    %399 = vmatpush1.msra.mxu0 0.0
    %400 = vmatprep.subr.mxu0 0.0
    %401 = vmatpush1.msra.mxu0 0.0
    %402 = vmatprep.subr.mxu0 0.0
    %403 = vmatpush1.msra.mxu0 0.0
    %404 = vmatprep.subr.mxu0 0.0
    %405 = vmatpush1.msra.mxu0 0.0
    %406 = vmatprep.subr.mxu0 0.0
    %407 = vmatpush1.msra.mxu0 0.0
    %408 = vmatprep.subr.mxu0 0.0
    %409 = vmatpush1.msra.mxu0 0.0
    %410 = vmatprep.subr.mxu0 0.0
    %411 = vmatpush1.msra.mxu0 0.0
    %412 = vmatprep.subr.mxu0 0.0
    %413 = vmatpush1.msra.mxu0 0.0
    %414 = vmatprep.subr.mxu0 0.0
    %415 = vmatpush1.msra.mxu0 0.0
    %416 = vmatprep.subr.mxu0 0.0
    %417 = vmatpush1.msra.mxu0 %v384
    %418 = vmatprep.subr.mxu0 0.0
    %419 = vmatpush1.msra.mxu0 %v383
    %420 = vmatprep.subr.mxu0 0.0
    %421 = vmatpush2.msra.mxu0 0.0
    %422 = vmatprep.subr.mxu0 0.0
    %423 = vmatpush2.msra.mxu0 0.0
    %424 = vmatprep.subr.mxu0 0.0
    %425 = vmatpush2.msra.mxu0 0.0
    %426 = vmatprep.subr.mxu0 0.0
    %427 = vmatpush2.msra.mxu0 0.0
    %428 = vmatprep.subr.mxu0 0.0
    %429 = vmatpush2.msra.mxu0 0.0
    %430 = vmatprep.subr.mxu0 0.0
    %431 = vmatpush2.msra.mxu0 0.0
    %432 = vmatprep.subr.mxu0 0.0
    %433 = vmatpush2.msra.mxu0 0.0
    %434 = vmatprep.subr.mxu0 0.0
    %435 = vmatpush2.msra.mxu0 0.0
    %436 = vmatprep.subr.mxu0 0.0
    %437 = vmatpush2.msra.mxu0 0.0
    %438 = vmatprep.subr.mxu0 0.0
    %439 = vmatpush2.msra.mxu0 0.0
    %440 = vmatprep.subr.mxu0 0.0
    %441 = vmatpush2.msra.mxu0 0.0
    %442 = vmatprep.subr.mxu0 0.0
    %443 = vmatpush2.msra.mxu0 0.0
    %444 = vmatprep.subr.mxu0 0.0
    %445 = vmatpush2.msra.mxu0 0.0
    %446 = vmatprep.subr.mxu0 0.0
    %447 = vmatpush2.msra.mxu0 0.0
    %448 = vmatprep.subr.mxu0 0.0
    %449 = vmatpush2.msra.mxu0 0.0
    %450 = vmatprep.subr.mxu0 0.0
    %451 = vmatpush2.msra.mxu0 0.0
    %452 = vmatprep.mubr.f32.mxu0 0.0
    %453 = vmatmul.mubr.f32.gmra.mxu0 %v386
    %v454 = vpop.f32.mrf.mxu0
    %v455 = vadd.f32 0.0, %v454
    %v456 = vpop.f32.mrf.mxu0
    %457 = vdwg.mxu0
    %v458 = vadd.f32 %v381, %v455
    %v459 = vmax.f32 %v458, 0.0
    %v461 = vrot.slane %v459, 1
    %v463 = vmax.f32 %v459, %v461
    %vm464 = vcmask 253952
    %465 = vst.msk [vmem:[%s5] sm:$0x1] %vm464, %v463
    %vm466 = vcmask 256002
    %467 = vst.msk [vmem:[%s5 - $0x1] sm:$0x4] %vm466, %v463
    %vm468 = vcmask 258052
    %469 = vst.msk [vmem:[%s5 - $0x2] sm:$0x10] %vm468, %v463
    %vm470 = vcmask 260102
    %471 = vst.msk [vmem:[%s5 - $0x3] sm:$0x40] %vm470, %v463
    %s472 = scalar_lea.vmem [#allocation2], 16
    %v473 = vld [vmem:[%s472] sm:$0xff]
    %v474 = vld [vmem:[%s3] sm:$0xff]
    %v475 = vld [vmem:[%s3 + $0x8] sm:$0xff]
    %v477 = vsel %vm178, %v473, 0
    %479 = vmatprep.subr.mxu0 0.0
    %480 = vmatpush1.msra.mxu0 0.0
    %481 = vmatprep.subr.mxu0 0.0
    %482 = vmatpush1.msra.mxu0 0.0
    %483 = vmatprep.subr.mxu0 0.0
    %484 = vmatpush1.msra.mxu0 0.0
    %485 = vmatprep.subr.mxu0 0.0
    %486 = vmatpush1.msra.mxu0 0.0
    %487 = vmatprep.subr.mxu0 0.0
    %488 = vmatpush1.msra.mxu0 0.0
    %489 = vmatprep.subr.mxu0 0.0
    %490 = vmatpush1.msra.mxu0 0.0
    %491 = vmatprep.subr.mxu0 0.0
    %492 = vmatpush1.msra.mxu0 0.0
    %493 = vmatprep.subr.mxu0 0.0
    %494 = vmatpush1.msra.mxu0 0.0
    %495 = vmatprep.subr.mxu0 0.0
    %496 = vmatpush1.msra.mxu0 0.0
    %497 = vmatprep.subr.mxu0 0.0
    %498 = vmatpush1.msra.mxu0 0.0
    %499 = vmatprep.subr.mxu0 0.0
    %500 = vmatpush1.msra.mxu0 0.0
    %501 = vmatprep.subr.mxu0 0.0
    %502 = vmatpush1.msra.mxu0 0.0
    %503 = vmatprep.subr.mxu0 0.0
    %504 = vmatpush1.msra.mxu0 0.0
    %505 = vmatprep.subr.mxu0 0.0
    %506 = vmatpush1.msra.mxu0 0.0
    %507 = vmatprep.subr.mxu0 0.0
    %508 = vmatpush1.msra.mxu0 %v475
    %509 = vmatprep.subr.mxu0 0.0
    %510 = vmatpush1.msra.mxu0 %v474
    %511 = vmatprep.subr.mxu0 0.0
    %512 = vmatpush2.msra.mxu0 0.0
    %513 = vmatprep.subr.mxu0 0.0
    %514 = vmatpush2.msra.mxu0 0.0
    %515 = vmatprep.subr.mxu0 0.0
    %516 = vmatpush2.msra.mxu0 0.0
    %517 = vmatprep.subr.mxu0 0.0
    %518 = vmatpush2.msra.mxu0 0.0
    %519 = vmatprep.subr.mxu0 0.0
    %520 = vmatpush2.msra.mxu0 0.0
    %521 = vmatprep.subr.mxu0 0.0
    %522 = vmatpush2.msra.mxu0 0.0
    %523 = vmatprep.subr.mxu0 0.0
    %524 = vmatpush2.msra.mxu0 0.0
    %525 = vmatprep.subr.mxu0 0.0
    %526 = vmatpush2.msra.mxu0 0.0
    %527 = vmatprep.subr.mxu0 0.0
    %528 = vmatpush2.msra.mxu0 0.0
    %529 = vmatprep.subr.mxu0 0.0
    %530 = vmatpush2.msra.mxu0 0.0
    %531 = vmatprep.subr.mxu0 0.0
    %532 = vmatpush2.msra.mxu0 0.0
    %533 = vmatprep.subr.mxu0 0.0
    %534 = vmatpush2.msra.mxu0 0.0
    %535 = vmatprep.subr.mxu0 0.0
    %536 = vmatpush2.msra.mxu0 0.0
    %537 = vmatprep.subr.mxu0 0.0
    %538 = vmatpush2.msra.mxu0 0.0
    %539 = vmatprep.subr.mxu0 0.0
    %540 = vmatpush2.msra.mxu0 0.0
    %541 = vmatprep.subr.mxu0 0.0
    %542 = vmatpush2.msra.mxu0 0.0
    %543 = vmatprep.mubr.f32.mxu0 0.0
    %544 = vmatmul.mubr.f32.gmra.mxu0 %v477
    %v545 = vpop.f32.mrf.mxu0
    %v546 = vadd.f32 0.0, %v545
    %v547 = vpop.f32.mrf.mxu0
    %548 = vdwg.mxu0
    %v549 = vadd.f32 %v227, %v546
    %v550 = vld [vmem:[%s472 + $0x1] sm:$0xff]
    %v551 = vld [vmem:[%s3 + $0x10] sm:$0xff]
    %v552 = vld [vmem:[%s3 + $0x18] sm:$0xff]
    %v554 = vsel %vm178, %v550, 0
    %556 = vmatprep.subr.mxu0 0.0
    %557 = vmatpush1.msra.mxu0 0.0
    %558 = vmatprep.subr.mxu0 0.0
    %559 = vmatpush1.msra.mxu0 0.0
    %560 = vmatprep.subr.mxu0 0.0
    %561 = vmatpush1.msra.mxu0 0.0
    %562 = vmatprep.subr.mxu0 0.0
    %563 = vmatpush1.msra.mxu0 0.0
    %564 = vmatprep.subr.mxu0 0.0
    %565 = vmatpush1.msra.mxu0 0.0
    %566 = vmatprep.subr.mxu0 0.0
    %567 = vmatpush1.msra.mxu0 0.0
    %568 = vmatprep.subr.mxu0 0.0
    %569 = vmatpush1.msra.mxu0 0.0
    %570 = vmatprep.subr.mxu0 0.0
    %571 = vmatpush1.msra.mxu0 0.0
    %572 = vmatprep.subr.mxu0 0.0
    %573 = vmatpush1.msra.mxu0 0.0
    %574 = vmatprep.subr.mxu0 0.0
    %575 = vmatpush1.msra.mxu0 0.0
    %576 = vmatprep.subr.mxu0 0.0
    %577 = vmatpush1.msra.mxu0 0.0
    %578 = vmatprep.subr.mxu0 0.0
    %579 = vmatpush1.msra.mxu0 0.0
    %580 = vmatprep.subr.mxu0 0.0
    %581 = vmatpush1.msra.mxu0 0.0
    %582 = vmatprep.subr.mxu0 0.0
    %583 = vmatpush1.msra.mxu0 0.0
    %584 = vmatprep.subr.mxu0 0.0
    %585 = vmatpush1.msra.mxu0 %v552
    %586 = vmatprep.subr.mxu0 0.0
    %587 = vmatpush1.msra.mxu0 %v551
    %588 = vmatprep.subr.mxu0 0.0
    %589 = vmatpush2.msra.mxu0 0.0
    %590 = vmatprep.subr.mxu0 0.0
    %591 = vmatpush2.msra.mxu0 0.0
    %592 = vmatprep.subr.mxu0 0.0
    %593 = vmatpush2.msra.mxu0 0.0
    %594 = vmatprep.subr.mxu0 0.0
    %595 = vmatpush2.msra.mxu0 0.0
    %596 = vmatprep.subr.mxu0 0.0
    %597 = vmatpush2.msra.mxu0 0.0
    %598 = vmatprep.subr.mxu0 0.0
    %599 = vmatpush2.msra.mxu0 0.0
    %600 = vmatprep.subr.mxu0 0.0
    %601 = vmatpush2.msra.mxu0 0.0
    %602 = vmatprep.subr.mxu0 0.0
    %603 = vmatpush2.msra.mxu0 0.0
    %604 = vmatprep.subr.mxu0 0.0
    %605 = vmatpush2.msra.mxu0 0.0
    %606 = vmatprep.subr.mxu0 0.0
    %607 = vmatpush2.msra.mxu0 0.0
    %608 = vmatprep.subr.mxu0 0.0
    %609 = vmatpush2.msra.mxu0 0.0
    %610 = vmatprep.subr.mxu0 0.0
    %611 = vmatpush2.msra.mxu0 0.0
    %612 = vmatprep.subr.mxu0 0.0
    %613 = vmatpush2.msra.mxu0 0.0
    %614 = vmatprep.subr.mxu0 0.0
    %615 = vmatpush2.msra.mxu0 0.0
    %616 = vmatprep.subr.mxu0 0.0
    %617 = vmatpush2.msra.mxu0 0.0
    %618 = vmatprep.subr.mxu0 0.0
    %619 = vmatpush2.msra.mxu0 0.0
    %620 = vmatprep.mubr.f32.mxu0 0.0
    %621 = vmatmul.mubr.f32.gmra.mxu0 %v554
    %v622 = vpop.f32.mrf.mxu0
    %v623 = vadd.f32 0.0, %v622
    %v624 = vpop.f32.mrf.mxu0
    %625 = vdwg.mxu0
    %v626 = vadd.f32 %v549, %v623
    %v627 = vld [vmem:[%s472 + $0x2] sm:$0xff]
    %v628 = vld [vmem:[%s3 + $0x20] sm:$0xff]
    %v629 = vld [vmem:[%s3 + $0x28] sm:$0xff]
    %v631 = vsel %vm178, %v627, 0
    %633 = vmatprep.subr.mxu0 0.0
    %634 = vmatpush1.msra.mxu0 0.0
    %635 = vmatprep.subr.mxu0 0.0
    %636 = vmatpush1.msra.mxu0 0.0
    %637 = vmatprep.subr.mxu0 0.0
    %638 = vmatpush1.msra.mxu0 0.0
    %639 = vmatprep.subr.mxu0 0.0
    %640 = vmatpush1.msra.mxu0 0.0
    %641 = vmatprep.subr.mxu0 0.0
    %642 = vmatpush1.msra.mxu0 0.0
    %643 = vmatprep.subr.mxu0 0.0
    %644 = vmatpush1.msra.mxu0 0.0
    %645 = vmatprep.subr.mxu0 0.0
    %646 = vmatpush1.msra.mxu0 0.0
    %647 = vmatprep.subr.mxu0 0.0
    %648 = vmatpush1.msra.mxu0 0.0
    %649 = vmatprep.subr.mxu0 0.0
    %650 = vmatpush1.msra.mxu0 0.0
    %651 = vmatprep.subr.mxu0 0.0
    %652 = vmatpush1.msra.mxu0 0.0
    %653 = vmatprep.subr.mxu0 0.0
    %654 = vmatpush1.msra.mxu0 0.0
    %655 = vmatprep.subr.mxu0 0.0
    %656 = vmatpush1.msra.mxu0 0.0
    %657 = vmatprep.subr.mxu0 0.0
    %658 = vmatpush1.msra.mxu0 0.0
    %659 = vmatprep.subr.mxu0 0.0
    %660 = vmatpush1.msra.mxu0 0.0
    %661 = vmatprep.subr.mxu0 0.0
    %662 = vmatpush1.msra.mxu0 %v629
    %663 = vmatprep.subr.mxu0 0.0
    %664 = vmatpush1.msra.mxu0 %v628
    %665 = vmatprep.subr.mxu0 0.0
    %666 = vmatpush2.msra.mxu0 0.0
    %667 = vmatprep.subr.mxu0 0.0
    %668 = vmatpush2.msra.mxu0 0.0
    %669 = vmatprep.subr.mxu0 0.0
    %670 = vmatpush2.msra.mxu0 0.0
    %671 = vmatprep.subr.mxu0 0.0
    %672 = vmatpush2.msra.mxu0 0.0
    %673 = vmatprep.subr.mxu0 0.0
    %674 = vmatpush2.msra.mxu0 0.0
    %675 = vmatprep.subr.mxu0 0.0
    %676 = vmatpush2.msra.mxu0 0.0
    %677 = vmatprep.subr.mxu0 0.0
    %678 = vmatpush2.msra.mxu0 0.0
    %679 = vmatprep.subr.mxu0 0.0
    %680 = vmatpush2.msra.mxu0 0.0
    %681 = vmatprep.subr.mxu0 0.0
    %682 = vmatpush2.msra.mxu0 0.0
    %683 = vmatprep.subr.mxu0 0.0
    %684 = vmatpush2.msra.mxu0 0.0
    %685 = vmatprep.subr.mxu0 0.0
    %686 = vmatpush2.msra.mxu0 0.0
    %687 = vmatprep.subr.mxu0 0.0
    %688 = vmatpush2.msra.mxu0 0.0
    %689 = vmatprep.subr.mxu0 0.0
    %690 = vmatpush2.msra.mxu0 0.0
    %691 = vmatprep.subr.mxu0 0.0
    %692 = vmatpush2.msra.mxu0 0.0
    %693 = vmatprep.subr.mxu0 0.0
    %694 = vmatpush2.msra.mxu0 0.0
    %695 = vmatprep.subr.mxu0 0.0
    %696 = vmatpush2.msra.mxu0 0.0
    %697 = vmatprep.mubr.f32.mxu0 0.0
    %698 = vmatmul.mubr.f32.gmra.mxu0 %v631
    %v699 = vpop.f32.mrf.mxu0
    %v700 = vadd.f32 0.0, %v699
    %v701 = vpop.f32.mrf.mxu0
    %702 = vdwg.mxu0
    %v703 = vadd.f32 %v626, %v700
    %v704 = vmax.f32 %v703, 0.0
    %v706 = vrot.slane %v704, 1
    %v708 = vmax.f32 %v704, %v706
    %709 = vst.msk [vmem:[%s5 + $0x4] sm:$0x1] %vm464, %v708
    %710 = vst.msk [vmem:[%s5 + $0x3] sm:$0x4] %vm466, %v708
    %711 = vst.msk [vmem:[%s5 + $0x2] sm:$0x10] %vm468, %v708
    %712 = vst.msk [vmem:[%s5 + $0x1] sm:$0x40] %vm470, %v708
    // Predicated region
    $region34: #{forward.3} parent=1 // pred_check
      _
    $region35: #{forward.3} parent=1 // pred_check_branch
      %714 = sbr.rel (0) target = $region37
    $region36: #{forward.3} parent=1 // pred_region
      _
    $region37: #{forward.3} parent=1 // pred_fallthru
      _
    // Predicated region
    $region38: #{forward.3} parent=1 // pred_check
      _
    $region39: #{forward.3} parent=1 // pred_check_branch
      %716 = sbr.rel (0) target = $region41
    $region40: #{forward.3} parent=1 // pred_region
      _
    $region41: #{forward.3} parent=1 // pred_fallthru
      _
    %717 = vsyncpa [#allocation4], 1
    %718 = vsyncpa [#allocation6], 1

// kernel: forward.4
$region0: #{forward.4}
  #allocation0 [shape = 'u32[]', space=smem, size = 0x4, offset = 0x4, fixed_abs, tag = 'smem constant byte address 0x4 - core index']
  #allocation1 [shape = 'u32[144,128]{1,0:T(1,128)}', space=vmem, size = 0x12000, scoped, tag = 'internal scratch']
  #allocation2 [shape = 'f32[8,32]{1,0:T(8,128)}', space=vmem, size = 0x1000, scoped, tag = 'scratch operand']
  %s0 = inlined_call_operand.vmem [shape: f32[8,32], index: 0, kind: input, shape index: {}]
  %s1 = inlined_call_operand.vmem [shape: f32[32,96], index: 1, kind: input, shape index: {}]
  %s2 = inlined_call_operand.hbm [shape: f32[1,96], index: 2, kind: input, shape index: {}]
  %s3 = inlined_call_operand.vmem [shape: f32[32,32], index: 3, kind: input, shape index: {}]
  %s4 = inlined_call_operand.hbm [shape: f32[1,32], index: 4, kind: input, shape index: {}]
  %s5 = inlined_call_operand.vmem [shape: f32[32,128], index: 5, kind: input, shape index: {}]
  %s6 = inlined_call_operand.hbm [shape: f32[1,128], index: 6, kind: input, shape index: {}]
  %s7 = inlined_call_operand.vmem [shape: f32[128,32], index: 7, kind: input, shape index: {}]
  %s8 = inlined_call_operand.hbm [shape: f32[1,32], index: 8, kind: input, shape index: {}]
  %s9 = inlined_call_operand.hbm [shape: f32[1,32], index: 9, kind: input, shape index: {}]
  %s10 = inlined_call_operand.hbm [shape: f32[1,32], index: 10, kind: input, shape index: {}]
  %s11 = inlined_call_operand.hbm [shape: f32[1,32], index: 11, kind: input, shape index: {}]
  %s12 = inlined_call_operand.hbm [shape: f32[1,32], index: 12, kind: input, shape index: {}]
  %s13 = inlined_call_operand.vmem [shape: f32[8,32], index: 13, kind: output, shape index: {}]
  %s14 = sld [smem:[#allocation0]]
  $region94: #{forward.4} parent=0
    _
  %s16 = ssub.s32 1, %s14
  %s17 = scalar_select 0, %s16, %s14
  $region1: #{forward.4} parent=0
    #allocation3 [shape = 'u8[512]{0}', space=vmem, size = 0x400, scoped, tag = 'input window, operand 2, single buffered']
    #allocation4 [shape = 's32[1]{0}', space=sflag, size = 0x4, scoped, tag = 'scoped memory for forward.4']
    #allocation5 [shape = 'u8[512]{0}', space=vmem, size = 0x400, scoped, tag = 'input window, operand 4, single buffered']
    #allocation6 [shape = 's32[1]{0}', space=sflag, size = 0x4, scoped, tag = 'scoped memory for forward.4']
    #allocation7 [shape = 'u8[512]{0}', space=vmem, size = 0x400, scoped, tag = 'input window, operand 6, single buffered']
    #allocation8 [shape = 'u8[512]{0}', space=vmem, size = 0x400, scoped, tag = 'input window, operand 8, single buffered']
    #allocation9 [shape = 's32[1]{0}', space=sflag, size = 0x4, scoped, tag = 'scoped memory for forward.4']
    #allocation10 [shape = 'u8[512]{0}', space=vmem, size = 0x400, scoped, tag = 'input window, operand 9, single buffered']
    #allocation11 [shape = 'u8[512]{0}', space=vmem, size = 0x400, scoped, tag = 'input window, operand 10, single buffered']
    #allocation12 [shape = 's32[1]{0}', space=sflag, size = 0x4, scoped, tag = 'scoped memory for forward.4']
    #allocation13 [shape = 'u8[512]{0}', space=vmem, size = 0x400, scoped, tag = 'input window, operand 11, single buffered']
    #allocation14 [shape = 'u8[512]{0}', space=vmem, size = 0x400, scoped, tag = 'input window, operand 12, single buffered']
    #allocation15 [shape = 's32[1]{0}', space=sflag, size = 0x4, scoped, tag = 'scoped memory for forward.4']
    %18 = vsyncpa [#allocation4], 0
    %19 = vsyncpa [#allocation6], 0
    %20 = vsyncpa [#allocation9], 0
    %21 = vsyncpa [#allocation12], 0
    %22 = vsyncpa [#allocation15], 0
    // Predicated region
    $region2: #{forward.4} parent=1 // pred_check
      _
    $region3: #{forward.4} parent=1 // pred_check_branch
      %24 = sbr.rel (0) target = $region5
    $region4: #{forward.4} parent=1 // pred_region
      _
    $region5: #{forward.4} parent=1 // pred_fallthru
      _
    // Predicated region
    $region6: #{forward.4} parent=1 // pred_check
      _
    $region7: #{forward.4} parent=1 // pred_check_branch
      %26 = sbr.rel (0) target = $region9
    $region8: #{forward.4} parent=1 // pred_region
      _
    $region9: #{forward.4} parent=1 // pred_fallthru
      _
    // Predicated region
    $region10: #{forward.4} parent=1 // pred_check
      _
    $region11: #{forward.4} parent=1 // pred_check_branch
      %28 = sbr.rel (0) target = $region13
    $region12: #{forward.4} parent=1 // pred_region
      %s30 = ssub.s32 16, 16
      %31 = vsyncadd [#allocation4], %s30
      %s33 = sshll.u32 [#allocation3], 4
      %s34 = int_to_ptr.vmem [resolvable:$true] %s33
      %36 = dma.hbm_to_vmem [thread:$0]  %s2, 16, %s34, [#allocation4]
    $region13: #{forward.4} parent=1 // pred_fallthru
      _
    // Predicated region
    $region14: #{forward.4} parent=1 // pred_check
      _
    $region15: #{forward.4} parent=1 // pred_check_branch
      %38 = sbr.rel (0) target = $region17
    $region16: #{forward.4} parent=1 // pred_region
      _
    $region17: #{forward.4} parent=1 // pred_fallthru
      _
    // Predicated region
    $region18: #{forward.4} parent=1 // pred_check
      _
    $region19: #{forward.4} parent=1 // pred_check_branch
      %40 = sbr.rel (0) target = $region21
    $region20: #{forward.4} parent=1 // pred_region
      %s42 = ssub.s32 16, 16
      %43 = vsyncadd [#allocation6], %s42
      %s45 = sshll.u32 [#allocation5], 4
      %s46 = int_to_ptr.vmem [resolvable:$true] %s45
      %48 = dma.hbm_to_vmem [thread:$0]  %s4, 16, %s46, [#allocation6]
    $region21: #{forward.4} parent=1 // pred_fallthru
      _
    // Predicated region
    $region22: #{forward.4} parent=1 // pred_check
      _
    $region23: #{forward.4} parent=1 // pred_check_branch
      %50 = sbr.rel (0) target = $region25
    $region24: #{forward.4} parent=1 // pred_region
      _
    $region25: #{forward.4} parent=1 // pred_fallthru
      _
    // Predicated region
    $region26: #{forward.4} parent=1 // pred_check
      _
    $region27: #{forward.4} parent=1 // pred_check_branch
      %52 = sbr.rel (0) target = $region29
    $region28: #{forward.4} parent=1 // pred_region
      %s54 = ssub.s32 16, 16
      %55 = vsyncadd [#allocation6], %s54
      %s57 = sshll.u32 [#allocation7], 4
      %s58 = int_to_ptr.vmem [resolvable:$true] %s57
      %60 = dma.hbm_to_vmem [thread:$0]  %s6, 16, %s58, [#allocation6]
    $region29: #{forward.4} parent=1 // pred_fallthru
      _
    // Predicated region
    $region30: #{forward.4} parent=1 // pred_check
      _
    $region31: #{forward.4} parent=1 // pred_check_branch
      %62 = sbr.rel (0) target = $region33
    $region32: #{forward.4} parent=1 // pred_region
      _
    $region33: #{forward.4} parent=1 // pred_fallthru
      _
    // Predicated region
    $region34: #{forward.4} parent=1 // pred_check
      _
    $region35: #{forward.4} parent=1 // pred_check_branch
      %64 = sbr.rel (0) target = $region37
    $region36: #{forward.4} parent=1 // pred_region
      %s66 = ssub.s32 16, 16
      %67 = vsyncadd [#allocation9], %s66
      %s69 = sshll.u32 [#allocation8], 4
      %s70 = int_to_ptr.vmem [resolvable:$true] %s69
      %72 = dma.hbm_to_vmem [thread:$0]  %s8, 16, %s70, [#allocation9]
    $region37: #{forward.4} parent=1 // pred_fallthru
      _
    // Predicated region
    $region38: #{forward.4} parent=1 // pred_check
      _
    $region39: #{forward.4} parent=1 // pred_check_branch
      %74 = sbr.rel (0) target = $region41
    $region40: #{forward.4} parent=1 // pred_region
      %s76 = ssub.s32 16, 16
      %77 = vsyncadd [#allocation9], %s76
      %s79 = sshll.u32 [#allocation10], 4
      %s80 = int_to_ptr.vmem [resolvable:$true] %s79
      %82 = dma.hbm_to_vmem [thread:$0]  %s9, 16, %s80, [#allocation9]
    $region41: #{forward.4} parent=1 // pred_fallthru
      _
    // Predicated region
    $region42: #{forward.4} parent=1 // pred_check
      _
    $region43: #{forward.4} parent=1 // pred_check_branch
      %84 = sbr.rel (0) target = $region45
    $region44: #{forward.4} parent=1 // pred_region
      %s86 = ssub.s32 16, 16
      %87 = vsyncadd [#allocation12], %s86
      %s89 = sshll.u32 [#allocation11], 4
      %s90 = int_to_ptr.vmem [resolvable:$true] %s89
      %92 = dma.hbm_to_vmem [thread:$0]  %s10, 16, %s90, [#allocation12]
    $region45: #{forward.4} parent=1 // pred_fallthru
      _
    // Predicated region
    $region46: #{forward.4} parent=1 // pred_check
      _
    $region47: #{forward.4} parent=1 // pred_check_branch
      %94 = sbr.rel (0) target = $region49
    $region48: #{forward.4} parent=1 // pred_region
      %s96 = ssub.s32 16, 16
      %97 = vsyncadd [#allocation12], %s96
      %s99 = sshll.u32 [#allocation13], 4
      %s100 = int_to_ptr.vmem [resolvable:$true] %s99
      %102 = dma.hbm_to_vmem [thread:$0]  %s11, 16, %s100, [#allocation12]
    $region49: #{forward.4} parent=1 // pred_fallthru
      _
    // Predicated region
    $region50: #{forward.4} parent=1 // pred_check
      _
    $region51: #{forward.4} parent=1 // pred_check_branch
      %104 = sbr.rel (0) target = $region53
    $region52: #{forward.4} parent=1 // pred_region
      %s106 = ssub.s32 16, 16
      %107 = vsyncadd [#allocation15], %s106
      %s109 = sshll.u32 [#allocation14], 4
      %s110 = int_to_ptr.vmem [resolvable:$true] %s109
      %112 = dma.hbm_to_vmem [thread:$0]  %s12, 16, %s110, [#allocation15]
    $region53: #{forward.4} parent=1 // pred_fallthru
      _
    // Predicated region
    $region54: #{forward.4} parent=1 // pred_check
      _
    $region55: #{forward.4} parent=1 // pred_check_branch
      %114 = sbr.rel (0) target = $region57
    $region56: #{forward.4} parent=1 // pred_region
      %115 = dma.done [#allocation4], 16
    $region57: #{forward.4} parent=1 // pred_fallthru
      _
    // Predicated region
    $region58: #{forward.4} parent=1 // pred_check
      _
    $region59: #{forward.4} parent=1 // pred_check_branch
      %117 = sbr.rel (0) target = $region61
    $region60: #{forward.4} parent=1 // pred_region
      %118 = dma.done [#allocation6], 16
    $region61: #{forward.4} parent=1 // pred_fallthru
      _
    // Predicated region
    $region62: #{forward.4} parent=1 // pred_check
      _
    $region63: #{forward.4} parent=1 // pred_check_branch
      %120 = sbr.rel (0) target = $region65
    $region64: #{forward.4} parent=1 // pred_region
      %121 = dma.done [#allocation6], 16
    $region65: #{forward.4} parent=1 // pred_fallthru
      _
    // Predicated region
    $region66: #{forward.4} parent=1 // pred_check
      _
    $region67: #{forward.4} parent=1 // pred_check_branch
      %123 = sbr.rel (0) target = $region69
    $region68: #{forward.4} parent=1 // pred_region
      %124 = dma.done [#allocation9], 16
    $region69: #{forward.4} parent=1 // pred_fallthru
      _
    // Predicated region
    $region70: #{forward.4} parent=1 // pred_check
      _
    $region71: #{forward.4} parent=1 // pred_check_branch
      %126 = sbr.rel (0) target = $region73
    $region72: #{forward.4} parent=1 // pred_region
      %127 = dma.done [#allocation9], 16
    $region73: #{forward.4} parent=1 // pred_fallthru
      _
    // Predicated region
    $region74: #{forward.4} parent=1 // pred_check
      _
    $region75: #{forward.4} parent=1 // pred_check_branch
      %129 = sbr.rel (0) target = $region77
    $region76: #{forward.4} parent=1 // pred_region
      %130 = dma.done [#allocation12], 16
    $region77: #{forward.4} parent=1 // pred_fallthru
      _
    // Predicated region
    $region78: #{forward.4} parent=1 // pred_check
      _
    $region79: #{forward.4} parent=1 // pred_check_branch
      %132 = sbr.rel (0) target = $region81
    $region80: #{forward.4} parent=1 // pred_region
      %133 = dma.done [#allocation12], 16
    $region81: #{forward.4} parent=1 // pred_fallthru
      _
    // Predicated region
    $region82: #{forward.4} parent=1 // pred_check
      _
    $region83: #{forward.4} parent=1 // pred_check_branch
      %135 = sbr.rel (0) target = $region85
    $region84: #{forward.4} parent=1 // pred_region
      %136 = dma.done [#allocation15], 16
    $region85: #{forward.4} parent=1 // pred_fallthru
      _
    %v137 = vld [vmem:[%s0] sm:$0xff]
    %v138 = vld [vmem:[%s1] sm:$0xff]
    %v139 = vld [vmem:[%s1 + $0x8] sm:$0xff]
    %v140 = vld [vmem:[%s1 + $0x10] sm:$0xff]
    %v141 = vld [vmem:[%s1 + $0x18] sm:$0xff]
    %v142 = vld [vmem:[#allocation3] sm:$0x1]
    %v144 = vlaneseq
    %v145 = vshrl.u32 %v144, 7
    %v146 = vsub.s32 0, %v145
    %v147 = vrot.slane %v142, %v146
    %vm149 = vcmask 261120
    %v151 = vsel %vm149, %v137, 0
    %153 = vmatprep.subr.mxu0 0.0
    %154 = vmatpush1.msra.mxu0 0.0
    %155 = vmatprep.subr.mxu0 0.0
    %156 = vmatpush1.msra.mxu0 0.0
    %157 = vmatprep.subr.mxu0 0.0
    %158 = vmatpush1.msra.mxu0 0.0
    %159 = vmatprep.subr.mxu0 0.0
    %160 = vmatpush1.msra.mxu0 0.0
    %161 = vmatprep.subr.mxu0 0.0
    %162 = vmatpush1.msra.mxu0 0.0
    %163 = vmatprep.subr.mxu0 0.0
    %164 = vmatpush1.msra.mxu0 0.0
    %165 = vmatprep.subr.mxu0 0.0
    %166 = vmatpush1.msra.mxu0 0.0
    %167 = vmatprep.subr.mxu0 0.0
    %168 = vmatpush1.msra.mxu0 0.0
    %169 = vmatprep.subr.mxu0 0.0
    %170 = vmatpush1.msra.mxu0 0.0
    %171 = vmatprep.subr.mxu0 0.0
    %172 = vmatpush1.msra.mxu0 0.0
    %173 = vmatprep.subr.mxu0 0.0
    %174 = vmatpush1.msra.mxu0 0.0
    %175 = vmatprep.subr.mxu0 0.0
    %176 = vmatpush1.msra.mxu0 0.0
    %177 = vmatprep.subr.mxu0 0.0
    %178 = vmatpush1.msra.mxu0 %v141
    %179 = vmatprep.subr.mxu0 0.0
    %180 = vmatpush1.msra.mxu0 %v140
    %181 = vmatprep.subr.mxu0 0.0
    %182 = vmatpush1.msra.mxu0 %v139
    %183 = vmatprep.subr.mxu0 0.0
    %184 = vmatpush1.msra.mxu0 %v138
    %185 = vmatprep.subr.mxu0 0.0
    %186 = vmatpush2.msra.mxu0 0.0
    %187 = vmatprep.subr.mxu0 0.0
    %188 = vmatpush2.msra.mxu0 0.0
    %189 = vmatprep.subr.mxu0 0.0
    %190 = vmatpush2.msra.mxu0 0.0
    %191 = vmatprep.subr.mxu0 0.0
    %192 = vmatpush2.msra.mxu0 0.0
    %193 = vmatprep.subr.mxu0 0.0
    %194 = vmatpush2.msra.mxu0 0.0
    %195 = vmatprep.subr.mxu0 0.0
    %196 = vmatpush2.msra.mxu0 0.0
    %197 = vmatprep.subr.mxu0 0.0
    %198 = vmatpush2.msra.mxu0 0.0
    %199 = vmatprep.subr.mxu0 0.0
    %200 = vmatpush2.msra.mxu0 0.0
    %201 = vmatprep.subr.mxu0 0.0
    %202 = vmatpush2.msra.mxu0 0.0
    %203 = vmatprep.subr.mxu0 0.0
    %204 = vmatpush2.msra.mxu0 0.0
    %205 = vmatprep.subr.mxu0 0.0
    %206 = vmatpush2.msra.mxu0 0.0
    %207 = vmatprep.subr.mxu0 0.0
    %208 = vmatpush2.msra.mxu0 0.0
    %209 = vmatprep.subr.mxu0 0.0
    %210 = vmatpush2.msra.mxu0 0.0
    %211 = vmatprep.subr.mxu0 0.0
    %212 = vmatpush2.msra.mxu0 0.0
    %213 = vmatprep.subr.mxu0 0.0
    %214 = vmatpush2.msra.mxu0 0.0
    %215 = vmatprep.subr.mxu0 0.0
    %216 = vmatpush2.msra.mxu0 0.0
    %217 = vmatprep.mubr.f32.mxu0 0.0
    %218 = vmatmul.mubr.f32.gmra.mxu0 %v151
    %v219 = vpop.f32.mrf.mxu0
    %v220 = vadd.f32 %v147, %v219
    %v221 = vpop.f32.mrf.mxu0
    %222 = vdwg.mxu0
    %v223 = vmul.f32 %v220, 0.35355338
    %225 = vrot.lane.b32.xlu0 %v220, 96
    %v226 = vpop.permute.xlu0 %225
    %vm227 = vcmask 64512
    %v229 = vsel %vm227, %v223, 0
    %v231 = vsel %vm227, %v226, 0
    %233 = vmatprep.subr.mxu0 0.0
    %234 = vmatpush1.xpose.msra.mxu0 0.0
    %235 = vmatprep.subr.mxu0 0.0
    %236 = vmatpush1.xpose.msra.mxu0 0.0
    %237 = vmatprep.subr.mxu0 0.0
    %238 = vmatpush1.xpose.msra.mxu0 0.0
    %239 = vmatprep.subr.mxu0 0.0
    %240 = vmatpush1.xpose.msra.mxu0 0.0
    %241 = vmatprep.subr.mxu0 0.0
    %242 = vmatpush1.xpose.msra.mxu0 0.0
    %243 = vmatprep.subr.mxu0 0.0
    %244 = vmatpush1.xpose.msra.mxu0 0.0
    %245 = vmatprep.subr.mxu0 0.0
    %246 = vmatpush1.xpose.msra.mxu0 0.0
    %247 = vmatprep.subr.mxu0 0.0
    %248 = vmatpush1.xpose.msra.mxu0 0.0
    %249 = vmatprep.subr.mxu0 0.0
    %250 = vmatpush1.xpose.msra.mxu0 0.0
    %251 = vmatprep.subr.mxu0 0.0
    %252 = vmatpush1.xpose.msra.mxu0 0.0
    %253 = vmatprep.subr.mxu0 0.0
    %254 = vmatpush1.xpose.msra.mxu0 0.0
    %255 = vmatprep.subr.mxu0 0.0
    %256 = vmatpush1.xpose.msra.mxu0 0.0
    %257 = vmatprep.subr.mxu0 0.0
    %258 = vmatpush1.xpose.msra.mxu0 0.0
    %259 = vmatprep.subr.mxu0 0.0
    %260 = vmatpush1.xpose.msra.mxu0 0.0
    %261 = vmatprep.subr.mxu0 0.0
    %262 = vmatpush1.xpose.msra.mxu0 0.0
    %263 = vmatprep.subr.mxu0 0.0
    %264 = vmatpush1.xpose.msra.mxu0 %v231
    %265 = vmatprep.subr.mxu0 0.0
    %266 = vmatpush2.xpose.msra.mxu0 0.0
    %267 = vmatprep.subr.mxu0 0.0
    %268 = vmatpush2.xpose.msra.mxu0 0.0
    %269 = vmatprep.subr.mxu0 0.0
    %270 = vmatpush2.xpose.msra.mxu0 0.0
    %271 = vmatprep.subr.mxu0 0.0
    %272 = vmatpush2.xpose.msra.mxu0 0.0
    %273 = vmatprep.subr.mxu0 0.0
    %274 = vmatpush2.xpose.msra.mxu0 0.0
    %275 = vmatprep.subr.mxu0 0.0
    %276 = vmatpush2.xpose.msra.mxu0 0.0
    %277 = vmatprep.subr.mxu0 0.0
    %278 = vmatpush2.xpose.msra.mxu0 0.0
    %279 = vmatprep.subr.mxu0 0.0
    %280 = vmatpush2.xpose.msra.mxu0 0.0
    %281 = vmatprep.subr.mxu0 0.0
    %282 = vmatpush2.xpose.msra.mxu0 0.0
    %283 = vmatprep.subr.mxu0 0.0
    %284 = vmatpush2.xpose.msra.mxu0 0.0
    %285 = vmatprep.subr.mxu0 0.0
    %286 = vmatpush2.xpose.msra.mxu0 0.0
    %287 = vmatprep.subr.mxu0 0.0
    %288 = vmatpush2.xpose.msra.mxu0 0.0
    %289 = vmatprep.subr.mxu0 0.0
    %290 = vmatpush2.xpose.msra.mxu0 0.0
    %291 = vmatprep.subr.mxu0 0.0
    %292 = vmatpush2.xpose.msra.mxu0 0.0
    %293 = vmatprep.subr.mxu0 0.0
    %294 = vmatpush2.xpose.msra.mxu0 0.0
    %295 = vmatprep.subr.mxu0 0.0
    %296 = vmatpush2.xpose.msra.mxu0 0.0
    %297 = vmatprep.mubr.f32.mxu0 0.0
    %298 = vmatmul.mubr.f32.gmra.mxu0 %v229
    %v299 = vpop.f32.mrf.mxu0
    %v300 = vadd.f32 0.0, %v299
    %v301 = vpop.f32.mrf.mxu0
    %302 = vdwg.mxu0
    %vm303 = vcmask 27648
    %v304 = vsel %vm303, %v300, -inf
    %305 = vmax.xlane.f32.xlu0 %v304
    %v306 = vpop.xlane.xlu0 %305
    %v307 = vsub.f32 %v300, %v306
    %v308 = vmul.f32 %v307, 1.442695
    %v309 = vpow.pop %v308
    %v310 = vsel %vm303, %v309, 0.0
    %311 = vadd.xlane.f32.xlu0 %v310
    %v312 = vpop.xlane.xlu0 %311
    %v313 = vrcp.pop %v312
    %v314 = vmul.f32 %v309, %v313
    %315 = vrot.lane.b32.xlu0 %v220, 64
    %v316 = vpop.permute.xlu0 %315
    %vm317 = vcmask 31744
    %v319 = vsel %vm317, %v314, 0
    %vm321 = vcmask 1043456
    %v322 = vsel %vm321, %v316, 0
    %324 = vmatprep.subr.mxu0 0.0
    %325 = vmatpush1.msra.mxu0 0.0
    %326 = vmatprep.subr.mxu0 0.0
    %327 = vmatpush1.msra.mxu0 0.0
    %328 = vmatprep.subr.mxu0 0.0
    %329 = vmatpush1.msra.mxu0 0.0
    %330 = vmatprep.subr.mxu0 0.0
    %331 = vmatpush1.msra.mxu0 0.0
    %332 = vmatprep.subr.mxu0 0.0
    %333 = vmatpush1.msra.mxu0 0.0
    %334 = vmatprep.subr.mxu0 0.0
    %335 = vmatpush1.msra.mxu0 0.0
    %336 = vmatprep.subr.mxu0 0.0
    %337 = vmatpush1.msra.mxu0 0.0
    %338 = vmatprep.subr.mxu0 0.0
    %339 = vmatpush1.msra.mxu0 0.0
    %340 = vmatprep.subr.mxu0 0.0
    %341 = vmatpush1.msra.mxu0 0.0
    %342 = vmatprep.subr.mxu0 0.0
    %343 = vmatpush1.msra.mxu0 0.0
    %344 = vmatprep.subr.mxu0 0.0
    %345 = vmatpush1.msra.mxu0 0.0
    %346 = vmatprep.subr.mxu0 0.0
    %347 = vmatpush1.msra.mxu0 0.0
    %348 = vmatprep.subr.mxu0 0.0
    %349 = vmatpush1.msra.mxu0 0.0
    %350 = vmatprep.subr.mxu0 0.0
    %351 = vmatpush1.msra.mxu0 0.0
    %352 = vmatprep.subr.mxu0 0.0
    %353 = vmatpush1.msra.mxu0 0.0
    %354 = vmatprep.subr.mxu0 0.0
    %355 = vmatpush1.msra.mxu0 %v322
    %356 = vmatprep.subr.mxu0 0.0
    %357 = vmatpush2.msra.mxu0 0.0
    %358 = vmatprep.subr.mxu0 0.0
    %359 = vmatpush2.msra.mxu0 0.0
    %360 = vmatprep.subr.mxu0 0.0
    %361 = vmatpush2.msra.mxu0 0.0
    %362 = vmatprep.subr.mxu0 0.0
    %363 = vmatpush2.msra.mxu0 0.0
    %364 = vmatprep.subr.mxu0 0.0
    %365 = vmatpush2.msra.mxu0 0.0
    %366 = vmatprep.subr.mxu0 0.0
    %367 = vmatpush2.msra.mxu0 0.0
    %368 = vmatprep.subr.mxu0 0.0
    %369 = vmatpush2.msra.mxu0 0.0
    %370 = vmatprep.subr.mxu0 0.0
    %371 = vmatpush2.msra.mxu0 0.0
    %372 = vmatprep.subr.mxu0 0.0
    %373 = vmatpush2.msra.mxu0 0.0
    %374 = vmatprep.subr.mxu0 0.0
    %375 = vmatpush2.msra.mxu0 0.0
    %376 = vmatprep.subr.mxu0 0.0
    %377 = vmatpush2.msra.mxu0 0.0
    %378 = vmatprep.subr.mxu0 0.0
    %379 = vmatpush2.msra.mxu0 0.0
    %380 = vmatprep.subr.mxu0 0.0
    %381 = vmatpush2.msra.mxu0 0.0
    %382 = vmatprep.subr.mxu0 0.0
    %383 = vmatpush2.msra.mxu0 0.0
    %384 = vmatprep.subr.mxu0 0.0
    %385 = vmatpush2.msra.mxu0 0.0
    %386 = vmatprep.subr.mxu0 0.0
    %387 = vmatpush2.msra.mxu0 0.0
    %388 = vmatprep.mubr.f32.mxu0 0.0
    %389 = vmatmul.mubr.f32.gmra.mxu0 %v319
    %v390 = vpop.f32.mrf.mxu0
    %v391 = vadd.f32 0.0, %v390
    %v392 = vpop.f32.mrf.mxu0
    %393 = vdwg.mxu0
    %vm394 = vcmask 60416
    %395 = vst.msk [vmem:[#allocation2] sm:$0xf] %vm394, %v391
    %396 = vrot.lane.b32.xlu0 %v223, 120
    %v397 = vpop.permute.xlu0 %396
    %398 = vrot.lane.b32.xlu0 %v220, 88
    %v399 = vpop.permute.xlu0 %398
    %v400 = vsel %vm227, %v397, 0
    %v402 = vsel %vm227, %v399, 0
    %404 = vmatprep.subr.mxu0 0.0
    %405 = vmatpush1.xpose.msra.mxu0 0.0
    %406 = vmatprep.subr.mxu0 0.0
    %407 = vmatpush1.xpose.msra.mxu0 0.0
    %408 = vmatprep.subr.mxu0 0.0
    %409 = vmatpush1.xpose.msra.mxu0 0.0
    %410 = vmatprep.subr.mxu0 0.0
    %411 = vmatpush1.xpose.msra.mxu0 0.0
    %412 = vmatprep.subr.mxu0 0.0
    %413 = vmatpush1.xpose.msra.mxu0 0.0
    %414 = vmatprep.subr.mxu0 0.0
    %415 = vmatpush1.xpose.msra.mxu0 0.0
    %416 = vmatprep.subr.mxu0 0.0
    %417 = vmatpush1.xpose.msra.mxu0 0.0
    %418 = vmatprep.subr.mxu0 0.0
    %419 = vmatpush1.xpose.msra.mxu0 0.0
    %420 = vmatprep.subr.mxu0 0.0
    %421 = vmatpush1.xpose.msra.mxu0 0.0
    %422 = vmatprep.subr.mxu0 0.0
    %423 = vmatpush1.xpose.msra.mxu0 0.0
    %424 = vmatprep.subr.mxu0 0.0
    %425 = vmatpush1.xpose.msra.mxu0 0.0
    %426 = vmatprep.subr.mxu0 0.0
    %427 = vmatpush1.xpose.msra.mxu0 0.0
    %428 = vmatprep.subr.mxu0 0.0
    %429 = vmatpush1.xpose.msra.mxu0 0.0
    %430 = vmatprep.subr.mxu0 0.0
    %431 = vmatpush1.xpose.msra.mxu0 0.0
    %432 = vmatprep.subr.mxu0 0.0
    %433 = vmatpush1.xpose.msra.mxu0 0.0
    %434 = vmatprep.subr.mxu0 0.0
    %435 = vmatpush1.xpose.msra.mxu0 %v402
    %436 = vmatprep.subr.mxu0 0.0
    %437 = vmatpush2.xpose.msra.mxu0 0.0
    %438 = vmatprep.subr.mxu0 0.0
    %439 = vmatpush2.xpose.msra.mxu0 0.0
    %440 = vmatprep.subr.mxu0 0.0
    %441 = vmatpush2.xpose.msra.mxu0 0.0
    %442 = vmatprep.subr.mxu0 0.0
    %443 = vmatpush2.xpose.msra.mxu0 0.0
    %444 = vmatprep.subr.mxu0 0.0
    %445 = vmatpush2.xpose.msra.mxu0 0.0
    %446 = vmatprep.subr.mxu0 0.0
    %447 = vmatpush2.xpose.msra.mxu0 0.0
    %448 = vmatprep.subr.mxu0 0.0
    %449 = vmatpush2.xpose.msra.mxu0 0.0
    %450 = vmatprep.subr.mxu0 0.0
    %451 = vmatpush2.xpose.msra.mxu0 0.0
    %452 = vmatprep.subr.mxu0 0.0
    %453 = vmatpush2.xpose.msra.mxu0 0.0
    %454 = vmatprep.subr.mxu0 0.0
    %455 = vmatpush2.xpose.msra.mxu0 0.0
    %456 = vmatprep.subr.mxu0 0.0
    %457 = vmatpush2.xpose.msra.mxu0 0.0
    %458 = vmatprep.subr.mxu0 0.0
    %459 = vmatpush2.xpose.msra.mxu0 0.0
    %460 = vmatprep.subr.mxu0 0.0
    %461 = vmatpush2.xpose.msra.mxu0 0.0
    %462 = vmatprep.subr.mxu0 0.0
    %463 = vmatpush2.xpose.msra.mxu0 0.0
    %464 = vmatprep.subr.mxu0 0.0
    %465 = vmatpush2.xpose.msra.mxu0 0.0
    %466 = vmatprep.subr.mxu0 0.0
    %467 = vmatpush2.xpose.msra.mxu0 0.0
    %468 = vmatprep.mubr.f32.mxu0 0.0
    %469 = vmatmul.mubr.f32.gmra.mxu0 %v400
    %v470 = vpop.f32.mrf.mxu0
    %v471 = vadd.f32 0.0, %v470
    %v472 = vpop.f32.mrf.mxu0
    %473 = vdwg.mxu0
    %v474 = vsel %vm303, %v471, -inf
    %475 = vmax.xlane.f32.xlu0 %v474
    %v476 = vpop.xlane.xlu0 %475
    %v477 = vsub.f32 %v471, %v476
    %v478 = vmul.f32 %v477, 1.442695
    %v479 = vpow.pop %v478
    %v480 = vsel %vm303, %v479, 0.0
    %481 = vadd.xlane.f32.xlu0 %v480
    %v482 = vpop.xlane.xlu0 %481
    %v483 = vrcp.pop %v482
    %v484 = vmul.f32 %v479, %v483
    %485 = vrot.lane.b32.xlu0 %v220, 56
    %v486 = vpop.permute.xlu0 %485
    %v488 = vsel %vm317, %v484, 0
    %v490 = vsel %vm321, %v486, 0
    %492 = vmatprep.subr.mxu0 0.0
    %493 = vmatpush1.msra.mxu0 0.0
    %494 = vmatprep.subr.mxu0 0.0
    %495 = vmatpush1.msra.mxu0 0.0
    %496 = vmatprep.subr.mxu0 0.0
    %497 = vmatpush1.msra.mxu0 0.0
    %498 = vmatprep.subr.mxu0 0.0
    %499 = vmatpush1.msra.mxu0 0.0
    %500 = vmatprep.subr.mxu0 0.0
    %501 = vmatpush1.msra.mxu0 0.0
    %502 = vmatprep.subr.mxu0 0.0
    %503 = vmatpush1.msra.mxu0 0.0
    %504 = vmatprep.subr.mxu0 0.0
    %505 = vmatpush1.msra.mxu0 0.0
    %506 = vmatprep.subr.mxu0 0.0
    %507 = vmatpush1.msra.mxu0 0.0
    %508 = vmatprep.subr.mxu0 0.0
    %509 = vmatpush1.msra.mxu0 0.0
    %510 = vmatprep.subr.mxu0 0.0
    %511 = vmatpush1.msra.mxu0 0.0
    %512 = vmatprep.subr.mxu0 0.0
    %513 = vmatpush1.msra.mxu0 0.0
    %514 = vmatprep.subr.mxu0 0.0
    %515 = vmatpush1.msra.mxu0 0.0
    %516 = vmatprep.subr.mxu0 0.0
    %517 = vmatpush1.msra.mxu0 0.0
    %518 = vmatprep.subr.mxu0 0.0
    %519 = vmatpush1.msra.mxu0 0.0
    %520 = vmatprep.subr.mxu0 0.0
    %521 = vmatpush1.msra.mxu0 0.0
    %522 = vmatprep.subr.mxu0 0.0
    %523 = vmatpush1.msra.mxu0 %v490
    %524 = vmatprep.subr.mxu0 0.0
    %525 = vmatpush2.msra.mxu0 0.0
    %526 = vmatprep.subr.mxu0 0.0
    %527 = vmatpush2.msra.mxu0 0.0
    %528 = vmatprep.subr.mxu0 0.0
    %529 = vmatpush2.msra.mxu0 0.0
    %530 = vmatprep.subr.mxu0 0.0
    %531 = vmatpush2.msra.mxu0 0.0
    %532 = vmatprep.subr.mxu0 0.0
    %533 = vmatpush2.msra.mxu0 0.0
    %534 = vmatprep.subr.mxu0 0.0
    %535 = vmatpush2.msra.mxu0 0.0
    %536 = vmatprep.subr.mxu0 0.0
    %537 = vmatpush2.msra.mxu0 0.0
    %538 = vmatprep.subr.mxu0 0.0
    %539 = vmatpush2.msra.mxu0 0.0
    %540 = vmatprep.subr.mxu0 0.0
    %541 = vmatpush2.msra.mxu0 0.0
    %542 = vmatprep.subr.mxu0 0.0
    %543 = vmatpush2.msra.mxu0 0.0
    %544 = vmatprep.subr.mxu0 0.0
    %545 = vmatpush2.msra.mxu0 0.0
    %546 = vmatprep.subr.mxu0 0.0
    %547 = vmatpush2.msra.mxu0 0.0
    %548 = vmatprep.subr.mxu0 0.0
    %549 = vmatpush2.msra.mxu0 0.0
    %550 = vmatprep.subr.mxu0 0.0
    %551 = vmatpush2.msra.mxu0 0.0
    %552 = vmatprep.subr.mxu0 0.0
    %553 = vmatpush2.msra.mxu0 0.0
    %554 = vmatprep.subr.mxu0 0.0
    %555 = vmatpush2.msra.mxu0 0.0
    %556 = vmatprep.mubr.f32.mxu0 0.0
    %557 = vmatmul.mubr.f32.gmra.mxu0 %v488
    %v558 = vpop.f32.mrf.mxu0
    %v559 = vadd.f32 0.0, %v558
    %v560 = vpop.f32.mrf.mxu0
    %561 = vdwg.mxu0
    %563 = vrot.lane.b32.xlu0 %v559, 8
    %v564 = vpop.permute.xlu0 %563
    %vm566 = vcmask 126016
    %567 = vst.msk [vmem:[#allocation2] sm:$0xf] %vm566, %v564
    %568 = vrot.lane.b32.xlu0 %v223, 112
    %v569 = vpop.permute.xlu0 %568
    %570 = vrot.lane.b32.xlu0 %v220, 80
    %v571 = vpop.permute.xlu0 %570
    %v572 = vsel %vm227, %v569, 0
    %v574 = vsel %vm227, %v571, 0
    %576 = vmatprep.subr.mxu0 0.0
    %577 = vmatpush1.xpose.msra.mxu0 0.0
    %578 = vmatprep.subr.mxu0 0.0
    %579 = vmatpush1.xpose.msra.mxu0 0.0
    %580 = vmatprep.subr.mxu0 0.0
    %581 = vmatpush1.xpose.msra.mxu0 0.0
    %582 = vmatprep.subr.mxu0 0.0
    %583 = vmatpush1.xpose.msra.mxu0 0.0
    %584 = vmatprep.subr.mxu0 0.0
    %585 = vmatpush1.xpose.msra.mxu0 0.0
    %586 = vmatprep.subr.mxu0 0.0
    %587 = vmatpush1.xpose.msra.mxu0 0.0
    %588 = vmatprep.subr.mxu0 0.0
    %589 = vmatpush1.xpose.msra.mxu0 0.0
    %590 = vmatprep.subr.mxu0 0.0
    %591 = vmatpush1.xpose.msra.mxu0 0.0
    %592 = vmatprep.subr.mxu0 0.0
    %593 = vmatpush1.xpose.msra.mxu0 0.0
    %594 = vmatprep.subr.mxu0 0.0
    %595 = vmatpush1.xpose.msra.mxu0 0.0
    %596 = vmatprep.subr.mxu0 0.0
    %597 = vmatpush1.xpose.msra.mxu0 0.0
    %598 = vmatprep.subr.mxu0 0.0
    %599 = vmatpush1.xpose.msra.mxu0 0.0
    %600 = vmatprep.subr.mxu0 0.0
    %601 = vmatpush1.xpose.msra.mxu0 0.0
    %602 = vmatprep.subr.mxu0 0.0
    %603 = vmatpush1.xpose.msra.mxu0 0.0
    %604 = vmatprep.subr.mxu0 0.0
    %605 = vmatpush1.xpose.msra.mxu0 0.0
    %606 = vmatprep.subr.mxu0 0.0
    %607 = vmatpush1.xpose.msra.mxu0 %v574
    %608 = vmatprep.subr.mxu0 0.0
    %609 = vmatpush2.xpose.msra.mxu0 0.0
    %610 = vmatprep.subr.mxu0 0.0
    %611 = vmatpush2.xpose.msra.mxu0 0.0
    %612 = vmatprep.subr.mxu0 0.0
    %613 = vmatpush2.xpose.msra.mxu0 0.0
    %614 = vmatprep.subr.mxu0 0.0
    %615 = vmatpush2.xpose.msra.mxu0 0.0
    %616 = vmatprep.subr.mxu0 0.0
    %617 = vmatpush2.xpose.msra.mxu0 0.0
    %618 = vmatprep.subr.mxu0 0.0
    %619 = vmatpush2.xpose.msra.mxu0 0.0
    %620 = vmatprep.subr.mxu0 0.0
    %621 = vmatpush2.xpose.msra.mxu0 0.0
    %622 = vmatprep.subr.mxu0 0.0
    %623 = vmatpush2.xpose.msra.mxu0 0.0
    %624 = vmatprep.subr.mxu0 0.0
    %625 = vmatpush2.xpose.msra.mxu0 0.0
    %626 = vmatprep.subr.mxu0 0.0
    %627 = vmatpush2.xpose.msra.mxu0 0.0
    %628 = vmatprep.subr.mxu0 0.0
    %629 = vmatpush2.xpose.msra.mxu0 0.0
    %630 = vmatprep.subr.mxu0 0.0
    %631 = vmatpush2.xpose.msra.mxu0 0.0
    %632 = vmatprep.subr.mxu0 0.0
    %633 = vmatpush2.xpose.msra.mxu0 0.0
    %634 = vmatprep.subr.mxu0 0.0
    %635 = vmatpush2.xpose.msra.mxu0 0.0
    %636 = vmatprep.subr.mxu0 0.0
    %637 = vmatpush2.xpose.msra.mxu0 0.0
    %638 = vmatprep.subr.mxu0 0.0
    %639 = vmatpush2.xpose.msra.mxu0 0.0
    %640 = vmatprep.mubr.f32.mxu0 0.0
    %641 = vmatmul.mubr.f32.gmra.mxu0 %v572
    %v642 = vpop.f32.mrf.mxu0
    %v643 = vadd.f32 0.0, %v642
    %v644 = vpop.f32.mrf.mxu0
    %645 = vdwg.mxu0
    %v646 = vsel %vm303, %v643, -inf
    %647 = vmax.xlane.f32.xlu0 %v646
    %v648 = vpop.xlane.xlu0 %647
    %v649 = vsub.f32 %v643, %v648
    %v650 = vmul.f32 %v649, 1.442695
    %v651 = vpow.pop %v650
    %v652 = vsel %vm303, %v651, 0.0
    %653 = vadd.xlane.f32.xlu0 %v652
    %v654 = vpop.xlane.xlu0 %653
    %v655 = vrcp.pop %v654
    %v656 = vmul.f32 %v651, %v655
    %657 = vrot.lane.b32.xlu0 %v220, 48
    %v658 = vpop.permute.xlu0 %657
    %v660 = vsel %vm317, %v656, 0
    %v662 = vsel %vm321, %v658, 0
    %664 = vmatprep.subr.mxu0 0.0
    %665 = vmatpush1.msra.mxu0 0.0
    %666 = vmatprep.subr.mxu0 0.0
    %667 = vmatpush1.msra.mxu0 0.0
    %668 = vmatprep.subr.mxu0 0.0
    %669 = vmatpush1.msra.mxu0 0.0
    %670 = vmatprep.subr.mxu0 0.0
    %671 = vmatpush1.msra.mxu0 0.0
    %672 = vmatprep.subr.mxu0 0.0
    %673 = vmatpush1.msra.mxu0 0.0
    %674 = vmatprep.subr.mxu0 0.0
    %675 = vmatpush1.msra.mxu0 0.0
    %676 = vmatprep.subr.mxu0 0.0
    %677 = vmatpush1.msra.mxu0 0.0
    %678 = vmatprep.subr.mxu0 0.0
    %679 = vmatpush1.msra.mxu0 0.0
    %680 = vmatprep.subr.mxu0 0.0
    %681 = vmatpush1.msra.mxu0 0.0
    %682 = vmatprep.subr.mxu0 0.0
    %683 = vmatpush1.msra.mxu0 0.0
    %684 = vmatprep.subr.mxu0 0.0
    %685 = vmatpush1.msra.mxu0 0.0
    %686 = vmatprep.subr.mxu0 0.0
    %687 = vmatpush1.msra.mxu0 0.0
    %688 = vmatprep.subr.mxu0 0.0
    %689 = vmatpush1.msra.mxu0 0.0
    %690 = vmatprep.subr.mxu0 0.0
    %691 = vmatpush1.msra.mxu0 0.0
    %692 = vmatprep.subr.mxu0 0.0
    %693 = vmatpush1.msra.mxu0 0.0
    %694 = vmatprep.subr.mxu0 0.0
    %695 = vmatpush1.msra.mxu0 %v662
    %696 = vmatprep.subr.mxu0 0.0
    %697 = vmatpush2.msra.mxu0 0.0
    %698 = vmatprep.subr.mxu0 0.0
    %699 = vmatpush2.msra.mxu0 0.0
    %700 = vmatprep.subr.mxu0 0.0
    %701 = vmatpush2.msra.mxu0 0.0
    %702 = vmatprep.subr.mxu0 0.0
    %703 = vmatpush2.msra.mxu0 0.0
    %704 = vmatprep.subr.mxu0 0.0
    %705 = vmatpush2.msra.mxu0 0.0
    %706 = vmatprep.subr.mxu0 0.0
    %707 = vmatpush2.msra.mxu0 0.0
    %708 = vmatprep.subr.mxu0 0.0
    %709 = vmatpush2.msra.mxu0 0.0
    %710 = vmatprep.subr.mxu0 0.0
    %711 = vmatpush2.msra.mxu0 0.0
    %712 = vmatprep.subr.mxu0 0.0
    %713 = vmatpush2.msra.mxu0 0.0
    %714 = vmatprep.subr.mxu0 0.0
    %715 = vmatpush2.msra.mxu0 0.0
    %716 = vmatprep.subr.mxu0 0.0
    %717 = vmatpush2.msra.mxu0 0.0
    %718 = vmatprep.subr.mxu0 0.0
    %719 = vmatpush2.msra.mxu0 0.0
    %720 = vmatprep.subr.mxu0 0.0
    %721 = vmatpush2.msra.mxu0 0.0
    %722 = vmatprep.subr.mxu0 0.0
    %723 = vmatpush2.msra.mxu0 0.0
    %724 = vmatprep.subr.mxu0 0.0
    %725 = vmatpush2.msra.mxu0 0.0
    %726 = vmatprep.subr.mxu0 0.0
    %727 = vmatpush2.msra.mxu0 0.0
    %728 = vmatprep.mubr.f32.mxu0 0.0
    %729 = vmatmul.mubr.f32.gmra.mxu0 %v660
    %v730 = vpop.f32.mrf.mxu0
    %v731 = vadd.f32 0.0, %v730
    %v732 = vpop.f32.mrf.mxu0
    %733 = vdwg.mxu0
    %735 = vrot.lane.b32.xlu0 %v731, 16
    %v736 = vpop.permute.xlu0 %735
    %vm738 = vcmask 191616
    %739 = vst.msk [vmem:[#allocation2] sm:$0xf] %vm738, %v736
    %740 = vrot.lane.b32.xlu0 %v223, 104
    %v741 = vpop.permute.xlu0 %740
    %742 = vrot.lane.b32.xlu0 %v220, 72
    %v743 = vpop.permute.xlu0 %742
    %v744 = vsel %vm227, %v741, 0
    %v746 = vsel %vm227, %v743, 0
    %748 = vmatprep.subr.mxu0 0.0
    %749 = vmatpush1.xpose.msra.mxu0 0.0
    %750 = vmatprep.subr.mxu0 0.0
    %751 = vmatpush1.xpose.msra.mxu0 0.0
    %752 = vmatprep.subr.mxu0 0.0
    %753 = vmatpush1.xpose.msra.mxu0 0.0
    %754 = vmatprep.subr.mxu0 0.0
    %755 = vmatpush1.xpose.msra.mxu0 0.0
    %756 = vmatprep.subr.mxu0 0.0
    %757 = vmatpush1.xpose.msra.mxu0 0.0
    %758 = vmatprep.subr.mxu0 0.0
    %759 = vmatpush1.xpose.msra.mxu0 0.0
    %760 = vmatprep.subr.mxu0 0.0
    %761 = vmatpush1.xpose.msra.mxu0 0.0
    %762 = vmatprep.subr.mxu0 0.0
    %763 = vmatpush1.xpose.msra.mxu0 0.0
    %764 = vmatprep.subr.mxu0 0.0
    %765 = vmatpush1.xpose.msra.mxu0 0.0
    %766 = vmatprep.subr.mxu0 0.0
    %767 = vmatpush1.xpose.msra.mxu0 0.0
    %768 = vmatprep.subr.mxu0 0.0
    %769 = vmatpush1.xpose.msra.mxu0 0.0
    %770 = vmatprep.subr.mxu0 0.0
    %771 = vmatpush1.xpose.msra.mxu0 0.0
    %772 = vmatprep.subr.mxu0 0.0
    %773 = vmatpush1.xpose.msra.mxu0 0.0
    %774 = vmatprep.subr.mxu0 0.0
    %775 = vmatpush1.xpose.msra.mxu0 0.0
    %776 = vmatprep.subr.mxu0 0.0
    %777 = vmatpush1.xpose.msra.mxu0 0.0
    %778 = vmatprep.subr.mxu0 0.0
    %779 = vmatpush1.xpose.msra.mxu0 %v746
    %780 = vmatprep.subr.mxu0 0.0
    %781 = vmatpush2.xpose.msra.mxu0 0.0
    %782 = vmatprep.subr.mxu0 0.0
    %783 = vmatpush2.xpose.msra.mxu0 0.0
    %784 = vmatprep.subr.mxu0 0.0
    %785 = vmatpush2.xpose.msra.mxu0 0.0
    %786 = vmatprep.subr.mxu0 0.0
    %787 = vmatpush2.xpose.msra.mxu0 0.0
    %788 = vmatprep.subr.mxu0 0.0
    %789 = vmatpush2.xpose.msra.mxu0 0.0
    %790 = vmatprep.subr.mxu0 0.0
    %791 = vmatpush2.xpose.msra.mxu0 0.0
    %792 = vmatprep.subr.mxu0 0.0
    %793 = vmatpush2.xpose.msra.mxu0 0.0
    %794 = vmatprep.subr.mxu0 0.0
    %795 = vmatpush2.xpose.msra.mxu0 0.0
    %796 = vmatprep.subr.mxu0 0.0
    %797 = vmatpush2.xpose.msra.mxu0 0.0
    %798 = vmatprep.subr.mxu0 0.0
    %799 = vmatpush2.xpose.msra.mxu0 0.0
    %800 = vmatprep.subr.mxu0 0.0
    %801 = vmatpush2.xpose.msra.mxu0 0.0
    %802 = vmatprep.subr.mxu0 0.0
    %803 = vmatpush2.xpose.msra.mxu0 0.0
    %804 = vmatprep.subr.mxu0 0.0
    %805 = vmatpush2.xpose.msra.mxu0 0.0
    %806 = vmatprep.subr.mxu0 0.0
    %807 = vmatpush2.xpose.msra.mxu0 0.0
    %808 = vmatprep.subr.mxu0 0.0
    %809 = vmatpush2.xpose.msra.mxu0 0.0
    %810 = vmatprep.subr.mxu0 0.0
    %811 = vmatpush2.xpose.msra.mxu0 0.0
    %812 = vmatprep.mubr.f32.mxu0 0.0
    %813 = vmatmul.mubr.f32.gmra.mxu0 %v744
    %v814 = vpop.f32.mrf.mxu0
    %v815 = vadd.f32 0.0, %v814
    %v816 = vpop.f32.mrf.mxu0
    %817 = vdwg.mxu0
    %v818 = vsel %vm303, %v815, -inf
    %819 = vmax.xlane.f32.xlu0 %v818
    %v820 = vpop.xlane.xlu0 %819
    %v821 = vsub.f32 %v815, %v820
    %v822 = vmul.f32 %v821, 1.442695
    %v823 = vpow.pop %v822
    %v824 = vsel %vm303, %v823, 0.0
    %825 = vadd.xlane.f32.xlu0 %v824
    %v826 = vpop.xlane.xlu0 %825
    %v827 = vrcp.pop %v826
    %v828 = vmul.f32 %v823, %v827
    %829 = vrot.lane.b32.xlu0 %v220, 40
    %v830 = vpop.permute.xlu0 %829
    %v832 = vsel %vm317, %v828, 0
    %v834 = vsel %vm321, %v830, 0
    %836 = vmatprep.subr.mxu0 0.0
    %837 = vmatpush1.msra.mxu0 0.0
    %838 = vmatprep.subr.mxu0 0.0
    %839 = vmatpush1.msra.mxu0 0.0
    %840 = vmatprep.subr.mxu0 0.0
    %841 = vmatpush1.msra.mxu0 0.0
    %842 = vmatprep.subr.mxu0 0.0
    %843 = vmatpush1.msra.mxu0 0.0
    %844 = vmatprep.subr.mxu0 0.0
    %845 = vmatpush1.msra.mxu0 0.0
    %846 = vmatprep.subr.mxu0 0.0
    %847 = vmatpush1.msra.mxu0 0.0
    %848 = vmatprep.subr.mxu0 0.0
    %849 = vmatpush1.msra.mxu0 0.0
    %850 = vmatprep.subr.mxu0 0.0
    %851 = vmatpush1.msra.mxu0 0.0
    %852 = vmatprep.subr.mxu0 0.0
    %853 = vmatpush1.msra.mxu0 0.0
    %854 = vmatprep.subr.mxu0 0.0
    %855 = vmatpush1.msra.mxu0 0.0
    %856 = vmatprep.subr.mxu0 0.0
    %857 = vmatpush1.msra.mxu0 0.0
    %858 = vmatprep.subr.mxu0 0.0
    %859 = vmatpush1.msra.mxu0 0.0
    %860 = vmatprep.subr.mxu0 0.0
    %861 = vmatpush1.msra.mxu0 0.0
    %862 = vmatprep.subr.mxu0 0.0
    %863 = vmatpush1.msra.mxu0 0.0
    %864 = vmatprep.subr.mxu0 0.0
    %865 = vmatpush1.msra.mxu0 0.0
    %866 = vmatprep.subr.mxu0 0.0
    %867 = vmatpush1.msra.mxu0 %v834
    %868 = vmatprep.subr.mxu0 0.0
    %869 = vmatpush2.msra.mxu0 0.0
    %870 = vmatprep.subr.mxu0 0.0
    %871 = vmatpush2.msra.mxu0 0.0
    %872 = vmatprep.subr.mxu0 0.0
    %873 = vmatpush2.msra.mxu0 0.0
    %874 = vmatprep.subr.mxu0 0.0
    %875 = vmatpush2.msra.mxu0 0.0
    %876 = vmatprep.subr.mxu0 0.0
    %877 = vmatpush2.msra.mxu0 0.0
    %878 = vmatprep.subr.mxu0 0.0
    %879 = vmatpush2.msra.mxu0 0.0
    %880 = vmatprep.subr.mxu0 0.0
    %881 = vmatpush2.msra.mxu0 0.0
    %882 = vmatprep.subr.mxu0 0.0
    %883 = vmatpush2.msra.mxu0 0.0
    %884 = vmatprep.subr.mxu0 0.0
    %885 = vmatpush2.msra.mxu0 0.0
    %886 = vmatprep.subr.mxu0 0.0
    %887 = vmatpush2.msra.mxu0 0.0
    %888 = vmatprep.subr.mxu0 0.0
    %889 = vmatpush2.msra.mxu0 0.0
    %890 = vmatprep.subr.mxu0 0.0
    %891 = vmatpush2.msra.mxu0 0.0
    %892 = vmatprep.subr.mxu0 0.0
    %893 = vmatpush2.msra.mxu0 0.0
    %894 = vmatprep.subr.mxu0 0.0
    %895 = vmatpush2.msra.mxu0 0.0
    %896 = vmatprep.subr.mxu0 0.0
    %897 = vmatpush2.msra.mxu0 0.0
    %898 = vmatprep.subr.mxu0 0.0
    %899 = vmatpush2.msra.mxu0 0.0
    %900 = vmatprep.mubr.f32.mxu0 0.0
    %901 = vmatmul.mubr.f32.gmra.mxu0 %v832
    %v902 = vpop.f32.mrf.mxu0
    %v903 = vadd.f32 0.0, %v902
    %v904 = vpop.f32.mrf.mxu0
    %905 = vdwg.mxu0
    %907 = vrot.lane.b32.xlu0 %v903, 24
    %v908 = vpop.permute.xlu0 %907
    %vm910 = vcmask 257216
    %911 = vst.msk [vmem:[#allocation2] sm:$0xf] %vm910, %v908
    %v912 = vrot.slane %v223, 4
    %v913 = vrot.slane %v220, 4
    %914 = vrot.lane.b32.xlu0 %v913, 96
    %v915 = vpop.permute.xlu0 %914
    %v916 = vsel %vm227, %v912, 0
    %v918 = vsel %vm227, %v915, 0
    %920 = vmatprep.subr.mxu0 0.0
    %921 = vmatpush1.xpose.msra.mxu0 0.0
    %922 = vmatprep.subr.mxu0 0.0
    %923 = vmatpush1.xpose.msra.mxu0 0.0
    %924 = vmatprep.subr.mxu0 0.0
    %925 = vmatpush1.xpose.msra.mxu0 0.0
    %926 = vmatprep.subr.mxu0 0.0
    %927 = vmatpush1.xpose.msra.mxu0 0.0
    %928 = vmatprep.subr.mxu0 0.0
    %929 = vmatpush1.xpose.msra.mxu0 0.0
    %930 = vmatprep.subr.mxu0 0.0
    %931 = vmatpush1.xpose.msra.mxu0 0.0
    %932 = vmatprep.subr.mxu0 0.0
    %933 = vmatpush1.xpose.msra.mxu0 0.0
    %934 = vmatprep.subr.mxu0 0.0
    %935 = vmatpush1.xpose.msra.mxu0 0.0
    %936 = vmatprep.subr.mxu0 0.0
    %937 = vmatpush1.xpose.msra.mxu0 0.0
    %938 = vmatprep.subr.mxu0 0.0
    %939 = vmatpush1.xpose.msra.mxu0 0.0
    %940 = vmatprep.subr.mxu0 0.0
    %941 = vmatpush1.xpose.msra.mxu0 0.0
    %942 = vmatprep.subr.mxu0 0.0
    %943 = vmatpush1.xpose.msra.mxu0 0.0
    %944 = vmatprep.subr.mxu0 0.0
    %945 = vmatpush1.xpose.msra.mxu0 0.0
    %946 = vmatprep.subr.mxu0 0.0
    %947 = vmatpush1.xpose.msra.mxu0 0.0
    %948 = vmatprep.subr.mxu0 0.0
    %949 = vmatpush1.xpose.msra.mxu0 0.0
    %950 = vmatprep.subr.mxu0 0.0
    %951 = vmatpush1.xpose.msra.mxu0 %v918
    %952 = vmatprep.subr.mxu0 0.0
    %953 = vmatpush2.xpose.msra.mxu0 0.0
    %954 = vmatprep.subr.mxu0 0.0
    %955 = vmatpush2.xpose.msra.mxu0 0.0
    %956 = vmatprep.subr.mxu0 0.0
    %957 = vmatpush2.xpose.msra.mxu0 0.0
    %958 = vmatprep.subr.mxu0 0.0
    %959 = vmatpush2.xpose.msra.mxu0 0.0
    %960 = vmatprep.subr.mxu0 0.0
    %961 = vmatpush2.xpose.msra.mxu0 0.0
    %962 = vmatprep.subr.mxu0 0.0
    %963 = vmatpush2.xpose.msra.mxu0 0.0
    %964 = vmatprep.subr.mxu0 0.0
    %965 = vmatpush2.xpose.msra.mxu0 0.0
    %966 = vmatprep.subr.mxu0 0.0
    %967 = vmatpush2.xpose.msra.mxu0 0.0
    %968 = vmatprep.subr.mxu0 0.0
    %969 = vmatpush2.xpose.msra.mxu0 0.0
    %970 = vmatprep.subr.mxu0 0.0
    %971 = vmatpush2.xpose.msra.mxu0 0.0
    %972 = vmatprep.subr.mxu0 0.0
    %973 = vmatpush2.xpose.msra.mxu0 0.0
    %974 = vmatprep.subr.mxu0 0.0
    %975 = vmatpush2.xpose.msra.mxu0 0.0
    %976 = vmatprep.subr.mxu0 0.0
    %977 = vmatpush2.xpose.msra.mxu0 0.0
    %978 = vmatprep.subr.mxu0 0.0
    %979 = vmatpush2.xpose.msra.mxu0 0.0
    %980 = vmatprep.subr.mxu0 0.0
    %981 = vmatpush2.xpose.msra.mxu0 0.0
    %982 = vmatprep.subr.mxu0 0.0
    %983 = vmatpush2.xpose.msra.mxu0 0.0
    %984 = vmatprep.mubr.f32.mxu0 0.0
    %985 = vmatmul.mubr.f32.gmra.mxu0 %v916
    %v986 = vpop.f32.mrf.mxu0
    %v987 = vadd.f32 0.0, %v986
    %v988 = vpop.f32.mrf.mxu0
    %989 = vdwg.mxu0
    %v990 = vsel %vm303, %v987, -inf
    %991 = vmax.xlane.f32.xlu0 %v990
    %v992 = vpop.xlane.xlu0 %991
    %v993 = vsub.f32 %v987, %v992
    %v994 = vmul.f32 %v993, 1.442695
    %v995 = vpow.pop %v994
    %v996 = vsel %vm303, %v995, 0.0
    %997 = vadd.xlane.f32.xlu0 %v996
    %v998 = vpop.xlane.xlu0 %997
    %v999 = vrcp.pop %v998
    %v1000 = vmul.f32 %v995, %v999
    %1001 = vrot.lane.b32.xlu0 %v913, 64
    %v1002 = vpop.permute.xlu0 %1001
    %v1004 = vsel %vm317, %v1000, 0
    %v1006 = vsel %vm321, %v1002, 0
    %1008 = vmatprep.subr.mxu0 0.0
    %1009 = vmatpush1.msra.mxu0 0.0
    %1010 = vmatprep.subr.mxu0 0.0
    %1011 = vmatpush1.msra.mxu0 0.0
    %1012 = vmatprep.subr.mxu0 0.0
    %1013 = vmatpush1.msra.mxu0 0.0
    %1014 = vmatprep.subr.mxu0 0.0
    %1015 = vmatpush1.msra.mxu0 0.0
    %1016 = vmatprep.subr.mxu0 0.0
    %1017 = vmatpush1.msra.mxu0 0.0
    %1018 = vmatprep.subr.mxu0 0.0
    %1019 = vmatpush1.msra.mxu0 0.0
    %1020 = vmatprep.subr.mxu0 0.0
    %1021 = vmatpush1.msra.mxu0 0.0
    %1022 = vmatprep.subr.mxu0 0.0
    %1023 = vmatpush1.msra.mxu0 0.0
    %1024 = vmatprep.subr.mxu0 0.0
    %1025 = vmatpush1.msra.mxu0 0.0
    %1026 = vmatprep.subr.mxu0 0.0
    %1027 = vmatpush1.msra.mxu0 0.0
    %1028 = vmatprep.subr.mxu0 0.0
    %1029 = vmatpush1.msra.mxu0 0.0
    %1030 = vmatprep.subr.mxu0 0.0
    %1031 = vmatpush1.msra.mxu0 0.0
    %1032 = vmatprep.subr.mxu0 0.0
    %1033 = vmatpush1.msra.mxu0 0.0
    %1034 = vmatprep.subr.mxu0 0.0
    %1035 = vmatpush1.msra.mxu0 0.0
    %1036 = vmatprep.subr.mxu0 0.0
    %1037 = vmatpush1.msra.mxu0 0.0
    %1038 = vmatprep.subr.mxu0 0.0
    %1039 = vmatpush1.msra.mxu0 %v1006
    %1040 = vmatprep.subr.mxu0 0.0
    %1041 = vmatpush2.msra.mxu0 0.0
    %1042 = vmatprep.subr.mxu0 0.0
    %1043 = vmatpush2.msra.mxu0 0.0
    %1044 = vmatprep.subr.mxu0 0.0
    %1045 = vmatpush2.msra.mxu0 0.0
    %1046 = vmatprep.subr.mxu0 0.0
    %1047 = vmatpush2.msra.mxu0 0.0
    %1048 = vmatprep.subr.mxu0 0.0
    %1049 = vmatpush2.msra.mxu0 0.0
    %1050 = vmatprep.subr.mxu0 0.0
    %1051 = vmatpush2.msra.mxu0 0.0
    %1052 = vmatprep.subr.mxu0 0.0
    %1053 = vmatpush2.msra.mxu0 0.0
    %1054 = vmatprep.subr.mxu0 0.0
    %1055 = vmatpush2.msra.mxu0 0.0
    %1056 = vmatprep.subr.mxu0 0.0
    %1057 = vmatpush2.msra.mxu0 0.0
    %1058 = vmatprep.subr.mxu0 0.0
    %1059 = vmatpush2.msra.mxu0 0.0
    %1060 = vmatprep.subr.mxu0 0.0
    %1061 = vmatpush2.msra.mxu0 0.0
    %1062 = vmatprep.subr.mxu0 0.0
    %1063 = vmatpush2.msra.mxu0 0.0
    %1064 = vmatprep.subr.mxu0 0.0
    %1065 = vmatpush2.msra.mxu0 0.0
    %1066 = vmatprep.subr.mxu0 0.0
    %1067 = vmatpush2.msra.mxu0 0.0
    %1068 = vmatprep.subr.mxu0 0.0
    %1069 = vmatpush2.msra.mxu0 0.0
    %1070 = vmatprep.subr.mxu0 0.0
    %1071 = vmatpush2.msra.mxu0 0.0
    %1072 = vmatprep.mubr.f32.mxu0 0.0
    %1073 = vmatmul.mubr.f32.gmra.mxu0 %v1004
    %v1074 = vpop.f32.mrf.mxu0
    %v1075 = vadd.f32 0.0, %v1074
    %v1076 = vpop.f32.mrf.mxu0
    %1077 = vdwg.mxu0
    %1078 = vst.msk [vmem:[#allocation2 + $0x4] sm:$0xf] %vm394, %v1075
    %1079 = vrot.lane.b32.xlu0 %v912, 120
    %v1080 = vpop.permute.xlu0 %1079
    %1081 = vrot.lane.b32.xlu0 %v913, 88
    %v1082 = vpop.permute.xlu0 %1081
    %v1083 = vsel %vm227, %v1080, 0
    %v1085 = vsel %vm227, %v1082, 0
    %1087 = vmatprep.subr.mxu0 0.0
    %1088 = vmatpush1.xpose.msra.mxu0 0.0
    %1089 = vmatprep.subr.mxu0 0.0
    %1090 = vmatpush1.xpose.msra.mxu0 0.0
    %1091 = vmatprep.subr.mxu0 0.0
    %1092 = vmatpush1.xpose.msra.mxu0 0.0
    %1093 = vmatprep.subr.mxu0 0.0
    %1094 = vmatpush1.xpose.msra.mxu0 0.0
    %1095 = vmatprep.subr.mxu0 0.0
    %1096 = vmatpush1.xpose.msra.mxu0 0.0
    %1097 = vmatprep.subr.mxu0 0.0
    %1098 = vmatpush1.xpose.msra.mxu0 0.0
    %1099 = vmatprep.subr.mxu0 0.0
    %1100 = vmatpush1.xpose.msra.mxu0 0.0
    %1101 = vmatprep.subr.mxu0 0.0
    %1102 = vmatpush1.xpose.msra.mxu0 0.0
    %1103 = vmatprep.subr.mxu0 0.0
    %1104 = vmatpush1.xpose.msra.mxu0 0.0
    %1105 = vmatprep.subr.mxu0 0.0
    %1106 = vmatpush1.xpose.msra.mxu0 0.0
    %1107 = vmatprep.subr.mxu0 0.0
    %1108 = vmatpush1.xpose.msra.mxu0 0.0
    %1109 = vmatprep.subr.mxu0 0.0
    %1110 = vmatpush1.xpose.msra.mxu0 0.0
    %1111 = vmatprep.subr.mxu0 0.0
    %1112 = vmatpush1.xpose.msra.mxu0 0.0
    %1113 = vmatprep.subr.mxu0 0.0
    %1114 = vmatpush1.xpose.msra.mxu0 0.0
    %1115 = vmatprep.subr.mxu0 0.0
    %1116 = vmatpush1.xpose.msra.mxu0 0.0
    %1117 = vmatprep.subr.mxu0 0.0
    %1118 = vmatpush1.xpose.msra.mxu0 %v1085
    %1119 = vmatprep.subr.mxu0 0.0
    %1120 = vmatpush2.xpose.msra.mxu0 0.0
    %1121 = vmatprep.subr.mxu0 0.0
    %1122 = vmatpush2.xpose.msra.mxu0 0.0
    %1123 = vmatprep.subr.mxu0 0.0
    %1124 = vmatpush2.xpose.msra.mxu0 0.0
    %1125 = vmatprep.subr.mxu0 0.0
    %1126 = vmatpush2.xpose.msra.mxu0 0.0
    %1127 = vmatprep.subr.mxu0 0.0
    %1128 = vmatpush2.xpose.msra.mxu0 0.0
    %1129 = vmatprep.subr.mxu0 0.0
    %1130 = vmatpush2.xpose.msra.mxu0 0.0
    %1131 = vmatprep.subr.mxu0 0.0
    %1132 = vmatpush2.xpose.msra.mxu0 0.0
    %1133 = vmatprep.subr.mxu0 0.0
    %1134 = vmatpush2.xpose.msra.mxu0 0.0
    %1135 = vmatprep.subr.mxu0 0.0
    %1136 = vmatpush2.xpose.msra.mxu0 0.0
    %1137 = vmatprep.subr.mxu0 0.0
    %1138 = vmatpush2.xpose.msra.mxu0 0.0
    %1139 = vmatprep.subr.mxu0 0.0
    %1140 = vmatpush2.xpose.msra.mxu0 0.0
    %1141 = vmatprep.subr.mxu0 0.0
    %1142 = vmatpush2.xpose.msra.mxu0 0.0
    %1143 = vmatprep.subr.mxu0 0.0
    %1144 = vmatpush2.xpose.msra.mxu0 0.0
    %1145 = vmatprep.subr.mxu0 0.0
    %1146 = vmatpush2.xpose.msra.mxu0 0.0
    %1147 = vmatprep.subr.mxu0 0.0
    %1148 = vmatpush2.xpose.msra.mxu0 0.0
    %1149 = vmatprep.subr.mxu0 0.0
    %1150 = vmatpush2.xpose.msra.mxu0 0.0
    %1151 = vmatprep.mubr.f32.mxu0 0.0
    %1152 = vmatmul.mubr.f32.gmra.mxu0 %v1083
    %v1153 = vpop.f32.mrf.mxu0
    %v1154 = vadd.f32 0.0, %v1153
    %v1155 = vpop.f32.mrf.mxu0
    %1156 = vdwg.mxu0
    %v1157 = vsel %vm303, %v1154, -inf
    %1158 = vmax.xlane.f32.xlu0 %v1157
    %v1159 = vpop.xlane.xlu0 %1158
    %v1160 = vsub.f32 %v1154, %v1159
    %v1161 = vmul.f32 %v1160, 1.442695
    %v1162 = vpow.pop %v1161
    %v1163 = vsel %vm303, %v1162, 0.0
    %1164 = vadd.xlane.f32.xlu0 %v1163
    %v1165 = vpop.xlane.xlu0 %1164
    %v1166 = vrcp.pop %v1165
    %v1167 = vmul.f32 %v1162, %v1166
    %1168 = vrot.lane.b32.xlu0 %v913, 56
    %v1169 = vpop.permute.xlu0 %1168
    %v1171 = vsel %vm317, %v1167, 0
    %v1173 = vsel %vm321, %v1169, 0
    %1175 = vmatprep.subr.mxu0 0.0
    %1176 = vmatpush1.msra.mxu0 0.0
    %1177 = vmatprep.subr.mxu0 0.0
    %1178 = vmatpush1.msra.mxu0 0.0
    %1179 = vmatprep.subr.mxu0 0.0
    %1180 = vmatpush1.msra.mxu0 0.0
    %1181 = vmatprep.subr.mxu0 0.0
    %1182 = vmatpush1.msra.mxu0 0.0
    %1183 = vmatprep.subr.mxu0 0.0
    %1184 = vmatpush1.msra.mxu0 0.0
    %1185 = vmatprep.subr.mxu0 0.0
    %1186 = vmatpush1.msra.mxu0 0.0
    %1187 = vmatprep.subr.mxu0 0.0
    %1188 = vmatpush1.msra.mxu0 0.0
    %1189 = vmatprep.subr.mxu0 0.0
    %1190 = vmatpush1.msra.mxu0 0.0
    %1191 = vmatprep.subr.mxu0 0.0
    %1192 = vmatpush1.msra.mxu0 0.0
    %1193 = vmatprep.subr.mxu0 0.0
    %1194 = vmatpush1.msra.mxu0 0.0
    %1195 = vmatprep.subr.mxu0 0.0
    %1196 = vmatpush1.msra.mxu0 0.0
    %1197 = vmatprep.subr.mxu0 0.0
    %1198 = vmatpush1.msra.mxu0 0.0
    %1199 = vmatprep.subr.mxu0 0.0
    %1200 = vmatpush1.msra.mxu0 0.0
    %1201 = vmatprep.subr.mxu0 0.0
    %1202 = vmatpush1.msra.mxu0 0.0
    %1203 = vmatprep.subr.mxu0 0.0
    %1204 = vmatpush1.msra.mxu0 0.0
    %1205 = vmatprep.subr.mxu0 0.0
    %1206 = vmatpush1.msra.mxu0 %v1173
    %1207 = vmatprep.subr.mxu0 0.0
    %1208 = vmatpush2.msra.mxu0 0.0
    %1209 = vmatprep.subr.mxu0 0.0
    %1210 = vmatpush2.msra.mxu0 0.0
    %1211 = vmatprep.subr.mxu0 0.0
    %1212 = vmatpush2.msra.mxu0 0.0
    %1213 = vmatprep.subr.mxu0 0.0
    %1214 = vmatpush2.msra.mxu0 0.0
    %1215 = vmatprep.subr.mxu0 0.0
    %1216 = vmatpush2.msra.mxu0 0.0
    %1217 = vmatprep.subr.mxu0 0.0
    %1218 = vmatpush2.msra.mxu0 0.0
    %1219 = vmatprep.subr.mxu0 0.0
    %1220 = vmatpush2.msra.mxu0 0.0
    %1221 = vmatprep.subr.mxu0 0.0
    %1222 = vmatpush2.msra.mxu0 0.0
    %1223 = vmatprep.subr.mxu0 0.0
    %1224 = vmatpush2.msra.mxu0 0.0
    %1225 = vmatprep.subr.mxu0 0.0
    %1226 = vmatpush2.msra.mxu0 0.0
    %1227 = vmatprep.subr.mxu0 0.0
    %1228 = vmatpush2.msra.mxu0 0.0
    %1229 = vmatprep.subr.mxu0 0.0
    %1230 = vmatpush2.msra.mxu0 0.0
    %1231 = vmatprep.subr.mxu0 0.0
    %1232 = vmatpush2.msra.mxu0 0.0
    %1233 = vmatprep.subr.mxu0 0.0
    %1234 = vmatpush2.msra.mxu0 0.0
    %1235 = vmatprep.subr.mxu0 0.0
    %1236 = vmatpush2.msra.mxu0 0.0
    %1237 = vmatprep.subr.mxu0 0.0
    %1238 = vmatpush2.msra.mxu0 0.0
    %1239 = vmatprep.mubr.f32.mxu0 0.0
    %1240 = vmatmul.mubr.f32.gmra.mxu0 %v1171
    %v1241 = vpop.f32.mrf.mxu0
    %v1242 = vadd.f32 0.0, %v1241
    %v1243 = vpop.f32.mrf.mxu0
    %1244 = vdwg.mxu0
    %1246 = vrot.lane.b32.xlu0 %v1242, 8
    %v1247 = vpop.permute.xlu0 %1246
    %1249 = vst.msk [vmem:[#allocation2 + $0x4] sm:$0xf] %vm566, %v1247
    %1250 = vrot.lane.b32.xlu0 %v912, 112
    %v1251 = vpop.permute.xlu0 %1250
    %1252 = vrot.lane.b32.xlu0 %v913, 80
    %v1253 = vpop.permute.xlu0 %1252
    %v1254 = vsel %vm227, %v1251, 0
    %v1256 = vsel %vm227, %v1253, 0
    %1258 = vmatprep.subr.mxu0 0.0
    %1259 = vmatpush1.xpose.msra.mxu0 0.0
    %1260 = vmatprep.subr.mxu0 0.0
    %1261 = vmatpush1.xpose.msra.mxu0 0.0
    %1262 = vmatprep.subr.mxu0 0.0
    %1263 = vmatpush1.xpose.msra.mxu0 0.0
    %1264 = vmatprep.subr.mxu0 0.0
    %1265 = vmatpush1.xpose.msra.mxu0 0.0
    %1266 = vmatprep.subr.mxu0 0.0
    %1267 = vmatpush1.xpose.msra.mxu0 0.0
    %1268 = vmatprep.subr.mxu0 0.0
    %1269 = vmatpush1.xpose.msra.mxu0 0.0
    %1270 = vmatprep.subr.mxu0 0.0
    %1271 = vmatpush1.xpose.msra.mxu0 0.0
    %1272 = vmatprep.subr.mxu0 0.0
    %1273 = vmatpush1.xpose.msra.mxu0 0.0
    %1274 = vmatprep.subr.mxu0 0.0
    %1275 = vmatpush1.xpose.msra.mxu0 0.0
    %1276 = vmatprep.subr.mxu0 0.0
    %1277 = vmatpush1.xpose.msra.mxu0 0.0
    %1278 = vmatprep.subr.mxu0 0.0
    %1279 = vmatpush1.xpose.msra.mxu0 0.0
    %1280 = vmatprep.subr.mxu0 0.0
    %1281 = vmatpush1.xpose.msra.mxu0 0.0
    %1282 = vmatprep.subr.mxu0 0.0
    %1283 = vmatpush1.xpose.msra.mxu0 0.0
    %1284 = vmatprep.subr.mxu0 0.0
    %1285 = vmatpush1.xpose.msra.mxu0 0.0
    %1286 = vmatprep.subr.mxu0 0.0
    %1287 = vmatpush1.xpose.msra.mxu0 0.0
    %1288 = vmatprep.subr.mxu0 0.0
    %1289 = vmatpush1.xpose.msra.mxu0 %v1256
    %1290 = vmatprep.subr.mxu0 0.0
    %1291 = vmatpush2.xpose.msra.mxu0 0.0
    %1292 = vmatprep.subr.mxu0 0.0
    %1293 = vmatpush2.xpose.msra.mxu0 0.0
    %1294 = vmatprep.subr.mxu0 0.0
    %1295 = vmatpush2.xpose.msra.mxu0 0.0
    %1296 = vmatprep.subr.mxu0 0.0
    %1297 = vmatpush2.xpose.msra.mxu0 0.0
    %1298 = vmatprep.subr.mxu0 0.0
    %1299 = vmatpush2.xpose.msra.mxu0 0.0
    %1300 = vmatprep.subr.mxu0 0.0
    %1301 = vmatpush2.xpose.msra.mxu0 0.0
    %1302 = vmatprep.subr.mxu0 0.0
    %1303 = vmatpush2.xpose.msra.mxu0 0.0
    %1304 = vmatprep.subr.mxu0 0.0
    %1305 = vmatpush2.xpose.msra.mxu0 0.0
    %1306 = vmatprep.subr.mxu0 0.0
    %1307 = vmatpush2.xpose.msra.mxu0 0.0
    %1308 = vmatprep.subr.mxu0 0.0
    %1309 = vmatpush2.xpose.msra.mxu0 0.0
    %1310 = vmatprep.subr.mxu0 0.0
    %1311 = vmatpush2.xpose.msra.mxu0 0.0
    %1312 = vmatprep.subr.mxu0 0.0
    %1313 = vmatpush2.xpose.msra.mxu0 0.0
    %1314 = vmatprep.subr.mxu0 0.0
    %1315 = vmatpush2.xpose.msra.mxu0 0.0
    %1316 = vmatprep.subr.mxu0 0.0
    %1317 = vmatpush2.xpose.msra.mxu0 0.0
    %1318 = vmatprep.subr.mxu0 0.0
    %1319 = vmatpush2.xpose.msra.mxu0 0.0
    %1320 = vmatprep.subr.mxu0 0.0
    %1321 = vmatpush2.xpose.msra.mxu0 0.0
    %1322 = vmatprep.mubr.f32.mxu0 0.0
    %1323 = vmatmul.mubr.f32.gmra.mxu0 %v1254
    %v1324 = vpop.f32.mrf.mxu0
    %v1325 = vadd.f32 0.0, %v1324
    %v1326 = vpop.f32.mrf.mxu0
    %1327 = vdwg.mxu0
    %v1328 = vsel %vm303, %v1325, -inf
    %1329 = vmax.xlane.f32.xlu0 %v1328
    %v1330 = vpop.xlane.xlu0 %1329
    %v1331 = vsub.f32 %v1325, %v1330
    %v1332 = vmul.f32 %v1331, 1.442695
    %v1333 = vpow.pop %v1332
    %v1334 = vsel %vm303, %v1333, 0.0
    %1335 = vadd.xlane.f32.xlu0 %v1334
    %v1336 = vpop.xlane.xlu0 %1335
    %v1337 = vrcp.pop %v1336
    %v1338 = vmul.f32 %v1333, %v1337
    %1339 = vrot.lane.b32.xlu0 %v913, 48
    %v1340 = vpop.permute.xlu0 %1339
    %v1342 = vsel %vm317, %v1338, 0
    %v1344 = vsel %vm321, %v1340, 0
    %1346 = vmatprep.subr.mxu0 0.0
    %1347 = vmatpush1.msra.mxu0 0.0
    %1348 = vmatprep.subr.mxu0 0.0
    %1349 = vmatpush1.msra.mxu0 0.0
    %1350 = vmatprep.subr.mxu0 0.0
    %1351 = vmatpush1.msra.mxu0 0.0
    %1352 = vmatprep.subr.mxu0 0.0
    %1353 = vmatpush1.msra.mxu0 0.0
    %1354 = vmatprep.subr.mxu0 0.0
    %1355 = vmatpush1.msra.mxu0 0.0
    %1356 = vmatprep.subr.mxu0 0.0
    %1357 = vmatpush1.msra.mxu0 0.0
    %1358 = vmatprep.subr.mxu0 0.0
    %1359 = vmatpush1.msra.mxu0 0.0
    %1360 = vmatprep.subr.mxu0 0.0
    %1361 = vmatpush1.msra.mxu0 0.0
    %1362 = vmatprep.subr.mxu0 0.0
    %1363 = vmatpush1.msra.mxu0 0.0
    %1364 = vmatprep.subr.mxu0 0.0
    %1365 = vmatpush1.msra.mxu0 0.0
    %1366 = vmatprep.subr.mxu0 0.0
    %1367 = vmatpush1.msra.mxu0 0.0
    %1368 = vmatprep.subr.mxu0 0.0
    %1369 = vmatpush1.msra.mxu0 0.0
    %1370 = vmatprep.subr.mxu0 0.0
    %1371 = vmatpush1.msra.mxu0 0.0
    %1372 = vmatprep.subr.mxu0 0.0
    %1373 = vmatpush1.msra.mxu0 0.0
    %1374 = vmatprep.subr.mxu0 0.0
    %1375 = vmatpush1.msra.mxu0 0.0
    %1376 = vmatprep.subr.mxu0 0.0
    %1377 = vmatpush1.msra.mxu0 %v1344
    %1378 = vmatprep.subr.mxu0 0.0
    %1379 = vmatpush2.msra.mxu0 0.0
    %1380 = vmatprep.subr.mxu0 0.0
    %1381 = vmatpush2.msra.mxu0 0.0
    %1382 = vmatprep.subr.mxu0 0.0
    %1383 = vmatpush2.msra.mxu0 0.0
    %1384 = vmatprep.subr.mxu0 0.0
    %1385 = vmatpush2.msra.mxu0 0.0
    %1386 = vmatprep.subr.mxu0 0.0
    %1387 = vmatpush2.msra.mxu0 0.0
    %1388 = vmatprep.subr.mxu0 0.0
    %1389 = vmatpush2.msra.mxu0 0.0
    %1390 = vmatprep.subr.mxu0 0.0
    %1391 = vmatpush2.msra.mxu0 0.0
    %1392 = vmatprep.subr.mxu0 0.0
    %1393 = vmatpush2.msra.mxu0 0.0
    %1394 = vmatprep.subr.mxu0 0.0
    %1395 = vmatpush2.msra.mxu0 0.0
    %1396 = vmatprep.subr.mxu0 0.0
    %1397 = vmatpush2.msra.mxu0 0.0
    %1398 = vmatprep.subr.mxu0 0.0
    %1399 = vmatpush2.msra.mxu0 0.0
    %1400 = vmatprep.subr.mxu0 0.0
    %1401 = vmatpush2.msra.mxu0 0.0
    %1402 = vmatprep.subr.mxu0 0.0
    %1403 = vmatpush2.msra.mxu0 0.0
    %1404 = vmatprep.subr.mxu0 0.0
    %1405 = vmatpush2.msra.mxu0 0.0
    %1406 = vmatprep.subr.mxu0 0.0
    %1407 = vmatpush2.msra.mxu0 0.0
    %1408 = vmatprep.subr.mxu0 0.0
    %1409 = vmatpush2.msra.mxu0 0.0
    %1410 = vmatprep.mubr.f32.mxu0 0.0
    %1411 = vmatmul.mubr.f32.gmra.mxu0 %v1342
    %v1412 = vpop.f32.mrf.mxu0
    %v1413 = vadd.f32 0.0, %v1412
    %v1414 = vpop.f32.mrf.mxu0
    %1415 = vdwg.mxu0
    %1417 = vrot.lane.b32.xlu0 %v1413, 16
    %v1418 = vpop.permute.xlu0 %1417
    %1420 = vst.msk [vmem:[#allocation2 + $0x4] sm:$0xf] %vm738, %v1418
    %1421 = vrot.lane.b32.xlu0 %v912, 104
    %v1422 = vpop.permute.xlu0 %1421
    %1423 = vrot.lane.b32.xlu0 %v913, 72
    %v1424 = vpop.permute.xlu0 %1423
    %v1425 = vsel %vm227, %v1422, 0
    %v1427 = vsel %vm227, %v1424, 0
    %1429 = vmatprep.subr.mxu0 0.0
    %1430 = vmatpush1.xpose.msra.mxu0 0.0
    %1431 = vmatprep.subr.mxu0 0.0
    %1432 = vmatpush1.xpose.msra.mxu0 0.0
    %1433 = vmatprep.subr.mxu0 0.0
    %1434 = vmatpush1.xpose.msra.mxu0 0.0
    %1435 = vmatprep.subr.mxu0 0.0
    %1436 = vmatpush1.xpose.msra.mxu0 0.0
    %1437 = vmatprep.subr.mxu0 0.0
    %1438 = vmatpush1.xpose.msra.mxu0 0.0
    %1439 = vmatprep.subr.mxu0 0.0
    %1440 = vmatpush1.xpose.msra.mxu0 0.0
    %1441 = vmatprep.subr.mxu0 0.0
    %1442 = vmatpush1.xpose.msra.mxu0 0.0
    %1443 = vmatprep.subr.mxu0 0.0
    %1444 = vmatpush1.xpose.msra.mxu0 0.0
    %1445 = vmatprep.subr.mxu0 0.0
    %1446 = vmatpush1.xpose.msra.mxu0 0.0
    %1447 = vmatprep.subr.mxu0 0.0
    %1448 = vmatpush1.xpose.msra.mxu0 0.0
    %1449 = vmatprep.subr.mxu0 0.0
    %1450 = vmatpush1.xpose.msra.mxu0 0.0
    %1451 = vmatprep.subr.mxu0 0.0
    %1452 = vmatpush1.xpose.msra.mxu0 0.0
    %1453 = vmatprep.subr.mxu0 0.0
    %1454 = vmatpush1.xpose.msra.mxu0 0.0
    %1455 = vmatprep.subr.mxu0 0.0
    %1456 = vmatpush1.xpose.msra.mxu0 0.0
    %1457 = vmatprep.subr.mxu0 0.0
    %1458 = vmatpush1.xpose.msra.mxu0 0.0
    %1459 = vmatprep.subr.mxu0 0.0
    %1460 = vmatpush1.xpose.msra.mxu0 %v1427
    %1461 = vmatprep.subr.mxu0 0.0
    %1462 = vmatpush2.xpose.msra.mxu0 0.0
    %1463 = vmatprep.subr.mxu0 0.0
    %1464 = vmatpush2.xpose.msra.mxu0 0.0
    %1465 = vmatprep.subr.mxu0 0.0
    %1466 = vmatpush2.xpose.msra.mxu0 0.0
    %1467 = vmatprep.subr.mxu0 0.0
    %1468 = vmatpush2.xpose.msra.mxu0 0.0
    %1469 = vmatprep.subr.mxu0 0.0
    %1470 = vmatpush2.xpose.msra.mxu0 0.0
    %1471 = vmatprep.subr.mxu0 0.0
    %1472 = vmatpush2.xpose.msra.mxu0 0.0
    %1473 = vmatprep.subr.mxu0 0.0
    %1474 = vmatpush2.xpose.msra.mxu0 0.0
    %1475 = vmatprep.subr.mxu0 0.0
    %1476 = vmatpush2.xpose.msra.mxu0 0.0
    %1477 = vmatprep.subr.mxu0 0.0
    %1478 = vmatpush2.xpose.msra.mxu0 0.0
    %1479 = vmatprep.subr.mxu0 0.0
    %1480 = vmatpush2.xpose.msra.mxu0 0.0
    %1481 = vmatprep.subr.mxu0 0.0
    %1482 = vmatpush2.xpose.msra.mxu0 0.0
    %1483 = vmatprep.subr.mxu0 0.0
    %1484 = vmatpush2.xpose.msra.mxu0 0.0
    %1485 = vmatprep.subr.mxu0 0.0
    %1486 = vmatpush2.xpose.msra.mxu0 0.0
    %1487 = vmatprep.subr.mxu0 0.0
    %1488 = vmatpush2.xpose.msra.mxu0 0.0
    %1489 = vmatprep.subr.mxu0 0.0
    %1490 = vmatpush2.xpose.msra.mxu0 0.0
    %1491 = vmatprep.subr.mxu0 0.0
    %1492 = vmatpush2.xpose.msra.mxu0 0.0
    %1493 = vmatprep.mubr.f32.mxu0 0.0
    %1494 = vmatmul.mubr.f32.gmra.mxu0 %v1425
    %v1495 = vpop.f32.mrf.mxu0
    %v1496 = vadd.f32 0.0, %v1495
    %v1497 = vpop.f32.mrf.mxu0
    %1498 = vdwg.mxu0
    %v1499 = vsel %vm303, %v1496, -inf
    %1500 = vmax.xlane.f32.xlu0 %v1499
    %v1501 = vpop.xlane.xlu0 %1500
    %v1502 = vsub.f32 %v1496, %v1501
    %v1503 = vmul.f32 %v1502, 1.442695
    %v1504 = vpow.pop %v1503
    %v1505 = vsel %vm303, %v1504, 0.0
    %1506 = vadd.xlane.f32.xlu0 %v1505
    %v1507 = vpop.xlane.xlu0 %1506
    %v1508 = vrcp.pop %v1507
    %v1509 = vmul.f32 %v1504, %v1508
    %1510 = vrot.lane.b32.xlu0 %v913, 40
    %v1511 = vpop.permute.xlu0 %1510
    %v1513 = vsel %vm317, %v1509, 0
    %v1515 = vsel %vm321, %v1511, 0
    %1517 = vmatprep.subr.mxu0 0.0
    %1518 = vmatpush1.msra.mxu0 0.0
    %1519 = vmatprep.subr.mxu0 0.0
    %1520 = vmatpush1.msra.mxu0 0.0
    %1521 = vmatprep.subr.mxu0 0.0
    %1522 = vmatpush1.msra.mxu0 0.0
    %1523 = vmatprep.subr.mxu0 0.0
    %1524 = vmatpush1.msra.mxu0 0.0
    %1525 = vmatprep.subr.mxu0 0.0
    %1526 = vmatpush1.msra.mxu0 0.0
    %1527 = vmatprep.subr.mxu0 0.0
    %1528 = vmatpush1.msra.mxu0 0.0
    %1529 = vmatprep.subr.mxu0 0.0
    %1530 = vmatpush1.msra.mxu0 0.0
    %1531 = vmatprep.subr.mxu0 0.0
    %1532 = vmatpush1.msra.mxu0 0.0
    %1533 = vmatprep.subr.mxu0 0.0
    %1534 = vmatpush1.msra.mxu0 0.0
    %1535 = vmatprep.subr.mxu0 0.0
    %1536 = vmatpush1.msra.mxu0 0.0
    %1537 = vmatprep.subr.mxu0 0.0
    %1538 = vmatpush1.msra.mxu0 0.0
    %1539 = vmatprep.subr.mxu0 0.0
    %1540 = vmatpush1.msra.mxu0 0.0
    %1541 = vmatprep.subr.mxu0 0.0
    %1542 = vmatpush1.msra.mxu0 0.0
    %1543 = vmatprep.subr.mxu0 0.0
    %1544 = vmatpush1.msra.mxu0 0.0
    %1545 = vmatprep.subr.mxu0 0.0
    %1546 = vmatpush1.msra.mxu0 0.0
    %1547 = vmatprep.subr.mxu0 0.0
    %1548 = vmatpush1.msra.mxu0 %v1515
    %1549 = vmatprep.subr.mxu0 0.0
    %1550 = vmatpush2.msra.mxu0 0.0
    %1551 = vmatprep.subr.mxu0 0.0
    %1552 = vmatpush2.msra.mxu0 0.0
    %1553 = vmatprep.subr.mxu0 0.0
    %1554 = vmatpush2.msra.mxu0 0.0
    %1555 = vmatprep.subr.mxu0 0.0
    %1556 = vmatpush2.msra.mxu0 0.0
    %1557 = vmatprep.subr.mxu0 0.0
    %1558 = vmatpush2.msra.mxu0 0.0
    %1559 = vmatprep.subr.mxu0 0.0
    %1560 = vmatpush2.msra.mxu0 0.0
    %1561 = vmatprep.subr.mxu0 0.0
    %1562 = vmatpush2.msra.mxu0 0.0
    %1563 = vmatprep.subr.mxu0 0.0
    %1564 = vmatpush2.msra.mxu0 0.0
    %1565 = vmatprep.subr.mxu0 0.0
    %1566 = vmatpush2.msra.mxu0 0.0
    %1567 = vmatprep.subr.mxu0 0.0
    %1568 = vmatpush2.msra.mxu0 0.0
    %1569 = vmatprep.subr.mxu0 0.0
    %1570 = vmatpush2.msra.mxu0 0.0
    %1571 = vmatprep.subr.mxu0 0.0
    %1572 = vmatpush2.msra.mxu0 0.0
    %1573 = vmatprep.subr.mxu0 0.0
    %1574 = vmatpush2.msra.mxu0 0.0
    %1575 = vmatprep.subr.mxu0 0.0
    %1576 = vmatpush2.msra.mxu0 0.0
    %1577 = vmatprep.subr.mxu0 0.0
    %1578 = vmatpush2.msra.mxu0 0.0
    %1579 = vmatprep.subr.mxu0 0.0
    %1580 = vmatpush2.msra.mxu0 0.0
    %1581 = vmatprep.mubr.f32.mxu0 0.0
    %1582 = vmatmul.mubr.f32.gmra.mxu0 %v1513
    %v1583 = vpop.f32.mrf.mxu0
    %v1584 = vadd.f32 0.0, %v1583
    %v1585 = vpop.f32.mrf.mxu0
    %1586 = vdwg.mxu0
    %1588 = vrot.lane.b32.xlu0 %v1584, 24
    %v1589 = vpop.permute.xlu0 %1588
    %1591 = vst.msk [vmem:[#allocation2 + $0x4] sm:$0xf] %vm910, %v1589
    %v1592 = vld [vmem:[#allocation2] sm:$0xff]
    %v1593 = vld [vmem:[%s3] sm:$0xff]
    %v1594 = vld [vmem:[%s3 + $0x8] sm:$0xff]
    %v1595 = vld [vmem:[%s3 + $0x10] sm:$0xff]
    %v1596 = vld [vmem:[%s3 + $0x18] sm:$0xff]
    %v1597 = vld [vmem:[#allocation5] sm:$0x1]
    %v1599 = vlaneseq
    %v1600 = vshrl.u32 %v1599, 7
    %v1601 = vsub.s32 0, %v1600
    %v1602 = vrot.slane %v1597, %v1601
    %v1605 = vsel %vm149, %v1592, 0
    %1607 = vmatprep.subr.mxu0 0.0
    %1608 = vmatpush1.msra.mxu0 0.0
    %1609 = vmatprep.subr.mxu0 0.0
    %1610 = vmatpush1.msra.mxu0 0.0
    %1611 = vmatprep.subr.mxu0 0.0
    %1612 = vmatpush1.msra.mxu0 0.0
    %1613 = vmatprep.subr.mxu0 0.0
    %1614 = vmatpush1.msra.mxu0 0.0
    %1615 = vmatprep.subr.mxu0 0.0
    %1616 = vmatpush1.msra.mxu0 0.0
    %1617 = vmatprep.subr.mxu0 0.0
    %1618 = vmatpush1.msra.mxu0 0.0
    %1619 = vmatprep.subr.mxu0 0.0
    %1620 = vmatpush1.msra.mxu0 0.0
    %1621 = vmatprep.subr.mxu0 0.0
    %1622 = vmatpush1.msra.mxu0 0.0
    %1623 = vmatprep.subr.mxu0 0.0
    %1624 = vmatpush1.msra.mxu0 0.0
    %1625 = vmatprep.subr.mxu0 0.0
    %1626 = vmatpush1.msra.mxu0 0.0
    %1627 = vmatprep.subr.mxu0 0.0
    %1628 = vmatpush1.msra.mxu0 0.0
    %1629 = vmatprep.subr.mxu0 0.0
    %1630 = vmatpush1.msra.mxu0 0.0
    %1631 = vmatprep.subr.mxu0 0.0
    %1632 = vmatpush1.msra.mxu0 %v1596
    %1633 = vmatprep.subr.mxu0 0.0
    %1634 = vmatpush1.msra.mxu0 %v1595
    %1635 = vmatprep.subr.mxu0 0.0
    %1636 = vmatpush1.msra.mxu0 %v1594
    %1637 = vmatprep.subr.mxu0 0.0
    %1638 = vmatpush1.msra.mxu0 %v1593
    %1639 = vmatprep.subr.mxu0 0.0
    %1640 = vmatpush2.msra.mxu0 0.0
    %1641 = vmatprep.subr.mxu0 0.0
    %1642 = vmatpush2.msra.mxu0 0.0
    %1643 = vmatprep.subr.mxu0 0.0
    %1644 = vmatpush2.msra.mxu0 0.0
    %1645 = vmatprep.subr.mxu0 0.0
    %1646 = vmatpush2.msra.mxu0 0.0
    %1647 = vmatprep.subr.mxu0 0.0
    %1648 = vmatpush2.msra.mxu0 0.0
    %1649 = vmatprep.subr.mxu0 0.0
    %1650 = vmatpush2.msra.mxu0 0.0
    %1651 = vmatprep.subr.mxu0 0.0
    %1652 = vmatpush2.msra.mxu0 0.0
    %1653 = vmatprep.subr.mxu0 0.0
    %1654 = vmatpush2.msra.mxu0 0.0
    %1655 = vmatprep.subr.mxu0 0.0
    %1656 = vmatpush2.msra.mxu0 0.0
    %1657 = vmatprep.subr.mxu0 0.0
    %1658 = vmatpush2.msra.mxu0 0.0
    %1659 = vmatprep.subr.mxu0 0.0
    %1660 = vmatpush2.msra.mxu0 0.0
    %1661 = vmatprep.subr.mxu0 0.0
    %1662 = vmatpush2.msra.mxu0 0.0
    %1663 = vmatprep.subr.mxu0 0.0
    %1664 = vmatpush2.msra.mxu0 0.0
    %1665 = vmatprep.subr.mxu0 0.0
    %1666 = vmatpush2.msra.mxu0 0.0
    %1667 = vmatprep.subr.mxu0 0.0
    %1668 = vmatpush2.msra.mxu0 0.0
    %1669 = vmatprep.subr.mxu0 0.0
    %1670 = vmatpush2.msra.mxu0 0.0
    %1671 = vmatprep.mubr.f32.mxu0 0.0
    %1672 = vmatmul.mubr.f32.gmra.mxu0 %v1605
    %v1673 = vpop.f32.mrf.mxu0
    %v1674 = vadd.f32 %v1602, %v1673
    %v1675 = vpop.f32.mrf.mxu0
    %1676 = vdwg.mxu0
    %v1677 = vadd.f32 %v137, %v1674
    %v1678 = vld [vmem:[#allocation10] sm:$0x1]
    %v1679 = vld [vmem:[#allocation11] sm:$0x1]
    %v1680 = vsel %vm149, %v1677, 0.0
    %1681 = vadd.xlane.f32.xlu0 %v1680
    %v1682 = vpop.xlane.xlu0 %1681
    %v1683 = vrcp.pop 32.0
    %v1684 = vmul.f32 %v1682, %v1683
    %v1685 = vsub.f32 %v1677, %v1684
    %v1686 = vmul.f32 %v1685, %v1685
    %v1687 = vsel %vm149, %v1686, 0.0
    %1688 = vadd.xlane.f32.xlu0 %v1687
    %v1689 = vpop.xlane.xlu0 %1688
    %v1690 = vmul.f32 %v1689, %v1683
    %v1691 = vadd.f32 %v1690, 1e-05
    %v1692 = vrsqrt.pop %v1691
    %v1693 = vmul.f32 %v1685, %v1692
    %v1695 = vlaneseq
    %v1696 = vshrl.u32 %v1695, 7
    %v1697 = vsub.s32 0, %v1696
    %v1698 = vrot.slane %v1678, %v1697
    %v1700 = vmul.f32 %v1693, %v1698
    %v1702 = vlaneseq
    %v1703 = vshrl.u32 %v1702, 7
    %v1704 = vsub.s32 0, %v1703
    %v1705 = vrot.slane %v1679, %v1704
    %v1707 = vadd.f32 %v1700, %v1705
    %v1708 = vld [vmem:[%s5] sm:$0xff]
    %v1709 = vld [vmem:[%s5 + $0x8] sm:$0xff]
    %v1710 = vld [vmem:[%s5 + $0x10] sm:$0xff]
    %v1711 = vld [vmem:[%s5 + $0x18] sm:$0xff]
    %v1712 = vld [vmem:[#allocation7] sm:$0x1]
    %v1714 = vlaneseq
    %v1715 = vshrl.u32 %v1714, 7
    %v1716 = vsub.s32 0, %v1715
    %v1717 = vrot.slane %v1712, %v1716
    %v1720 = vsel %vm149, %v1707, 0
    %1722 = vmatprep.subr.mxu0 0.0
    %1723 = vmatpush1.msra.mxu0 0.0
    %1724 = vmatprep.subr.mxu0 0.0
    %1725 = vmatpush1.msra.mxu0 0.0
    %1726 = vmatprep.subr.mxu0 0.0
    %1727 = vmatpush1.msra.mxu0 0.0
    %1728 = vmatprep.subr.mxu0 0.0
    %1729 = vmatpush1.msra.mxu0 0.0
    %1730 = vmatprep.subr.mxu0 0.0
    %1731 = vmatpush1.msra.mxu0 0.0
    %1732 = vmatprep.subr.mxu0 0.0
    %1733 = vmatpush1.msra.mxu0 0.0
    %1734 = vmatprep.subr.mxu0 0.0
    %1735 = vmatpush1.msra.mxu0 0.0
    %1736 = vmatprep.subr.mxu0 0.0
    %1737 = vmatpush1.msra.mxu0 0.0
    %1738 = vmatprep.subr.mxu0 0.0
    %1739 = vmatpush1.msra.mxu0 0.0
    %1740 = vmatprep.subr.mxu0 0.0
    %1741 = vmatpush1.msra.mxu0 0.0
    %1742 = vmatprep.subr.mxu0 0.0
    %1743 = vmatpush1.msra.mxu0 0.0
    %1744 = vmatprep.subr.mxu0 0.0
    %1745 = vmatpush1.msra.mxu0 0.0
    %1746 = vmatprep.subr.mxu0 0.0
    %1747 = vmatpush1.msra.mxu0 %v1711
    %1748 = vmatprep.subr.mxu0 0.0
    %1749 = vmatpush1.msra.mxu0 %v1710
    %1750 = vmatprep.subr.mxu0 0.0
    %1751 = vmatpush1.msra.mxu0 %v1709
    %1752 = vmatprep.subr.mxu0 0.0
    %1753 = vmatpush1.msra.mxu0 %v1708
    %1754 = vmatprep.subr.mxu0 0.0
    %1755 = vmatpush2.msra.mxu0 0.0
    %1756 = vmatprep.subr.mxu0 0.0
    %1757 = vmatpush2.msra.mxu0 0.0
    %1758 = vmatprep.subr.mxu0 0.0
    %1759 = vmatpush2.msra.mxu0 0.0
    %1760 = vmatprep.subr.mxu0 0.0
    %1761 = vmatpush2.msra.mxu0 0.0
    %1762 = vmatprep.subr.mxu0 0.0
    %1763 = vmatpush2.msra.mxu0 0.0
    %1764 = vmatprep.subr.mxu0 0.0
    %1765 = vmatpush2.msra.mxu0 0.0
    %1766 = vmatprep.subr.mxu0 0.0
    %1767 = vmatpush2.msra.mxu0 0.0
    %1768 = vmatprep.subr.mxu0 0.0
    %1769 = vmatpush2.msra.mxu0 0.0
    %1770 = vmatprep.subr.mxu0 0.0
    %1771 = vmatpush2.msra.mxu0 0.0
    %1772 = vmatprep.subr.mxu0 0.0
    %1773 = vmatpush2.msra.mxu0 0.0
    %1774 = vmatprep.subr.mxu0 0.0
    %1775 = vmatpush2.msra.mxu0 0.0
    %1776 = vmatprep.subr.mxu0 0.0
    %1777 = vmatpush2.msra.mxu0 0.0
    %1778 = vmatprep.subr.mxu0 0.0
    %1779 = vmatpush2.msra.mxu0 0.0
    %1780 = vmatprep.subr.mxu0 0.0
    %1781 = vmatpush2.msra.mxu0 0.0
    %1782 = vmatprep.subr.mxu0 0.0
    %1783 = vmatpush2.msra.mxu0 0.0
    %1784 = vmatprep.subr.mxu0 0.0
    %1785 = vmatpush2.msra.mxu0 0.0
    %1786 = vmatprep.mubr.f32.mxu0 0.0
    %1787 = vmatmul.mubr.f32.gmra.mxu0 %v1720
    %v1788 = vpop.f32.mrf.mxu0
    %v1789 = vadd.f32 %v1717, %v1788
    %v1790 = vpop.f32.mrf.mxu0
    %1791 = vdwg.mxu0
    %v1792 = vmax.f32 %v1789, 0.0
    %v1793 = vld [vmem:[%s7] sm:$0xff]
    %v1794 = vld [vmem:[%s7 + $0x8] sm:$0xff]
    %v1795 = vld [vmem:[%s7 + $0x10] sm:$0xff]
    %v1796 = vld [vmem:[%s7 + $0x18] sm:$0xff]
    %v1797 = vld [vmem:[%s7 + $0x20] sm:$0xff]
    %v1798 = vld [vmem:[%s7 + $0x28] sm:$0xff]
    %v1799 = vld [vmem:[%s7 + $0x30] sm:$0xff]
    %v1800 = vld [vmem:[%s7 + $0x38] sm:$0xff]
    %v1801 = vld [vmem:[%s7 + $0x40] sm:$0xff]
    %v1802 = vld [vmem:[%s7 + $0x48] sm:$0xff]
    %v1803 = vld [vmem:[%s7 + $0x50] sm:$0xff]
    %v1804 = vld [vmem:[%s7 + $0x58] sm:$0xff]
    %v1805 = vld [vmem:[%s7 + $0x60] sm:$0xff]
    %v1806 = vld [vmem:[%s7 + $0x68] sm:$0xff]
    %v1807 = vld [vmem:[%s7 + $0x70] sm:$0xff]
    %v1808 = vld [vmem:[%s7 + $0x78] sm:$0xff]
    %v1809 = vld [vmem:[#allocation8] sm:$0x1]
    %v1811 = vlaneseq
    %v1812 = vshrl.u32 %v1811, 7
    %v1813 = vsub.s32 0, %v1812
    %v1814 = vrot.slane %v1809, %v1813
    %1816 = vmatprep.subr.mxu0 0.0
    %1817 = vmatpush1.msra.mxu0 %v1808
    %1818 = vmatprep.subr.mxu0 0.0
    %1819 = vmatpush1.msra.mxu0 %v1807
    %1820 = vmatprep.subr.mxu0 0.0
    %1821 = vmatpush1.msra.mxu0 %v1806
    %1822 = vmatprep.subr.mxu0 0.0
    %1823 = vmatpush1.msra.mxu0 %v1805
    %1824 = vmatprep.subr.mxu0 0.0
    %1825 = vmatpush1.msra.mxu0 %v1804
    %1826 = vmatprep.subr.mxu0 0.0
    %1827 = vmatpush1.msra.mxu0 %v1803
    %1828 = vmatprep.subr.mxu0 0.0
    %1829 = vmatpush1.msra.mxu0 %v1802
    %1830 = vmatprep.subr.mxu0 0.0
    %1831 = vmatpush1.msra.mxu0 %v1801
    %1832 = vmatprep.subr.mxu0 0.0
    %1833 = vmatpush1.msra.mxu0 %v1800
    %1834 = vmatprep.subr.mxu0 0.0
    %1835 = vmatpush1.msra.mxu0 %v1799
    %1836 = vmatprep.subr.mxu0 0.0
    %1837 = vmatpush1.msra.mxu0 %v1798
    %1838 = vmatprep.subr.mxu0 0.0
    %1839 = vmatpush1.msra.mxu0 %v1797
    %1840 = vmatprep.subr.mxu0 0.0
    %1841 = vmatpush1.msra.mxu0 %v1796
    %1842 = vmatprep.subr.mxu0 0.0
    %1843 = vmatpush1.msra.mxu0 %v1795
    %1844 = vmatprep.subr.mxu0 0.0
    %1845 = vmatpush1.msra.mxu0 %v1794
    %1846 = vmatprep.subr.mxu0 0.0
    %1847 = vmatpush1.msra.mxu0 %v1793
    %1848 = vmatprep.subr.mxu0 0.0
    %1849 = vmatpush2.msra.mxu0 0.0
    %1850 = vmatprep.subr.mxu0 0.0
    %1851 = vmatpush2.msra.mxu0 0.0
    %1852 = vmatprep.subr.mxu0 0.0
    %1853 = vmatpush2.msra.mxu0 0.0
    %1854 = vmatprep.subr.mxu0 0.0
    %1855 = vmatpush2.msra.mxu0 0.0
    %1856 = vmatprep.subr.mxu0 0.0
    %1857 = vmatpush2.msra.mxu0 0.0
    %1858 = vmatprep.subr.mxu0 0.0
    %1859 = vmatpush2.msra.mxu0 0.0
    %1860 = vmatprep.subr.mxu0 0.0
    %1861 = vmatpush2.msra.mxu0 0.0
    %1862 = vmatprep.subr.mxu0 0.0
    %1863 = vmatpush2.msra.mxu0 0.0
    %1864 = vmatprep.subr.mxu0 0.0
    %1865 = vmatpush2.msra.mxu0 0.0
    %1866 = vmatprep.subr.mxu0 0.0
    %1867 = vmatpush2.msra.mxu0 0.0
    %1868 = vmatprep.subr.mxu0 0.0
    %1869 = vmatpush2.msra.mxu0 0.0
    %1870 = vmatprep.subr.mxu0 0.0
    %1871 = vmatpush2.msra.mxu0 0.0
    %1872 = vmatprep.subr.mxu0 0.0
    %1873 = vmatpush2.msra.mxu0 0.0
    %1874 = vmatprep.subr.mxu0 0.0
    %1875 = vmatpush2.msra.mxu0 0.0
    %1876 = vmatprep.subr.mxu0 0.0
    %1877 = vmatpush2.msra.mxu0 0.0
    %1878 = vmatprep.subr.mxu0 0.0
    %1879 = vmatpush2.msra.mxu0 0.0
    %1880 = vmatprep.mubr.f32.mxu0 0.0
    %1881 = vmatmul.mubr.f32.gmra.mxu0 %v1792
    %v1882 = vpop.f32.mrf.mxu0
    %v1883 = vadd.f32 %v1814, %v1882
    %v1884 = vpop.f32.mrf.mxu0
    %1885 = vdwg.mxu0
    %v1886 = vadd.f32 %v1707, %v1883
    %v1887 = vld [vmem:[#allocation13] sm:$0x1]
    %v1888 = vld [vmem:[#allocation14] sm:$0x1]
    %v1889 = vsel %vm149, %v1886, 0.0
    %1890 = vadd.xlane.f32.xlu0 %v1889
    %v1891 = vpop.xlane.xlu0 %1890
    %v1892 = vmul.f32 %v1891, %v1683
    %v1893 = vsub.f32 %v1886, %v1892
    %v1894 = vmul.f32 %v1893, %v1893
    %v1895 = vsel %vm149, %v1894, 0.0
    %1896 = vadd.xlane.f32.xlu0 %v1895
    %v1897 = vpop.xlane.xlu0 %1896
    %v1898 = vmul.f32 %v1897, %v1683
    %v1899 = vadd.f32 %v1898, 1e-05
    %v1900 = vrsqrt.pop %v1899
    %v1901 = vmul.f32 %v1893, %v1900
    %v1903 = vlaneseq
    %v1904 = vshrl.u32 %v1903, 7
    %v1905 = vsub.s32 0, %v1904
    %v1906 = vrot.slane %v1887, %v1905
    %v1908 = vmul.f32 %v1901, %v1906
    %v1910 = vlaneseq
    %v1911 = vshrl.u32 %v1910, 7
    %v1912 = vsub.s32 0, %v1911
    %v1913 = vrot.slane %v1888, %v1912
    %v1915 = vadd.f32 %v1908, %v1913
    %1916 = vst.msk [vmem:[%s13] sm:$0xff] %vm149, %v1915
    // Predicated region
    $region86: #{forward.4} parent=1 // pred_check
      _
    $region87: #{forward.4} parent=1 // pred_check_branch
      %1918 = sbr.rel (0) target = $region89
    $region88: #{forward.4} parent=1 // pred_region
      _
    $region89: #{forward.4} parent=1 // pred_fallthru
      _
    // Predicated region
    $region90: #{forward.4} parent=1 // pred_check
      _
    $region91: #{forward.4} parent=1 // pred_check_branch
      %1920 = sbr.rel (0) target = $region93
    $region92: #{forward.4} parent=1 // pred_region
      _
    $region93: #{forward.4} parent=1 // pred_fallthru
      _
    %1921 = vsyncpa [#allocation4], 1
    %1922 = vsyncpa [#allocation6], 1
    %1923 = vsyncpa [#allocation9], 1
    %1924 = vsyncpa [#allocation12], 1
    %1925 = vsyncpa [#allocation15], 1

// kernel: forward.5
$region0: #{forward.5}
  #allocation0 [shape = 'u32[]', space=smem, size = 0x4, offset = 0x4, fixed_abs, tag = 'smem constant byte address 0x4 - core index']
  #allocation1 [shape = 'u32[144,128]{1,0:T(1,128)}', space=vmem, size = 0x12000, scoped, tag = 'internal scratch']
  #allocation2 [shape = 'f32[2,4,512]{2,1,0:T(4,128)}', space=vmem, size = 0x4000, scoped, tag = 'scratch operand']
  #allocation3 [shape = 'f32[2,4,128]{2,1,0:T(4,128)}', space=vmem, size = 0x1000, scoped, tag = 'scratch operand']
  #allocation4 [shape = 'f32[1,1,1]{2,1,0:T(1,128)S(1)}', space=vmem, size = 0x200, scoped, tag = 'scoped memory for forward.5']
  %s0 = inlined_call_operand.vmem [shape: f32[8,32], index: 0, kind: input, shape index: {}]
  %s1 = inlined_call_operand.vmem [shape: f32[32,512], index: 1, kind: input, shape index: {}]
  %s2 = inlined_call_operand.vmem [shape: f32[64,256], index: 2, kind: input, shape index: {}]
  %s3 = inlined_call_operand.hbm [shape: f32[64,256], index: 3, kind: input, shape index: {}]
  %s4 = inlined_call_operand.hbm [shape: f32[1,512], index: 4, kind: input, shape index: {}]
  %s5 = inlined_call_operand.vmem [shape: f32[128,512], index: 5, kind: input, shape index: {}]
  %s6 = inlined_call_operand.hbm [shape: f32[64,256], index: 6, kind: input, shape index: {}]
  %s7 = inlined_call_operand.hbm [shape: f32[64,256], index: 7, kind: input, shape index: {}]
  %s8 = inlined_call_operand.hbm [shape: f32[1,512], index: 8, kind: input, shape index: {}]
  %s9 = inlined_call_operand.hbm [shape: f32[1,1,128], index: 9, kind: input, shape index: {}]
  %s10 = inlined_call_operand.<no memory space> [shape: f32[1,1,1], index: 10, kind: input, shape index: {}]
  %s11 = inlined_call_operand.vmem [shape: f32[128,2], index: 11, kind: input, shape index: {}]
  %s12 = inlined_call_operand.hbm [shape: f32[1,2], index: 12, kind: input, shape index: {}]
  %s13 = inlined_call_operand.hbm [shape: f32[2,2], index: 13, kind: output, shape index: {}]
  %s14 = sld [smem:[#allocation0]]
  $region90: #{forward.5} parent=0
    _
  %s16 = ssub.s32 1, %s14
  %s17 = scalar_select 0, %s16, %s14
  %v18 = vstv %s10
  %19 = vst [vmem:[#allocation4] sm:$0x1] %v18
  $region1: #{forward.5} parent=0
    #allocation5 [shape = 'u8[65536]{0}', space=vmem, size = 0x10000, scoped, tag = 'input window, operand 3, single buffered']
    #allocation6 [shape = 's32[1]{0}', space=sflag, size = 0x4, scoped, tag = 'scoped memory for forward.5']
    #allocation7 [shape = 's32[1]{0}', space=sflag, size = 0x4, scoped, tag = 'scoped memory for forward.5']
    #allocation8 [shape = 'u8[2048]{0}', space=vmem, size = 0x800, scoped, tag = 'input window, operand 4, single buffered']
    #allocation9 [shape = 's32[1]{0}', space=sflag, size = 0x4, scoped, tag = 'scoped memory for forward.5']
    #allocation10 [shape = 'u8[65536]{0}', space=vmem, size = 0x10000, scoped, tag = 'input window, operand 6, single buffered']
    #allocation11 [shape = 'u8[65536]{0}', space=vmem, size = 0x10000, scoped, tag = 'input window, operand 7, single buffered']
    #allocation12 [shape = 's32[1]{0}', space=sflag, size = 0x4, scoped, tag = 'scoped memory for forward.5']
    #allocation13 [shape = 'u8[2048]{0}', space=vmem, size = 0x800, scoped, tag = 'input window, operand 8, single buffered']
    #allocation14 [shape = 'u8[512]{0}', space=vmem, size = 0x400, scoped, tag = 'input window, operand 9, single buffered']
    #allocation15 [shape = 's32[1]{0}', space=sflag, size = 0x4, scoped, tag = 'scoped memory for forward.5']
    #allocation16 [shape = 'u8[512]{0}', space=vmem, size = 0x400, scoped, tag = 'input window, operand 12, single buffered']
    #allocation17 [shape = 'u8[1024]{0}', space=vmem, size = 0x400, scoped, tag = 'output window, operand 0, single buffered']
    %20 = vsyncpa [#allocation6], 0
    %21 = vsyncpa [#allocation9], 0
    %22 = vsyncpa [#allocation12], 0
    %23 = vsyncpa [#allocation15], 0
    %24 = vsyncpa [#allocation7], 0
    // Predicated region
    $region2: #{forward.5} parent=1 // pred_check
      _
    $region3: #{forward.5} parent=1 // pred_check_branch
      %26 = sbr.rel (0) target = $region5
    $region4: #{forward.5} parent=1 // pred_region
      _
    $region5: #{forward.5} parent=1 // pred_fallthru
      _
    // Predicated region
    $region6: #{forward.5} parent=1 // pred_check
      _
    $region7: #{forward.5} parent=1 // pred_check_branch
      %28 = sbr.rel (0) target = $region9
    $region8: #{forward.5} parent=1 // pred_region
      _
    $region9: #{forward.5} parent=1 // pred_fallthru
      _
    // Predicated region
    $region10: #{forward.5} parent=1 // pred_check
      _
    $region11: #{forward.5} parent=1 // pred_check_branch
      %30 = sbr.rel (0) target = $region13
    $region12: #{forward.5} parent=1 // pred_region
      _
    $region13: #{forward.5} parent=1 // pred_fallthru
      _
    // Predicated region
    $region14: #{forward.5} parent=1 // pred_check
      _
    $region15: #{forward.5} parent=1 // pred_check_branch
      %32 = sbr.rel (0) target = $region17
    $region16: #{forward.5} parent=1 // pred_region
      %s34 = ssub.s32 2048, 2048
      %35 = vsyncadd [#allocation6], %s34
      %s36 = sshll.u32 [#allocation5], 4
      %s37 = int_to_ptr.vmem [resolvable:$true] %s36
      %42 = dma.hbm_to_vmem [thread:$0]  %s3, 2048, %s37, [#allocation6], 256, 256, 16
    $region17: #{forward.5} parent=1 // pred_fallthru
      _
    // Predicated region
    $region18: #{forward.5} parent=1 // pred_check
      _
    $region19: #{forward.5} parent=1 // pred_check_branch
      %44 = sbr.rel (0) target = $region21
    $region20: #{forward.5} parent=1 // pred_region
      %s46 = ssub.s32 64, 64
      %47 = vsyncadd [#allocation9], %s46
      %s49 = sshll.u32 [#allocation8], 4
      %s50 = int_to_ptr.vmem [resolvable:$true] %s49
      %52 = dma.hbm_to_vmem [thread:$0]  %s4, 64, %s50, [#allocation9]
    $region21: #{forward.5} parent=1 // pred_fallthru
      _
    // Predicated region
    $region22: #{forward.5} parent=1 // pred_check
      _
    $region23: #{forward.5} parent=1 // pred_check_branch
      %54 = sbr.rel (0) target = $region25
    $region24: #{forward.5} parent=1 // pred_region
      _
    $region25: #{forward.5} parent=1 // pred_fallthru
      _
    // Predicated region
    $region26: #{forward.5} parent=1 // pred_check
      _
    $region27: #{forward.5} parent=1 // pred_check_branch
      %56 = sbr.rel (0) target = $region29
    $region28: #{forward.5} parent=1 // pred_region
      %s58 = ssub.s32 2048, 2048
      %59 = vsyncadd [#allocation9], %s58
      %s60 = sshll.u32 [#allocation10], 4
      %s61 = int_to_ptr.vmem [resolvable:$true] %s60
      %66 = dma.hbm_to_vmem [thread:$0]  %s6, 2048, %s61, [#allocation9], 256, 256, 16
    $region29: #{forward.5} parent=1 // pred_fallthru
      _
    // Predicated region
    $region30: #{forward.5} parent=1 // pred_check
      _
    $region31: #{forward.5} parent=1 // pred_check_branch
      %68 = sbr.rel (0) target = $region33
    $region32: #{forward.5} parent=1 // pred_region
      %s70 = ssub.s32 2048, 2048
      %71 = vsyncadd [#allocation12], %s70
      %s72 = sshll.u32 [#allocation11], 4
      %s73 = int_to_ptr.vmem [resolvable:$true] %s72
      %78 = dma.hbm_to_vmem [thread:$0]  %s7, 2048, %s73, [#allocation12], 256, 256, 16
    $region33: #{forward.5} parent=1 // pred_fallthru
      _
    // Predicated region
    $region34: #{forward.5} parent=1 // pred_check
      _
    $region35: #{forward.5} parent=1 // pred_check_branch
      %80 = sbr.rel (0) target = $region37
    $region36: #{forward.5} parent=1 // pred_region
      %s82 = ssub.s32 64, 64
      %83 = vsyncadd [#allocation12], %s82
      %s85 = sshll.u32 [#allocation13], 4
      %s86 = int_to_ptr.vmem [resolvable:$true] %s85
      %88 = dma.hbm_to_vmem [thread:$0]  %s8, 64, %s86, [#allocation12]
    $region37: #{forward.5} parent=1 // pred_fallthru
      _
    // Predicated region
    $region38: #{forward.5} parent=1 // pred_check
      _
    $region39: #{forward.5} parent=1 // pred_check_branch
      %90 = sbr.rel (0) target = $region41
    $region40: #{forward.5} parent=1 // pred_region
      %s92 = ssub.s32 16, 16
      %93 = vsyncadd [#allocation15], %s92
      %s95 = sshll.u32 [#allocation14], 4
      %s96 = int_to_ptr.vmem [resolvable:$true] %s95
      %98 = dma.hbm_to_vmem [thread:$0]  %s9, 16, %s96, [#allocation15]
    $region41: #{forward.5} parent=1 // pred_fallthru
      _
    // Predicated region
    $region42: #{forward.5} parent=1 // pred_check
      _
    $region43: #{forward.5} parent=1 // pred_check_branch
      %100 = sbr.rel (0) target = $region45
    $region44: #{forward.5} parent=1 // pred_region
      _
    $region45: #{forward.5} parent=1 // pred_fallthru
      _
    // Predicated region
    $region46: #{forward.5} parent=1 // pred_check
      _
    $region47: #{forward.5} parent=1 // pred_check_branch
      %102 = sbr.rel (0) target = $region49
    $region48: #{forward.5} parent=1 // pred_region
      _
    $region49: #{forward.5} parent=1 // pred_fallthru
      _
    // Predicated region
    $region50: #{forward.5} parent=1 // pred_check
      _
    $region51: #{forward.5} parent=1 // pred_check_branch
      %104 = sbr.rel (0) target = $region53
    $region52: #{forward.5} parent=1 // pred_region
      %s106 = ssub.s32 16, 16
      %107 = vsyncadd [#allocation15], %s106
      %s109 = sshll.u32 [#allocation16], 4
      %s110 = int_to_ptr.vmem [resolvable:$true] %s109
      %112 = dma.hbm_to_vmem [thread:$0]  %s12, 16, %s110, [#allocation15]
    $region53: #{forward.5} parent=1 // pred_fallthru
      _
    // Predicated region
    $region54: #{forward.5} parent=1 // pred_check
      _
    $region55: #{forward.5} parent=1 // pred_check_branch
      %114 = sbr.rel (0) target = $region57
    $region56: #{forward.5} parent=1 // pred_region
      %115 = dma.done [#allocation6], 2048
    $region57: #{forward.5} parent=1 // pred_fallthru
      _
    // Predicated region
    $region58: #{forward.5} parent=1 // pred_check
      _
    $region59: #{forward.5} parent=1 // pred_check_branch
      %117 = sbr.rel (0) target = $region61
    $region60: #{forward.5} parent=1 // pred_region
      %118 = dma.done [#allocation9], 64
    $region61: #{forward.5} parent=1 // pred_fallthru
      _
    // Predicated region
    $region62: #{forward.5} parent=1 // pred_check
      _
    $region63: #{forward.5} parent=1 // pred_check_branch
      %120 = sbr.rel (0) target = $region65
    $region64: #{forward.5} parent=1 // pred_region
      %121 = dma.done [#allocation9], 2048
    $region65: #{forward.5} parent=1 // pred_fallthru
      _
    // Predicated region
    $region66: #{forward.5} parent=1 // pred_check
      _
    $region67: #{forward.5} parent=1 // pred_check_branch
      %123 = sbr.rel (0) target = $region69
    $region68: #{forward.5} parent=1 // pred_region
      %124 = dma.done [#allocation12], 2048
    $region69: #{forward.5} parent=1 // pred_fallthru
      _
    // Predicated region
    $region70: #{forward.5} parent=1 // pred_check
      _
    $region71: #{forward.5} parent=1 // pred_check_branch
      %126 = sbr.rel (0) target = $region73
    $region72: #{forward.5} parent=1 // pred_region
      %127 = dma.done [#allocation12], 64
    $region73: #{forward.5} parent=1 // pred_fallthru
      _
    // Predicated region
    $region74: #{forward.5} parent=1 // pred_check
      _
    $region75: #{forward.5} parent=1 // pred_check_branch
      %129 = sbr.rel (0) target = $region77
    $region76: #{forward.5} parent=1 // pred_region
      %130 = dma.done [#allocation15], 16
    $region77: #{forward.5} parent=1 // pred_fallthru
      _
    // Predicated region
    $region78: #{forward.5} parent=1 // pred_check
      _
    $region79: #{forward.5} parent=1 // pred_check_branch
      %132 = sbr.rel (0) target = $region81
    $region80: #{forward.5} parent=1 // pred_region
      %133 = dma.done [#allocation15], 16
    $region81: #{forward.5} parent=1 // pred_fallthru
      _
    %v134 = vlaneseq
    %v135 = vand.u32 %v134, 127
    %v136 = vadd.s32 %v135, 128
    %vm137 = vcmp.ge.s32.totalorder %v135, 128
    %vm138 = vcmp.ge.s32.totalorder %v136, 128
    %vm139 = vcmp.lt.s32.totalorder %v135, 192
    %vm140 = vcmp.lt.s32.totalorder %v136, 192
    %vm141 = vmand %vm137, %vm139
    %vm142 = vmand %vm138, %vm140
    %v143 = vld [vmem:[%s0] sm:$0xf]
    %v144 = vld [vmem:[%s1] sm:$0xff]
    %v145 = vld [vmem:[%s1 + $0x8] sm:$0xff]
    %v146 = vld [vmem:[%s1 + $0x10] sm:$0xff]
    %v147 = vld [vmem:[%s1 + $0x18] sm:$0xff]
    %v148 = vld [vmem:[%s1 + $0x20] sm:$0xff]
    %v149 = vld [vmem:[%s1 + $0x28] sm:$0xff]
    %v150 = vld [vmem:[%s1 + $0x30] sm:$0xff]
    %v151 = vld [vmem:[%s1 + $0x38] sm:$0xff]
    %v152 = vld [vmem:[%s1 + $0x40] sm:$0xff]
    %v153 = vld [vmem:[%s1 + $0x48] sm:$0xff]
    %v154 = vld [vmem:[%s1 + $0x50] sm:$0xff]
    %v155 = vld [vmem:[%s1 + $0x58] sm:$0xff]
    %v156 = vld [vmem:[%s1 + $0x60] sm:$0xff]
    %v157 = vld [vmem:[%s1 + $0x68] sm:$0xff]
    %v158 = vld [vmem:[%s1 + $0x70] sm:$0xff]
    %v159 = vld [vmem:[%s1 + $0x78] sm:$0xff]
    %v160 = vld [vmem:[#allocation8] sm:$0xf]
    %v162 = vlaneseq
    %v163 = vshrl.u32 %v162, 7
    %v164 = vsub.s32 0, %v163
    %v165 = vrot.slane %v160, %v164
    %v166 = vlaneseq
    %v167 = vshrl.u32 %v166, 7
    %v168 = vsub.s32 1, %v167
    %v169 = vrot.slane %v160, %v168
    %v170 = vlaneseq
    %v171 = vshrl.u32 %v170, 7
    %v172 = vsub.s32 2, %v171
    %v173 = vrot.slane %v160, %v172
    %v174 = vlaneseq
    %v175 = vshrl.u32 %v174, 7
    %v176 = vsub.s32 3, %v175
    %v177 = vrot.slane %v160, %v176
    %vm182 = vcmask 261120
    %v184 = vsel %vm182, %v143, 0
    %186 = vmatprep.subr.mxu0 0.0
    %187 = vmatpush1.msra.mxu0 0.0
    %188 = vmatprep.subr.mxu0 0.0
    %189 = vmatpush1.msra.mxu0 0.0
    %190 = vmatprep.subr.mxu0 0.0
    %191 = vmatpush1.msra.mxu0 0.0
    %192 = vmatprep.subr.mxu0 0.0
    %193 = vmatpush1.msra.mxu0 0.0
    %194 = vmatprep.subr.mxu0 0.0
    %195 = vmatpush1.msra.mxu0 0.0
    %196 = vmatprep.subr.mxu0 0.0
    %197 = vmatpush1.msra.mxu0 0.0
    %198 = vmatprep.subr.mxu0 0.0
    %199 = vmatpush1.msra.mxu0 0.0
    %200 = vmatprep.subr.mxu0 0.0
    %201 = vmatpush1.msra.mxu0 0.0
    %202 = vmatprep.subr.mxu0 0.0
    %203 = vmatpush1.msra.mxu0 0.0
    %204 = vmatprep.subr.mxu0 0.0
    %205 = vmatpush1.msra.mxu0 0.0
    %206 = vmatprep.subr.mxu0 0.0
    %207 = vmatpush1.msra.mxu0 0.0
    %208 = vmatprep.subr.mxu0 0.0
    %209 = vmatpush1.msra.mxu0 0.0
    %210 = vmatprep.subr.mxu0 %v157
    %211 = vmatpush1.msra.mxu0 %v156
    %212 = vmatprep.subr.mxu0 %v153
    %213 = vmatpush1.msra.mxu0 %v152
    %214 = vmatprep.subr.mxu0 %v149
    %215 = vmatpush1.msra.mxu0 %v148
    %216 = vmatprep.subr.mxu0 %v145
    %217 = vmatpush1.msra.mxu0 %v144
    %218 = vmatprep.subr.mxu0 0.0
    %219 = vmatpush2.msra.mxu0 0.0
    %220 = vmatprep.subr.mxu0 0.0
    %221 = vmatpush2.msra.mxu0 0.0
    %222 = vmatprep.subr.mxu0 0.0
    %223 = vmatpush2.msra.mxu0 0.0
    %224 = vmatprep.subr.mxu0 0.0
    %225 = vmatpush2.msra.mxu0 0.0
    %226 = vmatprep.subr.mxu0 0.0
    %227 = vmatpush2.msra.mxu0 0.0
    %228 = vmatprep.subr.mxu0 0.0
    %229 = vmatpush2.msra.mxu0 0.0
    %230 = vmatprep.subr.mxu0 0.0
    %231 = vmatpush2.msra.mxu0 0.0
    %232 = vmatprep.subr.mxu0 0.0
    %233 = vmatpush2.msra.mxu0 0.0
    %234 = vmatprep.subr.mxu0 0.0
    %235 = vmatpush2.msra.mxu0 0.0
    %236 = vmatprep.subr.mxu0 0.0
    %237 = vmatpush2.msra.mxu0 0.0
    %238 = vmatprep.subr.mxu0 0.0
    %239 = vmatpush2.msra.mxu0 0.0
    %240 = vmatprep.subr.mxu0 0.0
    %241 = vmatpush2.msra.mxu0 0.0
    %242 = vmatprep.subr.mxu0 0.0
    %243 = vmatpush2.msra.mxu0 0.0
    %244 = vmatprep.subr.mxu0 0.0
    %245 = vmatpush2.msra.mxu0 0.0
    %246 = vmatprep.subr.mxu0 0.0
    %247 = vmatpush2.msra.mxu0 0.0
    %248 = vmatprep.subr.mxu0 0.0
    %249 = vmatpush2.msra.mxu0 0.0
    %250 = vmatprep.mubr.f32.mxu0 0.0
    %251 = vmatmul.mubr.f32.gmra.mxu0 %v184
    %v252 = vpop.f32.mrf.mxu0
    %v253 = vadd.f32 %v165, %v252
    %v254 = vpop.f32.mrf.mxu0
    %v255 = vadd.f32 %v169, %v254
    %256 = vdwg.mxu0
    %257 = vmatprep.subr.mxu0 0.0
    %258 = vmatpush1.msra.mxu0 0.0
    %259 = vmatprep.subr.mxu0 0.0
    %260 = vmatpush1.msra.mxu0 0.0
    %261 = vmatprep.subr.mxu0 0.0
    %262 = vmatpush1.msra.mxu0 0.0
    %263 = vmatprep.subr.mxu0 0.0
    %264 = vmatpush1.msra.mxu0 0.0
    %265 = vmatprep.subr.mxu0 0.0
    %266 = vmatpush1.msra.mxu0 0.0
    %267 = vmatprep.subr.mxu0 0.0
    %268 = vmatpush1.msra.mxu0 0.0
    %269 = vmatprep.subr.mxu0 0.0
    %270 = vmatpush1.msra.mxu0 0.0
    %271 = vmatprep.subr.mxu0 0.0
    %272 = vmatpush1.msra.mxu0 0.0
    %273 = vmatprep.subr.mxu0 0.0
    %274 = vmatpush1.msra.mxu0 0.0
    %275 = vmatprep.subr.mxu0 0.0
    %276 = vmatpush1.msra.mxu0 0.0
    %277 = vmatprep.subr.mxu0 0.0
    %278 = vmatpush1.msra.mxu0 0.0
    %279 = vmatprep.subr.mxu0 0.0
    %280 = vmatpush1.msra.mxu0 0.0
    %281 = vmatprep.subr.mxu0 %v159
    %282 = vmatpush1.msra.mxu0 %v158
    %283 = vmatprep.subr.mxu0 %v155
    %284 = vmatpush1.msra.mxu0 %v154
    %285 = vmatprep.subr.mxu0 %v151
    %286 = vmatpush1.msra.mxu0 %v150
    %287 = vmatprep.subr.mxu0 %v147
    %288 = vmatpush1.msra.mxu0 %v146
    %289 = vmatprep.subr.mxu0 0.0
    %290 = vmatpush2.msra.mxu0 0.0
    %291 = vmatprep.subr.mxu0 0.0
    %292 = vmatpush2.msra.mxu0 0.0
    %293 = vmatprep.subr.mxu0 0.0
    %294 = vmatpush2.msra.mxu0 0.0
    %295 = vmatprep.subr.mxu0 0.0
    %296 = vmatpush2.msra.mxu0 0.0
    %297 = vmatprep.subr.mxu0 0.0
    %298 = vmatpush2.msra.mxu0 0.0
    %299 = vmatprep.subr.mxu0 0.0
    %300 = vmatpush2.msra.mxu0 0.0
    %301 = vmatprep.subr.mxu0 0.0
    %302 = vmatpush2.msra.mxu0 0.0
    %303 = vmatprep.subr.mxu0 0.0
    %304 = vmatpush2.msra.mxu0 0.0
    %305 = vmatprep.subr.mxu0 0.0
    %306 = vmatpush2.msra.mxu0 0.0
    %307 = vmatprep.subr.mxu0 0.0
    %308 = vmatpush2.msra.mxu0 0.0
    %309 = vmatprep.subr.mxu0 0.0
    %310 = vmatpush2.msra.mxu0 0.0
    %311 = vmatprep.subr.mxu0 0.0
    %312 = vmatpush2.msra.mxu0 0.0
    %313 = vmatprep.subr.mxu0 0.0
    %314 = vmatpush2.msra.mxu0 0.0
    %315 = vmatprep.subr.mxu0 0.0
    %316 = vmatpush2.msra.mxu0 0.0
    %317 = vmatprep.subr.mxu0 0.0
    %318 = vmatpush2.msra.mxu0 0.0
    %319 = vmatprep.subr.mxu0 0.0
    %320 = vmatpush2.msra.mxu0 0.0
    %321 = vmatprep.mubr.f32.mxu0 0.0
    %322 = vmatmul.mubr.f32.gmra.mxu0 %v184
    %v323 = vpop.f32.mrf.mxu0
    %v324 = vadd.f32 %v173, %v323
    %v325 = vpop.f32.mrf.mxu0
    %v326 = vadd.f32 %v177, %v325
    %327 = vdwg.mxu0
    %v332 = vcombine.low %v253, %v255
    %v333 = vcombine.low %v324, %v326
    %336 = vst [vmem:[#allocation2] sm:$0xff] %v332
    %337 = vst [vmem:[#allocation2 + $0x8] sm:$0xff] %v333
    %v338 = vld [vmem:[%s0 + $0x4] sm:$0xf]
    %v339 = vld [vmem:[%s1] sm:$0xff]
    %v340 = vld [vmem:[%s1 + $0x8] sm:$0xff]
    %v341 = vld [vmem:[%s1 + $0x10] sm:$0xff]
    %v342 = vld [vmem:[%s1 + $0x18] sm:$0xff]
    %v343 = vld [vmem:[%s1 + $0x20] sm:$0xff]
    %v344 = vld [vmem:[%s1 + $0x28] sm:$0xff]
    %v345 = vld [vmem:[%s1 + $0x30] sm:$0xff]
    %v346 = vld [vmem:[%s1 + $0x38] sm:$0xff]
    %v347 = vld [vmem:[%s1 + $0x40] sm:$0xff]
    %v348 = vld [vmem:[%s1 + $0x48] sm:$0xff]
    %v349 = vld [vmem:[%s1 + $0x50] sm:$0xff]
    %v350 = vld [vmem:[%s1 + $0x58] sm:$0xff]
    %v351 = vld [vmem:[%s1 + $0x60] sm:$0xff]
    %v352 = vld [vmem:[%s1 + $0x68] sm:$0xff]
    %v353 = vld [vmem:[%s1 + $0x70] sm:$0xff]
    %v354 = vld [vmem:[%s1 + $0x78] sm:$0xff]
    %v355 = vld [vmem:[#allocation8] sm:$0xf]
    %v357 = vlaneseq
    %v358 = vshrl.u32 %v357, 7
    %v359 = vsub.s32 0, %v358
    %v360 = vrot.slane %v355, %v359
    %v361 = vlaneseq
    %v362 = vshrl.u32 %v361, 7
    %v363 = vsub.s32 1, %v362
    %v364 = vrot.slane %v355, %v363
    %v365 = vlaneseq
    %v366 = vshrl.u32 %v365, 7
    %v367 = vsub.s32 2, %v366
    %v368 = vrot.slane %v355, %v367
    %v369 = vlaneseq
    %v370 = vshrl.u32 %v369, 7
    %v371 = vsub.s32 3, %v370
    %v372 = vrot.slane %v355, %v371
    %v378 = vsel %vm182, %v338, 0
    %380 = vmatprep.subr.mxu0 0.0
    %381 = vmatpush1.msra.mxu0 0.0
    %382 = vmatprep.subr.mxu0 0.0
    %383 = vmatpush1.msra.mxu0 0.0
    %384 = vmatprep.subr.mxu0 0.0
    %385 = vmatpush1.msra.mxu0 0.0
    %386 = vmatprep.subr.mxu0 0.0
    %387 = vmatpush1.msra.mxu0 0.0
    %388 = vmatprep.subr.mxu0 0.0
    %389 = vmatpush1.msra.mxu0 0.0
    %390 = vmatprep.subr.mxu0 0.0
    %391 = vmatpush1.msra.mxu0 0.0
    %392 = vmatprep.subr.mxu0 0.0
    %393 = vmatpush1.msra.mxu0 0.0
    %394 = vmatprep.subr.mxu0 0.0
    %395 = vmatpush1.msra.mxu0 0.0
    %396 = vmatprep.subr.mxu0 0.0
    %397 = vmatpush1.msra.mxu0 0.0
    %398 = vmatprep.subr.mxu0 0.0
    %399 = vmatpush1.msra.mxu0 0.0
    %400 = vmatprep.subr.mxu0 0.0
    %401 = vmatpush1.msra.mxu0 0.0
    %402 = vmatprep.subr.mxu0 0.0
    %403 = vmatpush1.msra.mxu0 0.0
    %404 = vmatprep.subr.mxu0 %v352
    %405 = vmatpush1.msra.mxu0 %v351
    %406 = vmatprep.subr.mxu0 %v348
    %407 = vmatpush1.msra.mxu0 %v347
    %408 = vmatprep.subr.mxu0 %v344
    %409 = vmatpush1.msra.mxu0 %v343
    %410 = vmatprep.subr.mxu0 %v340
    %411 = vmatpush1.msra.mxu0 %v339
    %412 = vmatprep.subr.mxu0 0.0
    %413 = vmatpush2.msra.mxu0 0.0
    %414 = vmatprep.subr.mxu0 0.0
    %415 = vmatpush2.msra.mxu0 0.0
    %416 = vmatprep.subr.mxu0 0.0
    %417 = vmatpush2.msra.mxu0 0.0
    %418 = vmatprep.subr.mxu0 0.0
    %419 = vmatpush2.msra.mxu0 0.0
    %420 = vmatprep.subr.mxu0 0.0
    %421 = vmatpush2.msra.mxu0 0.0
    %422 = vmatprep.subr.mxu0 0.0
    %423 = vmatpush2.msra.mxu0 0.0
    %424 = vmatprep.subr.mxu0 0.0
    %425 = vmatpush2.msra.mxu0 0.0
    %426 = vmatprep.subr.mxu0 0.0
    %427 = vmatpush2.msra.mxu0 0.0
    %428 = vmatprep.subr.mxu0 0.0
    %429 = vmatpush2.msra.mxu0 0.0
    %430 = vmatprep.subr.mxu0 0.0
    %431 = vmatpush2.msra.mxu0 0.0
    %432 = vmatprep.subr.mxu0 0.0
    %433 = vmatpush2.msra.mxu0 0.0
    %434 = vmatprep.subr.mxu0 0.0
    %435 = vmatpush2.msra.mxu0 0.0
    %436 = vmatprep.subr.mxu0 0.0
    %437 = vmatpush2.msra.mxu0 0.0
    %438 = vmatprep.subr.mxu0 0.0
    %439 = vmatpush2.msra.mxu0 0.0
    %440 = vmatprep.subr.mxu0 0.0
    %441 = vmatpush2.msra.mxu0 0.0
    %442 = vmatprep.subr.mxu0 0.0
    %443 = vmatpush2.msra.mxu0 0.0
    %444 = vmatprep.mubr.f32.mxu0 0.0
    %445 = vmatmul.mubr.f32.gmra.mxu0 %v378
    %v446 = vpop.f32.mrf.mxu0
    %v447 = vadd.f32 %v360, %v446
    %v448 = vpop.f32.mrf.mxu0
    %v449 = vadd.f32 %v364, %v448
    %450 = vdwg.mxu0
    %451 = vmatprep.subr.mxu0 0.0
    %452 = vmatpush1.msra.mxu0 0.0
    %453 = vmatprep.subr.mxu0 0.0
    %454 = vmatpush1.msra.mxu0 0.0
    %455 = vmatprep.subr.mxu0 0.0
    %456 = vmatpush1.msra.mxu0 0.0
    %457 = vmatprep.subr.mxu0 0.0
    %458 = vmatpush1.msra.mxu0 0.0
    %459 = vmatprep.subr.mxu0 0.0
    %460 = vmatpush1.msra.mxu0 0.0
    %461 = vmatprep.subr.mxu0 0.0
    %462 = vmatpush1.msra.mxu0 0.0
    %463 = vmatprep.subr.mxu0 0.0
    %464 = vmatpush1.msra.mxu0 0.0
    %465 = vmatprep.subr.mxu0 0.0
    %466 = vmatpush1.msra.mxu0 0.0
    %467 = vmatprep.subr.mxu0 0.0
    %468 = vmatpush1.msra.mxu0 0.0
    %469 = vmatprep.subr.mxu0 0.0
    %470 = vmatpush1.msra.mxu0 0.0
    %471 = vmatprep.subr.mxu0 0.0
    %472 = vmatpush1.msra.mxu0 0.0
    %473 = vmatprep.subr.mxu0 0.0
    %474 = vmatpush1.msra.mxu0 0.0
    %475 = vmatprep.subr.mxu0 %v354
    %476 = vmatpush1.msra.mxu0 %v353
    %477 = vmatprep.subr.mxu0 %v350
    %478 = vmatpush1.msra.mxu0 %v349
    %479 = vmatprep.subr.mxu0 %v346
    %480 = vmatpush1.msra.mxu0 %v345
    %481 = vmatprep.subr.mxu0 %v342
    %482 = vmatpush1.msra.mxu0 %v341
    %483 = vmatprep.subr.mxu0 0.0
    %484 = vmatpush2.msra.mxu0 0.0
    %485 = vmatprep.subr.mxu0 0.0
    %486 = vmatpush2.msra.mxu0 0.0
    %487 = vmatprep.subr.mxu0 0.0
    %488 = vmatpush2.msra.mxu0 0.0
    %489 = vmatprep.subr.mxu0 0.0
    %490 = vmatpush2.msra.mxu0 0.0
    %491 = vmatprep.subr.mxu0 0.0
    %492 = vmatpush2.msra.mxu0 0.0
    %493 = vmatprep.subr.mxu0 0.0
    %494 = vmatpush2.msra.mxu0 0.0
    %495 = vmatprep.subr.mxu0 0.0
    %496 = vmatpush2.msra.mxu0 0.0
    %497 = vmatprep.subr.mxu0 0.0
    %498 = vmatpush2.msra.mxu0 0.0
    %499 = vmatprep.subr.mxu0 0.0
    %500 = vmatpush2.msra.mxu0 0.0
    %501 = vmatprep.subr.mxu0 0.0
    %502 = vmatpush2.msra.mxu0 0.0
    %503 = vmatprep.subr.mxu0 0.0
    %504 = vmatpush2.msra.mxu0 0.0
    %505 = vmatprep.subr.mxu0 0.0
    %506 = vmatpush2.msra.mxu0 0.0
    %507 = vmatprep.subr.mxu0 0.0
    %508 = vmatpush2.msra.mxu0 0.0
    %509 = vmatprep.subr.mxu0 0.0
    %510 = vmatpush2.msra.mxu0 0.0
    %511 = vmatprep.subr.mxu0 0.0
    %512 = vmatpush2.msra.mxu0 0.0
    %513 = vmatprep.subr.mxu0 0.0
    %514 = vmatpush2.msra.mxu0 0.0
    %515 = vmatprep.mubr.f32.mxu0 0.0
    %516 = vmatmul.mubr.f32.gmra.mxu0 %v378
    %v517 = vpop.f32.mrf.mxu0
    %v518 = vadd.f32 %v368, %v517
    %v519 = vpop.f32.mrf.mxu0
    %v520 = vadd.f32 %v372, %v519
    %521 = vdwg.mxu0
    %v526 = vcombine.low %v447, %v449
    %v527 = vcombine.low %v518, %v520
    %s530 = scalar_lea.vmem [#allocation2], 16
    %531 = vst [vmem:[%s530] sm:$0xff] %v526
    %532 = vst [vmem:[%s530 + $0x8] sm:$0xff] %v527
    %v533 = vld [vmem:[%s2] sm:$0xff]
    %v534 = vld [vmem:[%s2 + $0x8] sm:$0xff]
    %v535 = vld [vmem:[%s2 + $0x10] sm:$0xff]
    %v536 = vld [vmem:[%s2 + $0x18] sm:$0xff]
    %v537 = vld [vmem:[%s2 + $0x20] sm:$0xff]
    %v538 = vld [vmem:[%s2 + $0x28] sm:$0xff]
    %v539 = vld [vmem:[%s2 + $0x30] sm:$0xff]
    %v540 = vld [vmem:[%s2 + $0x38] sm:$0xff]
    %v541 = vld [vmem:[%s2 + $0x40] sm:$0xff]
    %v542 = vld [vmem:[%s2 + $0x48] sm:$0xff]
    %v543 = vld [vmem:[%s2 + $0x50] sm:$0xff]
    %v544 = vld [vmem:[%s2 + $0x58] sm:$0xff]
    %v545 = vld [vmem:[%s2 + $0x60] sm:$0xff]
    %v546 = vld [vmem:[%s2 + $0x68] sm:$0xff]
    %v547 = vld [vmem:[%s2 + $0x70] sm:$0xff]
    %v548 = vld [vmem:[%s2 + $0x78] sm:$0xff]
    %v549 = vld [vmem:[#allocation5] sm:$0xff]
    %v550 = vld [vmem:[#allocation5 + $0x8] sm:$0xff]
    %v551 = vld [vmem:[#allocation5 + $0x10] sm:$0xff]
    %v552 = vld [vmem:[#allocation5 + $0x18] sm:$0xff]
    %v553 = vld [vmem:[#allocation5 + $0x20] sm:$0xff]
    %v554 = vld [vmem:[#allocation5 + $0x28] sm:$0xff]
    %v555 = vld [vmem:[#allocation5 + $0x30] sm:$0xff]
    %v556 = vld [vmem:[#allocation5 + $0x38] sm:$0xff]
    %v557 = vld [vmem:[#allocation5 + $0x40] sm:$0xff]
    %v558 = vld [vmem:[#allocation5 + $0x48] sm:$0xff]
    %v559 = vld [vmem:[#allocation5 + $0x50] sm:$0xff]
    %v560 = vld [vmem:[#allocation5 + $0x58] sm:$0xff]
    %v561 = vld [vmem:[#allocation5 + $0x60] sm:$0xff]
    %v562 = vld [vmem:[#allocation5 + $0x68] sm:$0xff]
    %v563 = vld [vmem:[#allocation5 + $0x70] sm:$0xff]
    %v564 = vld [vmem:[#allocation5 + $0x78] sm:$0xff]
    %v565 = vld [vmem:[#allocation2] ss:$4 sm:$0x3]
    %s566 = scalar_lea.vmem [#allocation2], 16
    %v567 = vld [vmem:[%s566] ss:$4 sm:$0x3]
    %vm568 = vcmask 523264
    %v570 = vsel %vm568, 0.0, 0
    %572 = vmatprep.subr.mxu0 0.0
    %573 = vmatpush1.msra.mxu0 0.0
    %574 = vmatprep.subr.mxu0 0.0
    %575 = vmatpush1.msra.mxu0 0.0
    %576 = vmatprep.subr.mxu0 0.0
    %577 = vmatpush1.msra.mxu0 0.0
    %578 = vmatprep.subr.mxu0 0.0
    %579 = vmatpush1.msra.mxu0 0.0
    %580 = vmatprep.subr.mxu0 0.0
    %581 = vmatpush1.msra.mxu0 0.0
    %582 = vmatprep.subr.mxu0 0.0
    %583 = vmatpush1.msra.mxu0 0.0
    %584 = vmatprep.subr.mxu0 0.0
    %585 = vmatpush1.msra.mxu0 0.0
    %586 = vmatprep.subr.mxu0 0.0
    %587 = vmatpush1.msra.mxu0 0.0
    %588 = vmatprep.subr.mxu0 %v548
    %589 = vmatpush1.msra.mxu0 %v547
    %590 = vmatprep.subr.mxu0 %v546
    %591 = vmatpush1.msra.mxu0 %v545
    %592 = vmatprep.subr.mxu0 %v544
    %593 = vmatpush1.msra.mxu0 %v543
    %594 = vmatprep.subr.mxu0 %v542
    %595 = vmatpush1.msra.mxu0 %v541
    %596 = vmatprep.subr.mxu0 %v540
    %597 = vmatpush1.msra.mxu0 %v539
    %598 = vmatprep.subr.mxu0 %v538
    %599 = vmatpush1.msra.mxu0 %v537
    %600 = vmatprep.subr.mxu0 %v536
    %601 = vmatpush1.msra.mxu0 %v535
    %602 = vmatprep.subr.mxu0 %v534
    %603 = vmatpush1.msra.mxu0 %v533
    %604 = vmatprep.subr.mxu0 0.0
    %605 = vmatpush2.msra.mxu0 0.0
    %606 = vmatprep.subr.mxu0 0.0
    %607 = vmatpush2.msra.mxu0 0.0
    %608 = vmatprep.subr.mxu0 0.0
    %609 = vmatpush2.msra.mxu0 0.0
    %610 = vmatprep.subr.mxu0 0.0
    %611 = vmatpush2.msra.mxu0 0.0
    %612 = vmatprep.subr.mxu0 0.0
    %613 = vmatpush2.msra.mxu0 0.0
    %614 = vmatprep.subr.mxu0 0.0
    %615 = vmatpush2.msra.mxu0 0.0
    %616 = vmatprep.subr.mxu0 0.0
    %617 = vmatpush2.msra.mxu0 0.0
    %618 = vmatprep.subr.mxu0 0.0
    %619 = vmatpush2.msra.mxu0 0.0
    %620 = vmatprep.subr.mxu0 0.0
    %621 = vmatpush2.msra.mxu0 0.0
    %622 = vmatprep.subr.mxu0 0.0
    %623 = vmatpush2.msra.mxu0 0.0
    %624 = vmatprep.subr.mxu0 0.0
    %625 = vmatpush2.msra.mxu0 0.0
    %626 = vmatprep.subr.mxu0 0.0
    %627 = vmatpush2.msra.mxu0 0.0
    %628 = vmatprep.subr.mxu0 0.0
    %629 = vmatpush2.msra.mxu0 0.0
    %630 = vmatprep.subr.mxu0 0.0
    %631 = vmatpush2.msra.mxu0 0.0
    %632 = vmatprep.subr.mxu0 0.0
    %633 = vmatpush2.msra.mxu0 0.0
    %634 = vmatprep.subr.mxu0 0.0
    %635 = vmatpush2.msra.mxu0 0.0
    %636 = vmatprep.mubr.f32.mxu0 0.0
    %637 = vmatmul.mubr.f32.gmra.mxu0 %v570
    %v638 = vpop.f32.mrf.mxu0
    %v639 = vadd.f32 0.0, %v638
    %v640 = vpop.f32.mrf.mxu0
    %v641 = vadd.f32 0.0, %v640
    %642 = vdwg.mxu0
    %v645 = vcombine.low %v639, %v641
    %v647 = vunpack.c.l.s4 1966171168
    %v648 = vunpack.c.0.s8 %v647
    %v649 = vlaneseq
    %v650 = vshrl.u32 %v649, 7
    %v651 = vsub.s32 %v648, %v650
    %v652 = vrot.slane %v645, %v651
    %v653 = vcombine.high %v652, %v652
    %v655 = vunpack.c.l.s4 1966171168
    %v656 = vunpack.c.0.s8 %v655
    %v657 = vlaneseq
    %v658 = vshrl.u32 %v657, 7
    %v659 = vsub.s32 %v656, %v658
    %v660 = vrot.slane %v652, %v659
    %v662 = vunpack.c.l.s4 1966171168
    %v663 = vunpack.c.0.s8 %v662
    %v664 = vlaneseq
    %v665 = vshrl.u32 %v664, 7
    %v666 = vsub.s32 %v663, %v665
    %v667 = vrot.slane %v653, %v666
    %v670 = vadd.f32 %v565, %v660
    %v671 = vadd.f32 %v567, %v667
    %v672 = vtanh.pop %v670
    %v673 = vtanh.pop %v671
    %v674 = vxor.u32 %v670, 2147483648
    %v675 = vxor.u32 %v671, 2147483648
    %v676 = vmul.f32 %v674, 1.442695
    %v677 = vpow.pop %v676
    %v678 = vmul.f32 %v675, 1.442695
    %v679 = vpow.pop %v678
    %v680 = vadd.f32 %v677, 1.0
    %v681 = vadd.f32 %v679, 1.0
    %v682 = vrcp.pop %v680
    %v683 = vmul.f32 1.0, %v682
    %v684 = vrcp.pop %v681
    %v685 = vmul.f32 1.0, %v684
    %v688 = vcombine.low %v672, %v673
    %v690 = vunpack.c.l.s4 1966171168
    %v691 = vunpack.c.0.s8 %v690
    %v692 = vlaneseq
    %v693 = vshrl.u32 %v692, 7
    %v694 = vsub.s32 %v691, %v693
    %v695 = vrot.slane %v688, %v694
    %v696 = vcombine.high %v695, %v695
    %v698 = vunpack.c.l.s4 1966171168
    %v699 = vunpack.c.0.s8 %v698
    %v700 = vlaneseq
    %v701 = vshrl.u32 %v700, 7
    %v702 = vsub.s32 %v699, %v701
    %v703 = vrot.slane %v695, %v702
    %v705 = vunpack.c.l.s4 1966171168
    %v706 = vunpack.c.0.s8 %v705
    %v707 = vlaneseq
    %v708 = vshrl.u32 %v707, 7
    %v709 = vsub.s32 %v706, %v708
    %v710 = vrot.slane %v696, %v709
    %v715 = vcombine.low %v683, %v685
    %v717 = vunpack.c.l.s4 1966171168
    %v718 = vunpack.c.0.s8 %v717
    %v719 = vlaneseq
    %v720 = vshrl.u32 %v719, 7
    %v721 = vsub.s32 %v718, %v720
    %v722 = vrot.slane %v715, %v721
    %v723 = vcombine.high %v722, %v722
    %v725 = vunpack.c.l.s4 1966171168
    %v726 = vunpack.c.0.s8 %v725
    %v727 = vlaneseq
    %v728 = vshrl.u32 %v727, 7
    %v729 = vsub.s32 %v726, %v728
    %v730 = vrot.slane %v722, %v729
    %v732 = vunpack.c.l.s4 1966171168
    %v733 = vunpack.c.0.s8 %v732
    %v734 = vlaneseq
    %v735 = vshrl.u32 %v734, 7
    %v736 = vsub.s32 %v733, %v735
    %v737 = vrot.slane %v723, %v736
    %v740 = vsel %vm141, %v703, %v730
    %v741 = vsel %vm142, %v710, %v737
    %v742 = vmul.f32 %v740, 0.0
    %v743 = vmul.f32 %v740, %v741
    %745 = vrot.lane.b32.xlu0 %v743, 64
    %v746 = vpop.permute.xlu0 %745
    %v748 = vadd.f32 %v742, %v746
    %v749 = vtanh.pop %v748
    %v750 = vmul.f32 %v741, %v749
    %v753 = vunpack.c.l.s4 1966171168
    %v754 = vunpack.c.0.s8 %v753
    %v755 = vlaneseq
    %v756 = vshrl.u32 %v755, 7
    %v757 = vsub.s32 %v754, %v756
    %v758 = vrot.slane %v750, %v757
    %v759 = vcombine.high %v758, %v758
    %v761 = vunpack.c.l.s4 1966171168
    %v762 = vunpack.c.0.s8 %v761
    %v763 = vlaneseq
    %v764 = vshrl.u32 %v763, 7
    %v765 = vsub.s32 %v762, %v764
    %v766 = vrot.slane %v758, %v765
    %v768 = vunpack.c.l.s4 1966171168
    %v769 = vunpack.c.0.s8 %v768
    %v770 = vlaneseq
    %v771 = vshrl.u32 %v770, 7
    %v772 = vsub.s32 %v769, %v771
    %v773 = vrot.slane %v759, %v772
    %v774 = vlaneseq
    %v775 = vshrl.u32 %v774, 7
    %v776 = vsub.s32 0, %v775
    %v777 = vrot.slane %v766, %v776
    %v778 = vlaneseq
    %v779 = vshrl.u32 %v778, 7
    %v780 = vsub.s32 0, %v779
    %v781 = vrot.slane %v773, %v780
    %782 = vrot.lane.b32.xlu0 %v777, 64
    %v783 = vpop.permute.xlu0 %782
    %784 = vrot.lane.b32.xlu0 %v781, 64
    %v785 = vpop.permute.xlu0 %784
    %vm788 = vcmask 516096
    %789 = vst.msk [vmem:[#allocation3] sm:$0x1] %vm788, %v783
    %790 = vst.msk [vmem:[#allocation3 + $0x4] sm:$0x1] %vm788, %v785
    %s791 = scalar_lea.vmem [#allocation2], 1
    %v792 = vld [vmem:[%s791] ss:$4 sm:$0x3]
    %s793 = scalar_lea.vmem [#allocation2], 17
    %v794 = vld [vmem:[%s793] ss:$4 sm:$0x3]
    %795 = vrot.lane.b32.xlu0 %v750, 64
    %v796 = vpop.permute.xlu0 %795
    %v797 = vsel %vm568, %v796, 0
    %799 = vmatprep.subr.mxu0 0.0
    %800 = vmatpush1.msra.mxu0 0.0
    %801 = vmatprep.subr.mxu0 0.0
    %802 = vmatpush1.msra.mxu0 0.0
    %803 = vmatprep.subr.mxu0 0.0
    %804 = vmatpush1.msra.mxu0 0.0
    %805 = vmatprep.subr.mxu0 0.0
    %806 = vmatpush1.msra.mxu0 0.0
    %807 = vmatprep.subr.mxu0 0.0
    %808 = vmatpush1.msra.mxu0 0.0
    %809 = vmatprep.subr.mxu0 0.0
    %810 = vmatpush1.msra.mxu0 0.0
    %811 = vmatprep.subr.mxu0 0.0
    %812 = vmatpush1.msra.mxu0 0.0
    %813 = vmatprep.subr.mxu0 0.0
    %814 = vmatpush1.msra.mxu0 0.0
    %815 = vmatprep.subr.mxu0 %v548
    %816 = vmatpush1.msra.mxu0 %v547
    %817 = vmatprep.subr.mxu0 %v546
    %818 = vmatpush1.msra.mxu0 %v545
    %819 = vmatprep.subr.mxu0 %v544
    %820 = vmatpush1.msra.mxu0 %v543
    %821 = vmatprep.subr.mxu0 %v542
    %822 = vmatpush1.msra.mxu0 %v541
    %823 = vmatprep.subr.mxu0 %v540
    %824 = vmatpush1.msra.mxu0 %v539
    %825 = vmatprep.subr.mxu0 %v538
    %826 = vmatpush1.msra.mxu0 %v537
    %827 = vmatprep.subr.mxu0 %v536
    %828 = vmatpush1.msra.mxu0 %v535
    %829 = vmatprep.subr.mxu0 %v534
    %830 = vmatpush1.msra.mxu0 %v533
    %831 = vmatprep.subr.mxu0 0.0
    %832 = vmatpush2.msra.mxu0 0.0
    %833 = vmatprep.subr.mxu0 0.0
    %834 = vmatpush2.msra.mxu0 0.0
    %835 = vmatprep.subr.mxu0 0.0
    %836 = vmatpush2.msra.mxu0 0.0
    %837 = vmatprep.subr.mxu0 0.0
    %838 = vmatpush2.msra.mxu0 0.0
    %839 = vmatprep.subr.mxu0 0.0
    %840 = vmatpush2.msra.mxu0 0.0
    %841 = vmatprep.subr.mxu0 0.0
    %842 = vmatpush2.msra.mxu0 0.0
    %843 = vmatprep.subr.mxu0 0.0
    %844 = vmatpush2.msra.mxu0 0.0
    %845 = vmatprep.subr.mxu0 0.0
    %846 = vmatpush2.msra.mxu0 0.0
    %847 = vmatprep.subr.mxu0 0.0
    %848 = vmatpush2.msra.mxu0 0.0
    %849 = vmatprep.subr.mxu0 0.0
    %850 = vmatpush2.msra.mxu0 0.0
    %851 = vmatprep.subr.mxu0 0.0
    %852 = vmatpush2.msra.mxu0 0.0
    %853 = vmatprep.subr.mxu0 0.0
    %854 = vmatpush2.msra.mxu0 0.0
    %855 = vmatprep.subr.mxu0 0.0
    %856 = vmatpush2.msra.mxu0 0.0
    %857 = vmatprep.subr.mxu0 0.0
    %858 = vmatpush2.msra.mxu0 0.0
    %859 = vmatprep.subr.mxu0 0.0
    %860 = vmatpush2.msra.mxu0 0.0
    %861 = vmatprep.subr.mxu0 0.0
    %862 = vmatpush2.msra.mxu0 0.0
    %863 = vmatprep.mubr.f32.mxu0 0.0
    %864 = vmatmul.mubr.f32.gmra.mxu0 %v797
    %v865 = vpop.f32.mrf.mxu0
    %v866 = vadd.f32 0.0, %v865
    %v867 = vpop.f32.mrf.mxu0
    %v868 = vadd.f32 0.0, %v867
    %869 = vdwg.mxu0
    %v872 = vcombine.low %v866, %v868
    %v874 = vunpack.c.l.s4 1966171168
    %v875 = vunpack.c.0.s8 %v874
    %v876 = vlaneseq
    %v877 = vshrl.u32 %v876, 7
    %v878 = vsub.s32 %v875, %v877
    %v879 = vrot.slane %v872, %v878
    %v880 = vcombine.high %v879, %v879
    %v882 = vunpack.c.l.s4 1966171168
    %v883 = vunpack.c.0.s8 %v882
    %v884 = vlaneseq
    %v885 = vshrl.u32 %v884, 7
    %v886 = vsub.s32 %v883, %v885
    %v887 = vrot.slane %v879, %v886
    %v889 = vunpack.c.l.s4 1966171168
    %v890 = vunpack.c.0.s8 %v889
    %v891 = vlaneseq
    %v892 = vshrl.u32 %v891, 7
    %v893 = vsub.s32 %v890, %v892
    %v894 = vrot.slane %v880, %v893
    %v897 = vadd.f32 %v792, %v887
    %v898 = vadd.f32 %v794, %v894
    %v899 = vtanh.pop %v897
    %v900 = vtanh.pop %v898
    %v901 = vxor.u32 %v897, 2147483648
    %v902 = vxor.u32 %v898, 2147483648
    %v903 = vmul.f32 %v901, 1.442695
    %v904 = vpow.pop %v903
    %v905 = vmul.f32 %v902, 1.442695
    %v906 = vpow.pop %v905
    %v907 = vadd.f32 %v904, 1.0
    %v908 = vadd.f32 %v906, 1.0
    %v909 = vrcp.pop %v907
    %v910 = vmul.f32 1.0, %v909
    %v911 = vrcp.pop %v908
    %v912 = vmul.f32 1.0, %v911
    %v915 = vcombine.low %v899, %v900
    %v917 = vunpack.c.l.s4 1966171168
    %v918 = vunpack.c.0.s8 %v917
    %v919 = vlaneseq
    %v920 = vshrl.u32 %v919, 7
    %v921 = vsub.s32 %v918, %v920
    %v922 = vrot.slane %v915, %v921
    %v923 = vcombine.high %v922, %v922
    %v925 = vunpack.c.l.s4 1966171168
    %v926 = vunpack.c.0.s8 %v925
    %v927 = vlaneseq
    %v928 = vshrl.u32 %v927, 7
    %v929 = vsub.s32 %v926, %v928
    %v930 = vrot.slane %v922, %v929
    %v932 = vunpack.c.l.s4 1966171168
    %v933 = vunpack.c.0.s8 %v932
    %v934 = vlaneseq
    %v935 = vshrl.u32 %v934, 7
    %v936 = vsub.s32 %v933, %v935
    %v937 = vrot.slane %v923, %v936
    %v942 = vcombine.low %v910, %v912
    %v944 = vunpack.c.l.s4 1966171168
    %v945 = vunpack.c.0.s8 %v944
    %v946 = vlaneseq
    %v947 = vshrl.u32 %v946, 7
    %v948 = vsub.s32 %v945, %v947
    %v949 = vrot.slane %v942, %v948
    %v950 = vcombine.high %v949, %v949
    %v952 = vunpack.c.l.s4 1966171168
    %v953 = vunpack.c.0.s8 %v952
    %v954 = vlaneseq
    %v955 = vshrl.u32 %v954, 7
    %v956 = vsub.s32 %v953, %v955
    %v957 = vrot.slane %v949, %v956
    %v959 = vunpack.c.l.s4 1966171168
    %v960 = vunpack.c.0.s8 %v959
    %v961 = vlaneseq
    %v962 = vshrl.u32 %v961, 7
    %v963 = vsub.s32 %v960, %v962
    %v964 = vrot.slane %v950, %v963
    %v967 = vsel %vm141, %v930, %v957
    %v968 = vsel %vm142, %v937, %v964
    %v969 = vmul.f32 %v967, %v748
    %v970 = vmul.f32 %v967, %v968
    %972 = vrot.lane.b32.xlu0 %v970, 64
    %v973 = vpop.permute.xlu0 %972
    %v975 = vadd.f32 %v969, %v973
    %v976 = vtanh.pop %v975
    %v977 = vmul.f32 %v968, %v976
    %v980 = vunpack.c.l.s4 1966171168
    %v981 = vunpack.c.0.s8 %v980
    %v982 = vlaneseq
    %v983 = vshrl.u32 %v982, 7
    %v984 = vsub.s32 %v981, %v983
    %v985 = vrot.slane %v977, %v984
    %v986 = vcombine.high %v985, %v985
    %v988 = vunpack.c.l.s4 1966171168
    %v989 = vunpack.c.0.s8 %v988
    %v990 = vlaneseq
    %v991 = vshrl.u32 %v990, 7
    %v992 = vsub.s32 %v989, %v991
    %v993 = vrot.slane %v985, %v992
    %v995 = vunpack.c.l.s4 1966171168
    %v996 = vunpack.c.0.s8 %v995
    %v997 = vlaneseq
    %v998 = vshrl.u32 %v997, 7
    %v999 = vsub.s32 %v996, %v998
    %v1000 = vrot.slane %v986, %v999
    %v1001 = vlaneseq
    %v1002 = vshrl.u32 %v1001, 7
    %v1003 = vsub.s32 0, %v1002
    %v1004 = vrot.slane %v993, %v1003
    %v1005 = vlaneseq
    %v1006 = vshrl.u32 %v1005, 7
    %v1007 = vsub.s32 0, %v1006
    %v1008 = vrot.slane %v1000, %v1007
    %1009 = vrot.lane.b32.xlu0 %v1004, 64
    %v1010 = vpop.permute.xlu0 %1009
    %1011 = vrot.lane.b32.xlu0 %v1008, 64
    %v1012 = vpop.permute.xlu0 %1011
    %1015 = vst.msk [vmem:[#allocation3 + $0x1] sm:$0x1] %vm788, %v1010
    %1016 = vst.msk [vmem:[#allocation3 + $0x5] sm:$0x1] %vm788, %v1012
    %s1017 = scalar_lea.vmem [#allocation2], 2
    %v1018 = vld [vmem:[%s1017] ss:$4 sm:$0x3]
    %s1019 = scalar_lea.vmem [#allocation2], 18
    %v1020 = vld [vmem:[%s1019] ss:$4 sm:$0x3]
    %1021 = vrot.lane.b32.xlu0 %v977, 64
    %v1022 = vpop.permute.xlu0 %1021
    %v1023 = vsel %vm568, %v1022, 0
    %1025 = vmatprep.subr.mxu0 0.0
    %1026 = vmatpush1.msra.mxu0 0.0
    %1027 = vmatprep.subr.mxu0 0.0
    %1028 = vmatpush1.msra.mxu0 0.0
    %1029 = vmatprep.subr.mxu0 0.0
    %1030 = vmatpush1.msra.mxu0 0.0
    %1031 = vmatprep.subr.mxu0 0.0
    %1032 = vmatpush1.msra.mxu0 0.0
    %1033 = vmatprep.subr.mxu0 0.0
    %1034 = vmatpush1.msra.mxu0 0.0
    %1035 = vmatprep.subr.mxu0 0.0
    %1036 = vmatpush1.msra.mxu0 0.0
    %1037 = vmatprep.subr.mxu0 0.0
    %1038 = vmatpush1.msra.mxu0 0.0
    %1039 = vmatprep.subr.mxu0 0.0
    %1040 = vmatpush1.msra.mxu0 0.0
    %1041 = vmatprep.subr.mxu0 %v548
    %1042 = vmatpush1.msra.mxu0 %v547
    %1043 = vmatprep.subr.mxu0 %v546
    %1044 = vmatpush1.msra.mxu0 %v545
    %1045 = vmatprep.subr.mxu0 %v544
    %1046 = vmatpush1.msra.mxu0 %v543
    %1047 = vmatprep.subr.mxu0 %v542
    %1048 = vmatpush1.msra.mxu0 %v541
    %1049 = vmatprep.subr.mxu0 %v540
    %1050 = vmatpush1.msra.mxu0 %v539
    %1051 = vmatprep.subr.mxu0 %v538
    %1052 = vmatpush1.msra.mxu0 %v537
    %1053 = vmatprep.subr.mxu0 %v536
    %1054 = vmatpush1.msra.mxu0 %v535
    %1055 = vmatprep.subr.mxu0 %v534
    %1056 = vmatpush1.msra.mxu0 %v533
    %1057 = vmatprep.subr.mxu0 0.0
    %1058 = vmatpush2.msra.mxu0 0.0
    %1059 = vmatprep.subr.mxu0 0.0
    %1060 = vmatpush2.msra.mxu0 0.0
    %1061 = vmatprep.subr.mxu0 0.0
    %1062 = vmatpush2.msra.mxu0 0.0
    %1063 = vmatprep.subr.mxu0 0.0
    %1064 = vmatpush2.msra.mxu0 0.0
    %1065 = vmatprep.subr.mxu0 0.0
    %1066 = vmatpush2.msra.mxu0 0.0
    %1067 = vmatprep.subr.mxu0 0.0
    %1068 = vmatpush2.msra.mxu0 0.0
    %1069 = vmatprep.subr.mxu0 0.0
    %1070 = vmatpush2.msra.mxu0 0.0
    %1071 = vmatprep.subr.mxu0 0.0
    %1072 = vmatpush2.msra.mxu0 0.0
    %1073 = vmatprep.subr.mxu0 0.0
    %1074 = vmatpush2.msra.mxu0 0.0
    %1075 = vmatprep.subr.mxu0 0.0
    %1076 = vmatpush2.msra.mxu0 0.0
    %1077 = vmatprep.subr.mxu0 0.0
    %1078 = vmatpush2.msra.mxu0 0.0
    %1079 = vmatprep.subr.mxu0 0.0
    %1080 = vmatpush2.msra.mxu0 0.0
    %1081 = vmatprep.subr.mxu0 0.0
    %1082 = vmatpush2.msra.mxu0 0.0
    %1083 = vmatprep.subr.mxu0 0.0
    %1084 = vmatpush2.msra.mxu0 0.0
    %1085 = vmatprep.subr.mxu0 0.0
    %1086 = vmatpush2.msra.mxu0 0.0
    %1087 = vmatprep.subr.mxu0 0.0
    %1088 = vmatpush2.msra.mxu0 0.0
    %1089 = vmatprep.mubr.f32.mxu0 0.0
    %1090 = vmatmul.mubr.f32.gmra.mxu0 %v1023
    %v1091 = vpop.f32.mrf.mxu0
    %v1092 = vadd.f32 0.0, %v1091
    %v1093 = vpop.f32.mrf.mxu0
    %v1094 = vadd.f32 0.0, %v1093
    %1095 = vdwg.mxu0
    %v1098 = vcombine.low %v1092, %v1094
    %v1100 = vunpack.c.l.s4 1966171168
    %v1101 = vunpack.c.0.s8 %v1100
    %v1102 = vlaneseq
    %v1103 = vshrl.u32 %v1102, 7
    %v1104 = vsub.s32 %v1101, %v1103
    %v1105 = vrot.slane %v1098, %v1104
    %v1106 = vcombine.high %v1105, %v1105
    %v1108 = vunpack.c.l.s4 1966171168
    %v1109 = vunpack.c.0.s8 %v1108
    %v1110 = vlaneseq
    %v1111 = vshrl.u32 %v1110, 7
    %v1112 = vsub.s32 %v1109, %v1111
    %v1113 = vrot.slane %v1105, %v1112
    %v1115 = vunpack.c.l.s4 1966171168
    %v1116 = vunpack.c.0.s8 %v1115
    %v1117 = vlaneseq
    %v1118 = vshrl.u32 %v1117, 7
    %v1119 = vsub.s32 %v1116, %v1118
    %v1120 = vrot.slane %v1106, %v1119
    %v1123 = vadd.f32 %v1018, %v1113
    %v1124 = vadd.f32 %v1020, %v1120
    %v1125 = vtanh.pop %v1123
    %v1126 = vtanh.pop %v1124
    %v1127 = vxor.u32 %v1123, 2147483648
    %v1128 = vxor.u32 %v1124, 2147483648
    %v1129 = vmul.f32 %v1127, 1.442695
    %v1130 = vpow.pop %v1129
    %v1131 = vmul.f32 %v1128, 1.442695
    %v1132 = vpow.pop %v1131
    %v1133 = vadd.f32 %v1130, 1.0
    %v1134 = vadd.f32 %v1132, 1.0
    %v1135 = vrcp.pop %v1133
    %v1136 = vmul.f32 1.0, %v1135
    %v1137 = vrcp.pop %v1134
    %v1138 = vmul.f32 1.0, %v1137
    %v1141 = vcombine.low %v1125, %v1126
    %v1143 = vunpack.c.l.s4 1966171168
    %v1144 = vunpack.c.0.s8 %v1143
    %v1145 = vlaneseq
    %v1146 = vshrl.u32 %v1145, 7
    %v1147 = vsub.s32 %v1144, %v1146
    %v1148 = vrot.slane %v1141, %v1147
    %v1149 = vcombine.high %v1148, %v1148
    %v1151 = vunpack.c.l.s4 1966171168
    %v1152 = vunpack.c.0.s8 %v1151
    %v1153 = vlaneseq
    %v1154 = vshrl.u32 %v1153, 7
    %v1155 = vsub.s32 %v1152, %v1154
    %v1156 = vrot.slane %v1148, %v1155
    %v1158 = vunpack.c.l.s4 1966171168
    %v1159 = vunpack.c.0.s8 %v1158
    %v1160 = vlaneseq
    %v1161 = vshrl.u32 %v1160, 7
    %v1162 = vsub.s32 %v1159, %v1161
    %v1163 = vrot.slane %v1149, %v1162
    %v1168 = vcombine.low %v1136, %v1138
    %v1170 = vunpack.c.l.s4 1966171168
    %v1171 = vunpack.c.0.s8 %v1170
    %v1172 = vlaneseq
    %v1173 = vshrl.u32 %v1172, 7
    %v1174 = vsub.s32 %v1171, %v1173
    %v1175 = vrot.slane %v1168, %v1174
    %v1176 = vcombine.high %v1175, %v1175
    %v1178 = vunpack.c.l.s4 1966171168
    %v1179 = vunpack.c.0.s8 %v1178
    %v1180 = vlaneseq
    %v1181 = vshrl.u32 %v1180, 7
    %v1182 = vsub.s32 %v1179, %v1181
    %v1183 = vrot.slane %v1175, %v1182
    %v1185 = vunpack.c.l.s4 1966171168
    %v1186 = vunpack.c.0.s8 %v1185
    %v1187 = vlaneseq
    %v1188 = vshrl.u32 %v1187, 7
    %v1189 = vsub.s32 %v1186, %v1188
    %v1190 = vrot.slane %v1176, %v1189
    %v1193 = vsel %vm141, %v1156, %v1183
    %v1194 = vsel %vm142, %v1163, %v1190
    %v1195 = vmul.f32 %v1193, %v975
    %v1196 = vmul.f32 %v1193, %v1194
    %1198 = vrot.lane.b32.xlu0 %v1196, 64
    %v1199 = vpop.permute.xlu0 %1198
    %v1201 = vadd.f32 %v1195, %v1199
    %v1202 = vtanh.pop %v1201
    %v1203 = vmul.f32 %v1194, %v1202
    %v1206 = vunpack.c.l.s4 1966171168
    %v1207 = vunpack.c.0.s8 %v1206
    %v1208 = vlaneseq
    %v1209 = vshrl.u32 %v1208, 7
    %v1210 = vsub.s32 %v1207, %v1209
    %v1211 = vrot.slane %v1203, %v1210
    %v1212 = vcombine.high %v1211, %v1211
    %v1214 = vunpack.c.l.s4 1966171168
    %v1215 = vunpack.c.0.s8 %v1214
    %v1216 = vlaneseq
    %v1217 = vshrl.u32 %v1216, 7
    %v1218 = vsub.s32 %v1215, %v1217
    %v1219 = vrot.slane %v1211, %v1218
    %v1221 = vunpack.c.l.s4 1966171168
    %v1222 = vunpack.c.0.s8 %v1221
    %v1223 = vlaneseq
    %v1224 = vshrl.u32 %v1223, 7
    %v1225 = vsub.s32 %v1222, %v1224
    %v1226 = vrot.slane %v1212, %v1225
    %v1227 = vlaneseq
    %v1228 = vshrl.u32 %v1227, 7
    %v1229 = vsub.s32 0, %v1228
    %v1230 = vrot.slane %v1219, %v1229
    %v1231 = vlaneseq
    %v1232 = vshrl.u32 %v1231, 7
    %v1233 = vsub.s32 0, %v1232
    %v1234 = vrot.slane %v1226, %v1233
    %1235 = vrot.lane.b32.xlu0 %v1230, 64
    %v1236 = vpop.permute.xlu0 %1235
    %1237 = vrot.lane.b32.xlu0 %v1234, 64
    %v1238 = vpop.permute.xlu0 %1237
    %1241 = vst.msk [vmem:[#allocation3 + $0x2] sm:$0x1] %vm788, %v1236
    %1242 = vst.msk [vmem:[#allocation3 + $0x6] sm:$0x1] %vm788, %v1238
    %s1243 = scalar_lea.vmem [#allocation2], 3
    %v1244 = vld [vmem:[%s1243] ss:$4 sm:$0x3]
    %s1245 = scalar_lea.vmem [#allocation2], 19
    %v1246 = vld [vmem:[%s1245] ss:$4 sm:$0x3]
    %1247 = vrot.lane.b32.xlu0 %v1203, 64
    %v1248 = vpop.permute.xlu0 %1247
    %v1249 = vsel %vm568, %v1248, 0
    %1251 = vmatprep.subr.mxu0 0.0
    %1252 = vmatpush1.msra.mxu0 0.0
    %1253 = vmatprep.subr.mxu0 0.0
    %1254 = vmatpush1.msra.mxu0 0.0
    %1255 = vmatprep.subr.mxu0 0.0
    %1256 = vmatpush1.msra.mxu0 0.0
    %1257 = vmatprep.subr.mxu0 0.0
    %1258 = vmatpush1.msra.mxu0 0.0
    %1259 = vmatprep.subr.mxu0 0.0
    %1260 = vmatpush1.msra.mxu0 0.0
    %1261 = vmatprep.subr.mxu0 0.0
    %1262 = vmatpush1.msra.mxu0 0.0
    %1263 = vmatprep.subr.mxu0 0.0
    %1264 = vmatpush1.msra.mxu0 0.0
    %1265 = vmatprep.subr.mxu0 0.0
    %1266 = vmatpush1.msra.mxu0 0.0
    %1267 = vmatprep.subr.mxu0 %v548
    %1268 = vmatpush1.msra.mxu0 %v547
    %1269 = vmatprep.subr.mxu0 %v546
    %1270 = vmatpush1.msra.mxu0 %v545
    %1271 = vmatprep.subr.mxu0 %v544
    %1272 = vmatpush1.msra.mxu0 %v543
    %1273 = vmatprep.subr.mxu0 %v542
    %1274 = vmatpush1.msra.mxu0 %v541
    %1275 = vmatprep.subr.mxu0 %v540
    %1276 = vmatpush1.msra.mxu0 %v539
    %1277 = vmatprep.subr.mxu0 %v538
    %1278 = vmatpush1.msra.mxu0 %v537
    %1279 = vmatprep.subr.mxu0 %v536
    %1280 = vmatpush1.msra.mxu0 %v535
    %1281 = vmatprep.subr.mxu0 %v534
    %1282 = vmatpush1.msra.mxu0 %v533
    %1283 = vmatprep.subr.mxu0 0.0
    %1284 = vmatpush2.msra.mxu0 0.0
    %1285 = vmatprep.subr.mxu0 0.0
    %1286 = vmatpush2.msra.mxu0 0.0
    %1287 = vmatprep.subr.mxu0 0.0
    %1288 = vmatpush2.msra.mxu0 0.0
    %1289 = vmatprep.subr.mxu0 0.0
    %1290 = vmatpush2.msra.mxu0 0.0
    %1291 = vmatprep.subr.mxu0 0.0
    %1292 = vmatpush2.msra.mxu0 0.0
    %1293 = vmatprep.subr.mxu0 0.0
    %1294 = vmatpush2.msra.mxu0 0.0
    %1295 = vmatprep.subr.mxu0 0.0
    %1296 = vmatpush2.msra.mxu0 0.0
    %1297 = vmatprep.subr.mxu0 0.0
    %1298 = vmatpush2.msra.mxu0 0.0
    %1299 = vmatprep.subr.mxu0 0.0
    %1300 = vmatpush2.msra.mxu0 0.0
    %1301 = vmatprep.subr.mxu0 0.0
    %1302 = vmatpush2.msra.mxu0 0.0
    %1303 = vmatprep.subr.mxu0 0.0
    %1304 = vmatpush2.msra.mxu0 0.0
    %1305 = vmatprep.subr.mxu0 0.0
    %1306 = vmatpush2.msra.mxu0 0.0
    %1307 = vmatprep.subr.mxu0 0.0
    %1308 = vmatpush2.msra.mxu0 0.0
    %1309 = vmatprep.subr.mxu0 0.0
    %1310 = vmatpush2.msra.mxu0 0.0
    %1311 = vmatprep.subr.mxu0 0.0
    %1312 = vmatpush2.msra.mxu0 0.0
    %1313 = vmatprep.subr.mxu0 0.0
    %1314 = vmatpush2.msra.mxu0 0.0
    %1315 = vmatprep.mubr.f32.mxu0 0.0
    %1316 = vmatmul.mubr.f32.gmra.mxu0 %v1249
    %v1317 = vpop.f32.mrf.mxu0
    %v1318 = vadd.f32 0.0, %v1317
    %v1319 = vpop.f32.mrf.mxu0
    %v1320 = vadd.f32 0.0, %v1319
    %1321 = vdwg.mxu0
    %v1324 = vcombine.low %v1318, %v1320
    %v1326 = vunpack.c.l.s4 1966171168
    %v1327 = vunpack.c.0.s8 %v1326
    %v1328 = vlaneseq
    %v1329 = vshrl.u32 %v1328, 7
    %v1330 = vsub.s32 %v1327, %v1329
    %v1331 = vrot.slane %v1324, %v1330
    %v1332 = vcombine.high %v1331, %v1331
    %v1334 = vunpack.c.l.s4 1966171168
    %v1335 = vunpack.c.0.s8 %v1334
    %v1336 = vlaneseq
    %v1337 = vshrl.u32 %v1336, 7
    %v1338 = vsub.s32 %v1335, %v1337
    %v1339 = vrot.slane %v1331, %v1338
    %v1341 = vunpack.c.l.s4 1966171168
    %v1342 = vunpack.c.0.s8 %v1341
    %v1343 = vlaneseq
    %v1344 = vshrl.u32 %v1343, 7
    %v1345 = vsub.s32 %v1342, %v1344
    %v1346 = vrot.slane %v1332, %v1345
    %v1349 = vadd.f32 %v1244, %v1339
    %v1350 = vadd.f32 %v1246, %v1346
    %v1351 = vtanh.pop %v1349
    %v1352 = vtanh.pop %v1350
    %v1353 = vxor.u32 %v1349, 2147483648
    %v1354 = vxor.u32 %v1350, 2147483648
    %v1355 = vmul.f32 %v1353, 1.442695
    %v1356 = vpow.pop %v1355
    %v1357 = vmul.f32 %v1354, 1.442695
    %v1358 = vpow.pop %v1357
    %v1359 = vadd.f32 %v1356, 1.0
    %v1360 = vadd.f32 %v1358, 1.0
    %v1361 = vrcp.pop %v1359
    %v1362 = vmul.f32 1.0, %v1361
    %v1363 = vrcp.pop %v1360
    %v1364 = vmul.f32 1.0, %v1363
    %v1367 = vcombine.low %v1351, %v1352
    %v1369 = vunpack.c.l.s4 1966171168
    %v1370 = vunpack.c.0.s8 %v1369
    %v1371 = vlaneseq
    %v1372 = vshrl.u32 %v1371, 7
    %v1373 = vsub.s32 %v1370, %v1372
    %v1374 = vrot.slane %v1367, %v1373
    %v1375 = vcombine.high %v1374, %v1374
    %v1377 = vunpack.c.l.s4 1966171168
    %v1378 = vunpack.c.0.s8 %v1377
    %v1379 = vlaneseq
    %v1380 = vshrl.u32 %v1379, 7
    %v1381 = vsub.s32 %v1378, %v1380
    %v1382 = vrot.slane %v1374, %v1381
    %v1384 = vunpack.c.l.s4 1966171168
    %v1385 = vunpack.c.0.s8 %v1384
    %v1386 = vlaneseq
    %v1387 = vshrl.u32 %v1386, 7
    %v1388 = vsub.s32 %v1385, %v1387
    %v1389 = vrot.slane %v1375, %v1388
    %v1394 = vcombine.low %v1362, %v1364
    %v1396 = vunpack.c.l.s4 1966171168
    %v1397 = vunpack.c.0.s8 %v1396
    %v1398 = vlaneseq
    %v1399 = vshrl.u32 %v1398, 7
    %v1400 = vsub.s32 %v1397, %v1399
    %v1401 = vrot.slane %v1394, %v1400
    %v1402 = vcombine.high %v1401, %v1401
    %v1404 = vunpack.c.l.s4 1966171168
    %v1405 = vunpack.c.0.s8 %v1404
    %v1406 = vlaneseq
    %v1407 = vshrl.u32 %v1406, 7
    %v1408 = vsub.s32 %v1405, %v1407
    %v1409 = vrot.slane %v1401, %v1408
    %v1411 = vunpack.c.l.s4 1966171168
    %v1412 = vunpack.c.0.s8 %v1411
    %v1413 = vlaneseq
    %v1414 = vshrl.u32 %v1413, 7
    %v1415 = vsub.s32 %v1412, %v1414
    %v1416 = vrot.slane %v1402, %v1415
    %v1419 = vsel %vm141, %v1382, %v1409
    %v1420 = vsel %vm142, %v1389, %v1416
    %v1421 = vmul.f32 %v1419, %v1201
    %v1422 = vmul.f32 %v1419, %v1420
    %1424 = vrot.lane.b32.xlu0 %v1422, 64
    %v1425 = vpop.permute.xlu0 %1424
    %v1427 = vadd.f32 %v1421, %v1425
    %v1428 = vtanh.pop %v1427
    %v1429 = vmul.f32 %v1420, %v1428
    %v1432 = vunpack.c.l.s4 1966171168
    %v1433 = vunpack.c.0.s8 %v1432
    %v1434 = vlaneseq
    %v1435 = vshrl.u32 %v1434, 7
    %v1436 = vsub.s32 %v1433, %v1435
    %v1437 = vrot.slane %v1429, %v1436
    %v1438 = vcombine.high %v1437, %v1437
    %v1440 = vunpack.c.l.s4 1966171168
    %v1441 = vunpack.c.0.s8 %v1440
    %v1442 = vlaneseq
    %v1443 = vshrl.u32 %v1442, 7
    %v1444 = vsub.s32 %v1441, %v1443
    %v1445 = vrot.slane %v1437, %v1444
    %v1447 = vunpack.c.l.s4 1966171168
    %v1448 = vunpack.c.0.s8 %v1447
    %v1449 = vlaneseq
    %v1450 = vshrl.u32 %v1449, 7
    %v1451 = vsub.s32 %v1448, %v1450
    %v1452 = vrot.slane %v1438, %v1451
    %v1453 = vlaneseq
    %v1454 = vshrl.u32 %v1453, 7
    %v1455 = vsub.s32 0, %v1454
    %v1456 = vrot.slane %v1445, %v1455
    %v1457 = vlaneseq
    %v1458 = vshrl.u32 %v1457, 7
    %v1459 = vsub.s32 0, %v1458
    %v1460 = vrot.slane %v1452, %v1459
    %1461 = vrot.lane.b32.xlu0 %v1456, 64
    %v1462 = vpop.permute.xlu0 %1461
    %1463 = vrot.lane.b32.xlu0 %v1460, 64
    %v1464 = vpop.permute.xlu0 %1463
    %1467 = vst.msk [vmem:[#allocation3 + $0x3] sm:$0x1] %vm788, %v1462
    %1468 = vst.msk [vmem:[#allocation3 + $0x7] sm:$0x1] %vm788, %v1464
    %s1469 = scalar_lea.vmem [#allocation2], 11
    %v1470 = vld [vmem:[%s1469] ss:$4 sm:$0x3]
    %s1471 = scalar_lea.vmem [#allocation2], 27
    %v1472 = vld [vmem:[%s1471] ss:$4 sm:$0x3]
    %1473 = vmatprep.subr.mxu0 0.0
    %1474 = vmatpush1.msra.mxu0 0.0
    %1475 = vmatprep.subr.mxu0 0.0
    %1476 = vmatpush1.msra.mxu0 0.0
    %1477 = vmatprep.subr.mxu0 0.0
    %1478 = vmatpush1.msra.mxu0 0.0
    %1479 = vmatprep.subr.mxu0 0.0
    %1480 = vmatpush1.msra.mxu0 0.0
    %1481 = vmatprep.subr.mxu0 0.0
    %1482 = vmatpush1.msra.mxu0 0.0
    %1483 = vmatprep.subr.mxu0 0.0
    %1484 = vmatpush1.msra.mxu0 0.0
    %1485 = vmatprep.subr.mxu0 0.0
    %1486 = vmatpush1.msra.mxu0 0.0
    %1487 = vmatprep.subr.mxu0 0.0
    %1488 = vmatpush1.msra.mxu0 0.0
    %1489 = vmatprep.subr.mxu0 %v564
    %1490 = vmatpush1.msra.mxu0 %v563
    %1491 = vmatprep.subr.mxu0 %v562
    %1492 = vmatpush1.msra.mxu0 %v561
    %1493 = vmatprep.subr.mxu0 %v560
    %1494 = vmatpush1.msra.mxu0 %v559
    %1495 = vmatprep.subr.mxu0 %v558
    %1496 = vmatpush1.msra.mxu0 %v557
    %1497 = vmatprep.subr.mxu0 %v556
    %1498 = vmatpush1.msra.mxu0 %v555
    %1499 = vmatprep.subr.mxu0 %v554
    %1500 = vmatpush1.msra.mxu0 %v553
    %1501 = vmatprep.subr.mxu0 %v552
    %1502 = vmatpush1.msra.mxu0 %v551
    %1503 = vmatprep.subr.mxu0 %v550
    %1504 = vmatpush1.msra.mxu0 %v549
    %1505 = vmatprep.subr.mxu0 0.0
    %1506 = vmatpush2.msra.mxu0 0.0
    %1507 = vmatprep.subr.mxu0 0.0
    %1508 = vmatpush2.msra.mxu0 0.0
    %1509 = vmatprep.subr.mxu0 0.0
    %1510 = vmatpush2.msra.mxu0 0.0
    %1511 = vmatprep.subr.mxu0 0.0
    %1512 = vmatpush2.msra.mxu0 0.0
    %1513 = vmatprep.subr.mxu0 0.0
    %1514 = vmatpush2.msra.mxu0 0.0
    %1515 = vmatprep.subr.mxu0 0.0
    %1516 = vmatpush2.msra.mxu0 0.0
    %1517 = vmatprep.subr.mxu0 0.0
    %1518 = vmatpush2.msra.mxu0 0.0
    %1519 = vmatprep.subr.mxu0 0.0
    %1520 = vmatpush2.msra.mxu0 0.0
    %1521 = vmatprep.subr.mxu0 0.0
    %1522 = vmatpush2.msra.mxu0 0.0
    %1523 = vmatprep.subr.mxu0 0.0
    %1524 = vmatpush2.msra.mxu0 0.0
    %1525 = vmatprep.subr.mxu0 0.0
    %1526 = vmatpush2.msra.mxu0 0.0
    %1527 = vmatprep.subr.mxu0 0.0
    %1528 = vmatpush2.msra.mxu0 0.0
    %1529 = vmatprep.subr.mxu0 0.0
    %1530 = vmatpush2.msra.mxu0 0.0
    %1531 = vmatprep.subr.mxu0 0.0
    %1532 = vmatpush2.msra.mxu0 0.0
    %1533 = vmatprep.subr.mxu0 0.0
    %1534 = vmatpush2.msra.mxu0 0.0
    %1535 = vmatprep.subr.mxu0 0.0
    %1536 = vmatpush2.msra.mxu0 0.0
    %1537 = vmatprep.mubr.f32.mxu0 0.0
    %1538 = vmatmul.mubr.f32.gmra.mxu0 %v570
    %v1539 = vpop.f32.mrf.mxu0
    %v1540 = vadd.f32 0.0, %v1539
    %v1541 = vpop.f32.mrf.mxu0
    %v1542 = vadd.f32 0.0, %v1541
    %1543 = vdwg.mxu0
    %v1546 = vcombine.low %v1540, %v1542
    %v1548 = vunpack.c.l.s4 1966171168
    %v1549 = vunpack.c.0.s8 %v1548
    %v1550 = vlaneseq
    %v1551 = vshrl.u32 %v1550, 7
    %v1552 = vsub.s32 %v1549, %v1551
    %v1553 = vrot.slane %v1546, %v1552
    %v1554 = vcombine.high %v1553, %v1553
    %v1556 = vunpack.c.l.s4 1966171168
    %v1557 = vunpack.c.0.s8 %v1556
    %v1558 = vlaneseq
    %v1559 = vshrl.u32 %v1558, 7
    %v1560 = vsub.s32 %v1557, %v1559
    %v1561 = vrot.slane %v1553, %v1560
    %v1563 = vunpack.c.l.s4 1966171168
    %v1564 = vunpack.c.0.s8 %v1563
    %v1565 = vlaneseq
    %v1566 = vshrl.u32 %v1565, 7
    %v1567 = vsub.s32 %v1564, %v1566
    %v1568 = vrot.slane %v1554, %v1567
    %v1571 = vadd.f32 %v1470, %v1561
    %v1572 = vadd.f32 %v1472, %v1568
    %v1573 = vtanh.pop %v1571
    %v1574 = vtanh.pop %v1572
    %v1575 = vxor.u32 %v1571, 2147483648
    %v1576 = vxor.u32 %v1572, 2147483648
    %v1577 = vmul.f32 %v1575, 1.442695
    %v1578 = vpow.pop %v1577
    %v1579 = vmul.f32 %v1576, 1.442695
    %v1580 = vpow.pop %v1579
    %v1581 = vadd.f32 %v1578, 1.0
    %v1582 = vadd.f32 %v1580, 1.0
    %v1583 = vrcp.pop %v1581
    %v1584 = vmul.f32 1.0, %v1583
    %v1585 = vrcp.pop %v1582
    %v1586 = vmul.f32 1.0, %v1585
    %v1589 = vcombine.low %v1573, %v1574
    %v1591 = vunpack.c.l.s4 1966171168
    %v1592 = vunpack.c.0.s8 %v1591
    %v1593 = vlaneseq
    %v1594 = vshrl.u32 %v1593, 7
    %v1595 = vsub.s32 %v1592, %v1594
    %v1596 = vrot.slane %v1589, %v1595
    %v1597 = vcombine.high %v1596, %v1596
    %v1599 = vunpack.c.l.s4 1966171168
    %v1600 = vunpack.c.0.s8 %v1599
    %v1601 = vlaneseq
    %v1602 = vshrl.u32 %v1601, 7
    %v1603 = vsub.s32 %v1600, %v1602
    %v1604 = vrot.slane %v1596, %v1603
    %v1606 = vunpack.c.l.s4 1966171168
    %v1607 = vunpack.c.0.s8 %v1606
    %v1608 = vlaneseq
    %v1609 = vshrl.u32 %v1608, 7
    %v1610 = vsub.s32 %v1607, %v1609
    %v1611 = vrot.slane %v1597, %v1610
    %v1616 = vcombine.low %v1584, %v1586
    %v1618 = vunpack.c.l.s4 1966171168
    %v1619 = vunpack.c.0.s8 %v1618
    %v1620 = vlaneseq
    %v1621 = vshrl.u32 %v1620, 7
    %v1622 = vsub.s32 %v1619, %v1621
    %v1623 = vrot.slane %v1616, %v1622
    %v1624 = vcombine.high %v1623, %v1623
    %v1626 = vunpack.c.l.s4 1966171168
    %v1627 = vunpack.c.0.s8 %v1626
    %v1628 = vlaneseq
    %v1629 = vshrl.u32 %v1628, 7
    %v1630 = vsub.s32 %v1627, %v1629
    %v1631 = vrot.slane %v1623, %v1630
    %v1633 = vunpack.c.l.s4 1966171168
    %v1634 = vunpack.c.0.s8 %v1633
    %v1635 = vlaneseq
    %v1636 = vshrl.u32 %v1635, 7
    %v1637 = vsub.s32 %v1634, %v1636
    %v1638 = vrot.slane %v1624, %v1637
    %v1641 = vsel %vm141, %v1604, %v1631
    %v1642 = vsel %vm142, %v1611, %v1638
    %v1643 = vmul.f32 %v1641, 0.0
    %v1644 = vmul.f32 %v1641, %v1642
    %1646 = vrot.lane.b32.xlu0 %v1644, 64
    %v1647 = vpop.permute.xlu0 %1646
    %v1649 = vadd.f32 %v1643, %v1647
    %v1650 = vtanh.pop %v1649
    %v1651 = vmul.f32 %v1642, %v1650
    %v1654 = vunpack.c.l.s4 1966171168
    %v1655 = vunpack.c.0.s8 %v1654
    %v1656 = vlaneseq
    %v1657 = vshrl.u32 %v1656, 7
    %v1658 = vsub.s32 %v1655, %v1657
    %v1659 = vrot.slane %v1651, %v1658
    %v1660 = vcombine.high %v1659, %v1659
    %v1662 = vunpack.c.l.s4 1966171168
    %v1663 = vunpack.c.0.s8 %v1662
    %v1664 = vlaneseq
    %v1665 = vshrl.u32 %v1664, 7
    %v1666 = vsub.s32 %v1663, %v1665
    %v1667 = vrot.slane %v1659, %v1666
    %v1669 = vunpack.c.l.s4 1966171168
    %v1670 = vunpack.c.0.s8 %v1669
    %v1671 = vlaneseq
    %v1672 = vshrl.u32 %v1671, 7
    %v1673 = vsub.s32 %v1670, %v1672
    %v1674 = vrot.slane %v1660, %v1673
    %vm1677 = vcmask 1040896
    %1678 = vst.msk [vmem:[#allocation3 + $0x3] sm:$0x1] %vm1677, %v1667
    %1679 = vst.msk [vmem:[#allocation3 + $0x7] sm:$0x1] %vm1677, %v1674
    %s1680 = scalar_lea.vmem [#allocation2], 10
    %v1681 = vld [vmem:[%s1680] ss:$4 sm:$0x3]
    %s1682 = scalar_lea.vmem [#allocation2], 26
    %v1683 = vld [vmem:[%s1682] ss:$4 sm:$0x3]
    %1684 = vrot.lane.b32.xlu0 %v1651, 64
    %v1685 = vpop.permute.xlu0 %1684
    %v1686 = vsel %vm568, %v1685, 0
    %1688 = vmatprep.subr.mxu0 0.0
    %1689 = vmatpush1.msra.mxu0 0.0
    %1690 = vmatprep.subr.mxu0 0.0
    %1691 = vmatpush1.msra.mxu0 0.0
    %1692 = vmatprep.subr.mxu0 0.0
    %1693 = vmatpush1.msra.mxu0 0.0
    %1694 = vmatprep.subr.mxu0 0.0
    %1695 = vmatpush1.msra.mxu0 0.0
    %1696 = vmatprep.subr.mxu0 0.0
    %1697 = vmatpush1.msra.mxu0 0.0
    %1698 = vmatprep.subr.mxu0 0.0
    %1699 = vmatpush1.msra.mxu0 0.0
    %1700 = vmatprep.subr.mxu0 0.0
    %1701 = vmatpush1.msra.mxu0 0.0
    %1702 = vmatprep.subr.mxu0 0.0
    %1703 = vmatpush1.msra.mxu0 0.0
    %1704 = vmatprep.subr.mxu0 %v564
    %1705 = vmatpush1.msra.mxu0 %v563
    %1706 = vmatprep.subr.mxu0 %v562
    %1707 = vmatpush1.msra.mxu0 %v561
    %1708 = vmatprep.subr.mxu0 %v560
    %1709 = vmatpush1.msra.mxu0 %v559
    %1710 = vmatprep.subr.mxu0 %v558
    %1711 = vmatpush1.msra.mxu0 %v557
    %1712 = vmatprep.subr.mxu0 %v556
    %1713 = vmatpush1.msra.mxu0 %v555
    %1714 = vmatprep.subr.mxu0 %v554
    %1715 = vmatpush1.msra.mxu0 %v553
    %1716 = vmatprep.subr.mxu0 %v552
    %1717 = vmatpush1.msra.mxu0 %v551
    %1718 = vmatprep.subr.mxu0 %v550
    %1719 = vmatpush1.msra.mxu0 %v549
    %1720 = vmatprep.subr.mxu0 0.0
    %1721 = vmatpush2.msra.mxu0 0.0
    %1722 = vmatprep.subr.mxu0 0.0
    %1723 = vmatpush2.msra.mxu0 0.0
    %1724 = vmatprep.subr.mxu0 0.0
    %1725 = vmatpush2.msra.mxu0 0.0
    %1726 = vmatprep.subr.mxu0 0.0
    %1727 = vmatpush2.msra.mxu0 0.0
    %1728 = vmatprep.subr.mxu0 0.0
    %1729 = vmatpush2.msra.mxu0 0.0
    %1730 = vmatprep.subr.mxu0 0.0
    %1731 = vmatpush2.msra.mxu0 0.0
    %1732 = vmatprep.subr.mxu0 0.0
    %1733 = vmatpush2.msra.mxu0 0.0
    %1734 = vmatprep.subr.mxu0 0.0
    %1735 = vmatpush2.msra.mxu0 0.0
    %1736 = vmatprep.subr.mxu0 0.0
    %1737 = vmatpush2.msra.mxu0 0.0
    %1738 = vmatprep.subr.mxu0 0.0
    %1739 = vmatpush2.msra.mxu0 0.0
    %1740 = vmatprep.subr.mxu0 0.0
    %1741 = vmatpush2.msra.mxu0 0.0
    %1742 = vmatprep.subr.mxu0 0.0
    %1743 = vmatpush2.msra.mxu0 0.0
    %1744 = vmatprep.subr.mxu0 0.0
    %1745 = vmatpush2.msra.mxu0 0.0
    %1746 = vmatprep.subr.mxu0 0.0
    %1747 = vmatpush2.msra.mxu0 0.0
    %1748 = vmatprep.subr.mxu0 0.0
    %1749 = vmatpush2.msra.mxu0 0.0
    %1750 = vmatprep.subr.mxu0 0.0
    %1751 = vmatpush2.msra.mxu0 0.0
    %1752 = vmatprep.mubr.f32.mxu0 0.0
    %1753 = vmatmul.mubr.f32.gmra.mxu0 %v1686
    %v1754 = vpop.f32.mrf.mxu0
    %v1755 = vadd.f32 0.0, %v1754
    %v1756 = vpop.f32.mrf.mxu0
    %v1757 = vadd.f32 0.0, %v1756
    %1758 = vdwg.mxu0
    %v1761 = vcombine.low %v1755, %v1757
    %v1763 = vunpack.c.l.s4 1966171168
    %v1764 = vunpack.c.0.s8 %v1763
    %v1765 = vlaneseq
    %v1766 = vshrl.u32 %v1765, 7
    %v1767 = vsub.s32 %v1764, %v1766
    %v1768 = vrot.slane %v1761, %v1767
    %v1769 = vcombine.high %v1768, %v1768
    %v1771 = vunpack.c.l.s4 1966171168
    %v1772 = vunpack.c.0.s8 %v1771
    %v1773 = vlaneseq
    %v1774 = vshrl.u32 %v1773, 7
    %v1775 = vsub.s32 %v1772, %v1774
    %v1776 = vrot.slane %v1768, %v1775
    %v1778 = vunpack.c.l.s4 1966171168
    %v1779 = vunpack.c.0.s8 %v1778
    %v1780 = vlaneseq
    %v1781 = vshrl.u32 %v1780, 7
    %v1782 = vsub.s32 %v1779, %v1781
    %v1783 = vrot.slane %v1769, %v1782
    %v1786 = vadd.f32 %v1681, %v1776
    %v1787 = vadd.f32 %v1683, %v1783
    %v1788 = vtanh.pop %v1786
    %v1789 = vtanh.pop %v1787
    %v1790 = vxor.u32 %v1786, 2147483648
    %v1791 = vxor.u32 %v1787, 2147483648
    %v1792 = vmul.f32 %v1790, 1.442695
    %v1793 = vpow.pop %v1792
    %v1794 = vmul.f32 %v1791, 1.442695
    %v1795 = vpow.pop %v1794
    %v1796 = vadd.f32 %v1793, 1.0
    %v1797 = vadd.f32 %v1795, 1.0
    %v1798 = vrcp.pop %v1796
    %v1799 = vmul.f32 1.0, %v1798
    %v1800 = vrcp.pop %v1797
    %v1801 = vmul.f32 1.0, %v1800
    %v1804 = vcombine.low %v1788, %v1789
    %v1806 = vunpack.c.l.s4 1966171168
    %v1807 = vunpack.c.0.s8 %v1806
    %v1808 = vlaneseq
    %v1809 = vshrl.u32 %v1808, 7
    %v1810 = vsub.s32 %v1807, %v1809
    %v1811 = vrot.slane %v1804, %v1810
    %v1812 = vcombine.high %v1811, %v1811
    %v1814 = vunpack.c.l.s4 1966171168
    %v1815 = vunpack.c.0.s8 %v1814
    %v1816 = vlaneseq
    %v1817 = vshrl.u32 %v1816, 7
    %v1818 = vsub.s32 %v1815, %v1817
    %v1819 = vrot.slane %v1811, %v1818
    %v1821 = vunpack.c.l.s4 1966171168
    %v1822 = vunpack.c.0.s8 %v1821
    %v1823 = vlaneseq
    %v1824 = vshrl.u32 %v1823, 7
    %v1825 = vsub.s32 %v1822, %v1824
    %v1826 = vrot.slane %v1812, %v1825
    %v1831 = vcombine.low %v1799, %v1801
    %v1833 = vunpack.c.l.s4 1966171168
    %v1834 = vunpack.c.0.s8 %v1833
    %v1835 = vlaneseq
    %v1836 = vshrl.u32 %v1835, 7
    %v1837 = vsub.s32 %v1834, %v1836
    %v1838 = vrot.slane %v1831, %v1837
    %v1839 = vcombine.high %v1838, %v1838
    %v1841 = vunpack.c.l.s4 1966171168
    %v1842 = vunpack.c.0.s8 %v1841
    %v1843 = vlaneseq
    %v1844 = vshrl.u32 %v1843, 7
    %v1845 = vsub.s32 %v1842, %v1844
    %v1846 = vrot.slane %v1838, %v1845
    %v1848 = vunpack.c.l.s4 1966171168
    %v1849 = vunpack.c.0.s8 %v1848
    %v1850 = vlaneseq
    %v1851 = vshrl.u32 %v1850, 7
    %v1852 = vsub.s32 %v1849, %v1851
    %v1853 = vrot.slane %v1839, %v1852
    %v1856 = vsel %vm141, %v1819, %v1846
    %v1857 = vsel %vm142, %v1826, %v1853
    %v1858 = vmul.f32 %v1856, %v1649
    %v1859 = vmul.f32 %v1856, %v1857
    %1861 = vrot.lane.b32.xlu0 %v1859, 64
    %v1862 = vpop.permute.xlu0 %1861
    %v1864 = vadd.f32 %v1858, %v1862
    %v1865 = vtanh.pop %v1864
    %v1866 = vmul.f32 %v1857, %v1865
    %v1869 = vunpack.c.l.s4 1966171168
    %v1870 = vunpack.c.0.s8 %v1869
    %v1871 = vlaneseq
    %v1872 = vshrl.u32 %v1871, 7
    %v1873 = vsub.s32 %v1870, %v1872
    %v1874 = vrot.slane %v1866, %v1873
    %v1875 = vcombine.high %v1874, %v1874
    %v1877 = vunpack.c.l.s4 1966171168
    %v1878 = vunpack.c.0.s8 %v1877
    %v1879 = vlaneseq
    %v1880 = vshrl.u32 %v1879, 7
    %v1881 = vsub.s32 %v1878, %v1880
    %v1882 = vrot.slane %v1874, %v1881
    %v1884 = vunpack.c.l.s4 1966171168
    %v1885 = vunpack.c.0.s8 %v1884
    %v1886 = vlaneseq
    %v1887 = vshrl.u32 %v1886, 7
    %v1888 = vsub.s32 %v1885, %v1887
    %v1889 = vrot.slane %v1875, %v1888
    %1892 = vst.msk [vmem:[#allocation3 + $0x2] sm:$0x1] %vm1677, %v1882
    %1893 = vst.msk [vmem:[#allocation3 + $0x6] sm:$0x1] %vm1677, %v1889
    %s1894 = scalar_lea.vmem [#allocation2], 9
    %v1895 = vld [vmem:[%s1894] ss:$4 sm:$0x3]
    %s1896 = scalar_lea.vmem [#allocation2], 25
    %v1897 = vld [vmem:[%s1896] ss:$4 sm:$0x3]
    %1898 = vrot.lane.b32.xlu0 %v1866, 64
    %v1899 = vpop.permute.xlu0 %1898
    %v1900 = vsel %vm568, %v1899, 0
    %1902 = vmatprep.subr.mxu0 0.0
    %1903 = vmatpush1.msra.mxu0 0.0
    %1904 = vmatprep.subr.mxu0 0.0
    %1905 = vmatpush1.msra.mxu0 0.0
    %1906 = vmatprep.subr.mxu0 0.0
    %1907 = vmatpush1.msra.mxu0 0.0
    %1908 = vmatprep.subr.mxu0 0.0
    %1909 = vmatpush1.msra.mxu0 0.0
    %1910 = vmatprep.subr.mxu0 0.0
    %1911 = vmatpush1.msra.mxu0 0.0
    %1912 = vmatprep.subr.mxu0 0.0
    %1913 = vmatpush1.msra.mxu0 0.0
    %1914 = vmatprep.subr.mxu0 0.0
    %1915 = vmatpush1.msra.mxu0 0.0
    %1916 = vmatprep.subr.mxu0 0.0
    %1917 = vmatpush1.msra.mxu0 0.0
    %1918 = vmatprep.subr.mxu0 %v564
    %1919 = vmatpush1.msra.mxu0 %v563
    %1920 = vmatprep.subr.mxu0 %v562
    %1921 = vmatpush1.msra.mxu0 %v561
    %1922 = vmatprep.subr.mxu0 %v560
    %1923 = vmatpush1.msra.mxu0 %v559
    %1924 = vmatprep.subr.mxu0 %v558
    %1925 = vmatpush1.msra.mxu0 %v557
    %1926 = vmatprep.subr.mxu0 %v556
    %1927 = vmatpush1.msra.mxu0 %v555
    %1928 = vmatprep.subr.mxu0 %v554
    %1929 = vmatpush1.msra.mxu0 %v553
    %1930 = vmatprep.subr.mxu0 %v552
    %1931 = vmatpush1.msra.mxu0 %v551
    %1932 = vmatprep.subr.mxu0 %v550
    %1933 = vmatpush1.msra.mxu0 %v549
    %1934 = vmatprep.subr.mxu0 0.0
    %1935 = vmatpush2.msra.mxu0 0.0
    %1936 = vmatprep.subr.mxu0 0.0
    %1937 = vmatpush2.msra.mxu0 0.0
    %1938 = vmatprep.subr.mxu0 0.0
    %1939 = vmatpush2.msra.mxu0 0.0
    %1940 = vmatprep.subr.mxu0 0.0
    %1941 = vmatpush2.msra.mxu0 0.0
    %1942 = vmatprep.subr.mxu0 0.0
    %1943 = vmatpush2.msra.mxu0 0.0
    %1944 = vmatprep.subr.mxu0 0.0
    %1945 = vmatpush2.msra.mxu0 0.0
    %1946 = vmatprep.subr.mxu0 0.0
    %1947 = vmatpush2.msra.mxu0 0.0
    %1948 = vmatprep.subr.mxu0 0.0
    %1949 = vmatpush2.msra.mxu0 0.0
    %1950 = vmatprep.subr.mxu0 0.0
    %1951 = vmatpush2.msra.mxu0 0.0
    %1952 = vmatprep.subr.mxu0 0.0
    %1953 = vmatpush2.msra.mxu0 0.0
    %1954 = vmatprep.subr.mxu0 0.0
    %1955 = vmatpush2.msra.mxu0 0.0
    %1956 = vmatprep.subr.mxu0 0.0
    %1957 = vmatpush2.msra.mxu0 0.0
    %1958 = vmatprep.subr.mxu0 0.0
    %1959 = vmatpush2.msra.mxu0 0.0
    %1960 = vmatprep.subr.mxu0 0.0
    %1961 = vmatpush2.msra.mxu0 0.0
    %1962 = vmatprep.subr.mxu0 0.0
    %1963 = vmatpush2.msra.mxu0 0.0
    %1964 = vmatprep.subr.mxu0 0.0
    %1965 = vmatpush2.msra.mxu0 0.0
    %1966 = vmatprep.mubr.f32.mxu0 0.0
    %1967 = vmatmul.mubr.f32.gmra.mxu0 %v1900
    %v1968 = vpop.f32.mrf.mxu0
    %v1969 = vadd.f32 0.0, %v1968
    %v1970 = vpop.f32.mrf.mxu0
    %v1971 = vadd.f32 0.0, %v1970
    %1972 = vdwg.mxu0
    %v1975 = vcombine.low %v1969, %v1971
    %v1977 = vunpack.c.l.s4 1966171168
    %v1978 = vunpack.c.0.s8 %v1977
    %v1979 = vlaneseq
    %v1980 = vshrl.u32 %v1979, 7
    %v1981 = vsub.s32 %v1978, %v1980
    %v1982 = vrot.slane %v1975, %v1981
    %v1983 = vcombine.high %v1982, %v1982
    %v1985 = vunpack.c.l.s4 1966171168
    %v1986 = vunpack.c.0.s8 %v1985
    %v1987 = vlaneseq
    %v1988 = vshrl.u32 %v1987, 7
    %v1989 = vsub.s32 %v1986, %v1988
    %v1990 = vrot.slane %v1982, %v1989
    %v1992 = vunpack.c.l.s4 1966171168
    %v1993 = vunpack.c.0.s8 %v1992
    %v1994 = vlaneseq
    %v1995 = vshrl.u32 %v1994, 7
    %v1996 = vsub.s32 %v1993, %v1995
    %v1997 = vrot.slane %v1983, %v1996
    %v2000 = vadd.f32 %v1895, %v1990
    %v2001 = vadd.f32 %v1897, %v1997
    %v2002 = vtanh.pop %v2000
    %v2003 = vtanh.pop %v2001
    %v2004 = vxor.u32 %v2000, 2147483648
    %v2005 = vxor.u32 %v2001, 2147483648
    %v2006 = vmul.f32 %v2004, 1.442695
    %v2007 = vpow.pop %v2006
    %v2008 = vmul.f32 %v2005, 1.442695
    %v2009 = vpow.pop %v2008
    %v2010 = vadd.f32 %v2007, 1.0
    %v2011 = vadd.f32 %v2009, 1.0
    %v2012 = vrcp.pop %v2010
    %v2013 = vmul.f32 1.0, %v2012
    %v2014 = vrcp.pop %v2011
    %v2015 = vmul.f32 1.0, %v2014
    %v2018 = vcombine.low %v2002, %v2003
    %v2020 = vunpack.c.l.s4 1966171168
    %v2021 = vunpack.c.0.s8 %v2020
    %v2022 = vlaneseq
    %v2023 = vshrl.u32 %v2022, 7
    %v2024 = vsub.s32 %v2021, %v2023
    %v2025 = vrot.slane %v2018, %v2024
    %v2026 = vcombine.high %v2025, %v2025
    %v2028 = vunpack.c.l.s4 1966171168
    %v2029 = vunpack.c.0.s8 %v2028
    %v2030 = vlaneseq
    %v2031 = vshrl.u32 %v2030, 7
    %v2032 = vsub.s32 %v2029, %v2031
    %v2033 = vrot.slane %v2025, %v2032
    %v2035 = vunpack.c.l.s4 1966171168
    %v2036 = vunpack.c.0.s8 %v2035
    %v2037 = vlaneseq
    %v2038 = vshrl.u32 %v2037, 7
    %v2039 = vsub.s32 %v2036, %v2038
    %v2040 = vrot.slane %v2026, %v2039
    %v2045 = vcombine.low %v2013, %v2015
    %v2047 = vunpack.c.l.s4 1966171168
    %v2048 = vunpack.c.0.s8 %v2047
    %v2049 = vlaneseq
    %v2050 = vshrl.u32 %v2049, 7
    %v2051 = vsub.s32 %v2048, %v2050
    %v2052 = vrot.slane %v2045, %v2051
    %v2053 = vcombine.high %v2052, %v2052
    %v2055 = vunpack.c.l.s4 1966171168
    %v2056 = vunpack.c.0.s8 %v2055
    %v2057 = vlaneseq
    %v2058 = vshrl.u32 %v2057, 7
    %v2059 = vsub.s32 %v2056, %v2058
    %v2060 = vrot.slane %v2052, %v2059
    %v2062 = vunpack.c.l.s4 1966171168
    %v2063 = vunpack.c.0.s8 %v2062
    %v2064 = vlaneseq
    %v2065 = vshrl.u32 %v2064, 7
    %v2066 = vsub.s32 %v2063, %v2065
    %v2067 = vrot.slane %v2053, %v2066
    %v2070 = vsel %vm141, %v2033, %v2060
    %v2071 = vsel %vm142, %v2040, %v2067
    %v2072 = vmul.f32 %v2070, %v1864
    %v2073 = vmul.f32 %v2070, %v2071
    %2075 = vrot.lane.b32.xlu0 %v2073, 64
    %v2076 = vpop.permute.xlu0 %2075
    %v2078 = vadd.f32 %v2072, %v2076
    %v2079 = vtanh.pop %v2078
    %v2080 = vmul.f32 %v2071, %v2079
    %v2083 = vunpack.c.l.s4 1966171168
    %v2084 = vunpack.c.0.s8 %v2083
    %v2085 = vlaneseq
    %v2086 = vshrl.u32 %v2085, 7
    %v2087 = vsub.s32 %v2084, %v2086
    %v2088 = vrot.slane %v2080, %v2087
    %v2089 = vcombine.high %v2088, %v2088
    %v2091 = vunpack.c.l.s4 1966171168
    %v2092 = vunpack.c.0.s8 %v2091
    %v2093 = vlaneseq
    %v2094 = vshrl.u32 %v2093, 7
    %v2095 = vsub.s32 %v2092, %v2094
    %v2096 = vrot.slane %v2088, %v2095
    %v2098 = vunpack.c.l.s4 1966171168
    %v2099 = vunpack.c.0.s8 %v2098
    %v2100 = vlaneseq
    %v2101 = vshrl.u32 %v2100, 7
    %v2102 = vsub.s32 %v2099, %v2101
    %v2103 = vrot.slane %v2089, %v2102
    %2106 = vst.msk [vmem:[#allocation3 + $0x1] sm:$0x1] %vm1677, %v2096
    %2107 = vst.msk [vmem:[#allocation3 + $0x5] sm:$0x1] %vm1677, %v2103
    %s2108 = scalar_lea.vmem [#allocation2], 8
    %v2109 = vld [vmem:[%s2108] ss:$4 sm:$0x3]
    %s2110 = scalar_lea.vmem [#allocation2], 24
    %v2111 = vld [vmem:[%s2110] ss:$4 sm:$0x3]
    %2112 = vrot.lane.b32.xlu0 %v2080, 64
    %v2113 = vpop.permute.xlu0 %2112
    %v2114 = vsel %vm568, %v2113, 0
    %2116 = vmatprep.subr.mxu0 0.0
    %2117 = vmatpush1.msra.mxu0 0.0
    %2118 = vmatprep.subr.mxu0 0.0
    %2119 = vmatpush1.msra.mxu0 0.0
    %2120 = vmatprep.subr.mxu0 0.0
    %2121 = vmatpush1.msra.mxu0 0.0
    %2122 = vmatprep.subr.mxu0 0.0
    %2123 = vmatpush1.msra.mxu0 0.0
    %2124 = vmatprep.subr.mxu0 0.0
    %2125 = vmatpush1.msra.mxu0 0.0
    %2126 = vmatprep.subr.mxu0 0.0
    %2127 = vmatpush1.msra.mxu0 0.0
    %2128 = vmatprep.subr.mxu0 0.0
    %2129 = vmatpush1.msra.mxu0 0.0
    %2130 = vmatprep.subr.mxu0 0.0
    %2131 = vmatpush1.msra.mxu0 0.0
    %2132 = vmatprep.subr.mxu0 %v564
    %2133 = vmatpush1.msra.mxu0 %v563
    %2134 = vmatprep.subr.mxu0 %v562
    %2135 = vmatpush1.msra.mxu0 %v561
    %2136 = vmatprep.subr.mxu0 %v560
    %2137 = vmatpush1.msra.mxu0 %v559
    %2138 = vmatprep.subr.mxu0 %v558
    %2139 = vmatpush1.msra.mxu0 %v557
    %2140 = vmatprep.subr.mxu0 %v556
    %2141 = vmatpush1.msra.mxu0 %v555
    %2142 = vmatprep.subr.mxu0 %v554
    %2143 = vmatpush1.msra.mxu0 %v553
    %2144 = vmatprep.subr.mxu0 %v552
    %2145 = vmatpush1.msra.mxu0 %v551
    %2146 = vmatprep.subr.mxu0 %v550
    %2147 = vmatpush1.msra.mxu0 %v549
    %2148 = vmatprep.subr.mxu0 0.0
    %2149 = vmatpush2.msra.mxu0 0.0
    %2150 = vmatprep.subr.mxu0 0.0
    %2151 = vmatpush2.msra.mxu0 0.0
    %2152 = vmatprep.subr.mxu0 0.0
    %2153 = vmatpush2.msra.mxu0 0.0
    %2154 = vmatprep.subr.mxu0 0.0
    %2155 = vmatpush2.msra.mxu0 0.0
    %2156 = vmatprep.subr.mxu0 0.0
    %2157 = vmatpush2.msra.mxu0 0.0
    %2158 = vmatprep.subr.mxu0 0.0
    %2159 = vmatpush2.msra.mxu0 0.0
    %2160 = vmatprep.subr.mxu0 0.0
    %2161 = vmatpush2.msra.mxu0 0.0
    %2162 = vmatprep.subr.mxu0 0.0
    %2163 = vmatpush2.msra.mxu0 0.0
    %2164 = vmatprep.subr.mxu0 0.0
    %2165 = vmatpush2.msra.mxu0 0.0
    %2166 = vmatprep.subr.mxu0 0.0
    %2167 = vmatpush2.msra.mxu0 0.0
    %2168 = vmatprep.subr.mxu0 0.0
    %2169 = vmatpush2.msra.mxu0 0.0
    %2170 = vmatprep.subr.mxu0 0.0
    %2171 = vmatpush2.msra.mxu0 0.0
    %2172 = vmatprep.subr.mxu0 0.0
    %2173 = vmatpush2.msra.mxu0 0.0
    %2174 = vmatprep.subr.mxu0 0.0
    %2175 = vmatpush2.msra.mxu0 0.0
    %2176 = vmatprep.subr.mxu0 0.0
    %2177 = vmatpush2.msra.mxu0 0.0
    %2178 = vmatprep.subr.mxu0 0.0
    %2179 = vmatpush2.msra.mxu0 0.0
    %2180 = vmatprep.mubr.f32.mxu0 0.0
    %2181 = vmatmul.mubr.f32.gmra.mxu0 %v2114
    %v2182 = vpop.f32.mrf.mxu0
    %v2183 = vadd.f32 0.0, %v2182
    %v2184 = vpop.f32.mrf.mxu0
    %v2185 = vadd.f32 0.0, %v2184
    %2186 = vdwg.mxu0
    %v2189 = vcombine.low %v2183, %v2185
    %v2191 = vunpack.c.l.s4 1966171168
    %v2192 = vunpack.c.0.s8 %v2191
    %v2193 = vlaneseq
    %v2194 = vshrl.u32 %v2193, 7
    %v2195 = vsub.s32 %v2192, %v2194
    %v2196 = vrot.slane %v2189, %v2195
    %v2197 = vcombine.high %v2196, %v2196
    %v2199 = vunpack.c.l.s4 1966171168
    %v2200 = vunpack.c.0.s8 %v2199
    %v2201 = vlaneseq
    %v2202 = vshrl.u32 %v2201, 7
    %v2203 = vsub.s32 %v2200, %v2202
    %v2204 = vrot.slane %v2196, %v2203
    %v2206 = vunpack.c.l.s4 1966171168
    %v2207 = vunpack.c.0.s8 %v2206
    %v2208 = vlaneseq
    %v2209 = vshrl.u32 %v2208, 7
    %v2210 = vsub.s32 %v2207, %v2209
    %v2211 = vrot.slane %v2197, %v2210
    %v2214 = vadd.f32 %v2109, %v2204
    %v2215 = vadd.f32 %v2111, %v2211
    %v2216 = vtanh.pop %v2214
    %v2217 = vtanh.pop %v2215
    %v2218 = vxor.u32 %v2214, 2147483648
    %v2219 = vxor.u32 %v2215, 2147483648
    %v2220 = vmul.f32 %v2218, 1.442695
    %v2221 = vpow.pop %v2220
    %v2222 = vmul.f32 %v2219, 1.442695
    %v2223 = vpow.pop %v2222
    %v2224 = vadd.f32 %v2221, 1.0
    %v2225 = vadd.f32 %v2223, 1.0
    %v2226 = vrcp.pop %v2224
    %v2227 = vmul.f32 1.0, %v2226
    %v2228 = vrcp.pop %v2225
    %v2229 = vmul.f32 1.0, %v2228
    %v2232 = vcombine.low %v2216, %v2217
    %v2234 = vunpack.c.l.s4 1966171168
    %v2235 = vunpack.c.0.s8 %v2234
    %v2236 = vlaneseq
    %v2237 = vshrl.u32 %v2236, 7
    %v2238 = vsub.s32 %v2235, %v2237
    %v2239 = vrot.slane %v2232, %v2238
    %v2240 = vcombine.high %v2239, %v2239
    %v2242 = vunpack.c.l.s4 1966171168
    %v2243 = vunpack.c.0.s8 %v2242
    %v2244 = vlaneseq
    %v2245 = vshrl.u32 %v2244, 7
    %v2246 = vsub.s32 %v2243, %v2245
    %v2247 = vrot.slane %v2239, %v2246
    %v2249 = vunpack.c.l.s4 1966171168
    %v2250 = vunpack.c.0.s8 %v2249
    %v2251 = vlaneseq
    %v2252 = vshrl.u32 %v2251, 7
    %v2253 = vsub.s32 %v2250, %v2252
    %v2254 = vrot.slane %v2240, %v2253
    %v2259 = vcombine.low %v2227, %v2229
    %v2261 = vunpack.c.l.s4 1966171168
    %v2262 = vunpack.c.0.s8 %v2261
    %v2263 = vlaneseq
    %v2264 = vshrl.u32 %v2263, 7
    %v2265 = vsub.s32 %v2262, %v2264
    %v2266 = vrot.slane %v2259, %v2265
    %v2267 = vcombine.high %v2266, %v2266
    %v2269 = vunpack.c.l.s4 1966171168
    %v2270 = vunpack.c.0.s8 %v2269
    %v2271 = vlaneseq
    %v2272 = vshrl.u32 %v2271, 7
    %v2273 = vsub.s32 %v2270, %v2272
    %v2274 = vrot.slane %v2266, %v2273
    %v2276 = vunpack.c.l.s4 1966171168
    %v2277 = vunpack.c.0.s8 %v2276
    %v2278 = vlaneseq
    %v2279 = vshrl.u32 %v2278, 7
    %v2280 = vsub.s32 %v2277, %v2279
    %v2281 = vrot.slane %v2267, %v2280
    %v2284 = vsel %vm141, %v2247, %v2274
    %v2285 = vsel %vm142, %v2254, %v2281
    %v2286 = vmul.f32 %v2284, %v2078
    %v2287 = vmul.f32 %v2284, %v2285
    %2289 = vrot.lane.b32.xlu0 %v2287, 64
    %v2290 = vpop.permute.xlu0 %2289
    %v2292 = vadd.f32 %v2286, %v2290
    %v2293 = vtanh.pop %v2292
    %v2294 = vmul.f32 %v2285, %v2293
    %v2297 = vunpack.c.l.s4 1966171168
    %v2298 = vunpack.c.0.s8 %v2297
    %v2299 = vlaneseq
    %v2300 = vshrl.u32 %v2299, 7
    %v2301 = vsub.s32 %v2298, %v2300
    %v2302 = vrot.slane %v2294, %v2301
    %v2303 = vcombine.high %v2302, %v2302
    %v2305 = vunpack.c.l.s4 1966171168
    %v2306 = vunpack.c.0.s8 %v2305
    %v2307 = vlaneseq
    %v2308 = vshrl.u32 %v2307, 7
    %v2309 = vsub.s32 %v2306, %v2308
    %v2310 = vrot.slane %v2302, %v2309
    %v2312 = vunpack.c.l.s4 1966171168
    %v2313 = vunpack.c.0.s8 %v2312
    %v2314 = vlaneseq
    %v2315 = vshrl.u32 %v2314, 7
    %v2316 = vsub.s32 %v2313, %v2315
    %v2317 = vrot.slane %v2303, %v2316
    %2320 = vst.msk [vmem:[#allocation3] sm:$0x1] %vm1677, %v2310
    %2321 = vst.msk [vmem:[#allocation3 + $0x4] sm:$0x1] %vm1677, %v2317
    %v2322 = vld [vmem:[#allocation3] sm:$0xf]
    %v2323 = vld [vmem:[%s5] sm:$0xff]
    %v2324 = vld [vmem:[%s5 + $0x8] sm:$0xff]
    %v2325 = vld [vmem:[%s5 + $0x10] sm:$0xff]
    %v2326 = vld [vmem:[%s5 + $0x18] sm:$0xff]
    %v2327 = vld [vmem:[%s5 + $0x20] sm:$0xff]
    %v2328 = vld [vmem:[%s5 + $0x28] sm:$0xff]
    %v2329 = vld [vmem:[%s5 + $0x30] sm:$0xff]
    %v2330 = vld [vmem:[%s5 + $0x38] sm:$0xff]
    %v2331 = vld [vmem:[%s5 + $0x40] sm:$0xff]
    %v2332 = vld [vmem:[%s5 + $0x48] sm:$0xff]
    %v2333 = vld [vmem:[%s5 + $0x50] sm:$0xff]
    %v2334 = vld [vmem:[%s5 + $0x58] sm:$0xff]
    %v2335 = vld [vmem:[%s5 + $0x60] sm:$0xff]
    %v2336 = vld [vmem:[%s5 + $0x68] sm:$0xff]
    %v2337 = vld [vmem:[%s5 + $0x70] sm:$0xff]
    %v2338 = vld [vmem:[%s5 + $0x78] sm:$0xff]
    %v2339 = vld [vmem:[%s5 + $0x80] sm:$0xff]
    %v2340 = vld [vmem:[%s5 + $0x88] sm:$0xff]
    %v2341 = vld [vmem:[%s5 + $0x90] sm:$0xff]
    %v2342 = vld [vmem:[%s5 + $0x98] sm:$0xff]
    %v2343 = vld [vmem:[%s5 + $0xa0] sm:$0xff]
    %v2344 = vld [vmem:[%s5 + $0xa8] sm:$0xff]
    %v2345 = vld [vmem:[%s5 + $0xb0] sm:$0xff]
    %v2346 = vld [vmem:[%s5 + $0xb8] sm:$0xff]
    %v2347 = vld [vmem:[%s5 + $0xc0] sm:$0xff]
    %v2348 = vld [vmem:[%s5 + $0xc8] sm:$0xff]
    %v2349 = vld [vmem:[%s5 + $0xd0] sm:$0xff]
    %v2350 = vld [vmem:[%s5 + $0xd8] sm:$0xff]
    %v2351 = vld [vmem:[%s5 + $0xe0] sm:$0xff]
    %v2352 = vld [vmem:[%s5 + $0xe8] sm:$0xff]
    %v2353 = vld [vmem:[%s5 + $0xf0] sm:$0xff]
    %v2354 = vld [vmem:[%s5 + $0xf8] sm:$0xff]
    %v2355 = vld [vmem:[%s5 + $0x100] sm:$0xff]
    %v2356 = vld [vmem:[%s5 + $0x108] sm:$0xff]
    %v2357 = vld [vmem:[%s5 + $0x110] sm:$0xff]
    %v2358 = vld [vmem:[%s5 + $0x118] sm:$0xff]
    %v2359 = vld [vmem:[%s5 + $0x120] sm:$0xff]
    %v2360 = vld [vmem:[%s5 + $0x128] sm:$0xff]
    %v2361 = vld [vmem:[%s5 + $0x130] sm:$0xff]
    %v2362 = vld [vmem:[%s5 + $0x138] sm:$0xff]
    %v2363 = vld [vmem:[%s5 + $0x140] sm:$0xff]
    %v2364 = vld [vmem:[%s5 + $0x148] sm:$0xff]
    %v2365 = vld [vmem:[%s5 + $0x150] sm:$0xff]
    %v2366 = vld [vmem:[%s5 + $0x158] sm:$0xff]
    %v2367 = vld [vmem:[%s5 + $0x160] sm:$0xff]
    %v2368 = vld [vmem:[%s5 + $0x168] sm:$0xff]
    %v2369 = vld [vmem:[%s5 + $0x170] sm:$0xff]
    %v2370 = vld [vmem:[%s5 + $0x178] sm:$0xff]
    %v2371 = vld [vmem:[%s5 + $0x180] sm:$0xff]
    %v2372 = vld [vmem:[%s5 + $0x188] sm:$0xff]
    %v2373 = vld [vmem:[%s5 + $0x190] sm:$0xff]
    %v2374 = vld [vmem:[%s5 + $0x198] sm:$0xff]
    %v2375 = vld [vmem:[%s5 + $0x1a0] sm:$0xff]
    %v2376 = vld [vmem:[%s5 + $0x1a8] sm:$0xff]
    %v2377 = vld [vmem:[%s5 + $0x1b0] sm:$0xff]
    %v2378 = vld [vmem:[%s5 + $0x1b8] sm:$0xff]
    %v2379 = vld [vmem:[%s5 + $0x1c0] sm:$0xff]
    %v2380 = vld [vmem:[%s5 + $0x1c8] sm:$0xff]
    %v2381 = vld [vmem:[%s5 + $0x1d0] sm:$0xff]
    %v2382 = vld [vmem:[%s5 + $0x1d8] sm:$0xff]
    %v2383 = vld [vmem:[%s5 + $0x1e0] sm:$0xff]
    %v2384 = vld [vmem:[%s5 + $0x1e8] sm:$0xff]
    %v2385 = vld [vmem:[%s5 + $0x1f0] sm:$0xff]
    %v2386 = vld [vmem:[%s5 + $0x1f8] sm:$0xff]
    %v2387 = vld [vmem:[#allocation13] sm:$0xf]
    %v2389 = vlaneseq
    %v2390 = vshrl.u32 %v2389, 7
    %v2391 = vsub.s32 0, %v2390
    %v2392 = vrot.slane %v2387, %v2391
    %v2393 = vlaneseq
    %v2394 = vshrl.u32 %v2393, 7
    %v2395 = vsub.s32 1, %v2394
    %v2396 = vrot.slane %v2387, %v2395
    %v2397 = vlaneseq
    %v2398 = vshrl.u32 %v2397, 7
    %v2399 = vsub.s32 2, %v2398
    %v2400 = vrot.slane %v2387, %v2399
    %v2401 = vlaneseq
    %v2402 = vshrl.u32 %v2401, 7
    %v2403 = vsub.s32 3, %v2402
    %v2404 = vrot.slane %v2387, %v2403
    %2409 = vmatprep.subr.mxu0 %v2384
    %2410 = vmatpush1.msra.mxu0 %v2383
    %2411 = vmatprep.subr.mxu0 %v2380
    %2412 = vmatpush1.msra.mxu0 %v2379
    %2413 = vmatprep.subr.mxu0 %v2376
    %2414 = vmatpush1.msra.mxu0 %v2375
    %2415 = vmatprep.subr.mxu0 %v2372
    %2416 = vmatpush1.msra.mxu0 %v2371
    %2417 = vmatprep.subr.mxu0 %v2368
    %2418 = vmatpush1.msra.mxu0 %v2367
    %2419 = vmatprep.subr.mxu0 %v2364
    %2420 = vmatpush1.msra.mxu0 %v2363
    %2421 = vmatprep.subr.mxu0 %v2360
    %2422 = vmatpush1.msra.mxu0 %v2359
    %2423 = vmatprep.subr.mxu0 %v2356
    %2424 = vmatpush1.msra.mxu0 %v2355
    %2425 = vmatprep.subr.mxu0 %v2352
    %2426 = vmatpush1.msra.mxu0 %v2351
    %2427 = vmatprep.subr.mxu0 %v2348
    %2428 = vmatpush1.msra.mxu0 %v2347
    %2429 = vmatprep.subr.mxu0 %v2344
    %2430 = vmatpush1.msra.mxu0 %v2343
    %2431 = vmatprep.subr.mxu0 %v2340
    %2432 = vmatpush1.msra.mxu0 %v2339
    %2433 = vmatprep.subr.mxu0 %v2336
    %2434 = vmatpush1.msra.mxu0 %v2335
    %2435 = vmatprep.subr.mxu0 %v2332
    %2436 = vmatpush1.msra.mxu0 %v2331
    %2437 = vmatprep.subr.mxu0 %v2328
    %2438 = vmatpush1.msra.mxu0 %v2327
    %2439 = vmatprep.subr.mxu0 %v2324
    %2440 = vmatpush1.msra.mxu0 %v2323
    %2441 = vmatprep.subr.mxu0 0.0
    %2442 = vmatpush2.msra.mxu0 0.0
    %2443 = vmatprep.subr.mxu0 0.0
    %2444 = vmatpush2.msra.mxu0 0.0
    %2445 = vmatprep.subr.mxu0 0.0
    %2446 = vmatpush2.msra.mxu0 0.0
    %2447 = vmatprep.subr.mxu0 0.0
    %2448 = vmatpush2.msra.mxu0 0.0
    %2449 = vmatprep.subr.mxu0 0.0
    %2450 = vmatpush2.msra.mxu0 0.0
    %2451 = vmatprep.subr.mxu0 0.0
    %2452 = vmatpush2.msra.mxu0 0.0
    %2453 = vmatprep.subr.mxu0 0.0
    %2454 = vmatpush2.msra.mxu0 0.0
    %2455 = vmatprep.subr.mxu0 0.0
    %2456 = vmatpush2.msra.mxu0 0.0
    %2457 = vmatprep.subr.mxu0 0.0
    %2458 = vmatpush2.msra.mxu0 0.0
    %2459 = vmatprep.subr.mxu0 0.0
    %2460 = vmatpush2.msra.mxu0 0.0
    %2461 = vmatprep.subr.mxu0 0.0
    %2462 = vmatpush2.msra.mxu0 0.0
    %2463 = vmatprep.subr.mxu0 0.0
    %2464 = vmatpush2.msra.mxu0 0.0
    %2465 = vmatprep.subr.mxu0 0.0
    %2466 = vmatpush2.msra.mxu0 0.0
    %2467 = vmatprep.subr.mxu0 0.0
    %2468 = vmatpush2.msra.mxu0 0.0
    %2469 = vmatprep.subr.mxu0 0.0
    %2470 = vmatpush2.msra.mxu0 0.0
    %2471 = vmatprep.subr.mxu0 0.0
    %2472 = vmatpush2.msra.mxu0 0.0
    %2473 = vmatprep.mubr.f32.mxu0 0.0
    %2474 = vmatmul.mubr.f32.gmra.mxu0 %v2322
    %v2475 = vpop.f32.mrf.mxu0
    %v2476 = vadd.f32 %v2392, %v2475
    %v2477 = vpop.f32.mrf.mxu0
    %v2478 = vadd.f32 %v2396, %v2477
    %2479 = vdwg.mxu0
    %2480 = vmatprep.subr.mxu0 %v2386
    %2481 = vmatpush1.msra.mxu0 %v2385
    %2482 = vmatprep.subr.mxu0 %v2382
    %2483 = vmatpush1.msra.mxu0 %v2381
    %2484 = vmatprep.subr.mxu0 %v2378
    %2485 = vmatpush1.msra.mxu0 %v2377
    %2486 = vmatprep.subr.mxu0 %v2374
    %2487 = vmatpush1.msra.mxu0 %v2373
    %2488 = vmatprep.subr.mxu0 %v2370
    %2489 = vmatpush1.msra.mxu0 %v2369
    %2490 = vmatprep.subr.mxu0 %v2366
    %2491 = vmatpush1.msra.mxu0 %v2365
    %2492 = vmatprep.subr.mxu0 %v2362
    %2493 = vmatpush1.msra.mxu0 %v2361
    %2494 = vmatprep.subr.mxu0 %v2358
    %2495 = vmatpush1.msra.mxu0 %v2357
    %2496 = vmatprep.subr.mxu0 %v2354
    %2497 = vmatpush1.msra.mxu0 %v2353
    %2498 = vmatprep.subr.mxu0 %v2350
    %2499 = vmatpush1.msra.mxu0 %v2349
    %2500 = vmatprep.subr.mxu0 %v2346
    %2501 = vmatpush1.msra.mxu0 %v2345
    %2502 = vmatprep.subr.mxu0 %v2342
    %2503 = vmatpush1.msra.mxu0 %v2341
    %2504 = vmatprep.subr.mxu0 %v2338
    %2505 = vmatpush1.msra.mxu0 %v2337
    %2506 = vmatprep.subr.mxu0 %v2334
    %2507 = vmatpush1.msra.mxu0 %v2333
    %2508 = vmatprep.subr.mxu0 %v2330
    %2509 = vmatpush1.msra.mxu0 %v2329
    %2510 = vmatprep.subr.mxu0 %v2326
    %2511 = vmatpush1.msra.mxu0 %v2325
    %2512 = vmatprep.subr.mxu0 0.0
    %2513 = vmatpush2.msra.mxu0 0.0
    %2514 = vmatprep.subr.mxu0 0.0
    %2515 = vmatpush2.msra.mxu0 0.0
    %2516 = vmatprep.subr.mxu0 0.0
    %2517 = vmatpush2.msra.mxu0 0.0
    %2518 = vmatprep.subr.mxu0 0.0
    %2519 = vmatpush2.msra.mxu0 0.0
    %2520 = vmatprep.subr.mxu0 0.0
    %2521 = vmatpush2.msra.mxu0 0.0
    %2522 = vmatprep.subr.mxu0 0.0
    %2523 = vmatpush2.msra.mxu0 0.0
    %2524 = vmatprep.subr.mxu0 0.0
    %2525 = vmatpush2.msra.mxu0 0.0
    %2526 = vmatprep.subr.mxu0 0.0
    %2527 = vmatpush2.msra.mxu0 0.0
    %2528 = vmatprep.subr.mxu0 0.0
    %2529 = vmatpush2.msra.mxu0 0.0
    %2530 = vmatprep.subr.mxu0 0.0
    %2531 = vmatpush2.msra.mxu0 0.0
    %2532 = vmatprep.subr.mxu0 0.0
    %2533 = vmatpush2.msra.mxu0 0.0
    %2534 = vmatprep.subr.mxu0 0.0
    %2535 = vmatpush2.msra.mxu0 0.0
    %2536 = vmatprep.subr.mxu0 0.0
    %2537 = vmatpush2.msra.mxu0 0.0
    %2538 = vmatprep.subr.mxu0 0.0
    %2539 = vmatpush2.msra.mxu0 0.0
    %2540 = vmatprep.subr.mxu0 0.0
    %2541 = vmatpush2.msra.mxu0 0.0
    %2542 = vmatprep.subr.mxu0 0.0
    %2543 = vmatpush2.msra.mxu0 0.0
    %2544 = vmatprep.mubr.f32.mxu0 0.0
    %2545 = vmatmul.mubr.f32.gmra.mxu0 %v2322
    %v2546 = vpop.f32.mrf.mxu0
    %v2547 = vadd.f32 %v2400, %v2546
    %v2548 = vpop.f32.mrf.mxu0
    %v2549 = vadd.f32 %v2404, %v2548
    %2550 = vdwg.mxu0
    %v2555 = vcombine.low %v2476, %v2478
    %v2556 = vcombine.low %v2547, %v2549
    %2559 = vst [vmem:[#allocation2] sm:$0xff] %v2555
    %2560 = vst [vmem:[#allocation2 + $0x8] sm:$0xff] %v2556
    %s2561 = scalar_lea.vmem [#allocation3], 4
    %v2562 = vld [vmem:[%s2561] sm:$0xf]
    %v2563 = vld [vmem:[%s5] sm:$0xff]
    %v2564 = vld [vmem:[%s5 + $0x8] sm:$0xff]
    %v2565 = vld [vmem:[%s5 + $0x10] sm:$0xff]
    %v2566 = vld [vmem:[%s5 + $0x18] sm:$0xff]
    %v2567 = vld [vmem:[%s5 + $0x20] sm:$0xff]
    %v2568 = vld [vmem:[%s5 + $0x28] sm:$0xff]
    %v2569 = vld [vmem:[%s5 + $0x30] sm:$0xff]
    %v2570 = vld [vmem:[%s5 + $0x38] sm:$0xff]
    %v2571 = vld [vmem:[%s5 + $0x40] sm:$0xff]
    %v2572 = vld [vmem:[%s5 + $0x48] sm:$0xff]
    %v2573 = vld [vmem:[%s5 + $0x50] sm:$0xff]
    %v2574 = vld [vmem:[%s5 + $0x58] sm:$0xff]
    %v2575 = vld [vmem:[%s5 + $0x60] sm:$0xff]
    %v2576 = vld [vmem:[%s5 + $0x68] sm:$0xff]
    %v2577 = vld [vmem:[%s5 + $0x70] sm:$0xff]
    %v2578 = vld [vmem:[%s5 + $0x78] sm:$0xff]
    %v2579 = vld [vmem:[%s5 + $0x80] sm:$0xff]
    %v2580 = vld [vmem:[%s5 + $0x88] sm:$0xff]
    %v2581 = vld [vmem:[%s5 + $0x90] sm:$0xff]
    %v2582 = vld [vmem:[%s5 + $0x98] sm:$0xff]
    %v2583 = vld [vmem:[%s5 + $0xa0] sm:$0xff]
    %v2584 = vld [vmem:[%s5 + $0xa8] sm:$0xff]
    %v2585 = vld [vmem:[%s5 + $0xb0] sm:$0xff]
    %v2586 = vld [vmem:[%s5 + $0xb8] sm:$0xff]
    %v2587 = vld [vmem:[%s5 + $0xc0] sm:$0xff]
    %v2588 = vld [vmem:[%s5 + $0xc8] sm:$0xff]
    %v2589 = vld [vmem:[%s5 + $0xd0] sm:$0xff]
    %v2590 = vld [vmem:[%s5 + $0xd8] sm:$0xff]
    %v2591 = vld [vmem:[%s5 + $0xe0] sm:$0xff]
    %v2592 = vld [vmem:[%s5 + $0xe8] sm:$0xff]
    %v2593 = vld [vmem:[%s5 + $0xf0] sm:$0xff]
    %v2594 = vld [vmem:[%s5 + $0xf8] sm:$0xff]
    %v2595 = vld [vmem:[%s5 + $0x100] sm:$0xff]
    %v2596 = vld [vmem:[%s5 + $0x108] sm:$0xff]
    %v2597 = vld [vmem:[%s5 + $0x110] sm:$0xff]
    %v2598 = vld [vmem:[%s5 + $0x118] sm:$0xff]
    %v2599 = vld [vmem:[%s5 + $0x120] sm:$0xff]
    %v2600 = vld [vmem:[%s5 + $0x128] sm:$0xff]
    %v2601 = vld [vmem:[%s5 + $0x130] sm:$0xff]
    %v2602 = vld [vmem:[%s5 + $0x138] sm:$0xff]
    %v2603 = vld [vmem:[%s5 + $0x140] sm:$0xff]
    %v2604 = vld [vmem:[%s5 + $0x148] sm:$0xff]
    %v2605 = vld [vmem:[%s5 + $0x150] sm:$0xff]
    %v2606 = vld [vmem:[%s5 + $0x158] sm:$0xff]
    %v2607 = vld [vmem:[%s5 + $0x160] sm:$0xff]
    %v2608 = vld [vmem:[%s5 + $0x168] sm:$0xff]
    %v2609 = vld [vmem:[%s5 + $0x170] sm:$0xff]
    %v2610 = vld [vmem:[%s5 + $0x178] sm:$0xff]
    %v2611 = vld [vmem:[%s5 + $0x180] sm:$0xff]
    %v2612 = vld [vmem:[%s5 + $0x188] sm:$0xff]
    %v2613 = vld [vmem:[%s5 + $0x190] sm:$0xff]
    %v2614 = vld [vmem:[%s5 + $0x198] sm:$0xff]
    %v2615 = vld [vmem:[%s5 + $0x1a0] sm:$0xff]
    %v2616 = vld [vmem:[%s5 + $0x1a8] sm:$0xff]
    %v2617 = vld [vmem:[%s5 + $0x1b0] sm:$0xff]
    %v2618 = vld [vmem:[%s5 + $0x1b8] sm:$0xff]
    %v2619 = vld [vmem:[%s5 + $0x1c0] sm:$0xff]
    %v2620 = vld [vmem:[%s5 + $0x1c8] sm:$0xff]
    %v2621 = vld [vmem:[%s5 + $0x1d0] sm:$0xff]
    %v2622 = vld [vmem:[%s5 + $0x1d8] sm:$0xff]
    %v2623 = vld [vmem:[%s5 + $0x1e0] sm:$0xff]
    %v2624 = vld [vmem:[%s5 + $0x1e8] sm:$0xff]
    %v2625 = vld [vmem:[%s5 + $0x1f0] sm:$0xff]
    %v2626 = vld [vmem:[%s5 + $0x1f8] sm:$0xff]
    %v2627 = vld [vmem:[#allocation13] sm:$0xf]
    %v2629 = vlaneseq
    %v2630 = vshrl.u32 %v2629, 7
    %v2631 = vsub.s32 0, %v2630
    %v2632 = vrot.slane %v2627, %v2631
    %v2633 = vlaneseq
    %v2634 = vshrl.u32 %v2633, 7
    %v2635 = vsub.s32 1, %v2634
    %v2636 = vrot.slane %v2627, %v2635
    %v2637 = vlaneseq
    %v2638 = vshrl.u32 %v2637, 7
    %v2639 = vsub.s32 2, %v2638
    %v2640 = vrot.slane %v2627, %v2639
    %v2641 = vlaneseq
    %v2642 = vshrl.u32 %v2641, 7
    %v2643 = vsub.s32 3, %v2642
    %v2644 = vrot.slane %v2627, %v2643
    %2649 = vmatprep.subr.mxu0 %v2624
    %2650 = vmatpush1.msra.mxu0 %v2623
    %2651 = vmatprep.subr.mxu0 %v2620
    %2652 = vmatpush1.msra.mxu0 %v2619
    %2653 = vmatprep.subr.mxu0 %v2616
    %2654 = vmatpush1.msra.mxu0 %v2615
    %2655 = vmatprep.subr.mxu0 %v2612
    %2656 = vmatpush1.msra.mxu0 %v2611
    %2657 = vmatprep.subr.mxu0 %v2608
    %2658 = vmatpush1.msra.mxu0 %v2607
    %2659 = vmatprep.subr.mxu0 %v2604
    %2660 = vmatpush1.msra.mxu0 %v2603
    %2661 = vmatprep.subr.mxu0 %v2600
    %2662 = vmatpush1.msra.mxu0 %v2599
    %2663 = vmatprep.subr.mxu0 %v2596
    %2664 = vmatpush1.msra.mxu0 %v2595
    %2665 = vmatprep.subr.mxu0 %v2592
    %2666 = vmatpush1.msra.mxu0 %v2591
    %2667 = vmatprep.subr.mxu0 %v2588
    %2668 = vmatpush1.msra.mxu0 %v2587
    %2669 = vmatprep.subr.mxu0 %v2584
    %2670 = vmatpush1.msra.mxu0 %v2583
    %2671 = vmatprep.subr.mxu0 %v2580
    %2672 = vmatpush1.msra.mxu0 %v2579
    %2673 = vmatprep.subr.mxu0 %v2576
    %2674 = vmatpush1.msra.mxu0 %v2575
    %2675 = vmatprep.subr.mxu0 %v2572
    %2676 = vmatpush1.msra.mxu0 %v2571
    %2677 = vmatprep.subr.mxu0 %v2568
    %2678 = vmatpush1.msra.mxu0 %v2567
    %2679 = vmatprep.subr.mxu0 %v2564
    %2680 = vmatpush1.msra.mxu0 %v2563
    %2681 = vmatprep.subr.mxu0 0.0
    %2682 = vmatpush2.msra.mxu0 0.0
    %2683 = vmatprep.subr.mxu0 0.0
    %2684 = vmatpush2.msra.mxu0 0.0
    %2685 = vmatprep.subr.mxu0 0.0
    %2686 = vmatpush2.msra.mxu0 0.0
    %2687 = vmatprep.subr.mxu0 0.0
    %2688 = vmatpush2.msra.mxu0 0.0
    %2689 = vmatprep.subr.mxu0 0.0
    %2690 = vmatpush2.msra.mxu0 0.0
    %2691 = vmatprep.subr.mxu0 0.0
    %2692 = vmatpush2.msra.mxu0 0.0
    %2693 = vmatprep.subr.mxu0 0.0
    %2694 = vmatpush2.msra.mxu0 0.0
    %2695 = vmatprep.subr.mxu0 0.0
    %2696 = vmatpush2.msra.mxu0 0.0
    %2697 = vmatprep.subr.mxu0 0.0
    %2698 = vmatpush2.msra.mxu0 0.0
    %2699 = vmatprep.subr.mxu0 0.0
    %2700 = vmatpush2.msra.mxu0 0.0
    %2701 = vmatprep.subr.mxu0 0.0
    %2702 = vmatpush2.msra.mxu0 0.0
    %2703 = vmatprep.subr.mxu0 0.0
    %2704 = vmatpush2.msra.mxu0 0.0
    %2705 = vmatprep.subr.mxu0 0.0
    %2706 = vmatpush2.msra.mxu0 0.0
    %2707 = vmatprep.subr.mxu0 0.0
    %2708 = vmatpush2.msra.mxu0 0.0
    %2709 = vmatprep.subr.mxu0 0.0
    %2710 = vmatpush2.msra.mxu0 0.0
    %2711 = vmatprep.subr.mxu0 0.0
    %2712 = vmatpush2.msra.mxu0 0.0
    %2713 = vmatprep.mubr.f32.mxu0 0.0
    %2714 = vmatmul.mubr.f32.gmra.mxu0 %v2562
    %v2715 = vpop.f32.mrf.mxu0
    %v2716 = vadd.f32 %v2632, %v2715
    %v2717 = vpop.f32.mrf.mxu0
    %v2718 = vadd.f32 %v2636, %v2717
    %2719 = vdwg.mxu0
    %2720 = vmatprep.subr.mxu0 %v2626
    %2721 = vmatpush1.msra.mxu0 %v2625
    %2722 = vmatprep.subr.mxu0 %v2622
    %2723 = vmatpush1.msra.mxu0 %v2621
    %2724 = vmatprep.subr.mxu0 %v2618
    %2725 = vmatpush1.msra.mxu0 %v2617
    %2726 = vmatprep.subr.mxu0 %v2614
    %2727 = vmatpush1.msra.mxu0 %v2613
    %2728 = vmatprep.subr.mxu0 %v2610
    %2729 = vmatpush1.msra.mxu0 %v2609
    %2730 = vmatprep.subr.mxu0 %v2606
    %2731 = vmatpush1.msra.mxu0 %v2605
    %2732 = vmatprep.subr.mxu0 %v2602
    %2733 = vmatpush1.msra.mxu0 %v2601
    %2734 = vmatprep.subr.mxu0 %v2598
    %2735 = vmatpush1.msra.mxu0 %v2597
    %2736 = vmatprep.subr.mxu0 %v2594
    %2737 = vmatpush1.msra.mxu0 %v2593
    %2738 = vmatprep.subr.mxu0 %v2590
    %2739 = vmatpush1.msra.mxu0 %v2589
    %2740 = vmatprep.subr.mxu0 %v2586
    %2741 = vmatpush1.msra.mxu0 %v2585
    %2742 = vmatprep.subr.mxu0 %v2582
    %2743 = vmatpush1.msra.mxu0 %v2581
    %2744 = vmatprep.subr.mxu0 %v2578
    %2745 = vmatpush1.msra.mxu0 %v2577
    %2746 = vmatprep.subr.mxu0 %v2574
    %2747 = vmatpush1.msra.mxu0 %v2573
    %2748 = vmatprep.subr.mxu0 %v2570
    %2749 = vmatpush1.msra.mxu0 %v2569
    %2750 = vmatprep.subr.mxu0 %v2566
    %2751 = vmatpush1.msra.mxu0 %v2565
    %2752 = vmatprep.subr.mxu0 0.0
    %2753 = vmatpush2.msra.mxu0 0.0
    %2754 = vmatprep.subr.mxu0 0.0
    %2755 = vmatpush2.msra.mxu0 0.0
    %2756 = vmatprep.subr.mxu0 0.0
    %2757 = vmatpush2.msra.mxu0 0.0
    %2758 = vmatprep.subr.mxu0 0.0
    %2759 = vmatpush2.msra.mxu0 0.0
    %2760 = vmatprep.subr.mxu0 0.0
    %2761 = vmatpush2.msra.mxu0 0.0
    %2762 = vmatprep.subr.mxu0 0.0
    %2763 = vmatpush2.msra.mxu0 0.0
    %2764 = vmatprep.subr.mxu0 0.0
    %2765 = vmatpush2.msra.mxu0 0.0
    %2766 = vmatprep.subr.mxu0 0.0
    %2767 = vmatpush2.msra.mxu0 0.0
    %2768 = vmatprep.subr.mxu0 0.0
    %2769 = vmatpush2.msra.mxu0 0.0
    %2770 = vmatprep.subr.mxu0 0.0
    %2771 = vmatpush2.msra.mxu0 0.0
    %2772 = vmatprep.subr.mxu0 0.0
    %2773 = vmatpush2.msra.mxu0 0.0
    %2774 = vmatprep.subr.mxu0 0.0
    %2775 = vmatpush2.msra.mxu0 0.0
    %2776 = vmatprep.subr.mxu0 0.0
    %2777 = vmatpush2.msra.mxu0 0.0
    %2778 = vmatprep.subr.mxu0 0.0
    %2779 = vmatpush2.msra.mxu0 0.0
    %2780 = vmatprep.subr.mxu0 0.0
    %2781 = vmatpush2.msra.mxu0 0.0
    %2782 = vmatprep.subr.mxu0 0.0
    %2783 = vmatpush2.msra.mxu0 0.0
    %2784 = vmatprep.mubr.f32.mxu0 0.0
    %2785 = vmatmul.mubr.f32.gmra.mxu0 %v2562
    %v2786 = vpop.f32.mrf.mxu0
    %v2787 = vadd.f32 %v2640, %v2786
    %v2788 = vpop.f32.mrf.mxu0
    %v2789 = vadd.f32 %v2644, %v2788
    %2790 = vdwg.mxu0
    %v2795 = vcombine.low %v2716, %v2718
    %v2796 = vcombine.low %v2787, %v2789
    %2799 = vst [vmem:[%s530] sm:$0xff] %v2795
    %2800 = vst [vmem:[%s530 + $0x8] sm:$0xff] %v2796
    %v2801 = vld [vmem:[#allocation10] sm:$0xff]
    %v2802 = vld [vmem:[#allocation10 + $0x8] sm:$0xff]
    %v2803 = vld [vmem:[#allocation10 + $0x10] sm:$0xff]
    %v2804 = vld [vmem:[#allocation10 + $0x18] sm:$0xff]
    %v2805 = vld [vmem:[#allocation10 + $0x20] sm:$0xff]
    %v2806 = vld [vmem:[#allocation10 + $0x28] sm:$0xff]
    %v2807 = vld [vmem:[#allocation10 + $0x30] sm:$0xff]
    %v2808 = vld [vmem:[#allocation10 + $0x38] sm:$0xff]
    %v2809 = vld [vmem:[#allocation10 + $0x40] sm:$0xff]
    %v2810 = vld [vmem:[#allocation10 + $0x48] sm:$0xff]
    %v2811 = vld [vmem:[#allocation10 + $0x50] sm:$0xff]
    %v2812 = vld [vmem:[#allocation10 + $0x58] sm:$0xff]
    %v2813 = vld [vmem:[#allocation10 + $0x60] sm:$0xff]
    %v2814 = vld [vmem:[#allocation10 + $0x68] sm:$0xff]
    %v2815 = vld [vmem:[#allocation10 + $0x70] sm:$0xff]
    %v2816 = vld [vmem:[#allocation10 + $0x78] sm:$0xff]
    %v2817 = vld [vmem:[#allocation11] sm:$0xff]
    %v2818 = vld [vmem:[#allocation11 + $0x8] sm:$0xff]
    %v2819 = vld [vmem:[#allocation11 + $0x10] sm:$0xff]
    %v2820 = vld [vmem:[#allocation11 + $0x18] sm:$0xff]
    %v2821 = vld [vmem:[#allocation11 + $0x20] sm:$0xff]
    %v2822 = vld [vmem:[#allocation11 + $0x28] sm:$0xff]
    %v2823 = vld [vmem:[#allocation11 + $0x30] sm:$0xff]
    %v2824 = vld [vmem:[#allocation11 + $0x38] sm:$0xff]
    %v2825 = vld [vmem:[#allocation11 + $0x40] sm:$0xff]
    %v2826 = vld [vmem:[#allocation11 + $0x48] sm:$0xff]
    %v2827 = vld [vmem:[#allocation11 + $0x50] sm:$0xff]
    %v2828 = vld [vmem:[#allocation11 + $0x58] sm:$0xff]
    %v2829 = vld [vmem:[#allocation11 + $0x60] sm:$0xff]
    %v2830 = vld [vmem:[#allocation11 + $0x68] sm:$0xff]
    %v2831 = vld [vmem:[#allocation11 + $0x70] sm:$0xff]
    %v2832 = vld [vmem:[#allocation11 + $0x78] sm:$0xff]
    %v2833 = vld [vmem:[#allocation2] ss:$4 sm:$0x3]
    %v2834 = vld [vmem:[%s566] ss:$4 sm:$0x3]
    %2835 = vmatprep.subr.mxu0 0.0
    %2836 = vmatpush1.msra.mxu0 0.0
    %2837 = vmatprep.subr.mxu0 0.0
    %2838 = vmatpush1.msra.mxu0 0.0
    %2839 = vmatprep.subr.mxu0 0.0
    %2840 = vmatpush1.msra.mxu0 0.0
    %2841 = vmatprep.subr.mxu0 0.0
    %2842 = vmatpush1.msra.mxu0 0.0
    %2843 = vmatprep.subr.mxu0 0.0
    %2844 = vmatpush1.msra.mxu0 0.0
    %2845 = vmatprep.subr.mxu0 0.0
    %2846 = vmatpush1.msra.mxu0 0.0
    %2847 = vmatprep.subr.mxu0 0.0
    %2848 = vmatpush1.msra.mxu0 0.0
    %2849 = vmatprep.subr.mxu0 0.0
    %2850 = vmatpush1.msra.mxu0 0.0
    %2851 = vmatprep.subr.mxu0 %v2816
    %2852 = vmatpush1.msra.mxu0 %v2815
    %2853 = vmatprep.subr.mxu0 %v2814
    %2854 = vmatpush1.msra.mxu0 %v2813
    %2855 = vmatprep.subr.mxu0 %v2812
    %2856 = vmatpush1.msra.mxu0 %v2811
    %2857 = vmatprep.subr.mxu0 %v2810
    %2858 = vmatpush1.msra.mxu0 %v2809
    %2859 = vmatprep.subr.mxu0 %v2808
    %2860 = vmatpush1.msra.mxu0 %v2807
    %2861 = vmatprep.subr.mxu0 %v2806
    %2862 = vmatpush1.msra.mxu0 %v2805
    %2863 = vmatprep.subr.mxu0 %v2804
    %2864 = vmatpush1.msra.mxu0 %v2803
    %2865 = vmatprep.subr.mxu0 %v2802
    %2866 = vmatpush1.msra.mxu0 %v2801
    %2867 = vmatprep.subr.mxu0 0.0
    %2868 = vmatpush2.msra.mxu0 0.0
    %2869 = vmatprep.subr.mxu0 0.0
    %2870 = vmatpush2.msra.mxu0 0.0
    %2871 = vmatprep.subr.mxu0 0.0
    %2872 = vmatpush2.msra.mxu0 0.0
    %2873 = vmatprep.subr.mxu0 0.0
    %2874 = vmatpush2.msra.mxu0 0.0
    %2875 = vmatprep.subr.mxu0 0.0
    %2876 = vmatpush2.msra.mxu0 0.0
    %2877 = vmatprep.subr.mxu0 0.0
    %2878 = vmatpush2.msra.mxu0 0.0
    %2879 = vmatprep.subr.mxu0 0.0
    %2880 = vmatpush2.msra.mxu0 0.0
    %2881 = vmatprep.subr.mxu0 0.0
    %2882 = vmatpush2.msra.mxu0 0.0
    %2883 = vmatprep.subr.mxu0 0.0
    %2884 = vmatpush2.msra.mxu0 0.0
    %2885 = vmatprep.subr.mxu0 0.0
    %2886 = vmatpush2.msra.mxu0 0.0
    %2887 = vmatprep.subr.mxu0 0.0
    %2888 = vmatpush2.msra.mxu0 0.0
    %2889 = vmatprep.subr.mxu0 0.0
    %2890 = vmatpush2.msra.mxu0 0.0
    %2891 = vmatprep.subr.mxu0 0.0
    %2892 = vmatpush2.msra.mxu0 0.0
    %2893 = vmatprep.subr.mxu0 0.0
    %2894 = vmatpush2.msra.mxu0 0.0
    %2895 = vmatprep.subr.mxu0 0.0
    %2896 = vmatpush2.msra.mxu0 0.0
    %2897 = vmatprep.subr.mxu0 0.0
    %2898 = vmatpush2.msra.mxu0 0.0
    %2899 = vmatprep.mubr.f32.mxu0 0.0
    %2900 = vmatmul.mubr.f32.gmra.mxu0 %v570
    %v2901 = vpop.f32.mrf.mxu0
    %v2902 = vadd.f32 0.0, %v2901
    %v2903 = vpop.f32.mrf.mxu0
    %v2904 = vadd.f32 0.0, %v2903
    %2905 = vdwg.mxu0
    %v2908 = vcombine.low %v2902, %v2904
    %v2910 = vunpack.c.l.s4 1966171168
    %v2911 = vunpack.c.0.s8 %v2910
    %v2912 = vlaneseq
    %v2913 = vshrl.u32 %v2912, 7
    %v2914 = vsub.s32 %v2911, %v2913
    %v2915 = vrot.slane %v2908, %v2914
    %v2916 = vcombine.high %v2915, %v2915
    %v2918 = vunpack.c.l.s4 1966171168
    %v2919 = vunpack.c.0.s8 %v2918
    %v2920 = vlaneseq
    %v2921 = vshrl.u32 %v2920, 7
    %v2922 = vsub.s32 %v2919, %v2921
    %v2923 = vrot.slane %v2915, %v2922
    %v2925 = vunpack.c.l.s4 1966171168
    %v2926 = vunpack.c.0.s8 %v2925
    %v2927 = vlaneseq
    %v2928 = vshrl.u32 %v2927, 7
    %v2929 = vsub.s32 %v2926, %v2928
    %v2930 = vrot.slane %v2916, %v2929
    %v2933 = vadd.f32 %v2833, %v2923
    %v2934 = vadd.f32 %v2834, %v2930
    %v2935 = vtanh.pop %v2933
    %v2936 = vtanh.pop %v2934
    %v2937 = vxor.u32 %v2933, 2147483648
    %v2938 = vxor.u32 %v2934, 2147483648
    %v2939 = vmul.f32 %v2937, 1.442695
    %v2940 = vpow.pop %v2939
    %v2941 = vmul.f32 %v2938, 1.442695
    %v2942 = vpow.pop %v2941
    %v2943 = vadd.f32 %v2940, 1.0
    %v2944 = vadd.f32 %v2942, 1.0
    %v2945 = vrcp.pop %v2943
    %v2946 = vmul.f32 1.0, %v2945
    %v2947 = vrcp.pop %v2944
    %v2948 = vmul.f32 1.0, %v2947
    %v2951 = vcombine.low %v2935, %v2936
    %v2953 = vunpack.c.l.s4 1966171168
    %v2954 = vunpack.c.0.s8 %v2953
    %v2955 = vlaneseq
    %v2956 = vshrl.u32 %v2955, 7
    %v2957 = vsub.s32 %v2954, %v2956
    %v2958 = vrot.slane %v2951, %v2957
    %v2959 = vcombine.high %v2958, %v2958
    %v2961 = vunpack.c.l.s4 1966171168
    %v2962 = vunpack.c.0.s8 %v2961
    %v2963 = vlaneseq
    %v2964 = vshrl.u32 %v2963, 7
    %v2965 = vsub.s32 %v2962, %v2964
    %v2966 = vrot.slane %v2958, %v2965
    %v2968 = vunpack.c.l.s4 1966171168
    %v2969 = vunpack.c.0.s8 %v2968
    %v2970 = vlaneseq
    %v2971 = vshrl.u32 %v2970, 7
    %v2972 = vsub.s32 %v2969, %v2971
    %v2973 = vrot.slane %v2959, %v2972
    %v2978 = vcombine.low %v2946, %v2948
    %v2980 = vunpack.c.l.s4 1966171168
    %v2981 = vunpack.c.0.s8 %v2980
    %v2982 = vlaneseq
    %v2983 = vshrl.u32 %v2982, 7
    %v2984 = vsub.s32 %v2981, %v2983
    %v2985 = vrot.slane %v2978, %v2984
    %v2986 = vcombine.high %v2985, %v2985
    %v2988 = vunpack.c.l.s4 1966171168
    %v2989 = vunpack.c.0.s8 %v2988
    %v2990 = vlaneseq
    %v2991 = vshrl.u32 %v2990, 7
    %v2992 = vsub.s32 %v2989, %v2991
    %v2993 = vrot.slane %v2985, %v2992
    %v2995 = vunpack.c.l.s4 1966171168
    %v2996 = vunpack.c.0.s8 %v2995
    %v2997 = vlaneseq
    %v2998 = vshrl.u32 %v2997, 7
    %v2999 = vsub.s32 %v2996, %v2998
    %v3000 = vrot.slane %v2986, %v2999
    %v3003 = vsel %vm141, %v2966, %v2993
    %v3004 = vsel %vm142, %v2973, %v3000
    %v3005 = vmul.f32 %v3003, 0.0
    %v3006 = vmul.f32 %v3003, %v3004
    %3008 = vrot.lane.b32.xlu0 %v3006, 64
    %v3009 = vpop.permute.xlu0 %3008
    %v3011 = vadd.f32 %v3005, %v3009
    %v3012 = vtanh.pop %v3011
    %v3013 = vmul.f32 %v3004, %v3012
    %v3016 = vunpack.c.l.s4 1966171168
    %v3017 = vunpack.c.0.s8 %v3016
    %v3018 = vlaneseq
    %v3019 = vshrl.u32 %v3018, 7
    %v3020 = vsub.s32 %v3017, %v3019
    %v3021 = vrot.slane %v3013, %v3020
    %v3022 = vcombine.high %v3021, %v3021
    %v3024 = vunpack.c.l.s4 1966171168
    %v3025 = vunpack.c.0.s8 %v3024
    %v3026 = vlaneseq
    %v3027 = vshrl.u32 %v3026, 7
    %v3028 = vsub.s32 %v3025, %v3027
    %v3029 = vrot.slane %v3021, %v3028
    %v3031 = vunpack.c.l.s4 1966171168
    %v3032 = vunpack.c.0.s8 %v3031
    %v3033 = vlaneseq
    %v3034 = vshrl.u32 %v3033, 7
    %v3035 = vsub.s32 %v3032, %v3034
    %v3036 = vrot.slane %v3022, %v3035
    %v3037 = vlaneseq
    %v3038 = vshrl.u32 %v3037, 7
    %v3039 = vsub.s32 0, %v3038
    %v3040 = vrot.slane %v3029, %v3039
    %v3041 = vlaneseq
    %v3042 = vshrl.u32 %v3041, 7
    %v3043 = vsub.s32 0, %v3042
    %v3044 = vrot.slane %v3036, %v3043
    %3045 = vrot.lane.b32.xlu0 %v3040, 64
    %v3046 = vpop.permute.xlu0 %3045
    %3047 = vrot.lane.b32.xlu0 %v3044, 64
    %v3048 = vpop.permute.xlu0 %3047
    %3051 = vst.msk [vmem:[#allocation3] sm:$0x1] %vm788, %v3046
    %3052 = vst.msk [vmem:[#allocation3 + $0x4] sm:$0x1] %vm788, %v3048
    %v3053 = vld [vmem:[%s791] ss:$4 sm:$0x3]
    %v3054 = vld [vmem:[%s793] ss:$4 sm:$0x3]
    %3055 = vrot.lane.b32.xlu0 %v3013, 64
    %v3056 = vpop.permute.xlu0 %3055
    %v3057 = vsel %vm568, %v3056, 0
    %3059 = vmatprep.subr.mxu0 0.0
    %3060 = vmatpush1.msra.mxu0 0.0
    %3061 = vmatprep.subr.mxu0 0.0
    %3062 = vmatpush1.msra.mxu0 0.0
    %3063 = vmatprep.subr.mxu0 0.0
    %3064 = vmatpush1.msra.mxu0 0.0
    %3065 = vmatprep.subr.mxu0 0.0
    %3066 = vmatpush1.msra.mxu0 0.0
    %3067 = vmatprep.subr.mxu0 0.0
    %3068 = vmatpush1.msra.mxu0 0.0
    %3069 = vmatprep.subr.mxu0 0.0
    %3070 = vmatpush1.msra.mxu0 0.0
    %3071 = vmatprep.subr.mxu0 0.0
    %3072 = vmatpush1.msra.mxu0 0.0
    %3073 = vmatprep.subr.mxu0 0.0
    %3074 = vmatpush1.msra.mxu0 0.0
    %3075 = vmatprep.subr.mxu0 %v2816
    %3076 = vmatpush1.msra.mxu0 %v2815
    %3077 = vmatprep.subr.mxu0 %v2814
    %3078 = vmatpush1.msra.mxu0 %v2813
    %3079 = vmatprep.subr.mxu0 %v2812
    %3080 = vmatpush1.msra.mxu0 %v2811
    %3081 = vmatprep.subr.mxu0 %v2810
    %3082 = vmatpush1.msra.mxu0 %v2809
    %3083 = vmatprep.subr.mxu0 %v2808
    %3084 = vmatpush1.msra.mxu0 %v2807
    %3085 = vmatprep.subr.mxu0 %v2806
    %3086 = vmatpush1.msra.mxu0 %v2805
    %3087 = vmatprep.subr.mxu0 %v2804
    %3088 = vmatpush1.msra.mxu0 %v2803
    %3089 = vmatprep.subr.mxu0 %v2802
    %3090 = vmatpush1.msra.mxu0 %v2801
    %3091 = vmatprep.subr.mxu0 0.0
    %3092 = vmatpush2.msra.mxu0 0.0
    %3093 = vmatprep.subr.mxu0 0.0
    %3094 = vmatpush2.msra.mxu0 0.0
    %3095 = vmatprep.subr.mxu0 0.0
    %3096 = vmatpush2.msra.mxu0 0.0
    %3097 = vmatprep.subr.mxu0 0.0
    %3098 = vmatpush2.msra.mxu0 0.0
    %3099 = vmatprep.subr.mxu0 0.0
    %3100 = vmatpush2.msra.mxu0 0.0
    %3101 = vmatprep.subr.mxu0 0.0
    %3102 = vmatpush2.msra.mxu0 0.0
    %3103 = vmatprep.subr.mxu0 0.0
    %3104 = vmatpush2.msra.mxu0 0.0
    %3105 = vmatprep.subr.mxu0 0.0
    %3106 = vmatpush2.msra.mxu0 0.0
    %3107 = vmatprep.subr.mxu0 0.0
    %3108 = vmatpush2.msra.mxu0 0.0
    %3109 = vmatprep.subr.mxu0 0.0
    %3110 = vmatpush2.msra.mxu0 0.0
    %3111 = vmatprep.subr.mxu0 0.0
    %3112 = vmatpush2.msra.mxu0 0.0
    %3113 = vmatprep.subr.mxu0 0.0
    %3114 = vmatpush2.msra.mxu0 0.0
    %3115 = vmatprep.subr.mxu0 0.0
    %3116 = vmatpush2.msra.mxu0 0.0
    %3117 = vmatprep.subr.mxu0 0.0
    %3118 = vmatpush2.msra.mxu0 0.0
    %3119 = vmatprep.subr.mxu0 0.0
    %3120 = vmatpush2.msra.mxu0 0.0
    %3121 = vmatprep.subr.mxu0 0.0
    %3122 = vmatpush2.msra.mxu0 0.0
    %3123 = vmatprep.mubr.f32.mxu0 0.0
    %3124 = vmatmul.mubr.f32.gmra.mxu0 %v3057
    %v3125 = vpop.f32.mrf.mxu0
    %v3126 = vadd.f32 0.0, %v3125
    %v3127 = vpop.f32.mrf.mxu0
    %v3128 = vadd.f32 0.0, %v3127
    %3129 = vdwg.mxu0
    %v3132 = vcombine.low %v3126, %v3128
    %v3134 = vunpack.c.l.s4 1966171168
    %v3135 = vunpack.c.0.s8 %v3134
    %v3136 = vlaneseq
    %v3137 = vshrl.u32 %v3136, 7
    %v3138 = vsub.s32 %v3135, %v3137
    %v3139 = vrot.slane %v3132, %v3138
    %v3140 = vcombine.high %v3139, %v3139
    %v3142 = vunpack.c.l.s4 1966171168
    %v3143 = vunpack.c.0.s8 %v3142
    %v3144 = vlaneseq
    %v3145 = vshrl.u32 %v3144, 7
    %v3146 = vsub.s32 %v3143, %v3145
    %v3147 = vrot.slane %v3139, %v3146
    %v3149 = vunpack.c.l.s4 1966171168
    %v3150 = vunpack.c.0.s8 %v3149
    %v3151 = vlaneseq
    %v3152 = vshrl.u32 %v3151, 7
    %v3153 = vsub.s32 %v3150, %v3152
    %v3154 = vrot.slane %v3140, %v3153
    %v3157 = vadd.f32 %v3053, %v3147
    %v3158 = vadd.f32 %v3054, %v3154
    %v3159 = vtanh.pop %v3157
    %v3160 = vtanh.pop %v3158
    %v3161 = vxor.u32 %v3157, 2147483648
    %v3162 = vxor.u32 %v3158, 2147483648
    %v3163 = vmul.f32 %v3161, 1.442695
    %v3164 = vpow.pop %v3163
    %v3165 = vmul.f32 %v3162, 1.442695
    %v3166 = vpow.pop %v3165
    %v3167 = vadd.f32 %v3164, 1.0
    %v3168 = vadd.f32 %v3166, 1.0
    %v3169 = vrcp.pop %v3167
    %v3170 = vmul.f32 1.0, %v3169
    %v3171 = vrcp.pop %v3168
    %v3172 = vmul.f32 1.0, %v3171
    %v3175 = vcombine.low %v3159, %v3160
    %v3177 = vunpack.c.l.s4 1966171168
    %v3178 = vunpack.c.0.s8 %v3177
    %v3179 = vlaneseq
    %v3180 = vshrl.u32 %v3179, 7
    %v3181 = vsub.s32 %v3178, %v3180
    %v3182 = vrot.slane %v3175, %v3181
    %v3183 = vcombine.high %v3182, %v3182
    %v3185 = vunpack.c.l.s4 1966171168
    %v3186 = vunpack.c.0.s8 %v3185
    %v3187 = vlaneseq
    %v3188 = vshrl.u32 %v3187, 7
    %v3189 = vsub.s32 %v3186, %v3188
    %v3190 = vrot.slane %v3182, %v3189
    %v3192 = vunpack.c.l.s4 1966171168
    %v3193 = vunpack.c.0.s8 %v3192
    %v3194 = vlaneseq
    %v3195 = vshrl.u32 %v3194, 7
    %v3196 = vsub.s32 %v3193, %v3195
    %v3197 = vrot.slane %v3183, %v3196
    %v3202 = vcombine.low %v3170, %v3172
    %v3204 = vunpack.c.l.s4 1966171168
    %v3205 = vunpack.c.0.s8 %v3204
    %v3206 = vlaneseq
    %v3207 = vshrl.u32 %v3206, 7
    %v3208 = vsub.s32 %v3205, %v3207
    %v3209 = vrot.slane %v3202, %v3208
    %v3210 = vcombine.high %v3209, %v3209
    %v3212 = vunpack.c.l.s4 1966171168
    %v3213 = vunpack.c.0.s8 %v3212
    %v3214 = vlaneseq
    %v3215 = vshrl.u32 %v3214, 7
    %v3216 = vsub.s32 %v3213, %v3215
    %v3217 = vrot.slane %v3209, %v3216
    %v3219 = vunpack.c.l.s4 1966171168
    %v3220 = vunpack.c.0.s8 %v3219
    %v3221 = vlaneseq
    %v3222 = vshrl.u32 %v3221, 7
    %v3223 = vsub.s32 %v3220, %v3222
    %v3224 = vrot.slane %v3210, %v3223
    %v3227 = vsel %vm141, %v3190, %v3217
    %v3228 = vsel %vm142, %v3197, %v3224
    %v3229 = vmul.f32 %v3227, %v3011
    %v3230 = vmul.f32 %v3227, %v3228
    %3232 = vrot.lane.b32.xlu0 %v3230, 64
    %v3233 = vpop.permute.xlu0 %3232
    %v3235 = vadd.f32 %v3229, %v3233
    %v3236 = vtanh.pop %v3235
    %v3237 = vmul.f32 %v3228, %v3236
    %v3240 = vunpack.c.l.s4 1966171168
    %v3241 = vunpack.c.0.s8 %v3240
    %v3242 = vlaneseq
    %v3243 = vshrl.u32 %v3242, 7
    %v3244 = vsub.s32 %v3241, %v3243
    %v3245 = vrot.slane %v3237, %v3244
    %v3246 = vcombine.high %v3245, %v3245
    %v3248 = vunpack.c.l.s4 1966171168
    %v3249 = vunpack.c.0.s8 %v3248
    %v3250 = vlaneseq
    %v3251 = vshrl.u32 %v3250, 7
    %v3252 = vsub.s32 %v3249, %v3251
    %v3253 = vrot.slane %v3245, %v3252
    %v3255 = vunpack.c.l.s4 1966171168
    %v3256 = vunpack.c.0.s8 %v3255
    %v3257 = vlaneseq
    %v3258 = vshrl.u32 %v3257, 7
    %v3259 = vsub.s32 %v3256, %v3258
    %v3260 = vrot.slane %v3246, %v3259
    %v3261 = vlaneseq
    %v3262 = vshrl.u32 %v3261, 7
    %v3263 = vsub.s32 0, %v3262
    %v3264 = vrot.slane %v3253, %v3263
    %v3265 = vlaneseq
    %v3266 = vshrl.u32 %v3265, 7
    %v3267 = vsub.s32 0, %v3266
    %v3268 = vrot.slane %v3260, %v3267
    %3269 = vrot.lane.b32.xlu0 %v3264, 64
    %v3270 = vpop.permute.xlu0 %3269
    %3271 = vrot.lane.b32.xlu0 %v3268, 64
    %v3272 = vpop.permute.xlu0 %3271
    %3275 = vst.msk [vmem:[#allocation3 + $0x1] sm:$0x1] %vm788, %v3270
    %3276 = vst.msk [vmem:[#allocation3 + $0x5] sm:$0x1] %vm788, %v3272
    %v3277 = vld [vmem:[%s1017] ss:$4 sm:$0x3]
    %v3278 = vld [vmem:[%s1019] ss:$4 sm:$0x3]
    %3279 = vrot.lane.b32.xlu0 %v3237, 64
    %v3280 = vpop.permute.xlu0 %3279
    %v3281 = vsel %vm568, %v3280, 0
    %3283 = vmatprep.subr.mxu0 0.0
    %3284 = vmatpush1.msra.mxu0 0.0
    %3285 = vmatprep.subr.mxu0 0.0
    %3286 = vmatpush1.msra.mxu0 0.0
    %3287 = vmatprep.subr.mxu0 0.0
    %3288 = vmatpush1.msra.mxu0 0.0
    %3289 = vmatprep.subr.mxu0 0.0
    %3290 = vmatpush1.msra.mxu0 0.0
    %3291 = vmatprep.subr.mxu0 0.0
    %3292 = vmatpush1.msra.mxu0 0.0
    %3293 = vmatprep.subr.mxu0 0.0
    %3294 = vmatpush1.msra.mxu0 0.0
    %3295 = vmatprep.subr.mxu0 0.0
    %3296 = vmatpush1.msra.mxu0 0.0
    %3297 = vmatprep.subr.mxu0 0.0
    %3298 = vmatpush1.msra.mxu0 0.0
    %3299 = vmatprep.subr.mxu0 %v2816
    %3300 = vmatpush1.msra.mxu0 %v2815
    %3301 = vmatprep.subr.mxu0 %v2814
    %3302 = vmatpush1.msra.mxu0 %v2813
    %3303 = vmatprep.subr.mxu0 %v2812
    %3304 = vmatpush1.msra.mxu0 %v2811
    %3305 = vmatprep.subr.mxu0 %v2810
    %3306 = vmatpush1.msra.mxu0 %v2809
    %3307 = vmatprep.subr.mxu0 %v2808
    %3308 = vmatpush1.msra.mxu0 %v2807
    %3309 = vmatprep.subr.mxu0 %v2806
    %3310 = vmatpush1.msra.mxu0 %v2805
    %3311 = vmatprep.subr.mxu0 %v2804
    %3312 = vmatpush1.msra.mxu0 %v2803
    %3313 = vmatprep.subr.mxu0 %v2802
    %3314 = vmatpush1.msra.mxu0 %v2801
    %3315 = vmatprep.subr.mxu0 0.0
    %3316 = vmatpush2.msra.mxu0 0.0
    %3317 = vmatprep.subr.mxu0 0.0
    %3318 = vmatpush2.msra.mxu0 0.0
    %3319 = vmatprep.subr.mxu0 0.0
    %3320 = vmatpush2.msra.mxu0 0.0
    %3321 = vmatprep.subr.mxu0 0.0
    %3322 = vmatpush2.msra.mxu0 0.0
    %3323 = vmatprep.subr.mxu0 0.0
    %3324 = vmatpush2.msra.mxu0 0.0
    %3325 = vmatprep.subr.mxu0 0.0
    %3326 = vmatpush2.msra.mxu0 0.0
    %3327 = vmatprep.subr.mxu0 0.0
    %3328 = vmatpush2.msra.mxu0 0.0
    %3329 = vmatprep.subr.mxu0 0.0
    %3330 = vmatpush2.msra.mxu0 0.0
    %3331 = vmatprep.subr.mxu0 0.0
    %3332 = vmatpush2.msra.mxu0 0.0
    %3333 = vmatprep.subr.mxu0 0.0
    %3334 = vmatpush2.msra.mxu0 0.0
    %3335 = vmatprep.subr.mxu0 0.0
    %3336 = vmatpush2.msra.mxu0 0.0
    %3337 = vmatprep.subr.mxu0 0.0
    %3338 = vmatpush2.msra.mxu0 0.0
    %3339 = vmatprep.subr.mxu0 0.0
    %3340 = vmatpush2.msra.mxu0 0.0
    %3341 = vmatprep.subr.mxu0 0.0
    %3342 = vmatpush2.msra.mxu0 0.0
    %3343 = vmatprep.subr.mxu0 0.0
    %3344 = vmatpush2.msra.mxu0 0.0
    %3345 = vmatprep.subr.mxu0 0.0
    %3346 = vmatpush2.msra.mxu0 0.0
    %3347 = vmatprep.mubr.f32.mxu0 0.0
    %3348 = vmatmul.mubr.f32.gmra.mxu0 %v3281
    %v3349 = vpop.f32.mrf.mxu0
    %v3350 = vadd.f32 0.0, %v3349
    %v3351 = vpop.f32.mrf.mxu0
    %v3352 = vadd.f32 0.0, %v3351
    %3353 = vdwg.mxu0
    %v3356 = vcombine.low %v3350, %v3352
    %v3358 = vunpack.c.l.s4 1966171168
    %v3359 = vunpack.c.0.s8 %v3358
    %v3360 = vlaneseq
    %v3361 = vshrl.u32 %v3360, 7
    %v3362 = vsub.s32 %v3359, %v3361
    %v3363 = vrot.slane %v3356, %v3362
    %v3364 = vcombine.high %v3363, %v3363
    %v3366 = vunpack.c.l.s4 1966171168
    %v3367 = vunpack.c.0.s8 %v3366
    %v3368 = vlaneseq
    %v3369 = vshrl.u32 %v3368, 7
    %v3370 = vsub.s32 %v3367, %v3369
    %v3371 = vrot.slane %v3363, %v3370
    %v3373 = vunpack.c.l.s4 1966171168
    %v3374 = vunpack.c.0.s8 %v3373
    %v3375 = vlaneseq
    %v3376 = vshrl.u32 %v3375, 7
    %v3377 = vsub.s32 %v3374, %v3376
    %v3378 = vrot.slane %v3364, %v3377
    %v3381 = vadd.f32 %v3277, %v3371
    %v3382 = vadd.f32 %v3278, %v3378
    %v3383 = vtanh.pop %v3381
    %v3384 = vtanh.pop %v3382
    %v3385 = vxor.u32 %v3381, 2147483648
    %v3386 = vxor.u32 %v3382, 2147483648
    %v3387 = vmul.f32 %v3385, 1.442695
    %v3388 = vpow.pop %v3387
    %v3389 = vmul.f32 %v3386, 1.442695
    %v3390 = vpow.pop %v3389
    %v3391 = vadd.f32 %v3388, 1.0
    %v3392 = vadd.f32 %v3390, 1.0
    %v3393 = vrcp.pop %v3391
    %v3394 = vmul.f32 1.0, %v3393
    %v3395 = vrcp.pop %v3392
    %v3396 = vmul.f32 1.0, %v3395
    %v3399 = vcombine.low %v3383, %v3384
    %v3401 = vunpack.c.l.s4 1966171168
    %v3402 = vunpack.c.0.s8 %v3401
    %v3403 = vlaneseq
    %v3404 = vshrl.u32 %v3403, 7
    %v3405 = vsub.s32 %v3402, %v3404
    %v3406 = vrot.slane %v3399, %v3405
    %v3407 = vcombine.high %v3406, %v3406
    %v3409 = vunpack.c.l.s4 1966171168
    %v3410 = vunpack.c.0.s8 %v3409
    %v3411 = vlaneseq
    %v3412 = vshrl.u32 %v3411, 7
    %v3413 = vsub.s32 %v3410, %v3412
    %v3414 = vrot.slane %v3406, %v3413
    %v3416 = vunpack.c.l.s4 1966171168
    %v3417 = vunpack.c.0.s8 %v3416
    %v3418 = vlaneseq
    %v3419 = vshrl.u32 %v3418, 7
    %v3420 = vsub.s32 %v3417, %v3419
    %v3421 = vrot.slane %v3407, %v3420
    %v3426 = vcombine.low %v3394, %v3396
    %v3428 = vunpack.c.l.s4 1966171168
    %v3429 = vunpack.c.0.s8 %v3428
    %v3430 = vlaneseq
    %v3431 = vshrl.u32 %v3430, 7
    %v3432 = vsub.s32 %v3429, %v3431
    %v3433 = vrot.slane %v3426, %v3432
    %v3434 = vcombine.high %v3433, %v3433
    %v3436 = vunpack.c.l.s4 1966171168
    %v3437 = vunpack.c.0.s8 %v3436
    %v3438 = vlaneseq
    %v3439 = vshrl.u32 %v3438, 7
    %v3440 = vsub.s32 %v3437, %v3439
    %v3441 = vrot.slane %v3433, %v3440
    %v3443 = vunpack.c.l.s4 1966171168
    %v3444 = vunpack.c.0.s8 %v3443
    %v3445 = vlaneseq
    %v3446 = vshrl.u32 %v3445, 7
    %v3447 = vsub.s32 %v3444, %v3446
    %v3448 = vrot.slane %v3434, %v3447
    %v3451 = vsel %vm141, %v3414, %v3441
    %v3452 = vsel %vm142, %v3421, %v3448
    %v3453 = vmul.f32 %v3451, %v3235
    %v3454 = vmul.f32 %v3451, %v3452
    %3456 = vrot.lane.b32.xlu0 %v3454, 64
    %v3457 = vpop.permute.xlu0 %3456
    %v3459 = vadd.f32 %v3453, %v3457
    %v3460 = vtanh.pop %v3459
    %v3461 = vmul.f32 %v3452, %v3460
    %v3464 = vunpack.c.l.s4 1966171168
    %v3465 = vunpack.c.0.s8 %v3464
    %v3466 = vlaneseq
    %v3467 = vshrl.u32 %v3466, 7
    %v3468 = vsub.s32 %v3465, %v3467
    %v3469 = vrot.slane %v3461, %v3468
    %v3470 = vcombine.high %v3469, %v3469
    %v3472 = vunpack.c.l.s4 1966171168
    %v3473 = vunpack.c.0.s8 %v3472
    %v3474 = vlaneseq
    %v3475 = vshrl.u32 %v3474, 7
    %v3476 = vsub.s32 %v3473, %v3475
    %v3477 = vrot.slane %v3469, %v3476
    %v3479 = vunpack.c.l.s4 1966171168
    %v3480 = vunpack.c.0.s8 %v3479
    %v3481 = vlaneseq
    %v3482 = vshrl.u32 %v3481, 7
    %v3483 = vsub.s32 %v3480, %v3482
    %v3484 = vrot.slane %v3470, %v3483
    %v3485 = vlaneseq
    %v3486 = vshrl.u32 %v3485, 7
    %v3487 = vsub.s32 0, %v3486
    %v3488 = vrot.slane %v3477, %v3487
    %v3489 = vlaneseq
    %v3490 = vshrl.u32 %v3489, 7
    %v3491 = vsub.s32 0, %v3490
    %v3492 = vrot.slane %v3484, %v3491
    %3493 = vrot.lane.b32.xlu0 %v3488, 64
    %v3494 = vpop.permute.xlu0 %3493
    %3495 = vrot.lane.b32.xlu0 %v3492, 64
    %v3496 = vpop.permute.xlu0 %3495
    %3499 = vst.msk [vmem:[#allocation3 + $0x2] sm:$0x1] %vm788, %v3494
    %3500 = vst.msk [vmem:[#allocation3 + $0x6] sm:$0x1] %vm788, %v3496
    %v3501 = vld [vmem:[%s1243] ss:$4 sm:$0x3]
    %v3502 = vld [vmem:[%s1245] ss:$4 sm:$0x3]
    %3503 = vrot.lane.b32.xlu0 %v3461, 64
    %v3504 = vpop.permute.xlu0 %3503
    %v3505 = vsel %vm568, %v3504, 0
    %3507 = vmatprep.subr.mxu0 0.0
    %3508 = vmatpush1.msra.mxu0 0.0
    %3509 = vmatprep.subr.mxu0 0.0
    %3510 = vmatpush1.msra.mxu0 0.0
    %3511 = vmatprep.subr.mxu0 0.0
    %3512 = vmatpush1.msra.mxu0 0.0
    %3513 = vmatprep.subr.mxu0 0.0
    %3514 = vmatpush1.msra.mxu0 0.0
    %3515 = vmatprep.subr.mxu0 0.0
    %3516 = vmatpush1.msra.mxu0 0.0
    %3517 = vmatprep.subr.mxu0 0.0
    %3518 = vmatpush1.msra.mxu0 0.0
    %3519 = vmatprep.subr.mxu0 0.0
    %3520 = vmatpush1.msra.mxu0 0.0
    %3521 = vmatprep.subr.mxu0 0.0
    %3522 = vmatpush1.msra.mxu0 0.0
    %3523 = vmatprep.subr.mxu0 %v2816
    %3524 = vmatpush1.msra.mxu0 %v2815
    %3525 = vmatprep.subr.mxu0 %v2814
    %3526 = vmatpush1.msra.mxu0 %v2813
    %3527 = vmatprep.subr.mxu0 %v2812
    %3528 = vmatpush1.msra.mxu0 %v2811
    %3529 = vmatprep.subr.mxu0 %v2810
    %3530 = vmatpush1.msra.mxu0 %v2809
    %3531 = vmatprep.subr.mxu0 %v2808
    %3532 = vmatpush1.msra.mxu0 %v2807
    %3533 = vmatprep.subr.mxu0 %v2806
    %3534 = vmatpush1.msra.mxu0 %v2805
    %3535 = vmatprep.subr.mxu0 %v2804
    %3536 = vmatpush1.msra.mxu0 %v2803
    %3537 = vmatprep.subr.mxu0 %v2802
    %3538 = vmatpush1.msra.mxu0 %v2801
    %3539 = vmatprep.subr.mxu0 0.0
    %3540 = vmatpush2.msra.mxu0 0.0
    %3541 = vmatprep.subr.mxu0 0.0
    %3542 = vmatpush2.msra.mxu0 0.0
    %3543 = vmatprep.subr.mxu0 0.0
    %3544 = vmatpush2.msra.mxu0 0.0
    %3545 = vmatprep.subr.mxu0 0.0
    %3546 = vmatpush2.msra.mxu0 0.0
    %3547 = vmatprep.subr.mxu0 0.0
    %3548 = vmatpush2.msra.mxu0 0.0
    %3549 = vmatprep.subr.mxu0 0.0
    %3550 = vmatpush2.msra.mxu0 0.0
    %3551 = vmatprep.subr.mxu0 0.0
    %3552 = vmatpush2.msra.mxu0 0.0
    %3553 = vmatprep.subr.mxu0 0.0
    %3554 = vmatpush2.msra.mxu0 0.0
    %3555 = vmatprep.subr.mxu0 0.0
    %3556 = vmatpush2.msra.mxu0 0.0
    %3557 = vmatprep.subr.mxu0 0.0
    %3558 = vmatpush2.msra.mxu0 0.0
    %3559 = vmatprep.subr.mxu0 0.0
    %3560 = vmatpush2.msra.mxu0 0.0
    %3561 = vmatprep.subr.mxu0 0.0
    %3562 = vmatpush2.msra.mxu0 0.0
    %3563 = vmatprep.subr.mxu0 0.0
    %3564 = vmatpush2.msra.mxu0 0.0
    %3565 = vmatprep.subr.mxu0 0.0
    %3566 = vmatpush2.msra.mxu0 0.0
    %3567 = vmatprep.subr.mxu0 0.0
    %3568 = vmatpush2.msra.mxu0 0.0
    %3569 = vmatprep.subr.mxu0 0.0
    %3570 = vmatpush2.msra.mxu0 0.0
    %3571 = vmatprep.mubr.f32.mxu0 0.0
    %3572 = vmatmul.mubr.f32.gmra.mxu0 %v3505
    %v3573 = vpop.f32.mrf.mxu0
    %v3574 = vadd.f32 0.0, %v3573
    %v3575 = vpop.f32.mrf.mxu0
    %v3576 = vadd.f32 0.0, %v3575
    %3577 = vdwg.mxu0
    %v3580 = vcombine.low %v3574, %v3576
    %v3582 = vunpack.c.l.s4 1966171168
    %v3583 = vunpack.c.0.s8 %v3582
    %v3584 = vlaneseq
    %v3585 = vshrl.u32 %v3584, 7
    %v3586 = vsub.s32 %v3583, %v3585
    %v3587 = vrot.slane %v3580, %v3586
    %v3588 = vcombine.high %v3587, %v3587
    %v3590 = vunpack.c.l.s4 1966171168
    %v3591 = vunpack.c.0.s8 %v3590
    %v3592 = vlaneseq
    %v3593 = vshrl.u32 %v3592, 7
    %v3594 = vsub.s32 %v3591, %v3593
    %v3595 = vrot.slane %v3587, %v3594
    %v3597 = vunpack.c.l.s4 1966171168
    %v3598 = vunpack.c.0.s8 %v3597
    %v3599 = vlaneseq
    %v3600 = vshrl.u32 %v3599, 7
    %v3601 = vsub.s32 %v3598, %v3600
    %v3602 = vrot.slane %v3588, %v3601
    %v3605 = vadd.f32 %v3501, %v3595
    %v3606 = vadd.f32 %v3502, %v3602
    %v3607 = vtanh.pop %v3605
    %v3608 = vtanh.pop %v3606
    %v3609 = vxor.u32 %v3605, 2147483648
    %v3610 = vxor.u32 %v3606, 2147483648
    %v3611 = vmul.f32 %v3609, 1.442695
    %v3612 = vpow.pop %v3611
    %v3613 = vmul.f32 %v3610, 1.442695
    %v3614 = vpow.pop %v3613
    %v3615 = vadd.f32 %v3612, 1.0
    %v3616 = vadd.f32 %v3614, 1.0
    %v3617 = vrcp.pop %v3615
    %v3618 = vmul.f32 1.0, %v3617
    %v3619 = vrcp.pop %v3616
    %v3620 = vmul.f32 1.0, %v3619
    %v3623 = vcombine.low %v3607, %v3608
    %v3625 = vunpack.c.l.s4 1966171168
    %v3626 = vunpack.c.0.s8 %v3625
    %v3627 = vlaneseq
    %v3628 = vshrl.u32 %v3627, 7
    %v3629 = vsub.s32 %v3626, %v3628
    %v3630 = vrot.slane %v3623, %v3629
    %v3631 = vcombine.high %v3630, %v3630
    %v3633 = vunpack.c.l.s4 1966171168
    %v3634 = vunpack.c.0.s8 %v3633
    %v3635 = vlaneseq
    %v3636 = vshrl.u32 %v3635, 7
    %v3637 = vsub.s32 %v3634, %v3636
    %v3638 = vrot.slane %v3630, %v3637
    %v3640 = vunpack.c.l.s4 1966171168
    %v3641 = vunpack.c.0.s8 %v3640
    %v3642 = vlaneseq
    %v3643 = vshrl.u32 %v3642, 7
    %v3644 = vsub.s32 %v3641, %v3643
    %v3645 = vrot.slane %v3631, %v3644
    %v3650 = vcombine.low %v3618, %v3620
    %v3652 = vunpack.c.l.s4 1966171168
    %v3653 = vunpack.c.0.s8 %v3652
    %v3654 = vlaneseq
    %v3655 = vshrl.u32 %v3654, 7
    %v3656 = vsub.s32 %v3653, %v3655
    %v3657 = vrot.slane %v3650, %v3656
    %v3658 = vcombine.high %v3657, %v3657
    %v3660 = vunpack.c.l.s4 1966171168
    %v3661 = vunpack.c.0.s8 %v3660
    %v3662 = vlaneseq
    %v3663 = vshrl.u32 %v3662, 7
    %v3664 = vsub.s32 %v3661, %v3663
    %v3665 = vrot.slane %v3657, %v3664
    %v3667 = vunpack.c.l.s4 1966171168
    %v3668 = vunpack.c.0.s8 %v3667
    %v3669 = vlaneseq
    %v3670 = vshrl.u32 %v3669, 7
    %v3671 = vsub.s32 %v3668, %v3670
    %v3672 = vrot.slane %v3658, %v3671
    %v3675 = vsel %vm141, %v3638, %v3665
    %v3676 = vsel %vm142, %v3645, %v3672
    %v3677 = vmul.f32 %v3675, %v3459
    %v3678 = vmul.f32 %v3675, %v3676
    %3680 = vrot.lane.b32.xlu0 %v3678, 64
    %v3681 = vpop.permute.xlu0 %3680
    %v3683 = vadd.f32 %v3677, %v3681
    %v3684 = vtanh.pop %v3683
    %v3685 = vmul.f32 %v3676, %v3684
    %v3688 = vunpack.c.l.s4 1966171168
    %v3689 = vunpack.c.0.s8 %v3688
    %v3690 = vlaneseq
    %v3691 = vshrl.u32 %v3690, 7
    %v3692 = vsub.s32 %v3689, %v3691
    %v3693 = vrot.slane %v3685, %v3692
    %v3694 = vcombine.high %v3693, %v3693
    %v3696 = vunpack.c.l.s4 1966171168
    %v3697 = vunpack.c.0.s8 %v3696
    %v3698 = vlaneseq
    %v3699 = vshrl.u32 %v3698, 7
    %v3700 = vsub.s32 %v3697, %v3699
    %v3701 = vrot.slane %v3693, %v3700
    %v3703 = vunpack.c.l.s4 1966171168
    %v3704 = vunpack.c.0.s8 %v3703
    %v3705 = vlaneseq
    %v3706 = vshrl.u32 %v3705, 7
    %v3707 = vsub.s32 %v3704, %v3706
    %v3708 = vrot.slane %v3694, %v3707
    %v3709 = vlaneseq
    %v3710 = vshrl.u32 %v3709, 7
    %v3711 = vsub.s32 0, %v3710
    %v3712 = vrot.slane %v3701, %v3711
    %v3713 = vlaneseq
    %v3714 = vshrl.u32 %v3713, 7
    %v3715 = vsub.s32 0, %v3714
    %v3716 = vrot.slane %v3708, %v3715
    %3717 = vrot.lane.b32.xlu0 %v3712, 64
    %v3718 = vpop.permute.xlu0 %3717
    %3719 = vrot.lane.b32.xlu0 %v3716, 64
    %v3720 = vpop.permute.xlu0 %3719
    %3723 = vst.msk [vmem:[#allocation3 + $0x3] sm:$0x1] %vm788, %v3718
    %3724 = vst.msk [vmem:[#allocation3 + $0x7] sm:$0x1] %vm788, %v3720
    %v3725 = vld [vmem:[%s1469] ss:$4 sm:$0x3]
    %v3726 = vld [vmem:[%s1471] ss:$4 sm:$0x3]
    %3727 = vmatprep.subr.mxu0 0.0
    %3728 = vmatpush1.msra.mxu0 0.0
    %3729 = vmatprep.subr.mxu0 0.0
    %3730 = vmatpush1.msra.mxu0 0.0
    %3731 = vmatprep.subr.mxu0 0.0
    %3732 = vmatpush1.msra.mxu0 0.0
    %3733 = vmatprep.subr.mxu0 0.0
    %3734 = vmatpush1.msra.mxu0 0.0
    %3735 = vmatprep.subr.mxu0 0.0
    %3736 = vmatpush1.msra.mxu0 0.0
    %3737 = vmatprep.subr.mxu0 0.0
    %3738 = vmatpush1.msra.mxu0 0.0
    %3739 = vmatprep.subr.mxu0 0.0
    %3740 = vmatpush1.msra.mxu0 0.0
    %3741 = vmatprep.subr.mxu0 0.0
    %3742 = vmatpush1.msra.mxu0 0.0
    %3743 = vmatprep.subr.mxu0 %v2832
    %3744 = vmatpush1.msra.mxu0 %v2831
    %3745 = vmatprep.subr.mxu0 %v2830
    %3746 = vmatpush1.msra.mxu0 %v2829
    %3747 = vmatprep.subr.mxu0 %v2828
    %3748 = vmatpush1.msra.mxu0 %v2827
    %3749 = vmatprep.subr.mxu0 %v2826
    %3750 = vmatpush1.msra.mxu0 %v2825
    %3751 = vmatprep.subr.mxu0 %v2824
    %3752 = vmatpush1.msra.mxu0 %v2823
    %3753 = vmatprep.subr.mxu0 %v2822
    %3754 = vmatpush1.msra.mxu0 %v2821
    %3755 = vmatprep.subr.mxu0 %v2820
    %3756 = vmatpush1.msra.mxu0 %v2819
    %3757 = vmatprep.subr.mxu0 %v2818
    %3758 = vmatpush1.msra.mxu0 %v2817
    %3759 = vmatprep.subr.mxu0 0.0
    %3760 = vmatpush2.msra.mxu0 0.0
    %3761 = vmatprep.subr.mxu0 0.0
    %3762 = vmatpush2.msra.mxu0 0.0
    %3763 = vmatprep.subr.mxu0 0.0
    %3764 = vmatpush2.msra.mxu0 0.0
    %3765 = vmatprep.subr.mxu0 0.0
    %3766 = vmatpush2.msra.mxu0 0.0
    %3767 = vmatprep.subr.mxu0 0.0
    %3768 = vmatpush2.msra.mxu0 0.0
    %3769 = vmatprep.subr.mxu0 0.0
    %3770 = vmatpush2.msra.mxu0 0.0
    %3771 = vmatprep.subr.mxu0 0.0
    %3772 = vmatpush2.msra.mxu0 0.0
    %3773 = vmatprep.subr.mxu0 0.0
    %3774 = vmatpush2.msra.mxu0 0.0
    %3775 = vmatprep.subr.mxu0 0.0
    %3776 = vmatpush2.msra.mxu0 0.0
    %3777 = vmatprep.subr.mxu0 0.0
    %3778 = vmatpush2.msra.mxu0 0.0
    %3779 = vmatprep.subr.mxu0 0.0
    %3780 = vmatpush2.msra.mxu0 0.0
    %3781 = vmatprep.subr.mxu0 0.0
    %3782 = vmatpush2.msra.mxu0 0.0
    %3783 = vmatprep.subr.mxu0 0.0
    %3784 = vmatpush2.msra.mxu0 0.0
    %3785 = vmatprep.subr.mxu0 0.0
    %3786 = vmatpush2.msra.mxu0 0.0
    %3787 = vmatprep.subr.mxu0 0.0
    %3788 = vmatpush2.msra.mxu0 0.0
    %3789 = vmatprep.subr.mxu0 0.0
    %3790 = vmatpush2.msra.mxu0 0.0
    %3791 = vmatprep.mubr.f32.mxu0 0.0
    %3792 = vmatmul.mubr.f32.gmra.mxu0 %v570
    %v3793 = vpop.f32.mrf.mxu0
    %v3794 = vadd.f32 0.0, %v3793
    %v3795 = vpop.f32.mrf.mxu0
    %v3796 = vadd.f32 0.0, %v3795
    %3797 = vdwg.mxu0
    %v3800 = vcombine.low %v3794, %v3796
    %v3802 = vunpack.c.l.s4 1966171168
    %v3803 = vunpack.c.0.s8 %v3802
    %v3804 = vlaneseq
    %v3805 = vshrl.u32 %v3804, 7
    %v3806 = vsub.s32 %v3803, %v3805
    %v3807 = vrot.slane %v3800, %v3806
    %v3808 = vcombine.high %v3807, %v3807
    %v3810 = vunpack.c.l.s4 1966171168
    %v3811 = vunpack.c.0.s8 %v3810
    %v3812 = vlaneseq
    %v3813 = vshrl.u32 %v3812, 7
    %v3814 = vsub.s32 %v3811, %v3813
    %v3815 = vrot.slane %v3807, %v3814
    %v3817 = vunpack.c.l.s4 1966171168
    %v3818 = vunpack.c.0.s8 %v3817
    %v3819 = vlaneseq
    %v3820 = vshrl.u32 %v3819, 7
    %v3821 = vsub.s32 %v3818, %v3820
    %v3822 = vrot.slane %v3808, %v3821
    %v3825 = vadd.f32 %v3725, %v3815
    %v3826 = vadd.f32 %v3726, %v3822
    %v3827 = vtanh.pop %v3825
    %v3828 = vtanh.pop %v3826
    %v3829 = vxor.u32 %v3825, 2147483648
    %v3830 = vxor.u32 %v3826, 2147483648
    %v3831 = vmul.f32 %v3829, 1.442695
    %v3832 = vpow.pop %v3831
    %v3833 = vmul.f32 %v3830, 1.442695
    %v3834 = vpow.pop %v3833
    %v3835 = vadd.f32 %v3832, 1.0
    %v3836 = vadd.f32 %v3834, 1.0
    %v3837 = vrcp.pop %v3835
    %v3838 = vmul.f32 1.0, %v3837
    %v3839 = vrcp.pop %v3836
    %v3840 = vmul.f32 1.0, %v3839
    %v3843 = vcombine.low %v3827, %v3828
    %v3845 = vunpack.c.l.s4 1966171168
    %v3846 = vunpack.c.0.s8 %v3845
    %v3847 = vlaneseq
    %v3848 = vshrl.u32 %v3847, 7
    %v3849 = vsub.s32 %v3846, %v3848
    %v3850 = vrot.slane %v3843, %v3849
    %v3851 = vcombine.high %v3850, %v3850
    %v3853 = vunpack.c.l.s4 1966171168
    %v3854 = vunpack.c.0.s8 %v3853
    %v3855 = vlaneseq
    %v3856 = vshrl.u32 %v3855, 7
    %v3857 = vsub.s32 %v3854, %v3856
    %v3858 = vrot.slane %v3850, %v3857
    %v3860 = vunpack.c.l.s4 1966171168
    %v3861 = vunpack.c.0.s8 %v3860
    %v3862 = vlaneseq
    %v3863 = vshrl.u32 %v3862, 7
    %v3864 = vsub.s32 %v3861, %v3863
    %v3865 = vrot.slane %v3851, %v3864
    %v3870 = vcombine.low %v3838, %v3840
    %v3872 = vunpack.c.l.s4 1966171168
    %v3873 = vunpack.c.0.s8 %v3872
    %v3874 = vlaneseq
    %v3875 = vshrl.u32 %v3874, 7
    %v3876 = vsub.s32 %v3873, %v3875
    %v3877 = vrot.slane %v3870, %v3876
    %v3878 = vcombine.high %v3877, %v3877
    %v3880 = vunpack.c.l.s4 1966171168
    %v3881 = vunpack.c.0.s8 %v3880
    %v3882 = vlaneseq
    %v3883 = vshrl.u32 %v3882, 7
    %v3884 = vsub.s32 %v3881, %v3883
    %v3885 = vrot.slane %v3877, %v3884
    %v3887 = vunpack.c.l.s4 1966171168
    %v3888 = vunpack.c.0.s8 %v3887
    %v3889 = vlaneseq
    %v3890 = vshrl.u32 %v3889, 7
    %v3891 = vsub.s32 %v3888, %v3890
    %v3892 = vrot.slane %v3878, %v3891
    %v3895 = vsel %vm141, %v3858, %v3885
    %v3896 = vsel %vm142, %v3865, %v3892
    %v3897 = vmul.f32 %v3895, 0.0
    %v3898 = vmul.f32 %v3895, %v3896
    %3900 = vrot.lane.b32.xlu0 %v3898, 64
    %v3901 = vpop.permute.xlu0 %3900
    %v3903 = vadd.f32 %v3897, %v3901
    %v3904 = vtanh.pop %v3903
    %v3905 = vmul.f32 %v3896, %v3904
    %v3908 = vunpack.c.l.s4 1966171168
    %v3909 = vunpack.c.0.s8 %v3908
    %v3910 = vlaneseq
    %v3911 = vshrl.u32 %v3910, 7
    %v3912 = vsub.s32 %v3909, %v3911
    %v3913 = vrot.slane %v3905, %v3912
    %v3914 = vcombine.high %v3913, %v3913
    %v3916 = vunpack.c.l.s4 1966171168
    %v3917 = vunpack.c.0.s8 %v3916
    %v3918 = vlaneseq
    %v3919 = vshrl.u32 %v3918, 7
    %v3920 = vsub.s32 %v3917, %v3919
    %v3921 = vrot.slane %v3913, %v3920
    %v3923 = vunpack.c.l.s4 1966171168
    %v3924 = vunpack.c.0.s8 %v3923
    %v3925 = vlaneseq
    %v3926 = vshrl.u32 %v3925, 7
    %v3927 = vsub.s32 %v3924, %v3926
    %v3928 = vrot.slane %v3914, %v3927
    %3931 = vst.msk [vmem:[#allocation3 + $0x3] sm:$0x1] %vm1677, %v3921
    %3932 = vst.msk [vmem:[#allocation3 + $0x7] sm:$0x1] %vm1677, %v3928
    %v3933 = vld [vmem:[%s1680] ss:$4 sm:$0x3]
    %v3934 = vld [vmem:[%s1682] ss:$4 sm:$0x3]
    %3935 = vrot.lane.b32.xlu0 %v3905, 64
    %v3936 = vpop.permute.xlu0 %3935
    %v3937 = vsel %vm568, %v3936, 0
    %3939 = vmatprep.subr.mxu0 0.0
    %3940 = vmatpush1.msra.mxu0 0.0
    %3941 = vmatprep.subr.mxu0 0.0
    %3942 = vmatpush1.msra.mxu0 0.0
    %3943 = vmatprep.subr.mxu0 0.0
    %3944 = vmatpush1.msra.mxu0 0.0
    %3945 = vmatprep.subr.mxu0 0.0
    %3946 = vmatpush1.msra.mxu0 0.0
    %3947 = vmatprep.subr.mxu0 0.0
    %3948 = vmatpush1.msra.mxu0 0.0
    %3949 = vmatprep.subr.mxu0 0.0
    %3950 = vmatpush1.msra.mxu0 0.0
    %3951 = vmatprep.subr.mxu0 0.0
    %3952 = vmatpush1.msra.mxu0 0.0
    %3953 = vmatprep.subr.mxu0 0.0
    %3954 = vmatpush1.msra.mxu0 0.0
    %3955 = vmatprep.subr.mxu0 %v2832
    %3956 = vmatpush1.msra.mxu0 %v2831
    %3957 = vmatprep.subr.mxu0 %v2830
    %3958 = vmatpush1.msra.mxu0 %v2829
    %3959 = vmatprep.subr.mxu0 %v2828
    %3960 = vmatpush1.msra.mxu0 %v2827
    %3961 = vmatprep.subr.mxu0 %v2826
    %3962 = vmatpush1.msra.mxu0 %v2825
    %3963 = vmatprep.subr.mxu0 %v2824
    %3964 = vmatpush1.msra.mxu0 %v2823
    %3965 = vmatprep.subr.mxu0 %v2822
    %3966 = vmatpush1.msra.mxu0 %v2821
    %3967 = vmatprep.subr.mxu0 %v2820
    %3968 = vmatpush1.msra.mxu0 %v2819
    %3969 = vmatprep.subr.mxu0 %v2818
    %3970 = vmatpush1.msra.mxu0 %v2817
    %3971 = vmatprep.subr.mxu0 0.0
    %3972 = vmatpush2.msra.mxu0 0.0
    %3973 = vmatprep.subr.mxu0 0.0
    %3974 = vmatpush2.msra.mxu0 0.0
    %3975 = vmatprep.subr.mxu0 0.0
    %3976 = vmatpush2.msra.mxu0 0.0
    %3977 = vmatprep.subr.mxu0 0.0
    %3978 = vmatpush2.msra.mxu0 0.0
    %3979 = vmatprep.subr.mxu0 0.0
    %3980 = vmatpush2.msra.mxu0 0.0
    %3981 = vmatprep.subr.mxu0 0.0
    %3982 = vmatpush2.msra.mxu0 0.0
    %3983 = vmatprep.subr.mxu0 0.0
    %3984 = vmatpush2.msra.mxu0 0.0
    %3985 = vmatprep.subr.mxu0 0.0
    %3986 = vmatpush2.msra.mxu0 0.0
    %3987 = vmatprep.subr.mxu0 0.0
    %3988 = vmatpush2.msra.mxu0 0.0
    %3989 = vmatprep.subr.mxu0 0.0
    %3990 = vmatpush2.msra.mxu0 0.0
    %3991 = vmatprep.subr.mxu0 0.0
    %3992 = vmatpush2.msra.mxu0 0.0
    %3993 = vmatprep.subr.mxu0 0.0
    %3994 = vmatpush2.msra.mxu0 0.0
    %3995 = vmatprep.subr.mxu0 0.0
    %3996 = vmatpush2.msra.mxu0 0.0
    %3997 = vmatprep.subr.mxu0 0.0
    %3998 = vmatpush2.msra.mxu0 0.0
    %3999 = vmatprep.subr.mxu0 0.0
    %4000 = vmatpush2.msra.mxu0 0.0
    %4001 = vmatprep.subr.mxu0 0.0
    %4002 = vmatpush2.msra.mxu0 0.0
    %4003 = vmatprep.mubr.f32.mxu0 0.0
    %4004 = vmatmul.mubr.f32.gmra.mxu0 %v3937
    %v4005 = vpop.f32.mrf.mxu0
    %v4006 = vadd.f32 0.0, %v4005
    %v4007 = vpop.f32.mrf.mxu0
    %v4008 = vadd.f32 0.0, %v4007
    %4009 = vdwg.mxu0
    %v4012 = vcombine.low %v4006, %v4008
    %v4014 = vunpack.c.l.s4 1966171168
    %v4015 = vunpack.c.0.s8 %v4014
    %v4016 = vlaneseq
    %v4017 = vshrl.u32 %v4016, 7
    %v4018 = vsub.s32 %v4015, %v4017
    %v4019 = vrot.slane %v4012, %v4018
    %v4020 = vcombine.high %v4019, %v4019
    %v4022 = vunpack.c.l.s4 1966171168
    %v4023 = vunpack.c.0.s8 %v4022
    %v4024 = vlaneseq
    %v4025 = vshrl.u32 %v4024, 7
    %v4026 = vsub.s32 %v4023, %v4025
    %v4027 = vrot.slane %v4019, %v4026
    %v4029 = vunpack.c.l.s4 1966171168
    %v4030 = vunpack.c.0.s8 %v4029
    %v4031 = vlaneseq
    %v4032 = vshrl.u32 %v4031, 7
    %v4033 = vsub.s32 %v4030, %v4032
    %v4034 = vrot.slane %v4020, %v4033
    %v4037 = vadd.f32 %v3933, %v4027
    %v4038 = vadd.f32 %v3934, %v4034
    %v4039 = vtanh.pop %v4037
    %v4040 = vtanh.pop %v4038
    %v4041 = vxor.u32 %v4037, 2147483648
    %v4042 = vxor.u32 %v4038, 2147483648
    %v4043 = vmul.f32 %v4041, 1.442695
    %v4044 = vpow.pop %v4043
    %v4045 = vmul.f32 %v4042, 1.442695
    %v4046 = vpow.pop %v4045
    %v4047 = vadd.f32 %v4044, 1.0
    %v4048 = vadd.f32 %v4046, 1.0
    %v4049 = vrcp.pop %v4047
    %v4050 = vmul.f32 1.0, %v4049
    %v4051 = vrcp.pop %v4048
    %v4052 = vmul.f32 1.0, %v4051
    %v4055 = vcombine.low %v4039, %v4040
    %v4057 = vunpack.c.l.s4 1966171168
    %v4058 = vunpack.c.0.s8 %v4057
    %v4059 = vlaneseq
    %v4060 = vshrl.u32 %v4059, 7
    %v4061 = vsub.s32 %v4058, %v4060
    %v4062 = vrot.slane %v4055, %v4061
    %v4063 = vcombine.high %v4062, %v4062
    %v4065 = vunpack.c.l.s4 1966171168
    %v4066 = vunpack.c.0.s8 %v4065
    %v4067 = vlaneseq
    %v4068 = vshrl.u32 %v4067, 7
    %v4069 = vsub.s32 %v4066, %v4068
    %v4070 = vrot.slane %v4062, %v4069
    %v4072 = vunpack.c.l.s4 1966171168
    %v4073 = vunpack.c.0.s8 %v4072
    %v4074 = vlaneseq
    %v4075 = vshrl.u32 %v4074, 7
    %v4076 = vsub.s32 %v4073, %v4075
    %v4077 = vrot.slane %v4063, %v4076
    %v4082 = vcombine.low %v4050, %v4052
    %v4084 = vunpack.c.l.s4 1966171168
    %v4085 = vunpack.c.0.s8 %v4084
    %v4086 = vlaneseq
    %v4087 = vshrl.u32 %v4086, 7
    %v4088 = vsub.s32 %v4085, %v4087
    %v4089 = vrot.slane %v4082, %v4088
    %v4090 = vcombine.high %v4089, %v4089
    %v4092 = vunpack.c.l.s4 1966171168
    %v4093 = vunpack.c.0.s8 %v4092
    %v4094 = vlaneseq
    %v4095 = vshrl.u32 %v4094, 7
    %v4096 = vsub.s32 %v4093, %v4095
    %v4097 = vrot.slane %v4089, %v4096
    %v4099 = vunpack.c.l.s4 1966171168
    %v4100 = vunpack.c.0.s8 %v4099
    %v4101 = vlaneseq
    %v4102 = vshrl.u32 %v4101, 7
    %v4103 = vsub.s32 %v4100, %v4102
    %v4104 = vrot.slane %v4090, %v4103
    %v4107 = vsel %vm141, %v4070, %v4097
    %v4108 = vsel %vm142, %v4077, %v4104
    %v4109 = vmul.f32 %v4107, %v3903
    %v4110 = vmul.f32 %v4107, %v4108
    %4112 = vrot.lane.b32.xlu0 %v4110, 64
    %v4113 = vpop.permute.xlu0 %4112
    %v4115 = vadd.f32 %v4109, %v4113
    %v4116 = vtanh.pop %v4115
    %v4117 = vmul.f32 %v4108, %v4116
    %v4120 = vunpack.c.l.s4 1966171168
    %v4121 = vunpack.c.0.s8 %v4120
    %v4122 = vlaneseq
    %v4123 = vshrl.u32 %v4122, 7
    %v4124 = vsub.s32 %v4121, %v4123
    %v4125 = vrot.slane %v4117, %v4124
    %v4126 = vcombine.high %v4125, %v4125
    %v4128 = vunpack.c.l.s4 1966171168
    %v4129 = vunpack.c.0.s8 %v4128
    %v4130 = vlaneseq
    %v4131 = vshrl.u32 %v4130, 7
    %v4132 = vsub.s32 %v4129, %v4131
    %v4133 = vrot.slane %v4125, %v4132
    %v4135 = vunpack.c.l.s4 1966171168
    %v4136 = vunpack.c.0.s8 %v4135
    %v4137 = vlaneseq
    %v4138 = vshrl.u32 %v4137, 7
    %v4139 = vsub.s32 %v4136, %v4138
    %v4140 = vrot.slane %v4126, %v4139
    %4143 = vst.msk [vmem:[#allocation3 + $0x2] sm:$0x1] %vm1677, %v4133
    %4144 = vst.msk [vmem:[#allocation3 + $0x6] sm:$0x1] %vm1677, %v4140
    %v4145 = vld [vmem:[%s1894] ss:$4 sm:$0x3]
    %v4146 = vld [vmem:[%s1896] ss:$4 sm:$0x3]
    %4147 = vrot.lane.b32.xlu0 %v4117, 64
    %v4148 = vpop.permute.xlu0 %4147
    %v4149 = vsel %vm568, %v4148, 0
    %4151 = vmatprep.subr.mxu0 0.0
    %4152 = vmatpush1.msra.mxu0 0.0
    %4153 = vmatprep.subr.mxu0 0.0
    %4154 = vmatpush1.msra.mxu0 0.0
    %4155 = vmatprep.subr.mxu0 0.0
    %4156 = vmatpush1.msra.mxu0 0.0
    %4157 = vmatprep.subr.mxu0 0.0
    %4158 = vmatpush1.msra.mxu0 0.0
    %4159 = vmatprep.subr.mxu0 0.0
    %4160 = vmatpush1.msra.mxu0 0.0
    %4161 = vmatprep.subr.mxu0 0.0
    %4162 = vmatpush1.msra.mxu0 0.0
    %4163 = vmatprep.subr.mxu0 0.0
    %4164 = vmatpush1.msra.mxu0 0.0
    %4165 = vmatprep.subr.mxu0 0.0
    %4166 = vmatpush1.msra.mxu0 0.0
    %4167 = vmatprep.subr.mxu0 %v2832
    %4168 = vmatpush1.msra.mxu0 %v2831
    %4169 = vmatprep.subr.mxu0 %v2830
    %4170 = vmatpush1.msra.mxu0 %v2829
    %4171 = vmatprep.subr.mxu0 %v2828
    %4172 = vmatpush1.msra.mxu0 %v2827
    %4173 = vmatprep.subr.mxu0 %v2826
    %4174 = vmatpush1.msra.mxu0 %v2825
    %4175 = vmatprep.subr.mxu0 %v2824
    %4176 = vmatpush1.msra.mxu0 %v2823
    %4177 = vmatprep.subr.mxu0 %v2822
    %4178 = vmatpush1.msra.mxu0 %v2821
    %4179 = vmatprep.subr.mxu0 %v2820
    %4180 = vmatpush1.msra.mxu0 %v2819
    %4181 = vmatprep.subr.mxu0 %v2818
    %4182 = vmatpush1.msra.mxu0 %v2817
    %4183 = vmatprep.subr.mxu0 0.0
    %4184 = vmatpush2.msra.mxu0 0.0
    %4185 = vmatprep.subr.mxu0 0.0
    %4186 = vmatpush2.msra.mxu0 0.0
    %4187 = vmatprep.subr.mxu0 0.0
    %4188 = vmatpush2.msra.mxu0 0.0
    %4189 = vmatprep.subr.mxu0 0.0
    %4190 = vmatpush2.msra.mxu0 0.0
    %4191 = vmatprep.subr.mxu0 0.0
    %4192 = vmatpush2.msra.mxu0 0.0
    %4193 = vmatprep.subr.mxu0 0.0
    %4194 = vmatpush2.msra.mxu0 0.0
    %4195 = vmatprep.subr.mxu0 0.0
    %4196 = vmatpush2.msra.mxu0 0.0
    %4197 = vmatprep.subr.mxu0 0.0
    %4198 = vmatpush2.msra.mxu0 0.0
    %4199 = vmatprep.subr.mxu0 0.0
    %4200 = vmatpush2.msra.mxu0 0.0
    %4201 = vmatprep.subr.mxu0 0.0
    %4202 = vmatpush2.msra.mxu0 0.0
    %4203 = vmatprep.subr.mxu0 0.0
    %4204 = vmatpush2.msra.mxu0 0.0
    %4205 = vmatprep.subr.mxu0 0.0
    %4206 = vmatpush2.msra.mxu0 0.0
    %4207 = vmatprep.subr.mxu0 0.0
    %4208 = vmatpush2.msra.mxu0 0.0
    %4209 = vmatprep.subr.mxu0 0.0
    %4210 = vmatpush2.msra.mxu0 0.0
    %4211 = vmatprep.subr.mxu0 0.0
    %4212 = vmatpush2.msra.mxu0 0.0
    %4213 = vmatprep.subr.mxu0 0.0
    %4214 = vmatpush2.msra.mxu0 0.0
    %4215 = vmatprep.mubr.f32.mxu0 0.0
    %4216 = vmatmul.mubr.f32.gmra.mxu0 %v4149
    %v4217 = vpop.f32.mrf.mxu0
    %v4218 = vadd.f32 0.0, %v4217
    %v4219 = vpop.f32.mrf.mxu0
    %v4220 = vadd.f32 0.0, %v4219
    %4221 = vdwg.mxu0
    %v4224 = vcombine.low %v4218, %v4220
    %v4226 = vunpack.c.l.s4 1966171168
    %v4227 = vunpack.c.0.s8 %v4226
    %v4228 = vlaneseq
    %v4229 = vshrl.u32 %v4228, 7
    %v4230 = vsub.s32 %v4227, %v4229
    %v4231 = vrot.slane %v4224, %v4230
    %v4232 = vcombine.high %v4231, %v4231
    %v4234 = vunpack.c.l.s4 1966171168
    %v4235 = vunpack.c.0.s8 %v4234
    %v4236 = vlaneseq
    %v4237 = vshrl.u32 %v4236, 7
    %v4238 = vsub.s32 %v4235, %v4237
    %v4239 = vrot.slane %v4231, %v4238
    %v4241 = vunpack.c.l.s4 1966171168
    %v4242 = vunpack.c.0.s8 %v4241
    %v4243 = vlaneseq
    %v4244 = vshrl.u32 %v4243, 7
    %v4245 = vsub.s32 %v4242, %v4244
    %v4246 = vrot.slane %v4232, %v4245
    %v4249 = vadd.f32 %v4145, %v4239
    %v4250 = vadd.f32 %v4146, %v4246
    %v4251 = vtanh.pop %v4249
    %v4252 = vtanh.pop %v4250
    %v4253 = vxor.u32 %v4249, 2147483648
    %v4254 = vxor.u32 %v4250, 2147483648
    %v4255 = vmul.f32 %v4253, 1.442695
    %v4256 = vpow.pop %v4255
    %v4257 = vmul.f32 %v4254, 1.442695
    %v4258 = vpow.pop %v4257
    %v4259 = vadd.f32 %v4256, 1.0
    %v4260 = vadd.f32 %v4258, 1.0
    %v4261 = vrcp.pop %v4259
    %v4262 = vmul.f32 1.0, %v4261
    %v4263 = vrcp.pop %v4260
    %v4264 = vmul.f32 1.0, %v4263
    %v4267 = vcombine.low %v4251, %v4252
    %v4269 = vunpack.c.l.s4 1966171168
    %v4270 = vunpack.c.0.s8 %v4269
    %v4271 = vlaneseq
    %v4272 = vshrl.u32 %v4271, 7
    %v4273 = vsub.s32 %v4270, %v4272
    %v4274 = vrot.slane %v4267, %v4273
    %v4275 = vcombine.high %v4274, %v4274
    %v4277 = vunpack.c.l.s4 1966171168
    %v4278 = vunpack.c.0.s8 %v4277
    %v4279 = vlaneseq
    %v4280 = vshrl.u32 %v4279, 7
    %v4281 = vsub.s32 %v4278, %v4280
    %v4282 = vrot.slane %v4274, %v4281
    %v4284 = vunpack.c.l.s4 1966171168
    %v4285 = vunpack.c.0.s8 %v4284
    %v4286 = vlaneseq
    %v4287 = vshrl.u32 %v4286, 7
    %v4288 = vsub.s32 %v4285, %v4287
    %v4289 = vrot.slane %v4275, %v4288
    %v4294 = vcombine.low %v4262, %v4264
    %v4296 = vunpack.c.l.s4 1966171168
    %v4297 = vunpack.c.0.s8 %v4296
    %v4298 = vlaneseq
    %v4299 = vshrl.u32 %v4298, 7
    %v4300 = vsub.s32 %v4297, %v4299
    %v4301 = vrot.slane %v4294, %v4300
    %v4302 = vcombine.high %v4301, %v4301
    %v4304 = vunpack.c.l.s4 1966171168
    %v4305 = vunpack.c.0.s8 %v4304
    %v4306 = vlaneseq
    %v4307 = vshrl.u32 %v4306, 7
    %v4308 = vsub.s32 %v4305, %v4307
    %v4309 = vrot.slane %v4301, %v4308
    %v4311 = vunpack.c.l.s4 1966171168
    %v4312 = vunpack.c.0.s8 %v4311
    %v4313 = vlaneseq
    %v4314 = vshrl.u32 %v4313, 7
    %v4315 = vsub.s32 %v4312, %v4314
    %v4316 = vrot.slane %v4302, %v4315
    %v4319 = vsel %vm141, %v4282, %v4309
    %v4320 = vsel %vm142, %v4289, %v4316
    %v4321 = vmul.f32 %v4319, %v4115
    %v4322 = vmul.f32 %v4319, %v4320
    %4324 = vrot.lane.b32.xlu0 %v4322, 64
    %v4325 = vpop.permute.xlu0 %4324
    %v4327 = vadd.f32 %v4321, %v4325
    %v4328 = vtanh.pop %v4327
    %v4329 = vmul.f32 %v4320, %v4328
    %v4332 = vunpack.c.l.s4 1966171168
    %v4333 = vunpack.c.0.s8 %v4332
    %v4334 = vlaneseq
    %v4335 = vshrl.u32 %v4334, 7
    %v4336 = vsub.s32 %v4333, %v4335
    %v4337 = vrot.slane %v4329, %v4336
    %v4338 = vcombine.high %v4337, %v4337
    %v4340 = vunpack.c.l.s4 1966171168
    %v4341 = vunpack.c.0.s8 %v4340
    %v4342 = vlaneseq
    %v4343 = vshrl.u32 %v4342, 7
    %v4344 = vsub.s32 %v4341, %v4343
    %v4345 = vrot.slane %v4337, %v4344
    %v4347 = vunpack.c.l.s4 1966171168
    %v4348 = vunpack.c.0.s8 %v4347
    %v4349 = vlaneseq
    %v4350 = vshrl.u32 %v4349, 7
    %v4351 = vsub.s32 %v4348, %v4350
    %v4352 = vrot.slane %v4338, %v4351
    %4355 = vst.msk [vmem:[#allocation3 + $0x1] sm:$0x1] %vm1677, %v4345
    %4356 = vst.msk [vmem:[#allocation3 + $0x5] sm:$0x1] %vm1677, %v4352
    %v4357 = vld [vmem:[%s2108] ss:$4 sm:$0x3]
    %v4358 = vld [vmem:[%s2110] ss:$4 sm:$0x3]
    %4359 = vrot.lane.b32.xlu0 %v4329, 64
    %v4360 = vpop.permute.xlu0 %4359
    %v4361 = vsel %vm568, %v4360, 0
    %4363 = vmatprep.subr.mxu0 0.0
    %4364 = vmatpush1.msra.mxu0 0.0
    %4365 = vmatprep.subr.mxu0 0.0
    %4366 = vmatpush1.msra.mxu0 0.0
    %4367 = vmatprep.subr.mxu0 0.0
    %4368 = vmatpush1.msra.mxu0 0.0
    %4369 = vmatprep.subr.mxu0 0.0
    %4370 = vmatpush1.msra.mxu0 0.0
    %4371 = vmatprep.subr.mxu0 0.0
    %4372 = vmatpush1.msra.mxu0 0.0
    %4373 = vmatprep.subr.mxu0 0.0
    %4374 = vmatpush1.msra.mxu0 0.0
    %4375 = vmatprep.subr.mxu0 0.0
    %4376 = vmatpush1.msra.mxu0 0.0
    %4377 = vmatprep.subr.mxu0 0.0
    %4378 = vmatpush1.msra.mxu0 0.0
    %4379 = vmatprep.subr.mxu0 %v2832
    %4380 = vmatpush1.msra.mxu0 %v2831
    %4381 = vmatprep.subr.mxu0 %v2830
    %4382 = vmatpush1.msra.mxu0 %v2829
    %4383 = vmatprep.subr.mxu0 %v2828
    %4384 = vmatpush1.msra.mxu0 %v2827
    %4385 = vmatprep.subr.mxu0 %v2826
    %4386 = vmatpush1.msra.mxu0 %v2825
    %4387 = vmatprep.subr.mxu0 %v2824
    %4388 = vmatpush1.msra.mxu0 %v2823
    %4389 = vmatprep.subr.mxu0 %v2822
    %4390 = vmatpush1.msra.mxu0 %v2821
    %4391 = vmatprep.subr.mxu0 %v2820
    %4392 = vmatpush1.msra.mxu0 %v2819
    %4393 = vmatprep.subr.mxu0 %v2818
    %4394 = vmatpush1.msra.mxu0 %v2817
    %4395 = vmatprep.subr.mxu0 0.0
    %4396 = vmatpush2.msra.mxu0 0.0
    %4397 = vmatprep.subr.mxu0 0.0
    %4398 = vmatpush2.msra.mxu0 0.0
    %4399 = vmatprep.subr.mxu0 0.0
    %4400 = vmatpush2.msra.mxu0 0.0
    %4401 = vmatprep.subr.mxu0 0.0
    %4402 = vmatpush2.msra.mxu0 0.0
    %4403 = vmatprep.subr.mxu0 0.0
    %4404 = vmatpush2.msra.mxu0 0.0
    %4405 = vmatprep.subr.mxu0 0.0
    %4406 = vmatpush2.msra.mxu0 0.0
    %4407 = vmatprep.subr.mxu0 0.0
    %4408 = vmatpush2.msra.mxu0 0.0
    %4409 = vmatprep.subr.mxu0 0.0
    %4410 = vmatpush2.msra.mxu0 0.0
    %4411 = vmatprep.subr.mxu0 0.0
    %4412 = vmatpush2.msra.mxu0 0.0
    %4413 = vmatprep.subr.mxu0 0.0
    %4414 = vmatpush2.msra.mxu0 0.0
    %4415 = vmatprep.subr.mxu0 0.0
    %4416 = vmatpush2.msra.mxu0 0.0
    %4417 = vmatprep.subr.mxu0 0.0
    %4418 = vmatpush2.msra.mxu0 0.0
    %4419 = vmatprep.subr.mxu0 0.0
    %4420 = vmatpush2.msra.mxu0 0.0
    %4421 = vmatprep.subr.mxu0 0.0
    %4422 = vmatpush2.msra.mxu0 0.0
    %4423 = vmatprep.subr.mxu0 0.0
    %4424 = vmatpush2.msra.mxu0 0.0
    %4425 = vmatprep.subr.mxu0 0.0
    %4426 = vmatpush2.msra.mxu0 0.0
    %4427 = vmatprep.mubr.f32.mxu0 0.0
    %4428 = vmatmul.mubr.f32.gmra.mxu0 %v4361
    %v4429 = vpop.f32.mrf.mxu0
    %v4430 = vadd.f32 0.0, %v4429
    %v4431 = vpop.f32.mrf.mxu0
    %v4432 = vadd.f32 0.0, %v4431
    %4433 = vdwg.mxu0
    %v4436 = vcombine.low %v4430, %v4432
    %v4438 = vunpack.c.l.s4 1966171168
    %v4439 = vunpack.c.0.s8 %v4438
    %v4440 = vlaneseq
    %v4441 = vshrl.u32 %v4440, 7
    %v4442 = vsub.s32 %v4439, %v4441
    %v4443 = vrot.slane %v4436, %v4442
    %v4444 = vcombine.high %v4443, %v4443
    %v4446 = vunpack.c.l.s4 1966171168
    %v4447 = vunpack.c.0.s8 %v4446
    %v4448 = vlaneseq
    %v4449 = vshrl.u32 %v4448, 7
    %v4450 = vsub.s32 %v4447, %v4449
    %v4451 = vrot.slane %v4443, %v4450
    %v4453 = vunpack.c.l.s4 1966171168
    %v4454 = vunpack.c.0.s8 %v4453
    %v4455 = vlaneseq
    %v4456 = vshrl.u32 %v4455, 7
    %v4457 = vsub.s32 %v4454, %v4456
    %v4458 = vrot.slane %v4444, %v4457
    %v4461 = vadd.f32 %v4357, %v4451
    %v4462 = vadd.f32 %v4358, %v4458
    %v4463 = vtanh.pop %v4461
    %v4464 = vtanh.pop %v4462
    %v4465 = vxor.u32 %v4461, 2147483648
    %v4466 = vxor.u32 %v4462, 2147483648
    %v4467 = vmul.f32 %v4465, 1.442695
    %v4468 = vpow.pop %v4467
    %v4469 = vmul.f32 %v4466, 1.442695
    %v4470 = vpow.pop %v4469
    %v4471 = vadd.f32 %v4468, 1.0
    %v4472 = vadd.f32 %v4470, 1.0
    %v4473 = vrcp.pop %v4471
    %v4474 = vmul.f32 1.0, %v4473
    %v4475 = vrcp.pop %v4472
    %v4476 = vmul.f32 1.0, %v4475
    %v4479 = vcombine.low %v4463, %v4464
    %v4481 = vunpack.c.l.s4 1966171168
    %v4482 = vunpack.c.0.s8 %v4481
    %v4483 = vlaneseq
    %v4484 = vshrl.u32 %v4483, 7
    %v4485 = vsub.s32 %v4482, %v4484
    %v4486 = vrot.slane %v4479, %v4485
    %v4487 = vcombine.high %v4486, %v4486
    %v4489 = vunpack.c.l.s4 1966171168
    %v4490 = vunpack.c.0.s8 %v4489
    %v4491 = vlaneseq
    %v4492 = vshrl.u32 %v4491, 7
    %v4493 = vsub.s32 %v4490, %v4492
    %v4494 = vrot.slane %v4486, %v4493
    %v4496 = vunpack.c.l.s4 1966171168
    %v4497 = vunpack.c.0.s8 %v4496
    %v4498 = vlaneseq
    %v4499 = vshrl.u32 %v4498, 7
    %v4500 = vsub.s32 %v4497, %v4499
    %v4501 = vrot.slane %v4487, %v4500
    %v4506 = vcombine.low %v4474, %v4476
    %v4508 = vunpack.c.l.s4 1966171168
    %v4509 = vunpack.c.0.s8 %v4508
    %v4510 = vlaneseq
    %v4511 = vshrl.u32 %v4510, 7
    %v4512 = vsub.s32 %v4509, %v4511
    %v4513 = vrot.slane %v4506, %v4512
    %v4514 = vcombine.high %v4513, %v4513
    %v4516 = vunpack.c.l.s4 1966171168
    %v4517 = vunpack.c.0.s8 %v4516
    %v4518 = vlaneseq
    %v4519 = vshrl.u32 %v4518, 7
    %v4520 = vsub.s32 %v4517, %v4519
    %v4521 = vrot.slane %v4513, %v4520
    %v4523 = vunpack.c.l.s4 1966171168
    %v4524 = vunpack.c.0.s8 %v4523
    %v4525 = vlaneseq
    %v4526 = vshrl.u32 %v4525, 7
    %v4527 = vsub.s32 %v4524, %v4526
    %v4528 = vrot.slane %v4514, %v4527
    %v4531 = vsel %vm141, %v4494, %v4521
    %v4532 = vsel %vm142, %v4501, %v4528
    %v4533 = vmul.f32 %v4531, %v4327
    %v4534 = vmul.f32 %v4531, %v4532
    %4536 = vrot.lane.b32.xlu0 %v4534, 64
    %v4537 = vpop.permute.xlu0 %4536
    %v4539 = vadd.f32 %v4533, %v4537
    %v4540 = vtanh.pop %v4539
    %v4541 = vmul.f32 %v4532, %v4540
    %v4544 = vunpack.c.l.s4 1966171168
    %v4545 = vunpack.c.0.s8 %v4544
    %v4546 = vlaneseq
    %v4547 = vshrl.u32 %v4546, 7
    %v4548 = vsub.s32 %v4545, %v4547
    %v4549 = vrot.slane %v4541, %v4548
    %v4550 = vcombine.high %v4549, %v4549
    %v4552 = vunpack.c.l.s4 1966171168
    %v4553 = vunpack.c.0.s8 %v4552
    %v4554 = vlaneseq
    %v4555 = vshrl.u32 %v4554, 7
    %v4556 = vsub.s32 %v4553, %v4555
    %v4557 = vrot.slane %v4549, %v4556
    %v4559 = vunpack.c.l.s4 1966171168
    %v4560 = vunpack.c.0.s8 %v4559
    %v4561 = vlaneseq
    %v4562 = vshrl.u32 %v4561, 7
    %v4563 = vsub.s32 %v4560, %v4562
    %v4564 = vrot.slane %v4550, %v4563
    %4567 = vst.msk [vmem:[#allocation3] sm:$0x1] %vm1677, %v4557
    %4568 = vst.msk [vmem:[#allocation3 + $0x4] sm:$0x1] %vm1677, %v4564
    %v4569 = vld [vmem:[#allocation3] sm:$0xf]
    %v4570 = vld [vmem:[#allocation3 + $0x4] sm:$0xf]
    %v4571 = vld [vmem:[#allocation14] sm:$0x1]
    %v4573 = vlaneseq
    %v4574 = vshrl.u32 %v4573, 7
    %v4575 = vsub.s32 0, %v4574
    %v4576 = vrot.slane %v4571, %v4575
    %v4578 = vmul.f32 %v4569, %v4576
    %v4579 = vmul.f32 %v4570, %v4576
    %vm4580 = vcmask 1043456
    %v4581 = vsel %vm4580, %v4578, 0.0
    %4582 = vadd.xlane.f32.xlu0 %v4581
    %v4583 = vpop.xlane.xlu0 %4582
    %v4584 = vsel %vm4580, %v4579, 0.0
    %4585 = vadd.xlane.f32.xlu0 %v4584
    %v4586 = vpop.xlane.xlu0 %4585
    %v4587 = vld [vmem:[#allocation4] sm:$0x1]
    %v4589 = vlaneseq
    %v4590 = vshrl.u32 %v4589, 7
    %v4591 = vsub.s32 0, %v4590
    %v4592 = vrot.slane %v4587, %v4591
    %v4594 = vadd.f32 %v4583, %v4592
    %v4595 = vadd.f32 %v4586, %v4592
    %vm4596 = vcmask 3072
    %v4597 = vsel %vm4596, %v4594, -inf
    %v4598 = vrot.slane %v4597, 4
    %v4599 = vmax.f32 %v4597, %v4598
    %v4600 = vrot.slane %v4599, 2
    %v4601 = vmax.f32 %v4599, %v4600
    %v4602 = vrot.slane %v4601, 1
    %v4603 = vmax.f32 %v4601, %v4602
    %v4604 = vsel %vm4596, %v4595, -inf
    %v4605 = vrot.slane %v4604, 4
    %v4606 = vmax.f32 %v4604, %v4605
    %v4607 = vrot.slane %v4606, 2
    %v4608 = vmax.f32 %v4606, %v4607
    %v4609 = vrot.slane %v4608, 1
    %v4610 = vmax.f32 %v4608, %v4609
    %v4611 = vsub.f32 %v4594, %v4603
    %v4612 = vsub.f32 %v4595, %v4610
    %v4613 = vmul.f32 %v4611, 1.442695
    %v4614 = vpow.pop %v4613
    %v4615 = vmul.f32 %v4612, 1.442695
    %v4616 = vpow.pop %v4615
    %v4617 = vsel %vm4596, %v4614, 0.0
    %v4618 = vrot.slane %v4617, 4
    %v4619 = vadd.f32 %v4617, %v4618
    %v4620 = vrot.slane %v4619, 2
    %v4621 = vadd.f32 %v4619, %v4620
    %v4622 = vrot.slane %v4621, 1
    %v4623 = vadd.f32 %v4621, %v4622
    %v4624 = vsel %vm4596, %v4616, 0.0
    %v4625 = vrot.slane %v4624, 4
    %v4626 = vadd.f32 %v4624, %v4625
    %v4627 = vrot.slane %v4626, 2
    %v4628 = vadd.f32 %v4626, %v4627
    %v4629 = vrot.slane %v4628, 1
    %v4630 = vadd.f32 %v4628, %v4629
    %v4631 = vrcp.pop %v4623
    %v4632 = vrcp.pop %v4630
    %v4633 = vmul.f32 %v4614, %v4631
    %v4634 = vmul.f32 %v4616, %v4632
    %4636 = vset.pattern.permute.xlu0 0
    %4637 = vperm.xlu0 %4636, %v4633
    %v4638 = vpop.permute.xlu0 %4637
    %4641 = vset.pattern.permute.xlu0 0
    %4642 = vperm.xlu0 %4641, %v4634
    %v4643 = vpop.permute.xlu0 %4642
    %v4645 = vmul.f32 %v4569, %v4638
    %v4646 = vmul.f32 %v4570, %v4643
    %v4647 = vsel %vm4580, %v4645, 0.0
    %v4648 = vrot.slane %v4647, 4
    %v4649 = vadd.f32 %v4647, %v4648
    %v4650 = vrot.slane %v4649, 2
    %v4651 = vadd.f32 %v4649, %v4650
    %v4652 = vrot.slane %v4651, 1
    %v4653 = vadd.f32 %v4651, %v4652
    %v4654 = vsel %vm4580, %v4646, 0.0
    %v4655 = vrot.slane %v4654, 4
    %v4656 = vadd.f32 %v4654, %v4655
    %v4657 = vrot.slane %v4656, 2
    %v4658 = vadd.f32 %v4656, %v4657
    %v4659 = vrot.slane %v4658, 1
    %v4660 = vadd.f32 %v4658, %v4659
    %v4661 = vld [vmem:[%s11] sm:$0xff]
    %v4662 = vld [vmem:[%s11 + $0x8] sm:$0xff]
    %v4663 = vld [vmem:[%s11 + $0x10] sm:$0xff]
    %v4664 = vld [vmem:[%s11 + $0x18] sm:$0xff]
    %v4665 = vld [vmem:[%s11 + $0x20] sm:$0xff]
    %v4666 = vld [vmem:[%s11 + $0x28] sm:$0xff]
    %v4667 = vld [vmem:[%s11 + $0x30] sm:$0xff]
    %v4668 = vld [vmem:[%s11 + $0x38] sm:$0xff]
    %v4669 = vld [vmem:[%s11 + $0x40] sm:$0xff]
    %v4670 = vld [vmem:[%s11 + $0x48] sm:$0xff]
    %v4671 = vld [vmem:[%s11 + $0x50] sm:$0xff]
    %v4672 = vld [vmem:[%s11 + $0x58] sm:$0xff]
    %v4673 = vld [vmem:[%s11 + $0x60] sm:$0xff]
    %v4674 = vld [vmem:[%s11 + $0x68] sm:$0xff]
    %v4675 = vld [vmem:[%s11 + $0x70] sm:$0xff]
    %v4676 = vld [vmem:[%s11 + $0x78] sm:$0xff]
    %v4677 = vld [vmem:[#allocation16] sm:$0x1]
    %v4679 = vlaneseq
    %v4680 = vshrl.u32 %v4679, 7
    %v4681 = vsub.s32 0, %v4680
    %v4682 = vrot.slane %v4677, %v4681
    %vm4686 = vcmask 1041409
    %v4687 = vsel %vm4686, %v4660, %v4653
    %4689 = vmatprep.subr.mxu0 0.0
    %4690 = vmatpush1.msra.mxu0 %v4676
    %4691 = vmatprep.subr.mxu0 0.0
    %4692 = vmatpush1.msra.mxu0 %v4675
    %4693 = vmatprep.subr.mxu0 0.0
    %4694 = vmatpush1.msra.mxu0 %v4674
    %4695 = vmatprep.subr.mxu0 0.0
    %4696 = vmatpush1.msra.mxu0 %v4673
    %4697 = vmatprep.subr.mxu0 0.0
    %4698 = vmatpush1.msra.mxu0 %v4672
    %4699 = vmatprep.subr.mxu0 0.0
    %4700 = vmatpush1.msra.mxu0 %v4671
    %4701 = vmatprep.subr.mxu0 0.0
    %4702 = vmatpush1.msra.mxu0 %v4670
    %4703 = vmatprep.subr.mxu0 0.0
    %4704 = vmatpush1.msra.mxu0 %v4669
    %4705 = vmatprep.subr.mxu0 0.0
    %4706 = vmatpush1.msra.mxu0 %v4668
    %4707 = vmatprep.subr.mxu0 0.0
    %4708 = vmatpush1.msra.mxu0 %v4667
    %4709 = vmatprep.subr.mxu0 0.0
    %4710 = vmatpush1.msra.mxu0 %v4666
    %4711 = vmatprep.subr.mxu0 0.0
    %4712 = vmatpush1.msra.mxu0 %v4665
    %4713 = vmatprep.subr.mxu0 0.0
    %4714 = vmatpush1.msra.mxu0 %v4664
    %4715 = vmatprep.subr.mxu0 0.0
    %4716 = vmatpush1.msra.mxu0 %v4663
    %4717 = vmatprep.subr.mxu0 0.0
    %4718 = vmatpush1.msra.mxu0 %v4662
    %4719 = vmatprep.subr.mxu0 0.0
    %4720 = vmatpush1.msra.mxu0 %v4661
    %4721 = vmatprep.subr.mxu0 0.0
    %4722 = vmatpush2.msra.mxu0 0.0
    %4723 = vmatprep.subr.mxu0 0.0
    %4724 = vmatpush2.msra.mxu0 0.0
    %4725 = vmatprep.subr.mxu0 0.0
    %4726 = vmatpush2.msra.mxu0 0.0
    %4727 = vmatprep.subr.mxu0 0.0
    %4728 = vmatpush2.msra.mxu0 0.0
    %4729 = vmatprep.subr.mxu0 0.0
    %4730 = vmatpush2.msra.mxu0 0.0
    %4731 = vmatprep.subr.mxu0 0.0
    %4732 = vmatpush2.msra.mxu0 0.0
    %4733 = vmatprep.subr.mxu0 0.0
    %4734 = vmatpush2.msra.mxu0 0.0
    %4735 = vmatprep.subr.mxu0 0.0
    %4736 = vmatpush2.msra.mxu0 0.0
    %4737 = vmatprep.subr.mxu0 0.0
    %4738 = vmatpush2.msra.mxu0 0.0
    %4739 = vmatprep.subr.mxu0 0.0
    %4740 = vmatpush2.msra.mxu0 0.0
    %4741 = vmatprep.subr.mxu0 0.0
    %4742 = vmatpush2.msra.mxu0 0.0
    %4743 = vmatprep.subr.mxu0 0.0
    %4744 = vmatpush2.msra.mxu0 0.0
    %4745 = vmatprep.subr.mxu0 0.0
    %4746 = vmatpush2.msra.mxu0 0.0
    %4747 = vmatprep.subr.mxu0 0.0
    %4748 = vmatpush2.msra.mxu0 0.0
    %4749 = vmatprep.subr.mxu0 0.0
    %4750 = vmatpush2.msra.mxu0 0.0
    %4751 = vmatprep.subr.mxu0 0.0
    %4752 = vmatpush2.msra.mxu0 0.0
    %4753 = vmatprep.mubr.f32.mxu0 0.0
    %4754 = vmatmul.mubr.f32.gmra.mxu0 %v4687
    %v4755 = vpop.f32.mrf.mxu0
    %v4756 = vadd.f32 %v4682, %v4755
    %v4757 = vpop.f32.mrf.mxu0
    %4758 = vdwg.mxu0
    %vm4759 = vcmask 9216
    %4760 = vst.msk [vmem:[#allocation17] sm:$0x3] %vm4759, %v4756
    // Predicated region
    $region82: #{forward.5} parent=1 // pred_check
      _
    $region83: #{forward.5} parent=1 // pred_check_branch
      %4762 = sbr.rel (0) target = $region85
    $region84: #{forward.5} parent=1 // pred_region
      %s4764 = ssub.s32 32, 32
      %4765 = vsyncadd [#allocation7], %s4764
      %s4767 = sshll.u32 [#allocation17], 4
      %s4768 = int_to_ptr.vmem [resolvable:$true] %s4767
      %4770 = dma.vmem_to_hbm [thread:$0]  %s4768, 32, %s13, [#allocation7]
    $region85: #{forward.5} parent=1 // pred_fallthru
      _
    // Predicated region
    $region86: #{forward.5} parent=1 // pred_check
      _
    $region87: #{forward.5} parent=1 // pred_check_branch
      %4772 = sbr.rel (0) target = $region89
    $region88: #{forward.5} parent=1 // pred_region
      %4773 = dma.done [#allocation7], 32
    $region89: #{forward.5} parent=1 // pred_fallthru
      _
    %4774 = vsyncpa [#allocation6], 1
    %4775 = vsyncpa [#allocation9], 1
    %4776 = vsyncpa [#allocation12], 1
    %4777 = vsyncpa [#allocation15], 1
    %4778 = vsyncpa [#allocation7], 1

</llo_original>
